<compile_context>
chip_gen: v5e
topology: v5e:2x2
jax: 0.10.0
libtpu: 0.0.40
codegen_flags: <defaults>
</compile_context>

<pallas_src>
import functools

import jax
import jax.numpy as jnp
from jax.experimental import pallas as pl
from jax.experimental.pallas import tpu as pltpu


# ----------------------------------------------------------------------------
# Fully fused residual block kernel (NHWC, whole batch resident in VMEM).
# ----------------------------------------------------------------------------
def _residual_block_kernel(x_ref, w1_ref, w2_ref, g1_ref, b1_ref, g2_ref,
                           b2_ref, o_ref, xpad_ref, *, eps):
    # x_ref : (N, H, W, C)   f32 input
    # w*_ref: (9*C, C)       bf16 im2col-flattened conv weights (HWIO order)
    # g/b   : (1, C)         f32 BN affine params
    # o_ref : (N, H, W, C)   f32 output
    # xpad  : (N, H+2, W+2, C) f32 VMEM scratch (halo stays zero)
    N, H, W, C = x_ref.shape
    NHW = N * H * W

    # Zero once; only the interior is (re)written before each conv, so the
    # 1-pixel halo remains zero for both convolutions.
    xpad_ref[...] = jnp.zeros_like(xpad_ref)

    def conv3x3(act_nhwc, w_ref):
        # In-kernel halo handling: copy unpadded activation into the interior.
        xpad_ref[:, 1:H + 1, 1:W + 1, :] = act_nhwc
        taps = []
        for kh in range(3):
            for kw in range(3):
                taps.append(
                    xpad_ref[:, kh:kh + H, kw:kw + W, :].reshape(NHW, C))
        # One MXU contraction with K = 9*C instead of 9 tiny K=C matmuls.
        patches = jnp.concatenate(taps, axis=-1).astype(jnp.bfloat16)
        return jnp.dot(patches, w_ref[...],
                       preferred_element_type=jnp.float32)        # (NHW, C) f32

    def batchnorm(y_flat, g_ref, b_ref):
        # Training-mode BatchNorm2d: per-channel batch stats, biased variance.
        # All statistics / elementwise math in f32.
        mean = jnp.mean(y_flat, axis=0, keepdims=True)                   # (1,C)
        var = jnp.mean(jnp.square(y_flat - mean), axis=0, keepdims=True)
        scale = g_ref[...] * jax.lax.rsqrt(var + eps)                    # (1,C)
        shift = b_ref[...] - mean * scale                                # (1,C)
        return y_flat * scale + shift

    x = x_ref[...]                                                 # (N,H,W,C)

    y1 = conv3x3(x, w1_ref)                                        # conv1
    a1 = jnp.maximum(batchnorm(y1, g1_ref, b1_ref), 0.0)           # bn1 + relu

    y2 = conv3x3(a1.reshape(N, H, W, C), w2_ref)                   # conv2
    out = batchnorm(y2, g2_ref, b2_ref) + x.reshape(NHW, C)        # bn2 + res
    out = jnp.maximum(out, 0.0)                                    # relu

    o_ref[...] = out.reshape(N, H, W, C)


# ----------------------------------------------------------------------------
# Wrappers
# ----------------------------------------------------------------------------
def residual_block_nhwc(x, params, eps=1e-5):
    """x: (N, H, W, C) f32; params hold HWIO conv weights + BN affine."""
    N, H, W, C = x.shape
    # im2col weight layout: row index = (kh*3 + kw)*C + cin (plain reshape of
    # HWIO).  bf16 weights halve DMA bytes and hit the MXU fast path.
    w1 = params["w1"].reshape(9 * C, C).astype(jnp.bfloat16)
    w2 = params["w2"].reshape(9 * C, C).astype(jnp.bfloat16)
    g1 = params["gamma1"].reshape(1, C).astype(jnp.float32)
    b1 = params["beta1"].reshape(1, C).astype(jnp.float32)
    g2 = params["gamma2"].reshape(1, C).astype(jnp.float32)
    b2 = params["beta2"].reshape(1, C).astype(jnp.float32)

    vmem = pl.BlockSpec(memory_space=pltpu.MemorySpace.VMEM)
    return pl.pallas_call(
        functools.partial(_residual_block_kernel, eps=eps),
        out_shape=jax.ShapeDtypeStruct((N, H, W, C), jnp.float32),
        in_specs=[vmem] * 7,
        out_specs=vmem,
        scratch_shapes=[pltpu.VMEM((N, H + 2, W + 2, C), jnp.float32)],
    )(x.astype(jnp.float32), w1, w2, g1, b1, g2, b2)


def residual_block_nchw(x_nchw, params):
    x = jnp.transpose(x_nchw, (0, 2, 3, 1))        # NCHW -> NHWC
    out = residual_block_nhwc(x, params)
    return jnp.transpose(out, (0, 3, 1, 2))        # NHWC -> NCHW


# ----------------------------------------------------------------------------
# Pure-JAX reference (training-mode forward of the PyTorch module)
# ----------------------------------------------------------------------------
def _reference_nchw(x_nchw, params, eps=1e-5):
    x = jnp.transpose(x_nchw, (0, 2, 3, 1)).astype(jnp.float32)

    def conv(a, w):
        return jax.lax.conv_general_dilated(
            a, w, window_strides=(1, 1), padding=((1, 1), (1, 1)),
            dimension_numbers=("NHWC", "HWIO", "NHWC"),
            precision=jax.lax.Precision.HIGHEST)

    def bn(y, g, b):
        m = jnp.mean(y, axis=(0, 1, 2), keepdims=True)
        v = jnp.mean(jnp.square(y - m), axis=(0, 1, 2), keepdims=True)
        return ((y - m) * jax.lax.rsqrt(v + eps) * g.reshape(1, 1, 1, -1)
                + b.reshape(1, 1, 1, -1))

    a1 = jnp.maximum(bn(conv(x, params["w1"]),
                        params["gamma1"], params["beta1"]), 0.0)
    y2 = bn(conv(a1, params["w2"]), params["gamma2"], params["beta2"])
    out = jnp.maximum(y2 + x, 0.0)
    return jnp.transpose(out, (0, 3, 1, 2))


if __name__ == "__main__":
    key = jax.random.PRNGKey(0)
    k1, k2, k3, k4, k5, kx = jax.random.split(key, 6)

    # in_channels == out_channels (downsample=None requires matching shapes)
    N, C, H, W = 2, 8, 16, 16

    params = {
        # conv weights stored as HWIO (3, 3, Cin, Cout)
        "w1": 0.1 * jax.random.normal(k1, (3, 3, C, C), jnp.float32),
        "w2": 0.1 * jax.random.normal(k2, (3, 3, C, C), jnp.float32),
        "gamma1": 1.0 + 0.1 * jax.random.normal(k3, (C,), jnp.float32),
        "beta1": 0.1 * jax.random.normal(k4, (C,), jnp.float32),
        "gamma2": 1.0 + 0.1 * jax.random.normal(k5, (C,), jnp.float32),
        "beta2": jnp.zeros((C,), jnp.float32),
    }

    x = jax.random.normal(kx, (N, C, H, W), jnp.float32)  # PyTorch NCHW input

    fwd = jax.jit(lambda inp: residual_block_nchw(inp, params))
    out = jax.block_until_ready(fwd(x))

    assert out.shape == (N, C, H, W), out.shape
    assert out.dtype == jnp.float32
    assert bool(jnp.all(out >= 0.0))  # final ReLU

    ref = _reference_nchw(x, params)
    max_err = float(jnp.max(jnp.abs(out - ref)))
    # bf16 matmul inputs with f32 accumulation -> expect O(1e-2) deviation max.
    assert bool(jnp.allclose(out, ref, atol=5e-2, rtol=5e-2)), max_err

    print("KERNEL_OK")
</pallas_src>

<mosaic_0001>
module attributes {stable_mosaic.version = 11 : i64} {
  func.func @_residual_block_kernel(%arg0: memref<2x16x16x8xf32, #tpu.memory_space<vmem>>, %arg1: memref<72x8xbf16, #tpu.memory_space<vmem>>, %arg2: memref<72x8xbf16, #tpu.memory_space<vmem>>, %arg3: memref<1x8xf32, #tpu.memory_space<vmem>>, %arg4: memref<1x8xf32, #tpu.memory_space<vmem>>, %arg5: memref<1x8xf32, #tpu.memory_space<vmem>>, %arg6: memref<1x8xf32, #tpu.memory_space<vmem>>, %arg7: memref<2x16x16x8xf32, #tpu.memory_space<vmem>>, %arg8: memref<2x18x18x8xf32, #tpu.memory_space<vmem>>) attributes {dimension_semantics = [], scalar_prefetch = 0 : i64, scratch_operands = 1 : i64, tpu.core_type = #tpu.core_type<tc>} {
    %cst = arith.constant 0.000000e+00 : f32
    %0 = vector.broadcast %cst : f32 to vector<2x18x18x8xf32>
    %c0 = arith.constant 0 : index
    %c0_0 = arith.constant 0 : index
    %c0_1 = arith.constant 0 : index
    %c0_2 = arith.constant 0 : index
    %1 = vector.load %arg8[%c0, %c0_0, %c0_1, %c0_2] : memref<2x18x18x8xf32, #tpu.memory_space<vmem>>, vector<2x18x18x8xf32>
    tpu.vector_store %arg8[%c0, %c0_0, %c0_1, %c0_2], %0 {strides = array<i32>} : memref<2x18x18x8xf32, #tpu.memory_space<vmem>>, vector<2x18x18x8xf32>,
    %c0_3 = arith.constant 0 : index
    %c0_4 = arith.constant 0 : index
    %c0_5 = arith.constant 0 : index
    %c0_6 = arith.constant 0 : index
    %2 = vector.load %arg0[%c0_3, %c0_4, %c0_5, %c0_6] : memref<2x16x16x8xf32, #tpu.memory_space<vmem>>, vector<2x16x16x8xf32>
    %c0_7 = arith.constant 0 : index
    %c1 = arith.constant 1 : index
    %c1_8 = arith.constant 1 : index
    %c0_9 = arith.constant 0 : index
    %3 = vector.load %arg8[%c0_7, %c1, %c1_8, %c0_9] : memref<2x18x18x8xf32, #tpu.memory_space<vmem>>, vector<2x16x16x8xf32>
    tpu.vector_store %arg8[%c0_7, %c1, %c1_8, %c0_9], %2 {strides = array<i32>} : memref<2x18x18x8xf32, #tpu.memory_space<vmem>>, vector<2x16x16x8xf32>,
    %c0_10 = arith.constant 0 : index
    %c0_11 = arith.constant 0 : index
    %c0_12 = arith.constant 0 : index
    %c0_13 = arith.constant 0 : index
    %4 = vector.load %arg8[%c0_10, %c0_11, %c0_12, %c0_13] : memref<2x18x18x8xf32, #tpu.memory_space<vmem>>, vector<2x16x16x8xf32>
    %5 = vector.shape_cast %4 : vector<2x16x16x8xf32> to vector<512x8xf32>
    %c0_14 = arith.constant 0 : index
    %c0_15 = arith.constant 0 : index
    %c1_16 = arith.constant 1 : index
    %c0_17 = arith.constant 0 : index
    %6 = vector.load %arg8[%c0_14, %c0_15, %c1_16, %c0_17] : memref<2x18x18x8xf32, #tpu.memory_space<vmem>>, vector<2x16x16x8xf32>
    %7 = vector.shape_cast %6 : vector<2x16x16x8xf32> to vector<512x8xf32>
    %c0_18 = arith.constant 0 : index
    %c0_19 = arith.constant 0 : index
    %c2 = arith.constant 2 : index
    %c0_20 = arith.constant 0 : index
    %8 = vector.load %arg8[%c0_18, %c0_19, %c2, %c0_20] : memref<2x18x18x8xf32, #tpu.memory_space<vmem>>, vector<2x16x16x8xf32>
    %9 = vector.shape_cast %8 : vector<2x16x16x8xf32> to vector<512x8xf32>
    %c0_21 = arith.constant 0 : index
    %c1_22 = arith.constant 1 : index
    %c0_23 = arith.constant 0 : index
    %c0_24 = arith.constant 0 : index
    %10 = vector.load %arg8[%c0_21, %c1_22, %c0_23, %c0_24] : memref<2x18x18x8xf32, #tpu.memory_space<vmem>>, vector<2x16x16x8xf32>
    %11 = vector.shape_cast %10 : vector<2x16x16x8xf32> to vector<512x8xf32>
    %c0_25 = arith.constant 0 : index
    %c1_26 = arith.constant 1 : index
    %c1_27 = arith.constant 1 : index
    %c0_28 = arith.constant 0 : index
    %12 = vector.load %arg8[%c0_25, %c1_26, %c1_27, %c0_28] : memref<2x18x18x8xf32, #tpu.memory_space<vmem>>, vector<2x16x16x8xf32>
    %13 = vector.shape_cast %12 : vector<2x16x16x8xf32> to vector<512x8xf32>
    %c0_29 = arith.constant 0 : index
    %c1_30 = arith.constant 1 : index
    %c2_31 = arith.constant 2 : index
    %c0_32 = arith.constant 0 : index
    %14 = vector.load %arg8[%c0_29, %c1_30, %c2_31, %c0_32] : memref<2x18x18x8xf32, #tpu.memory_space<vmem>>, vector<2x16x16x8xf32>
    %15 = vector.shape_cast %14 : vector<2x16x16x8xf32> to vector<512x8xf32>
    %c0_33 = arith.constant 0 : index
    %c2_34 = arith.constant 2 : index
    %c0_35 = arith.constant 0 : index
    %c0_36 = arith.constant 0 : index
    %16 = vector.load %arg8[%c0_33, %c2_34, %c0_35, %c0_36] : memref<2x18x18x8xf32, #tpu.memory_space<vmem>>, vector<2x16x16x8xf32>
    %17 = vector.shape_cast %16 : vector<2x16x16x8xf32> to vector<512x8xf32>
    %c0_37 = arith.constant 0 : index
    %c2_38 = arith.constant 2 : index
    %c1_39 = arith.constant 1 : index
    %c0_40 = arith.constant 0 : index
    %18 = vector.load %arg8[%c0_37, %c2_38, %c1_39, %c0_40] : memref<2x18x18x8xf32, #tpu.memory_space<vmem>>, vector<2x16x16x8xf32>
    %19 = vector.shape_cast %18 : vector<2x16x16x8xf32> to vector<512x8xf32>
    %c0_41 = arith.constant 0 : index
    %c2_42 = arith.constant 2 : index
    %c2_43 = arith.constant 2 : index
    %c0_44 = arith.constant 0 : index
    %20 = vector.load %arg8[%c0_41, %c2_42, %c2_43, %c0_44] : memref<2x18x18x8xf32, #tpu.memory_space<vmem>>, vector<2x16x16x8xf32>
    %21 = vector.shape_cast %20 : vector<2x16x16x8xf32> to vector<512x8xf32>
    %22 = tpu.concatenate %5, %7, %9, %11, %13, %15, %17, %19, %21 in 1 : vector<512x8xf32>, vector<512x8xf32>, vector<512x8xf32>, vector<512x8xf32>, vector<512x8xf32>, vector<512x8xf32>, vector<512x8xf32>, vector<512x8xf32>, vector<512x8xf32> -> vector<512x72xf32>
    %23 = arith.truncf %22 : vector<512x72xf32> to vector<512x72xbf16>
    %c0_45 = arith.constant 0 : index
    %c0_46 = arith.constant 0 : index
    %24 = vector.load %arg1[%c0_45, %c0_46] : memref<72x8xbf16, #tpu.memory_space<vmem>>, vector<72x8xbf16>
    %cst_47 = arith.constant dense<0.000000e+00> : vector<512x8xf32>
    %25 = tpu.matmul %23, %24, %cst_47 {dimension_numbers = #tpu.dot_dimension_numbers<[1], [0], [0], [1], [0, 0, 1, 1], [], []>} : vector<512x72xbf16>, vector<72x8xbf16>, vector<512x8xf32> -> vector<512x8xf32>
    %cst_48 = arith.constant dense<0.000000e+00> : vector<8xf32>
    %26 = vector.multi_reduction <add>, %25, %cst_48 [0] : vector<512x8xf32> to vector<8xf32>
    %27 = vector.shape_cast %26 : vector<8xf32> to vector<1x8xf32>
    %cst_49 = arith.constant 5.120000e+02 : f32
    %28 = vector.broadcast %cst_49 : f32 to vector<1x8xf32>
    %29 = arith.divf %27, %28 : vector<1x8xf32>
    %30 = vector.broadcast %29 : vector<1x8xf32> to vector<512x8xf32>
    %31 = arith.subf %25, %30 : vector<512x8xf32>
    %32 = arith.mulf %31, %31 : vector<512x8xf32>
    %cst_50 = arith.constant dense<0.000000e+00> : vector<8xf32>
    %33 = vector.multi_reduction <add>, %32, %cst_50 [0] : vector<512x8xf32> to vector<8xf32>
    %34 = vector.shape_cast %33 : vector<8xf32> to vector<1x8xf32>
    %cst_51 = arith.constant 5.120000e+02 : f32
    %35 = vector.broadcast %cst_51 : f32 to vector<1x8xf32>
    %36 = arith.divf %34, %35 : vector<1x8xf32>
    %c0_52 = arith.constant 0 : index
    %c0_53 = arith.constant 0 : index
    %37 = vector.load %arg3[%c0_52, %c0_53] : memref<1x8xf32, #tpu.memory_space<vmem>>, vector<1x8xf32>
    %cst_54 = arith.constant 9.99999974E-6 : f32
    %38 = vector.broadcast %cst_54 : f32 to vector<1x8xf32>
    %39 = arith.addf %36, %38 : vector<1x8xf32>
    %40 = math.rsqrt %39 : vector<1x8xf32>
    %41 = arith.mulf %37, %40 : vector<1x8xf32>
    %c0_55 = arith.constant 0 : index
    %c0_56 = arith.constant 0 : index
    %42 = vector.load %arg4[%c0_55, %c0_56] : memref<1x8xf32, #tpu.memory_space<vmem>>, vector<1x8xf32>
    %43 = arith.mulf %29, %41 : vector<1x8xf32>
    %44 = arith.subf %42, %43 : vector<1x8xf32>
    %45 = vector.broadcast %41 : vector<1x8xf32> to vector<512x8xf32>
    %46 = arith.mulf %25, %45 : vector<512x8xf32>
    %47 = vector.broadcast %44 : vector<1x8xf32> to vector<512x8xf32>
    %48 = arith.addf %46, %47 : vector<512x8xf32>
    %cst_57 = arith.constant 0.000000e+00 : f32
    %49 = vector.broadcast %cst_57 : f32 to vector<512x8xf32>
    %50 = arith.maximumf %48, %49 : vector<512x8xf32>
    %51 = vector.shape_cast %50 : vector<512x8xf32> to vector<2x16x16x8xf32>
    %c0_58 = arith.constant 0 : index
    %c1_59 = arith.constant 1 : index
    %c1_60 = arith.constant 1 : index
    %c0_61 = arith.constant 0 : index
    %52 = vector.load %arg8[%c0_58, %c1_59, %c1_60, %c0_61] : memref<2x18x18x8xf32, #tpu.memory_space<vmem>>, vector<2x16x16x8xf32>
    tpu.vector_store %arg8[%c0_58, %c1_59, %c1_60, %c0_61], %51 {strides = array<i32>} : memref<2x18x18x8xf32, #tpu.memory_space<vmem>>, vector<2x16x16x8xf32>,
    %c0_62 = arith.constant 0 : index
    %c0_63 = arith.constant 0 : index
    %c0_64 = arith.constant 0 : index
    %c0_65 = arith.constant 0 : index
    %53 = vector.load %arg8[%c0_62, %c0_63, %c0_64, %c0_65] : memref<2x18x18x8xf32, #tpu.memory_space<vmem>>, vector<2x16x16x8xf32>
    %54 = vector.shape_cast %53 : vector<2x16x16x8xf32> to vector<512x8xf32>
    %c0_66 = arith.constant 0 : index
    %c0_67 = arith.constant 0 : index
    %c1_68 = arith.constant 1 : index
    %c0_69 = arith.constant 0 : index
    %55 = vector.load %arg8[%c0_66, %c0_67, %c1_68, %c0_69] : memref<2x18x18x8xf32, #tpu.memory_space<vmem>>, vector<2x16x16x8xf32>
    %56 = vector.shape_cast %55 : vector<2x16x16x8xf32> to vector<512x8xf32>
    %c0_70 = arith.constant 0 : index
    %c0_71 = arith.constant 0 : index
    %c2_72 = arith.constant 2 : index
    %c0_73 = arith.constant 0 : index
    %57 = vector.load %arg8[%c0_70, %c0_71, %c2_72, %c0_73] : memref<2x18x18x8xf32, #tpu.memory_space<vmem>>, vector<2x16x16x8xf32>
    %58 = vector.shape_cast %57 : vector<2x16x16x8xf32> to vector<512x8xf32>
    %c0_74 = arith.constant 0 : index
    %c1_75 = arith.constant 1 : index
    %c0_76 = arith.constant 0 : index
    %c0_77 = arith.constant 0 : index
    %59 = vector.load %arg8[%c0_74, %c1_75, %c0_76, %c0_77] : memref<2x18x18x8xf32, #tpu.memory_space<vmem>>, vector<2x16x16x8xf32>
    %60 = vector.shape_cast %59 : vector<2x16x16x8xf32> to vector<512x8xf32>
    %c0_78 = arith.constant 0 : index
    %c1_79 = arith.constant 1 : index
    %c1_80 = arith.constant 1 : index
    %c0_81 = arith.constant 0 : index
    %61 = vector.load %arg8[%c0_78, %c1_79, %c1_80, %c0_81] : memref<2x18x18x8xf32, #tpu.memory_space<vmem>>, vector<2x16x16x8xf32>
    %62 = vector.shape_cast %61 : vector<2x16x16x8xf32> to vector<512x8xf32>
    %c0_82 = arith.constant 0 : index
    %c1_83 = arith.constant 1 : index
    %c2_84 = arith.constant 2 : index
    %c0_85 = arith.constant 0 : index
    %63 = vector.load %arg8[%c0_82, %c1_83, %c2_84, %c0_85] : memref<2x18x18x8xf32, #tpu.memory_space<vmem>>, vector<2x16x16x8xf32>
    %64 = vector.shape_cast %63 : vector<2x16x16x8xf32> to vector<512x8xf32>
    %c0_86 = arith.constant 0 : index
    %c2_87 = arith.constant 2 : index
    %c0_88 = arith.constant 0 : index
    %c0_89 = arith.constant 0 : index
    %65 = vector.load %arg8[%c0_86, %c2_87, %c0_88, %c0_89] : memref<2x18x18x8xf32, #tpu.memory_space<vmem>>, vector<2x16x16x8xf32>
    %66 = vector.shape_cast %65 : vector<2x16x16x8xf32> to vector<512x8xf32>
    %c0_90 = arith.constant 0 : index
    %c2_91 = arith.constant 2 : index
    %c1_92 = arith.constant 1 : index
    %c0_93 = arith.constant 0 : index
    %67 = vector.load %arg8[%c0_90, %c2_91, %c1_92, %c0_93] : memref<2x18x18x8xf32, #tpu.memory_space<vmem>>, vector<2x16x16x8xf32>
    %68 = vector.shape_cast %67 : vector<2x16x16x8xf32> to vector<512x8xf32>
    %c0_94 = arith.constant 0 : index
    %c2_95 = arith.constant 2 : index
    %c2_96 = arith.constant 2 : index
    %c0_97 = arith.constant 0 : index
    %69 = vector.load %arg8[%c0_94, %c2_95, %c2_96, %c0_97] : memref<2x18x18x8xf32, #tpu.memory_space<vmem>>, vector<2x16x16x8xf32>
    %70 = vector.shape_cast %69 : vector<2x16x16x8xf32> to vector<512x8xf32>
    %71 = tpu.concatenate %54, %56, %58, %60, %62, %64, %66, %68, %70 in 1 : vector<512x8xf32>, vector<512x8xf32>, vector<512x8xf32>, vector<512x8xf32>, vector<512x8xf32>, vector<512x8xf32>, vector<512x8xf32>, vector<512x8xf32>, vector<512x8xf32> -> vector<512x72xf32>
    %72 = arith.truncf %71 : vector<512x72xf32> to vector<512x72xbf16>
    %c0_98 = arith.constant 0 : index
    %c0_99 = arith.constant 0 : index
    %73 = vector.load %arg2[%c0_98, %c0_99] : memref<72x8xbf16, #tpu.memory_space<vmem>>, vector<72x8xbf16>
    %cst_100 = arith.constant dense<0.000000e+00> : vector<512x8xf32>
    %74 = tpu.matmul %72, %73, %cst_100 {dimension_numbers = #tpu.dot_dimension_numbers<[1], [0], [0], [1], [0, 0, 1, 1], [], []>} : vector<512x72xbf16>, vector<72x8xbf16>, vector<512x8xf32> -> vector<512x8xf32>
    %cst_101 = arith.constant dense<0.000000e+00> : vector<8xf32>
    %75 = vector.multi_reduction <add>, %74, %cst_101 [0] : vector<512x8xf32> to vector<8xf32>
    %76 = vector.shape_cast %75 : vector<8xf32> to vector<1x8xf32>
    %cst_102 = arith.constant 5.120000e+02 : f32
    %77 = vector.broadcast %cst_102 : f32 to vector<1x8xf32>
    %78 = arith.divf %76, %77 : vector<1x8xf32>
    %79 = vector.broadcast %78 : vector<1x8xf32> to vector<512x8xf32>
    %80 = arith.subf %74, %79 : vector<512x8xf32>
    %81 = arith.mulf %80, %80 : vector<512x8xf32>
    %cst_103 = arith.constant dense<0.000000e+00> : vector<8xf32>
    %82 = vector.multi_reduction <add>, %81, %cst_103 [0] : vector<512x8xf32> to vector<8xf32>
    %83 = vector.shape_cast %82 : vector<8xf32> to vector<1x8xf32>
    %cst_104 = arith.constant 5.120000e+02 : f32
    %84 = vector.broadcast %cst_104 : f32 to vector<1x8xf32>
    %85 = arith.divf %83, %84 : vector<1x8xf32>
    %c0_105 = arith.constant 0 : index
    %c0_106 = arith.constant 0 : index
    %86 = vector.load %arg5[%c0_105, %c0_106] : memref<1x8xf32, #tpu.memory_space<vmem>>, vector<1x8xf32>
    %cst_107 = arith.constant 9.99999974E-6 : f32
    %87 = vector.broadcast %cst_107 : f32 to vector<1x8xf32>
    %88 = arith.addf %85, %87 : vector<1x8xf32>
    %89 = math.rsqrt %88 : vector<1x8xf32>
    %90 = arith.mulf %86, %89 : vector<1x8xf32>
    %c0_108 = arith.constant 0 : index
    %c0_109 = arith.constant 0 : index
    %91 = vector.load %arg6[%c0_108, %c0_109] : memref<1x8xf32, #tpu.memory_space<vmem>>, vector<1x8xf32>
    %92 = arith.mulf %78, %90 : vector<1x8xf32>
    %93 = arith.subf %91, %92 : vector<1x8xf32>
    %94 = vector.broadcast %90 : vector<1x8xf32> to vector<512x8xf32>
    %95 = arith.mulf %74, %94 : vector<512x8xf32>
    %96 = vector.broadcast %93 : vector<1x8xf32> to vector<512x8xf32>
    %97 = arith.addf %95, %96 : vector<512x8xf32>
    %98 = vector.shape_cast %2 : vector<2x16x16x8xf32> to vector<512x8xf32>
    %99 = arith.addf %97, %98 : vector<512x8xf32>
    %cst_110 = arith.constant 0.000000e+00 : f32
    %100 = vector.broadcast %cst_110 : f32 to vector<512x8xf32>
    %101 = arith.maximumf %99, %100 : vector<512x8xf32>
    %102 = vector.shape_cast %101 : vector<512x8xf32> to vector<2x16x16x8xf32>
    %c0_111 = arith.constant 0 : index
    %c0_112 = arith.constant 0 : index
    %c0_113 = arith.constant 0 : index
    %c0_114 = arith.constant 0 : index
    %103 = vector.load %arg7[%c0_111, %c0_112, %c0_113, %c0_114] : memref<2x16x16x8xf32, #tpu.memory_space<vmem>>, vector<2x16x16x8xf32>
    tpu.vector_store %arg7[%c0_111, %c0_112, %c0_113, %c0_114], %102 {strides = array<i32>} : memref<2x16x16x8xf32, #tpu.memory_space<vmem>>, vector<2x16x16x8xf32>,
    return
  }
}

</mosaic_0001>

<llo_original>
// kernel: _lambda_.1
$region0: #{_lambda_.1}
  #allocation0 [shape = 'u32[]', space=smem, size = 0x4, offset = 0x4, fixed_abs, tag = 'smem constant byte address 0x4 - core index']
  #allocation1 [shape = 'u32[72,128]{1,0:T(1,128)}', space=vmem, size = 0x9000, scoped, tag = 'internal scratch']
  #allocation2 [shape = 'f32[2,18,18,8]{3,2,1,0:T(8,128)}', space=vmem, size = 0x6c000, scoped, tag = 'scratch operand']
  %s0 = inlined_call_operand.vmem [shape: f32[2,16,16,8], index: 0, kind: input, shape index: {}]
  %s1 = inlined_call_operand.vmem [shape: bf16[72,8], index: 1, kind: input, shape index: {}]
  %s2 = inlined_call_operand.vmem [shape: bf16[72,8], index: 2, kind: input, shape index: {}]
  %s3 = inlined_call_operand.vmem [shape: f32[1,8], index: 3, kind: input, shape index: {}]
  %s4 = inlined_call_operand.vmem [shape: f32[1,8], index: 4, kind: input, shape index: {}]
  %s5 = inlined_call_operand.vmem [shape: f32[1,8], index: 5, kind: input, shape index: {}]
  %s6 = inlined_call_operand.vmem [shape: f32[1,8], index: 6, kind: input, shape index: {}]
  %s7 = inlined_call_operand.vmem [shape: f32[2,16,16,8], index: 7, kind: output, shape index: {}]
  %s8 = sld [smem:[#allocation0]]
  $region38: #{_lambda_.1} parent=0
    _
  %s10 = ssub.s32 1, %s8
  %s11 = scalar_select 0, %s10, %s8
  // Predicated region
  $region2: #{_lambda_.1} parent=0 // pred_check
    _
  $region3: #{_lambda_.1} parent=0 // pred_check_branch
    %13 = sbr.rel (0) target = $region5
  $region4: #{_lambda_.1} parent=0 // pred_region
    _
  $region5: #{_lambda_.1} parent=0 // pred_fallthru
    _
  // Predicated region
  $region6: #{_lambda_.1} parent=0 // pred_check
    _
  $region7: #{_lambda_.1} parent=0 // pred_check_branch
    %15 = sbr.rel (0) target = $region9
  $region8: #{_lambda_.1} parent=0 // pred_region
    _
  $region9: #{_lambda_.1} parent=0 // pred_fallthru
    _
  // Predicated region
  $region10: #{_lambda_.1} parent=0 // pred_check
    _
  $region11: #{_lambda_.1} parent=0 // pred_check_branch
    %17 = sbr.rel (0) target = $region13
  $region12: #{_lambda_.1} parent=0 // pred_region
    _
  $region13: #{_lambda_.1} parent=0 // pred_fallthru
    _
  // Predicated region
  $region14: #{_lambda_.1} parent=0 // pred_check
    _
  $region15: #{_lambda_.1} parent=0 // pred_check_branch
    %19 = sbr.rel (0) target = $region17
  $region16: #{_lambda_.1} parent=0 // pred_region
    _
  $region17: #{_lambda_.1} parent=0 // pred_fallthru
    _
  // Predicated region
  $region18: #{_lambda_.1} parent=0 // pred_check
    _
  $region19: #{_lambda_.1} parent=0 // pred_check_branch
    %21 = sbr.rel (0) target = $region21
  $region20: #{_lambda_.1} parent=0 // pred_region
    _
  $region21: #{_lambda_.1} parent=0 // pred_fallthru
    _
  // Predicated region
  $region22: #{_lambda_.1} parent=0 // pred_check
    _
  $region23: #{_lambda_.1} parent=0 // pred_check_branch
    %23 = sbr.rel (0) target = $region25
  $region24: #{_lambda_.1} parent=0 // pred_region
    _
  $region25: #{_lambda_.1} parent=0 // pred_fallthru
    _
  // Predicated region
  $region26: #{_lambda_.1} parent=0 // pred_check
    _
  $region27: #{_lambda_.1} parent=0 // pred_check_branch
    %25 = sbr.rel (0) target = $region29
  $region28: #{_lambda_.1} parent=0 // pred_region
    _
  $region29: #{_lambda_.1} parent=0 // pred_fallthru
    _
  %vm27 = vcmask 64512
  %28 = vst.msk [vmem:[#allocation2] sm:$0xff] %vm27, 0.0
  %29 = vst.msk [vmem:[#allocation2 + $0x8] sm:$0xff] %vm27, 0.0
  %vm30 = vcmask 58368
  %31 = vst.msk [vmem:[#allocation2 + $0x10] sm:$0x3] %vm30, 0.0
  %32 = vst.msk [vmem:[#allocation2 + $0x18] sm:$0xff] %vm27, 0.0
  %33 = vst.msk [vmem:[#allocation2 + $0x20] sm:$0xff] %vm27, 0.0
  %34 = vst.msk [vmem:[#allocation2 + $0x28] sm:$0x3] %vm30, 0.0
  %35 = vst.msk [vmem:[#allocation2 + $0x30] sm:$0xff] %vm27, 0.0
  %36 = vst.msk [vmem:[#allocation2 + $0x38] sm:$0xff] %vm27, 0.0
  %37 = vst.msk [vmem:[#allocation2 + $0x40] sm:$0x3] %vm30, 0.0
  %38 = vst.msk [vmem:[#allocation2 + $0x48] sm:$0xff] %vm27, 0.0
  %39 = vst.msk [vmem:[#allocation2 + $0x50] sm:$0xff] %vm27, 0.0
  %40 = vst.msk [vmem:[#allocation2 + $0x58] sm:$0x3] %vm30, 0.0
  %41 = vst.msk [vmem:[#allocation2 + $0x60] sm:$0xff] %vm27, 0.0
  %42 = vst.msk [vmem:[#allocation2 + $0x68] sm:$0xff] %vm27, 0.0
  %43 = vst.msk [vmem:[#allocation2 + $0x70] sm:$0x3] %vm30, 0.0
  %44 = vst.msk [vmem:[#allocation2 + $0x78] sm:$0xff] %vm27, 0.0
  %45 = vst.msk [vmem:[#allocation2 + $0x80] sm:$0xff] %vm27, 0.0
  %46 = vst.msk [vmem:[#allocation2 + $0x88] sm:$0x3] %vm30, 0.0
  %47 = vst.msk [vmem:[#allocation2 + $0x90] sm:$0xff] %vm27, 0.0
  %48 = vst.msk [vmem:[#allocation2 + $0x98] sm:$0xff] %vm27, 0.0
  %49 = vst.msk [vmem:[#allocation2 + $0xa0] sm:$0x3] %vm30, 0.0
  %50 = vst.msk [vmem:[#allocation2 + $0xa8] sm:$0xff] %vm27, 0.0
  %51 = vst.msk [vmem:[#allocation2 + $0xb0] sm:$0xff] %vm27, 0.0
  %52 = vst.msk [vmem:[#allocation2 + $0xb8] sm:$0x3] %vm30, 0.0
  %53 = vst.msk [vmem:[#allocation2 + $0xc0] sm:$0xff] %vm27, 0.0
  %54 = vst.msk [vmem:[#allocation2 + $0xc8] sm:$0xff] %vm27, 0.0
  %55 = vst.msk [vmem:[#allocation2 + $0xd0] sm:$0x3] %vm30, 0.0
  %56 = vst.msk [vmem:[#allocation2 + $0xd8] sm:$0xff] %vm27, 0.0
  %57 = vst.msk [vmem:[#allocation2 + $0xe0] sm:$0xff] %vm27, 0.0
  %58 = vst.msk [vmem:[#allocation2 + $0xe8] sm:$0x3] %vm30, 0.0
  %59 = vst.msk [vmem:[#allocation2 + $0xf0] sm:$0xff] %vm27, 0.0
  %60 = vst.msk [vmem:[#allocation2 + $0xf8] sm:$0xff] %vm27, 0.0
  %61 = vst.msk [vmem:[#allocation2 + $0x100] sm:$0x3] %vm30, 0.0
  %62 = vst.msk [vmem:[#allocation2 + $0x108] sm:$0xff] %vm27, 0.0
  %63 = vst.msk [vmem:[#allocation2 + $0x110] sm:$0xff] %vm27, 0.0
  %64 = vst.msk [vmem:[#allocation2 + $0x118] sm:$0x3] %vm30, 0.0
  %65 = vst.msk [vmem:[#allocation2 + $0x120] sm:$0xff] %vm27, 0.0
  %66 = vst.msk [vmem:[#allocation2 + $0x128] sm:$0xff] %vm27, 0.0
  %67 = vst.msk [vmem:[#allocation2 + $0x130] sm:$0x3] %vm30, 0.0
  %68 = vst.msk [vmem:[#allocation2 + $0x138] sm:$0xff] %vm27, 0.0
  %69 = vst.msk [vmem:[#allocation2 + $0x140] sm:$0xff] %vm27, 0.0
  %70 = vst.msk [vmem:[#allocation2 + $0x148] sm:$0x3] %vm30, 0.0
  %71 = vst.msk [vmem:[#allocation2 + $0x150] sm:$0xff] %vm27, 0.0
  %72 = vst.msk [vmem:[#allocation2 + $0x158] sm:$0xff] %vm27, 0.0
  %73 = vst.msk [vmem:[#allocation2 + $0x160] sm:$0x3] %vm30, 0.0
  %74 = vst.msk [vmem:[#allocation2 + $0x168] sm:$0xff] %vm27, 0.0
  %75 = vst.msk [vmem:[#allocation2 + $0x170] sm:$0xff] %vm27, 0.0
  %76 = vst.msk [vmem:[#allocation2 + $0x178] sm:$0x3] %vm30, 0.0
  %77 = vst.msk [vmem:[#allocation2 + $0x180] sm:$0xff] %vm27, 0.0
  %78 = vst.msk [vmem:[#allocation2 + $0x188] sm:$0xff] %vm27, 0.0
  %79 = vst.msk [vmem:[#allocation2 + $0x190] sm:$0x3] %vm30, 0.0
  %80 = vst.msk [vmem:[#allocation2 + $0x198] sm:$0xff] %vm27, 0.0
  %81 = vst.msk [vmem:[#allocation2 + $0x1a0] sm:$0xff] %vm27, 0.0
  %82 = vst.msk [vmem:[#allocation2 + $0x1a8] sm:$0x3] %vm30, 0.0
  %83 = vst.msk [vmem:[#allocation2 + $0x1b0] sm:$0xff] %vm27, 0.0
  %84 = vst.msk [vmem:[#allocation2 + $0x1b8] sm:$0xff] %vm27, 0.0
  %85 = vst.msk [vmem:[#allocation2 + $0x1c0] sm:$0x3] %vm30, 0.0
  %86 = vst.msk [vmem:[#allocation2 + $0x1c8] sm:$0xff] %vm27, 0.0
  %87 = vst.msk [vmem:[#allocation2 + $0x1d0] sm:$0xff] %vm27, 0.0
  %88 = vst.msk [vmem:[#allocation2 + $0x1d8] sm:$0x3] %vm30, 0.0
  %89 = vst.msk [vmem:[#allocation2 + $0x1e0] sm:$0xff] %vm27, 0.0
  %90 = vst.msk [vmem:[#allocation2 + $0x1e8] sm:$0xff] %vm27, 0.0
  %91 = vst.msk [vmem:[#allocation2 + $0x1f0] sm:$0x3] %vm30, 0.0
  %92 = vst.msk [vmem:[#allocation2 + $0x1f8] sm:$0xff] %vm27, 0.0
  %93 = vst.msk [vmem:[#allocation2 + $0x200] sm:$0xff] %vm27, 0.0
  %94 = vst.msk [vmem:[#allocation2 + $0x208] sm:$0x3] %vm30, 0.0
  %95 = vst.msk [vmem:[#allocation2 + $0x210] sm:$0xff] %vm27, 0.0
  %96 = vst.msk [vmem:[#allocation2 + $0x218] sm:$0xff] %vm27, 0.0
  %97 = vst.msk [vmem:[#allocation2 + $0x220] sm:$0x3] %vm30, 0.0
  %98 = vst.msk [vmem:[#allocation2 + $0x228] sm:$0xff] %vm27, 0.0
  %99 = vst.msk [vmem:[#allocation2 + $0x230] sm:$0xff] %vm27, 0.0
  %100 = vst.msk [vmem:[#allocation2 + $0x238] sm:$0x3] %vm30, 0.0
  %101 = vst.msk [vmem:[#allocation2 + $0x240] sm:$0xff] %vm27, 0.0
  %102 = vst.msk [vmem:[#allocation2 + $0x248] sm:$0xff] %vm27, 0.0
  %103 = vst.msk [vmem:[#allocation2 + $0x250] sm:$0x3] %vm30, 0.0
  %104 = vst.msk [vmem:[#allocation2 + $0x258] sm:$0xff] %vm27, 0.0
  %105 = vst.msk [vmem:[#allocation2 + $0x260] sm:$0xff] %vm27, 0.0
  %106 = vst.msk [vmem:[#allocation2 + $0x268] sm:$0x3] %vm30, 0.0
  %107 = vst.msk [vmem:[#allocation2 + $0x270] sm:$0xff] %vm27, 0.0
  %108 = vst.msk [vmem:[#allocation2 + $0x278] sm:$0xff] %vm27, 0.0
  %109 = vst.msk [vmem:[#allocation2 + $0x280] sm:$0x3] %vm30, 0.0
  %110 = vst.msk [vmem:[#allocation2 + $0x288] sm:$0xff] %vm27, 0.0
  %111 = vst.msk [vmem:[#allocation2 + $0x290] sm:$0xff] %vm27, 0.0
  %112 = vst.msk [vmem:[#allocation2 + $0x298] sm:$0x3] %vm30, 0.0
  %113 = vst.msk [vmem:[#allocation2 + $0x2a0] sm:$0xff] %vm27, 0.0
  %114 = vst.msk [vmem:[#allocation2 + $0x2a8] sm:$0xff] %vm27, 0.0
  %115 = vst.msk [vmem:[#allocation2 + $0x2b0] sm:$0x3] %vm30, 0.0
  %116 = vst.msk [vmem:[#allocation2 + $0x2b8] sm:$0xff] %vm27, 0.0
  %117 = vst.msk [vmem:[#allocation2 + $0x2c0] sm:$0xff] %vm27, 0.0
  %118 = vst.msk [vmem:[#allocation2 + $0x2c8] sm:$0x3] %vm30, 0.0
  %119 = vst.msk [vmem:[#allocation2 + $0x2d0] sm:$0xff] %vm27, 0.0
  %120 = vst.msk [vmem:[#allocation2 + $0x2d8] sm:$0xff] %vm27, 0.0
  %121 = vst.msk [vmem:[#allocation2 + $0x2e0] sm:$0x3] %vm30, 0.0
  %122 = vst.msk [vmem:[#allocation2 + $0x2e8] sm:$0xff] %vm27, 0.0
  %123 = vst.msk [vmem:[#allocation2 + $0x2f0] sm:$0xff] %vm27, 0.0
  %124 = vst.msk [vmem:[#allocation2 + $0x2f8] sm:$0x3] %vm30, 0.0
  %125 = vst.msk [vmem:[#allocation2 + $0x300] sm:$0xff] %vm27, 0.0
  %126 = vst.msk [vmem:[#allocation2 + $0x308] sm:$0xff] %vm27, 0.0
  %127 = vst.msk [vmem:[#allocation2 + $0x310] sm:$0x3] %vm30, 0.0
  %128 = vst.msk [vmem:[#allocation2 + $0x318] sm:$0xff] %vm27, 0.0
  %129 = vst.msk [vmem:[#allocation2 + $0x320] sm:$0xff] %vm27, 0.0
  %130 = vst.msk [vmem:[#allocation2 + $0x328] sm:$0x3] %vm30, 0.0
  %131 = vst.msk [vmem:[#allocation2 + $0x330] sm:$0xff] %vm27, 0.0
  %132 = vst.msk [vmem:[#allocation2 + $0x338] sm:$0xff] %vm27, 0.0
  %133 = vst.msk [vmem:[#allocation2 + $0x340] sm:$0x3] %vm30, 0.0
  %134 = vst.msk [vmem:[#allocation2 + $0x348] sm:$0xff] %vm27, 0.0
  %135 = vst.msk [vmem:[#allocation2 + $0x350] sm:$0xff] %vm27, 0.0
  %136 = vst.msk [vmem:[#allocation2 + $0x358] sm:$0x3] %vm30, 0.0
  %v137 = vld [vmem:[%s0] sm:$0xff]
  %v138 = vld [vmem:[%s0 + $0x8] sm:$0xff]
  %v139 = vld [vmem:[%s0 + $0x10] sm:$0xff]
  %v140 = vld [vmem:[%s0 + $0x18] sm:$0xff]
  %v141 = vld [vmem:[%s0 + $0x20] sm:$0xff]
  %v142 = vld [vmem:[%s0 + $0x28] sm:$0xff]
  %v143 = vld [vmem:[%s0 + $0x30] sm:$0xff]
  %v144 = vld [vmem:[%s0 + $0x38] sm:$0xff]
  %v145 = vld [vmem:[%s0 + $0x40] sm:$0xff]
  %v146 = vld [vmem:[%s0 + $0x48] sm:$0xff]
  %v147 = vld [vmem:[%s0 + $0x50] sm:$0xff]
  %v148 = vld [vmem:[%s0 + $0x58] sm:$0xff]
  %v149 = vld [vmem:[%s0 + $0x60] sm:$0xff]
  %v150 = vld [vmem:[%s0 + $0x68] sm:$0xff]
  %v151 = vld [vmem:[%s0 + $0x70] sm:$0xff]
  %v152 = vld [vmem:[%s0 + $0x78] sm:$0xff]
  %v153 = vld [vmem:[%s0 + $0x80] sm:$0xff]
  %v154 = vld [vmem:[%s0 + $0x88] sm:$0xff]
  %v155 = vld [vmem:[%s0 + $0x90] sm:$0xff]
  %v156 = vld [vmem:[%s0 + $0x98] sm:$0xff]
  %v157 = vld [vmem:[%s0 + $0xa0] sm:$0xff]
  %v158 = vld [vmem:[%s0 + $0xa8] sm:$0xff]
  %v159 = vld [vmem:[%s0 + $0xb0] sm:$0xff]
  %v160 = vld [vmem:[%s0 + $0xb8] sm:$0xff]
  %v161 = vld [vmem:[%s0 + $0xc0] sm:$0xff]
  %v162 = vld [vmem:[%s0 + $0xc8] sm:$0xff]
  %v163 = vld [vmem:[%s0 + $0xd0] sm:$0xff]
  %v164 = vld [vmem:[%s0 + $0xd8] sm:$0xff]
  %v165 = vld [vmem:[%s0 + $0xe0] sm:$0xff]
  %v166 = vld [vmem:[%s0 + $0xe8] sm:$0xff]
  %v167 = vld [vmem:[%s0 + $0xf0] sm:$0xff]
  %v168 = vld [vmem:[%s0 + $0xf8] sm:$0xff]
  %v169 = vld [vmem:[%s0 + $0x100] sm:$0xff]
  %v170 = vld [vmem:[%s0 + $0x108] sm:$0xff]
  %v171 = vld [vmem:[%s0 + $0x110] sm:$0xff]
  %v172 = vld [vmem:[%s0 + $0x118] sm:$0xff]
  %v173 = vld [vmem:[%s0 + $0x120] sm:$0xff]
  %v174 = vld [vmem:[%s0 + $0x128] sm:$0xff]
  %v175 = vld [vmem:[%s0 + $0x130] sm:$0xff]
  %v176 = vld [vmem:[%s0 + $0x138] sm:$0xff]
  %v177 = vld [vmem:[%s0 + $0x140] sm:$0xff]
  %v178 = vld [vmem:[%s0 + $0x148] sm:$0xff]
  %v179 = vld [vmem:[%s0 + $0x150] sm:$0xff]
  %v180 = vld [vmem:[%s0 + $0x158] sm:$0xff]
  %v181 = vld [vmem:[%s0 + $0x160] sm:$0xff]
  %v182 = vld [vmem:[%s0 + $0x168] sm:$0xff]
  %v183 = vld [vmem:[%s0 + $0x170] sm:$0xff]
  %v184 = vld [vmem:[%s0 + $0x178] sm:$0xff]
  %v185 = vld [vmem:[%s0 + $0x180] sm:$0xff]
  %v186 = vld [vmem:[%s0 + $0x188] sm:$0xff]
  %v187 = vld [vmem:[%s0 + $0x190] sm:$0xff]
  %v188 = vld [vmem:[%s0 + $0x198] sm:$0xff]
  %v189 = vld [vmem:[%s0 + $0x1a0] sm:$0xff]
  %v190 = vld [vmem:[%s0 + $0x1a8] sm:$0xff]
  %v191 = vld [vmem:[%s0 + $0x1b0] sm:$0xff]
  %v192 = vld [vmem:[%s0 + $0x1b8] sm:$0xff]
  %v193 = vld [vmem:[%s0 + $0x1c0] sm:$0xff]
  %v194 = vld [vmem:[%s0 + $0x1c8] sm:$0xff]
  %v195 = vld [vmem:[%s0 + $0x1d0] sm:$0xff]
  %v196 = vld [vmem:[%s0 + $0x1d8] sm:$0xff]
  %v197 = vld [vmem:[%s0 + $0x1e0] sm:$0xff]
  %v198 = vld [vmem:[%s0 + $0x1e8] sm:$0xff]
  %v199 = vld [vmem:[%s0 + $0x1f0] sm:$0xff]
  %v200 = vld [vmem:[%s0 + $0x1f8] sm:$0xff]
  %s201 = scalar_lea.vmem [#allocation2], 24
  %202 = vst.msk [vmem:[%s201 + $0x1] sm:$0xff] %vm27, %v137
  %203 = vst.msk [vmem:[%s201 + $0x9] sm:$0xff] %vm27, %v138
  %204 = vst.msk [vmem:[%s201 + $0x19] sm:$0xff] %vm27, %v139
  %205 = vst.msk [vmem:[%s201 + $0x21] sm:$0xff] %vm27, %v140
  %206 = vst.msk [vmem:[%s201 + $0x31] sm:$0xff] %vm27, %v141
  %207 = vst.msk [vmem:[%s201 + $0x39] sm:$0xff] %vm27, %v142
  %208 = vst.msk [vmem:[%s201 + $0x49] sm:$0xff] %vm27, %v143
  %209 = vst.msk [vmem:[%s201 + $0x51] sm:$0xff] %vm27, %v144
  %210 = vst.msk [vmem:[%s201 + $0x61] sm:$0xff] %vm27, %v145
  %211 = vst.msk [vmem:[%s201 + $0x69] sm:$0xff] %vm27, %v146
  %212 = vst.msk [vmem:[%s201 + $0x79] sm:$0xff] %vm27, %v147
  %213 = vst.msk [vmem:[%s201 + $0x81] sm:$0xff] %vm27, %v148
  %214 = vst.msk [vmem:[%s201 + $0x91] sm:$0xff] %vm27, %v149
  %215 = vst.msk [vmem:[%s201 + $0x99] sm:$0xff] %vm27, %v150
  %216 = vst.msk [vmem:[%s201 + $0xa9] sm:$0xff] %vm27, %v151
  %217 = vst.msk [vmem:[%s201 + $0xb1] sm:$0xff] %vm27, %v152
  %218 = vst.msk [vmem:[%s201 + $0xc1] sm:$0xff] %vm27, %v153
  %219 = vst.msk [vmem:[%s201 + $0xc9] sm:$0xff] %vm27, %v154
  %220 = vst.msk [vmem:[%s201 + $0xd9] sm:$0xff] %vm27, %v155
  %221 = vst.msk [vmem:[%s201 + $0xe1] sm:$0xff] %vm27, %v156
  %222 = vst.msk [vmem:[%s201 + $0xf1] sm:$0xff] %vm27, %v157
  %223 = vst.msk [vmem:[%s201 + $0xf9] sm:$0xff] %vm27, %v158
  %224 = vst.msk [vmem:[%s201 + $0x109] sm:$0xff] %vm27, %v159
  %225 = vst.msk [vmem:[%s201 + $0x111] sm:$0xff] %vm27, %v160
  %226 = vst.msk [vmem:[%s201 + $0x121] sm:$0xff] %vm27, %v161
  %227 = vst.msk [vmem:[%s201 + $0x129] sm:$0xff] %vm27, %v162
  %228 = vst.msk [vmem:[%s201 + $0x139] sm:$0xff] %vm27, %v163
  %229 = vst.msk [vmem:[%s201 + $0x141] sm:$0xff] %vm27, %v164
  %230 = vst.msk [vmem:[%s201 + $0x151] sm:$0xff] %vm27, %v165
  %231 = vst.msk [vmem:[%s201 + $0x159] sm:$0xff] %vm27, %v166
  %232 = vst.msk [vmem:[%s201 + $0x169] sm:$0xff] %vm27, %v167
  %233 = vst.msk [vmem:[%s201 + $0x171] sm:$0xff] %vm27, %v168
  %234 = vst.msk [vmem:[%s201 + $0x1b1] sm:$0xff] %vm27, %v169
  %235 = vst.msk [vmem:[%s201 + $0x1b9] sm:$0xff] %vm27, %v170
  %236 = vst.msk [vmem:[%s201 + $0x1c9] sm:$0xff] %vm27, %v171
  %237 = vst.msk [vmem:[%s201 + $0x1d1] sm:$0xff] %vm27, %v172
  %238 = vst.msk [vmem:[%s201 + $0x1e1] sm:$0xff] %vm27, %v173
  %239 = vst.msk [vmem:[%s201 + $0x1e9] sm:$0xff] %vm27, %v174
  %240 = vst.msk [vmem:[%s201 + $0x1f9] sm:$0xff] %vm27, %v175
  %241 = vst.msk [vmem:[%s201 + $0x201] sm:$0xff] %vm27, %v176
  %242 = vst.msk [vmem:[%s201 + $0x211] sm:$0xff] %vm27, %v177
  %243 = vst.msk [vmem:[%s201 + $0x219] sm:$0xff] %vm27, %v178
  %244 = vst.msk [vmem:[%s201 + $0x229] sm:$0xff] %vm27, %v179
  %245 = vst.msk [vmem:[%s201 + $0x231] sm:$0xff] %vm27, %v180
  %246 = vst.msk [vmem:[%s201 + $0x241] sm:$0xff] %vm27, %v181
  %247 = vst.msk [vmem:[%s201 + $0x249] sm:$0xff] %vm27, %v182
  %248 = vst.msk [vmem:[%s201 + $0x259] sm:$0xff] %vm27, %v183
  %249 = vst.msk [vmem:[%s201 + $0x261] sm:$0xff] %vm27, %v184
  %250 = vst.msk [vmem:[%s201 + $0x271] sm:$0xff] %vm27, %v185
  %251 = vst.msk [vmem:[%s201 + $0x279] sm:$0xff] %vm27, %v186
  %252 = vst.msk [vmem:[%s201 + $0x289] sm:$0xff] %vm27, %v187
  %253 = vst.msk [vmem:[%s201 + $0x291] sm:$0xff] %vm27, %v188
  %254 = vst.msk [vmem:[%s201 + $0x2a1] sm:$0xff] %vm27, %v189
  %255 = vst.msk [vmem:[%s201 + $0x2a9] sm:$0xff] %vm27, %v190
  %256 = vst.msk [vmem:[%s201 + $0x2b9] sm:$0xff] %vm27, %v191
  %257 = vst.msk [vmem:[%s201 + $0x2c1] sm:$0xff] %vm27, %v192
  %258 = vst.msk [vmem:[%s201 + $0x2d1] sm:$0xff] %vm27, %v193
  %259 = vst.msk [vmem:[%s201 + $0x2d9] sm:$0xff] %vm27, %v194
  %260 = vst.msk [vmem:[%s201 + $0x2e9] sm:$0xff] %vm27, %v195
  %261 = vst.msk [vmem:[%s201 + $0x2f1] sm:$0xff] %vm27, %v196
  %262 = vst.msk [vmem:[%s201 + $0x301] sm:$0xff] %vm27, %v197
  %263 = vst.msk [vmem:[%s201 + $0x309] sm:$0xff] %vm27, %v198
  %264 = vst.msk [vmem:[%s201 + $0x319] sm:$0xff] %vm27, %v199
  %265 = vst.msk [vmem:[%s201 + $0x321] sm:$0xff] %vm27, %v200
  %v266 = vld [vmem:[#allocation2] sm:$0xff]
  %v267 = vld [vmem:[#allocation2 + $0x8] sm:$0xff]
  %v268 = vld [vmem:[#allocation2 + $0x18] sm:$0xff]
  %v269 = vld [vmem:[#allocation2 + $0x20] sm:$0xff]
  %v270 = vld [vmem:[#allocation2 + $0x30] sm:$0xff]
  %v271 = vld [vmem:[#allocation2 + $0x38] sm:$0xff]
  %v272 = vld [vmem:[#allocation2 + $0x48] sm:$0xff]
  %v273 = vld [vmem:[#allocation2 + $0x50] sm:$0xff]
  %v274 = vld [vmem:[#allocation2 + $0x60] sm:$0xff]
  %v275 = vld [vmem:[#allocation2 + $0x68] sm:$0xff]
  %v276 = vld [vmem:[#allocation2 + $0x78] sm:$0xff]
  %v277 = vld [vmem:[#allocation2 + $0x80] sm:$0xff]
  %v278 = vld [vmem:[#allocation2 + $0x90] sm:$0xff]
  %v279 = vld [vmem:[#allocation2 + $0x98] sm:$0xff]
  %v280 = vld [vmem:[#allocation2 + $0xa8] sm:$0xff]
  %v281 = vld [vmem:[#allocation2 + $0xb0] sm:$0xff]
  %v282 = vld [vmem:[#allocation2 + $0xc0] sm:$0xff]
  %v283 = vld [vmem:[#allocation2 + $0xc8] sm:$0xff]
  %v284 = vld [vmem:[#allocation2 + $0xd8] sm:$0xff]
  %v285 = vld [vmem:[#allocation2 + $0xe0] sm:$0xff]
  %v286 = vld [vmem:[#allocation2 + $0xf0] sm:$0xff]
  %v287 = vld [vmem:[#allocation2 + $0xf8] sm:$0xff]
  %v288 = vld [vmem:[#allocation2 + $0x108] sm:$0xff]
  %v289 = vld [vmem:[#allocation2 + $0x110] sm:$0xff]
  %v290 = vld [vmem:[#allocation2 + $0x120] sm:$0xff]
  %v291 = vld [vmem:[#allocation2 + $0x128] sm:$0xff]
  %v292 = vld [vmem:[#allocation2 + $0x138] sm:$0xff]
  %v293 = vld [vmem:[#allocation2 + $0x140] sm:$0xff]
  %v294 = vld [vmem:[#allocation2 + $0x150] sm:$0xff]
  %v295 = vld [vmem:[#allocation2 + $0x158] sm:$0xff]
  %v296 = vld [vmem:[#allocation2 + $0x168] sm:$0xff]
  %v297 = vld [vmem:[#allocation2 + $0x170] sm:$0xff]
  %v298 = vld [vmem:[#allocation2 + $0x1b0] sm:$0xff]
  %v299 = vld [vmem:[#allocation2 + $0x1b8] sm:$0xff]
  %v300 = vld [vmem:[#allocation2 + $0x1c8] sm:$0xff]
  %v301 = vld [vmem:[#allocation2 + $0x1d0] sm:$0xff]
  %v302 = vld [vmem:[#allocation2 + $0x1e0] sm:$0xff]
  %v303 = vld [vmem:[#allocation2 + $0x1e8] sm:$0xff]
  %v304 = vld [vmem:[#allocation2 + $0x1f8] sm:$0xff]
  %v305 = vld [vmem:[#allocation2 + $0x200] sm:$0xff]
  %v306 = vld [vmem:[#allocation2 + $0x210] sm:$0xff]
  %v307 = vld [vmem:[#allocation2 + $0x218] sm:$0xff]
  %v308 = vld [vmem:[#allocation2 + $0x228] sm:$0xff]
  %v309 = vld [vmem:[#allocation2 + $0x230] sm:$0xff]
  %v310 = vld [vmem:[#allocation2 + $0x240] sm:$0xff]
  %v311 = vld [vmem:[#allocation2 + $0x248] sm:$0xff]
  %v312 = vld [vmem:[#allocation2 + $0x258] sm:$0xff]
  %v313 = vld [vmem:[#allocation2 + $0x260] sm:$0xff]
  %v314 = vld [vmem:[#allocation2 + $0x270] sm:$0xff]
  %v315 = vld [vmem:[#allocation2 + $0x278] sm:$0xff]
  %v316 = vld [vmem:[#allocation2 + $0x288] sm:$0xff]
  %v317 = vld [vmem:[#allocation2 + $0x290] sm:$0xff]
  %v318 = vld [vmem:[#allocation2 + $0x2a0] sm:$0xff]
  %v319 = vld [vmem:[#allocation2 + $0x2a8] sm:$0xff]
  %v320 = vld [vmem:[#allocation2 + $0x2b8] sm:$0xff]
  %v321 = vld [vmem:[#allocation2 + $0x2c0] sm:$0xff]
  %v322 = vld [vmem:[#allocation2 + $0x2d0] sm:$0xff]
  %v323 = vld [vmem:[#allocation2 + $0x2d8] sm:$0xff]
  %v324 = vld [vmem:[#allocation2 + $0x2e8] sm:$0xff]
  %v325 = vld [vmem:[#allocation2 + $0x2f0] sm:$0xff]
  %v326 = vld [vmem:[#allocation2 + $0x300] sm:$0xff]
  %v327 = vld [vmem:[#allocation2 + $0x308] sm:$0xff]
  %v328 = vld [vmem:[#allocation2 + $0x318] sm:$0xff]
  %v329 = vld [vmem:[#allocation2 + $0x320] sm:$0xff]
  %v330 = vld [vmem:[#allocation2 + $0x1] sm:$0xff]
  %v331 = vld [vmem:[#allocation2 + $0x9] sm:$0xff]
  %v332 = vld [vmem:[#allocation2 + $0x19] sm:$0xff]
  %v333 = vld [vmem:[#allocation2 + $0x21] sm:$0xff]
  %v334 = vld [vmem:[#allocation2 + $0x31] sm:$0xff]
  %v335 = vld [vmem:[#allocation2 + $0x39] sm:$0xff]
  %v336 = vld [vmem:[#allocation2 + $0x49] sm:$0xff]
  %v337 = vld [vmem:[#allocation2 + $0x51] sm:$0xff]
  %v338 = vld [vmem:[#allocation2 + $0x61] sm:$0xff]
  %v339 = vld [vmem:[#allocation2 + $0x69] sm:$0xff]
  %v340 = vld [vmem:[#allocation2 + $0x79] sm:$0xff]
  %v341 = vld [vmem:[#allocation2 + $0x81] sm:$0xff]
  %v342 = vld [vmem:[#allocation2 + $0x91] sm:$0xff]
  %v343 = vld [vmem:[#allocation2 + $0x99] sm:$0xff]
  %v344 = vld [vmem:[#allocation2 + $0xa9] sm:$0xff]
  %v345 = vld [vmem:[#allocation2 + $0xb1] sm:$0xff]
  %v346 = vld [vmem:[#allocation2 + $0xc1] sm:$0xff]
  %v347 = vld [vmem:[#allocation2 + $0xc9] sm:$0xff]
  %v348 = vld [vmem:[#allocation2 + $0xd9] sm:$0xff]
  %v349 = vld [vmem:[#allocation2 + $0xe1] sm:$0xff]
  %v350 = vld [vmem:[#allocation2 + $0xf1] sm:$0xff]
  %v351 = vld [vmem:[#allocation2 + $0xf9] sm:$0xff]
  %v352 = vld [vmem:[#allocation2 + $0x109] sm:$0xff]
  %v353 = vld [vmem:[#allocation2 + $0x111] sm:$0xff]
  %v354 = vld [vmem:[#allocation2 + $0x121] sm:$0xff]
  %v355 = vld [vmem:[#allocation2 + $0x129] sm:$0xff]
  %v356 = vld [vmem:[#allocation2 + $0x139] sm:$0xff]
  %v357 = vld [vmem:[#allocation2 + $0x141] sm:$0xff]
  %v358 = vld [vmem:[#allocation2 + $0x151] sm:$0xff]
  %v359 = vld [vmem:[#allocation2 + $0x159] sm:$0xff]
  %v360 = vld [vmem:[#allocation2 + $0x169] sm:$0xff]
  %v361 = vld [vmem:[#allocation2 + $0x171] sm:$0xff]
  %v362 = vld [vmem:[#allocation2 + $0x1b1] sm:$0xff]
  %v363 = vld [vmem:[#allocation2 + $0x1b9] sm:$0xff]
  %v364 = vld [vmem:[#allocation2 + $0x1c9] sm:$0xff]
  %v365 = vld [vmem:[#allocation2 + $0x1d1] sm:$0xff]
  %v366 = vld [vmem:[#allocation2 + $0x1e1] sm:$0xff]
  %v367 = vld [vmem:[#allocation2 + $0x1e9] sm:$0xff]
  %v368 = vld [vmem:[#allocation2 + $0x1f9] sm:$0xff]
  %v369 = vld [vmem:[#allocation2 + $0x201] sm:$0xff]
  %v370 = vld [vmem:[#allocation2 + $0x211] sm:$0xff]
  %v371 = vld [vmem:[#allocation2 + $0x219] sm:$0xff]
  %v372 = vld [vmem:[#allocation2 + $0x229] sm:$0xff]
  %v373 = vld [vmem:[#allocation2 + $0x231] sm:$0xff]
  %v374 = vld [vmem:[#allocation2 + $0x241] sm:$0xff]
  %v375 = vld [vmem:[#allocation2 + $0x249] sm:$0xff]
  %v376 = vld [vmem:[#allocation2 + $0x259] sm:$0xff]
  %v377 = vld [vmem:[#allocation2 + $0x261] sm:$0xff]
  %v378 = vld [vmem:[#allocation2 + $0x271] sm:$0xff]
  %v379 = vld [vmem:[#allocation2 + $0x279] sm:$0xff]
  %v380 = vld [vmem:[#allocation2 + $0x289] sm:$0xff]
  %v381 = vld [vmem:[#allocation2 + $0x291] sm:$0xff]
  %v382 = vld [vmem:[#allocation2 + $0x2a1] sm:$0xff]
  %v383 = vld [vmem:[#allocation2 + $0x2a9] sm:$0xff]
  %v384 = vld [vmem:[#allocation2 + $0x2b9] sm:$0xff]
  %v385 = vld [vmem:[#allocation2 + $0x2c1] sm:$0xff]
  %v386 = vld [vmem:[#allocation2 + $0x2d1] sm:$0xff]
  %v387 = vld [vmem:[#allocation2 + $0x2d9] sm:$0xff]
  %v388 = vld [vmem:[#allocation2 + $0x2e9] sm:$0xff]
  %v389 = vld [vmem:[#allocation2 + $0x2f1] sm:$0xff]
  %v390 = vld [vmem:[#allocation2 + $0x301] sm:$0xff]
  %v391 = vld [vmem:[#allocation2 + $0x309] sm:$0xff]
  %v392 = vld [vmem:[#allocation2 + $0x319] sm:$0xff]
  %v393 = vld [vmem:[#allocation2 + $0x321] sm:$0xff]
  %v394 = vld [vmem:[#allocation2 + $0x2] sm:$0xff]
  %v395 = vld [vmem:[#allocation2 + $0xa] sm:$0xff]
  %v396 = vld [vmem:[#allocation2 + $0x1a] sm:$0xff]
  %v397 = vld [vmem:[#allocation2 + $0x22] sm:$0xff]
  %v398 = vld [vmem:[#allocation2 + $0x32] sm:$0xff]
  %v399 = vld [vmem:[#allocation2 + $0x3a] sm:$0xff]
  %v400 = vld [vmem:[#allocation2 + $0x4a] sm:$0xff]
  %v401 = vld [vmem:[#allocation2 + $0x52] sm:$0xff]
  %v402 = vld [vmem:[#allocation2 + $0x62] sm:$0xff]
  %v403 = vld [vmem:[#allocation2 + $0x6a] sm:$0xff]
  %v404 = vld [vmem:[#allocation2 + $0x7a] sm:$0xff]
  %v405 = vld [vmem:[#allocation2 + $0x82] sm:$0xff]
  %v406 = vld [vmem:[#allocation2 + $0x92] sm:$0xff]
  %v407 = vld [vmem:[#allocation2 + $0x9a] sm:$0xff]
  %v408 = vld [vmem:[#allocation2 + $0xaa] sm:$0xff]
  %v409 = vld [vmem:[#allocation2 + $0xb2] sm:$0xff]
  %v410 = vld [vmem:[#allocation2 + $0xc2] sm:$0xff]
  %v411 = vld [vmem:[#allocation2 + $0xca] sm:$0xff]
  %v412 = vld [vmem:[#allocation2 + $0xda] sm:$0xff]
  %v413 = vld [vmem:[#allocation2 + $0xe2] sm:$0xff]
  %v414 = vld [vmem:[#allocation2 + $0xf2] sm:$0xff]
  %v415 = vld [vmem:[#allocation2 + $0xfa] sm:$0xff]
  %v416 = vld [vmem:[#allocation2 + $0x10a] sm:$0xff]
  %v417 = vld [vmem:[#allocation2 + $0x112] sm:$0xff]
  %v418 = vld [vmem:[#allocation2 + $0x122] sm:$0xff]
  %v419 = vld [vmem:[#allocation2 + $0x12a] sm:$0xff]
  %v420 = vld [vmem:[#allocation2 + $0x13a] sm:$0xff]
  %v421 = vld [vmem:[#allocation2 + $0x142] sm:$0xff]
  %v422 = vld [vmem:[#allocation2 + $0x152] sm:$0xff]
  %v423 = vld [vmem:[#allocation2 + $0x15a] sm:$0xff]
  %v424 = vld [vmem:[#allocation2 + $0x16a] sm:$0xff]
  %v425 = vld [vmem:[#allocation2 + $0x172] sm:$0xff]
  %v426 = vld [vmem:[#allocation2 + $0x1b2] sm:$0xff]
  %v427 = vld [vmem:[#allocation2 + $0x1ba] sm:$0xff]
  %v428 = vld [vmem:[#allocation2 + $0x1ca] sm:$0xff]
  %v429 = vld [vmem:[#allocation2 + $0x1d2] sm:$0xff]
  %v430 = vld [vmem:[#allocation2 + $0x1e2] sm:$0xff]
  %v431 = vld [vmem:[#allocation2 + $0x1ea] sm:$0xff]
  %v432 = vld [vmem:[#allocation2 + $0x1fa] sm:$0xff]
  %v433 = vld [vmem:[#allocation2 + $0x202] sm:$0xff]
  %v434 = vld [vmem:[#allocation2 + $0x212] sm:$0xff]
  %v435 = vld [vmem:[#allocation2 + $0x21a] sm:$0xff]
  %v436 = vld [vmem:[#allocation2 + $0x22a] sm:$0xff]
  %v437 = vld [vmem:[#allocation2 + $0x232] sm:$0xff]
  %v438 = vld [vmem:[#allocation2 + $0x242] sm:$0xff]
  %v439 = vld [vmem:[#allocation2 + $0x24a] sm:$0xff]
  %v440 = vld [vmem:[#allocation2 + $0x25a] sm:$0xff]
  %v441 = vld [vmem:[#allocation2 + $0x262] sm:$0xff]
  %v442 = vld [vmem:[#allocation2 + $0x272] sm:$0xff]
  %v443 = vld [vmem:[#allocation2 + $0x27a] sm:$0xff]
  %v444 = vld [vmem:[#allocation2 + $0x28a] sm:$0xff]
  %v445 = vld [vmem:[#allocation2 + $0x292] sm:$0xff]
  %v446 = vld [vmem:[#allocation2 + $0x2a2] sm:$0xff]
  %v447 = vld [vmem:[#allocation2 + $0x2aa] sm:$0xff]
  %v448 = vld [vmem:[#allocation2 + $0x2ba] sm:$0xff]
  %v449 = vld [vmem:[#allocation2 + $0x2c2] sm:$0xff]
  %v450 = vld [vmem:[#allocation2 + $0x2d2] sm:$0xff]
  %v451 = vld [vmem:[#allocation2 + $0x2da] sm:$0xff]
  %v452 = vld [vmem:[#allocation2 + $0x2ea] sm:$0xff]
  %v453 = vld [vmem:[#allocation2 + $0x2f2] sm:$0xff]
  %v454 = vld [vmem:[#allocation2 + $0x302] sm:$0xff]
  %v455 = vld [vmem:[#allocation2 + $0x30a] sm:$0xff]
  %v456 = vld [vmem:[#allocation2 + $0x31a] sm:$0xff]
  %v457 = vld [vmem:[#allocation2 + $0x322] sm:$0xff]
  %v458 = vld [vmem:[%s201] sm:$0xff]
  %v459 = vld [vmem:[%s201 + $0x8] sm:$0xff]
  %v460 = vld [vmem:[%s201 + $0x18] sm:$0xff]
  %v461 = vld [vmem:[%s201 + $0x20] sm:$0xff]
  %v462 = vld [vmem:[%s201 + $0x30] sm:$0xff]
  %v463 = vld [vmem:[%s201 + $0x38] sm:$0xff]
  %v464 = vld [vmem:[%s201 + $0x48] sm:$0xff]
  %v465 = vld [vmem:[%s201 + $0x50] sm:$0xff]
  %v466 = vld [vmem:[%s201 + $0x60] sm:$0xff]
  %v467 = vld [vmem:[%s201 + $0x68] sm:$0xff]
  %v468 = vld [vmem:[%s201 + $0x78] sm:$0xff]
  %v469 = vld [vmem:[%s201 + $0x80] sm:$0xff]
  %v470 = vld [vmem:[%s201 + $0x90] sm:$0xff]
  %v471 = vld [vmem:[%s201 + $0x98] sm:$0xff]
  %v472 = vld [vmem:[%s201 + $0xa8] sm:$0xff]
  %v473 = vld [vmem:[%s201 + $0xb0] sm:$0xff]
  %v474 = vld [vmem:[%s201 + $0xc0] sm:$0xff]
  %v475 = vld [vmem:[%s201 + $0xc8] sm:$0xff]
  %v476 = vld [vmem:[%s201 + $0xd8] sm:$0xff]
  %v477 = vld [vmem:[%s201 + $0xe0] sm:$0xff]
  %v478 = vld [vmem:[%s201 + $0xf0] sm:$0xff]
  %v479 = vld [vmem:[%s201 + $0xf8] sm:$0xff]
  %v480 = vld [vmem:[%s201 + $0x108] sm:$0xff]
  %v481 = vld [vmem:[%s201 + $0x110] sm:$0xff]
  %v482 = vld [vmem:[%s201 + $0x120] sm:$0xff]
  %v483 = vld [vmem:[%s201 + $0x128] sm:$0xff]
  %v484 = vld [vmem:[%s201 + $0x138] sm:$0xff]
  %v485 = vld [vmem:[%s201 + $0x140] sm:$0xff]
  %v486 = vld [vmem:[%s201 + $0x150] sm:$0xff]
  %v487 = vld [vmem:[%s201 + $0x158] sm:$0xff]
  %v488 = vld [vmem:[%s201 + $0x168] sm:$0xff]
  %v489 = vld [vmem:[%s201 + $0x170] sm:$0xff]
  %v490 = vld [vmem:[%s201 + $0x1b0] sm:$0xff]
  %v491 = vld [vmem:[%s201 + $0x1b8] sm:$0xff]
  %v492 = vld [vmem:[%s201 + $0x1c8] sm:$0xff]
  %v493 = vld [vmem:[%s201 + $0x1d0] sm:$0xff]
  %v494 = vld [vmem:[%s201 + $0x1e0] sm:$0xff]
  %v495 = vld [vmem:[%s201 + $0x1e8] sm:$0xff]
  %v496 = vld [vmem:[%s201 + $0x1f8] sm:$0xff]
  %v497 = vld [vmem:[%s201 + $0x200] sm:$0xff]
  %v498 = vld [vmem:[%s201 + $0x210] sm:$0xff]
  %v499 = vld [vmem:[%s201 + $0x218] sm:$0xff]
  %v500 = vld [vmem:[%s201 + $0x228] sm:$0xff]
  %v501 = vld [vmem:[%s201 + $0x230] sm:$0xff]
  %v502 = vld [vmem:[%s201 + $0x240] sm:$0xff]
  %v503 = vld [vmem:[%s201 + $0x248] sm:$0xff]
  %v504 = vld [vmem:[%s201 + $0x258] sm:$0xff]
  %v505 = vld [vmem:[%s201 + $0x260] sm:$0xff]
  %v506 = vld [vmem:[%s201 + $0x270] sm:$0xff]
  %v507 = vld [vmem:[%s201 + $0x278] sm:$0xff]
  %v508 = vld [vmem:[%s201 + $0x288] sm:$0xff]
  %v509 = vld [vmem:[%s201 + $0x290] sm:$0xff]
  %v510 = vld [vmem:[%s201 + $0x2a0] sm:$0xff]
  %v511 = vld [vmem:[%s201 + $0x2a8] sm:$0xff]
  %v512 = vld [vmem:[%s201 + $0x2b8] sm:$0xff]
  %v513 = vld [vmem:[%s201 + $0x2c0] sm:$0xff]
  %v514 = vld [vmem:[%s201 + $0x2d0] sm:$0xff]
  %v515 = vld [vmem:[%s201 + $0x2d8] sm:$0xff]
  %v516 = vld [vmem:[%s201 + $0x2e8] sm:$0xff]
  %v517 = vld [vmem:[%s201 + $0x2f0] sm:$0xff]
  %v518 = vld [vmem:[%s201 + $0x300] sm:$0xff]
  %v519 = vld [vmem:[%s201 + $0x308] sm:$0xff]
  %v520 = vld [vmem:[%s201 + $0x318] sm:$0xff]
  %v521 = vld [vmem:[%s201 + $0x320] sm:$0xff]
  %v522 = vld [vmem:[%s201 + $0x1] sm:$0xff]
  %v523 = vld [vmem:[%s201 + $0x9] sm:$0xff]
  %v524 = vld [vmem:[%s201 + $0x19] sm:$0xff]
  %v525 = vld [vmem:[%s201 + $0x21] sm:$0xff]
  %v526 = vld [vmem:[%s201 + $0x31] sm:$0xff]
  %v527 = vld [vmem:[%s201 + $0x39] sm:$0xff]
  %v528 = vld [vmem:[%s201 + $0x49] sm:$0xff]
  %v529 = vld [vmem:[%s201 + $0x51] sm:$0xff]
  %v530 = vld [vmem:[%s201 + $0x61] sm:$0xff]
  %v531 = vld [vmem:[%s201 + $0x69] sm:$0xff]
  %v532 = vld [vmem:[%s201 + $0x79] sm:$0xff]
  %v533 = vld [vmem:[%s201 + $0x81] sm:$0xff]
  %v534 = vld [vmem:[%s201 + $0x91] sm:$0xff]
  %v535 = vld [vmem:[%s201 + $0x99] sm:$0xff]
  %v536 = vld [vmem:[%s201 + $0xa9] sm:$0xff]
  %v537 = vld [vmem:[%s201 + $0xb1] sm:$0xff]
  %v538 = vld [vmem:[%s201 + $0xc1] sm:$0xff]
  %v539 = vld [vmem:[%s201 + $0xc9] sm:$0xff]
  %v540 = vld [vmem:[%s201 + $0xd9] sm:$0xff]
  %v541 = vld [vmem:[%s201 + $0xe1] sm:$0xff]
  %v542 = vld [vmem:[%s201 + $0xf1] sm:$0xff]
  %v543 = vld [vmem:[%s201 + $0xf9] sm:$0xff]
  %v544 = vld [vmem:[%s201 + $0x109] sm:$0xff]
  %v545 = vld [vmem:[%s201 + $0x111] sm:$0xff]
  %v546 = vld [vmem:[%s201 + $0x121] sm:$0xff]
  %v547 = vld [vmem:[%s201 + $0x129] sm:$0xff]
  %v548 = vld [vmem:[%s201 + $0x139] sm:$0xff]
  %v549 = vld [vmem:[%s201 + $0x141] sm:$0xff]
  %v550 = vld [vmem:[%s201 + $0x151] sm:$0xff]
  %v551 = vld [vmem:[%s201 + $0x159] sm:$0xff]
  %v552 = vld [vmem:[%s201 + $0x169] sm:$0xff]
  %v553 = vld [vmem:[%s201 + $0x171] sm:$0xff]
  %v554 = vld [vmem:[%s201 + $0x1b1] sm:$0xff]
  %v555 = vld [vmem:[%s201 + $0x1b9] sm:$0xff]
  %v556 = vld [vmem:[%s201 + $0x1c9] sm:$0xff]
  %v557 = vld [vmem:[%s201 + $0x1d1] sm:$0xff]
  %v558 = vld [vmem:[%s201 + $0x1e1] sm:$0xff]
  %v559 = vld [vmem:[%s201 + $0x1e9] sm:$0xff]
  %v560 = vld [vmem:[%s201 + $0x1f9] sm:$0xff]
  %v561 = vld [vmem:[%s201 + $0x201] sm:$0xff]
  %v562 = vld [vmem:[%s201 + $0x211] sm:$0xff]
  %v563 = vld [vmem:[%s201 + $0x219] sm:$0xff]
  %v564 = vld [vmem:[%s201 + $0x229] sm:$0xff]
  %v565 = vld [vmem:[%s201 + $0x231] sm:$0xff]
  %v566 = vld [vmem:[%s201 + $0x241] sm:$0xff]
  %v567 = vld [vmem:[%s201 + $0x249] sm:$0xff]
  %v568 = vld [vmem:[%s201 + $0x259] sm:$0xff]
  %v569 = vld [vmem:[%s201 + $0x261] sm:$0xff]
  %v570 = vld [vmem:[%s201 + $0x271] sm:$0xff]
  %v571 = vld [vmem:[%s201 + $0x279] sm:$0xff]
  %v572 = vld [vmem:[%s201 + $0x289] sm:$0xff]
  %v573 = vld [vmem:[%s201 + $0x291] sm:$0xff]
  %v574 = vld [vmem:[%s201 + $0x2a1] sm:$0xff]
  %v575 = vld [vmem:[%s201 + $0x2a9] sm:$0xff]
  %v576 = vld [vmem:[%s201 + $0x2b9] sm:$0xff]
  %v577 = vld [vmem:[%s201 + $0x2c1] sm:$0xff]
  %v578 = vld [vmem:[%s201 + $0x2d1] sm:$0xff]
  %v579 = vld [vmem:[%s201 + $0x2d9] sm:$0xff]
  %v580 = vld [vmem:[%s201 + $0x2e9] sm:$0xff]
  %v581 = vld [vmem:[%s201 + $0x2f1] sm:$0xff]
  %v582 = vld [vmem:[%s201 + $0x301] sm:$0xff]
  %v583 = vld [vmem:[%s201 + $0x309] sm:$0xff]
  %v584 = vld [vmem:[%s201 + $0x319] sm:$0xff]
  %v585 = vld [vmem:[%s201 + $0x321] sm:$0xff]
  %v586 = vld [vmem:[%s201 + $0x2] sm:$0xff]
  %v587 = vld [vmem:[%s201 + $0xa] sm:$0xff]
  %v588 = vld [vmem:[%s201 + $0x1a] sm:$0xff]
  %v589 = vld [vmem:[%s201 + $0x22] sm:$0xff]
  %v590 = vld [vmem:[%s201 + $0x32] sm:$0xff]
  %v591 = vld [vmem:[%s201 + $0x3a] sm:$0xff]
  %v592 = vld [vmem:[%s201 + $0x4a] sm:$0xff]
  %v593 = vld [vmem:[%s201 + $0x52] sm:$0xff]
  %v594 = vld [vmem:[%s201 + $0x62] sm:$0xff]
  %v595 = vld [vmem:[%s201 + $0x6a] sm:$0xff]
  %v596 = vld [vmem:[%s201 + $0x7a] sm:$0xff]
  %v597 = vld [vmem:[%s201 + $0x82] sm:$0xff]
  %v598 = vld [vmem:[%s201 + $0x92] sm:$0xff]
  %v599 = vld [vmem:[%s201 + $0x9a] sm:$0xff]
  %v600 = vld [vmem:[%s201 + $0xaa] sm:$0xff]
  %v601 = vld [vmem:[%s201 + $0xb2] sm:$0xff]
  %v602 = vld [vmem:[%s201 + $0xc2] sm:$0xff]
  %v603 = vld [vmem:[%s201 + $0xca] sm:$0xff]
  %v604 = vld [vmem:[%s201 + $0xda] sm:$0xff]
  %v605 = vld [vmem:[%s201 + $0xe2] sm:$0xff]
  %v606 = vld [vmem:[%s201 + $0xf2] sm:$0xff]
  %v607 = vld [vmem:[%s201 + $0xfa] sm:$0xff]
  %v608 = vld [vmem:[%s201 + $0x10a] sm:$0xff]
  %v609 = vld [vmem:[%s201 + $0x112] sm:$0xff]
  %v610 = vld [vmem:[%s201 + $0x122] sm:$0xff]
  %v611 = vld [vmem:[%s201 + $0x12a] sm:$0xff]
  %v612 = vld [vmem:[%s201 + $0x13a] sm:$0xff]
  %v613 = vld [vmem:[%s201 + $0x142] sm:$0xff]
  %v614 = vld [vmem:[%s201 + $0x152] sm:$0xff]
  %v615 = vld [vmem:[%s201 + $0x15a] sm:$0xff]
  %v616 = vld [vmem:[%s201 + $0x16a] sm:$0xff]
  %v617 = vld [vmem:[%s201 + $0x172] sm:$0xff]
  %v618 = vld [vmem:[%s201 + $0x1b2] sm:$0xff]
  %v619 = vld [vmem:[%s201 + $0x1ba] sm:$0xff]
  %v620 = vld [vmem:[%s201 + $0x1ca] sm:$0xff]
  %v621 = vld [vmem:[%s201 + $0x1d2] sm:$0xff]
  %v622 = vld [vmem:[%s201 + $0x1e2] sm:$0xff]
  %v623 = vld [vmem:[%s201 + $0x1ea] sm:$0xff]
  %v624 = vld [vmem:[%s201 + $0x1fa] sm:$0xff]
  %v625 = vld [vmem:[%s201 + $0x202] sm:$0xff]
  %v626 = vld [vmem:[%s201 + $0x212] sm:$0xff]
  %v627 = vld [vmem:[%s201 + $0x21a] sm:$0xff]
  %v628 = vld [vmem:[%s201 + $0x22a] sm:$0xff]
  %v629 = vld [vmem:[%s201 + $0x232] sm:$0xff]
  %v630 = vld [vmem:[%s201 + $0x242] sm:$0xff]
  %v631 = vld [vmem:[%s201 + $0x24a] sm:$0xff]
  %v632 = vld [vmem:[%s201 + $0x25a] sm:$0xff]
  %v633 = vld [vmem:[%s201 + $0x262] sm:$0xff]
  %v634 = vld [vmem:[%s201 + $0x272] sm:$0xff]
  %v635 = vld [vmem:[%s201 + $0x27a] sm:$0xff]
  %v636 = vld [vmem:[%s201 + $0x28a] sm:$0xff]
  %v637 = vld [vmem:[%s201 + $0x292] sm:$0xff]
  %v638 = vld [vmem:[%s201 + $0x2a2] sm:$0xff]
  %v639 = vld [vmem:[%s201 + $0x2aa] sm:$0xff]
  %v640 = vld [vmem:[%s201 + $0x2ba] sm:$0xff]
  %v641 = vld [vmem:[%s201 + $0x2c2] sm:$0xff]
  %v642 = vld [vmem:[%s201 + $0x2d2] sm:$0xff]
  %v643 = vld [vmem:[%s201 + $0x2da] sm:$0xff]
  %v644 = vld [vmem:[%s201 + $0x2ea] sm:$0xff]
  %v645 = vld [vmem:[%s201 + $0x2f2] sm:$0xff]
  %v646 = vld [vmem:[%s201 + $0x302] sm:$0xff]
  %v647 = vld [vmem:[%s201 + $0x30a] sm:$0xff]
  %v648 = vld [vmem:[%s201 + $0x31a] sm:$0xff]
  %v649 = vld [vmem:[%s201 + $0x322] sm:$0xff]
  %s650 = scalar_lea.vmem [#allocation2], 48
  %v651 = vld [vmem:[%s650] sm:$0xff]
  %v652 = vld [vmem:[%s650 + $0x8] sm:$0xff]
  %v653 = vld [vmem:[%s650 + $0x18] sm:$0xff]
  %v654 = vld [vmem:[%s650 + $0x20] sm:$0xff]
  %v655 = vld [vmem:[%s650 + $0x30] sm:$0xff]
  %v656 = vld [vmem:[%s650 + $0x38] sm:$0xff]
  %v657 = vld [vmem:[%s650 + $0x48] sm:$0xff]
  %v658 = vld [vmem:[%s650 + $0x50] sm:$0xff]
  %v659 = vld [vmem:[%s650 + $0x60] sm:$0xff]
  %v660 = vld [vmem:[%s650 + $0x68] sm:$0xff]
  %v661 = vld [vmem:[%s650 + $0x78] sm:$0xff]
  %v662 = vld [vmem:[%s650 + $0x80] sm:$0xff]
  %v663 = vld [vmem:[%s650 + $0x90] sm:$0xff]
  %v664 = vld [vmem:[%s650 + $0x98] sm:$0xff]
  %v665 = vld [vmem:[%s650 + $0xa8] sm:$0xff]
  %v666 = vld [vmem:[%s650 + $0xb0] sm:$0xff]
  %v667 = vld [vmem:[%s650 + $0xc0] sm:$0xff]
  %v668 = vld [vmem:[%s650 + $0xc8] sm:$0xff]
  %v669 = vld [vmem:[%s650 + $0xd8] sm:$0xff]
  %v670 = vld [vmem:[%s650 + $0xe0] sm:$0xff]
  %v671 = vld [vmem:[%s650 + $0xf0] sm:$0xff]
  %v672 = vld [vmem:[%s650 + $0xf8] sm:$0xff]
  %v673 = vld [vmem:[%s650 + $0x108] sm:$0xff]
  %v674 = vld [vmem:[%s650 + $0x110] sm:$0xff]
  %v675 = vld [vmem:[%s650 + $0x120] sm:$0xff]
  %v676 = vld [vmem:[%s650 + $0x128] sm:$0xff]
  %v677 = vld [vmem:[%s650 + $0x138] sm:$0xff]
  %v678 = vld [vmem:[%s650 + $0x140] sm:$0xff]
  %v679 = vld [vmem:[%s650 + $0x150] sm:$0xff]
  %v680 = vld [vmem:[%s650 + $0x158] sm:$0xff]
  %v681 = vld [vmem:[%s650 + $0x168] sm:$0xff]
  %v682 = vld [vmem:[%s650 + $0x170] sm:$0xff]
  %v683 = vld [vmem:[%s650 + $0x1b0] sm:$0xff]
  %v684 = vld [vmem:[%s650 + $0x1b8] sm:$0xff]
  %v685 = vld [vmem:[%s650 + $0x1c8] sm:$0xff]
  %v686 = vld [vmem:[%s650 + $0x1d0] sm:$0xff]
  %v687 = vld [vmem:[%s650 + $0x1e0] sm:$0xff]
  %v688 = vld [vmem:[%s650 + $0x1e8] sm:$0xff]
  %v689 = vld [vmem:[%s650 + $0x1f8] sm:$0xff]
  %v690 = vld [vmem:[%s650 + $0x200] sm:$0xff]
  %v691 = vld [vmem:[%s650 + $0x210] sm:$0xff]
  %v692 = vld [vmem:[%s650 + $0x218] sm:$0xff]
  %v693 = vld [vmem:[%s650 + $0x228] sm:$0xff]
  %v694 = vld [vmem:[%s650 + $0x230] sm:$0xff]
  %v695 = vld [vmem:[%s650 + $0x240] sm:$0xff]
  %v696 = vld [vmem:[%s650 + $0x248] sm:$0xff]
  %v697 = vld [vmem:[%s650 + $0x258] sm:$0xff]
  %v698 = vld [vmem:[%s650 + $0x260] sm:$0xff]
  %v699 = vld [vmem:[%s650 + $0x270] sm:$0xff]
  %v700 = vld [vmem:[%s650 + $0x278] sm:$0xff]
  %v701 = vld [vmem:[%s650 + $0x288] sm:$0xff]
  %v702 = vld [vmem:[%s650 + $0x290] sm:$0xff]
  %v703 = vld [vmem:[%s650 + $0x2a0] sm:$0xff]
  %v704 = vld [vmem:[%s650 + $0x2a8] sm:$0xff]
  %v705 = vld [vmem:[%s650 + $0x2b8] sm:$0xff]
  %v706 = vld [vmem:[%s650 + $0x2c0] sm:$0xff]
  %v707 = vld [vmem:[%s650 + $0x2d0] sm:$0xff]
  %v708 = vld [vmem:[%s650 + $0x2d8] sm:$0xff]
  %v709 = vld [vmem:[%s650 + $0x2e8] sm:$0xff]
  %v710 = vld [vmem:[%s650 + $0x2f0] sm:$0xff]
  %v711 = vld [vmem:[%s650 + $0x300] sm:$0xff]
  %v712 = vld [vmem:[%s650 + $0x308] sm:$0xff]
  %v713 = vld [vmem:[%s650 + $0x318] sm:$0xff]
  %v714 = vld [vmem:[%s650 + $0x320] sm:$0xff]
  %v715 = vld [vmem:[%s650 + $0x1] sm:$0xff]
  %v716 = vld [vmem:[%s650 + $0x9] sm:$0xff]
  %v717 = vld [vmem:[%s650 + $0x19] sm:$0xff]
  %v718 = vld [vmem:[%s650 + $0x21] sm:$0xff]
  %v719 = vld [vmem:[%s650 + $0x31] sm:$0xff]
  %v720 = vld [vmem:[%s650 + $0x39] sm:$0xff]
  %v721 = vld [vmem:[%s650 + $0x49] sm:$0xff]
  %v722 = vld [vmem:[%s650 + $0x51] sm:$0xff]
  %v723 = vld [vmem:[%s650 + $0x61] sm:$0xff]
  %v724 = vld [vmem:[%s650 + $0x69] sm:$0xff]
  %v725 = vld [vmem:[%s650 + $0x79] sm:$0xff]
  %v726 = vld [vmem:[%s650 + $0x81] sm:$0xff]
  %v727 = vld [vmem:[%s650 + $0x91] sm:$0xff]
  %v728 = vld [vmem:[%s650 + $0x99] sm:$0xff]
  %v729 = vld [vmem:[%s650 + $0xa9] sm:$0xff]
  %v730 = vld [vmem:[%s650 + $0xb1] sm:$0xff]
  %v731 = vld [vmem:[%s650 + $0xc1] sm:$0xff]
  %v732 = vld [vmem:[%s650 + $0xc9] sm:$0xff]
  %v733 = vld [vmem:[%s650 + $0xd9] sm:$0xff]
  %v734 = vld [vmem:[%s650 + $0xe1] sm:$0xff]
  %v735 = vld [vmem:[%s650 + $0xf1] sm:$0xff]
  %v736 = vld [vmem:[%s650 + $0xf9] sm:$0xff]
  %v737 = vld [vmem:[%s650 + $0x109] sm:$0xff]
  %v738 = vld [vmem:[%s650 + $0x111] sm:$0xff]
  %v739 = vld [vmem:[%s650 + $0x121] sm:$0xff]
  %v740 = vld [vmem:[%s650 + $0x129] sm:$0xff]
  %v741 = vld [vmem:[%s650 + $0x139] sm:$0xff]
  %v742 = vld [vmem:[%s650 + $0x141] sm:$0xff]
  %v743 = vld [vmem:[%s650 + $0x151] sm:$0xff]
  %v744 = vld [vmem:[%s650 + $0x159] sm:$0xff]
  %v745 = vld [vmem:[%s650 + $0x169] sm:$0xff]
  %v746 = vld [vmem:[%s650 + $0x171] sm:$0xff]
  %v747 = vld [vmem:[%s650 + $0x1b1] sm:$0xff]
  %v748 = vld [vmem:[%s650 + $0x1b9] sm:$0xff]
  %v749 = vld [vmem:[%s650 + $0x1c9] sm:$0xff]
  %v750 = vld [vmem:[%s650 + $0x1d1] sm:$0xff]
  %v751 = vld [vmem:[%s650 + $0x1e1] sm:$0xff]
  %v752 = vld [vmem:[%s650 + $0x1e9] sm:$0xff]
  %v753 = vld [vmem:[%s650 + $0x1f9] sm:$0xff]
  %v754 = vld [vmem:[%s650 + $0x201] sm:$0xff]
  %v755 = vld [vmem:[%s650 + $0x211] sm:$0xff]
  %v756 = vld [vmem:[%s650 + $0x219] sm:$0xff]
  %v757 = vld [vmem:[%s650 + $0x229] sm:$0xff]
  %v758 = vld [vmem:[%s650 + $0x231] sm:$0xff]
  %v759 = vld [vmem:[%s650 + $0x241] sm:$0xff]
  %v760 = vld [vmem:[%s650 + $0x249] sm:$0xff]
  %v761 = vld [vmem:[%s650 + $0x259] sm:$0xff]
  %v762 = vld [vmem:[%s650 + $0x261] sm:$0xff]
  %v763 = vld [vmem:[%s650 + $0x271] sm:$0xff]
  %v764 = vld [vmem:[%s650 + $0x279] sm:$0xff]
  %v765 = vld [vmem:[%s650 + $0x289] sm:$0xff]
  %v766 = vld [vmem:[%s650 + $0x291] sm:$0xff]
  %v767 = vld [vmem:[%s650 + $0x2a1] sm:$0xff]
  %v768 = vld [vmem:[%s650 + $0x2a9] sm:$0xff]
  %v769 = vld [vmem:[%s650 + $0x2b9] sm:$0xff]
  %v770 = vld [vmem:[%s650 + $0x2c1] sm:$0xff]
  %v771 = vld [vmem:[%s650 + $0x2d1] sm:$0xff]
  %v772 = vld [vmem:[%s650 + $0x2d9] sm:$0xff]
  %v773 = vld [vmem:[%s650 + $0x2e9] sm:$0xff]
  %v774 = vld [vmem:[%s650 + $0x2f1] sm:$0xff]
  %v775 = vld [vmem:[%s650 + $0x301] sm:$0xff]
  %v776 = vld [vmem:[%s650 + $0x309] sm:$0xff]
  %v777 = vld [vmem:[%s650 + $0x319] sm:$0xff]
  %v778 = vld [vmem:[%s650 + $0x321] sm:$0xff]
  %v779 = vld [vmem:[%s650 + $0x2] sm:$0xff]
  %v780 = vld [vmem:[%s650 + $0xa] sm:$0xff]
  %v781 = vld [vmem:[%s650 + $0x1a] sm:$0xff]
  %v782 = vld [vmem:[%s650 + $0x22] sm:$0xff]
  %v783 = vld [vmem:[%s650 + $0x32] sm:$0xff]
  %v784 = vld [vmem:[%s650 + $0x3a] sm:$0xff]
  %v785 = vld [vmem:[%s650 + $0x4a] sm:$0xff]
  %v786 = vld [vmem:[%s650 + $0x52] sm:$0xff]
  %v787 = vld [vmem:[%s650 + $0x62] sm:$0xff]
  %v788 = vld [vmem:[%s650 + $0x6a] sm:$0xff]
  %v789 = vld [vmem:[%s650 + $0x7a] sm:$0xff]
  %v790 = vld [vmem:[%s650 + $0x82] sm:$0xff]
  %v791 = vld [vmem:[%s650 + $0x92] sm:$0xff]
  %v792 = vld [vmem:[%s650 + $0x9a] sm:$0xff]
  %v793 = vld [vmem:[%s650 + $0xaa] sm:$0xff]
  %v794 = vld [vmem:[%s650 + $0xb2] sm:$0xff]
  %v795 = vld [vmem:[%s650 + $0xc2] sm:$0xff]
  %v796 = vld [vmem:[%s650 + $0xca] sm:$0xff]
  %v797 = vld [vmem:[%s650 + $0xda] sm:$0xff]
  %v798 = vld [vmem:[%s650 + $0xe2] sm:$0xff]
  %v799 = vld [vmem:[%s650 + $0xf2] sm:$0xff]
  %v800 = vld [vmem:[%s650 + $0xfa] sm:$0xff]
  %v801 = vld [vmem:[%s650 + $0x10a] sm:$0xff]
  %v802 = vld [vmem:[%s650 + $0x112] sm:$0xff]
  %v803 = vld [vmem:[%s650 + $0x122] sm:$0xff]
  %v804 = vld [vmem:[%s650 + $0x12a] sm:$0xff]
  %v805 = vld [vmem:[%s650 + $0x13a] sm:$0xff]
  %v806 = vld [vmem:[%s650 + $0x142] sm:$0xff]
  %v807 = vld [vmem:[%s650 + $0x152] sm:$0xff]
  %v808 = vld [vmem:[%s650 + $0x15a] sm:$0xff]
  %v809 = vld [vmem:[%s650 + $0x16a] sm:$0xff]
  %v810 = vld [vmem:[%s650 + $0x172] sm:$0xff]
  %v811 = vld [vmem:[%s650 + $0x1b2] sm:$0xff]
  %v812 = vld [vmem:[%s650 + $0x1ba] sm:$0xff]
  %v813 = vld [vmem:[%s650 + $0x1ca] sm:$0xff]
  %v814 = vld [vmem:[%s650 + $0x1d2] sm:$0xff]
  %v815 = vld [vmem:[%s650 + $0x1e2] sm:$0xff]
  %v816 = vld [vmem:[%s650 + $0x1ea] sm:$0xff]
  %v817 = vld [vmem:[%s650 + $0x1fa] sm:$0xff]
  %v818 = vld [vmem:[%s650 + $0x202] sm:$0xff]
  %v819 = vld [vmem:[%s650 + $0x212] sm:$0xff]
  %v820 = vld [vmem:[%s650 + $0x21a] sm:$0xff]
  %v821 = vld [vmem:[%s650 + $0x22a] sm:$0xff]
  %v822 = vld [vmem:[%s650 + $0x232] sm:$0xff]
  %v823 = vld [vmem:[%s650 + $0x242] sm:$0xff]
  %v824 = vld [vmem:[%s650 + $0x24a] sm:$0xff]
  %v825 = vld [vmem:[%s650 + $0x25a] sm:$0xff]
  %v826 = vld [vmem:[%s650 + $0x262] sm:$0xff]
  %v827 = vld [vmem:[%s650 + $0x272] sm:$0xff]
  %v828 = vld [vmem:[%s650 + $0x27a] sm:$0xff]
  %v829 = vld [vmem:[%s650 + $0x28a] sm:$0xff]
  %v830 = vld [vmem:[%s650 + $0x292] sm:$0xff]
  %v831 = vld [vmem:[%s650 + $0x2a2] sm:$0xff]
  %v832 = vld [vmem:[%s650 + $0x2aa] sm:$0xff]
  %v833 = vld [vmem:[%s650 + $0x2ba] sm:$0xff]
  %v834 = vld [vmem:[%s650 + $0x2c2] sm:$0xff]
  %v835 = vld [vmem:[%s650 + $0x2d2] sm:$0xff]
  %v836 = vld [vmem:[%s650 + $0x2da] sm:$0xff]
  %v837 = vld [vmem:[%s650 + $0x2ea] sm:$0xff]
  %v838 = vld [vmem:[%s650 + $0x2f2] sm:$0xff]
  %v839 = vld [vmem:[%s650 + $0x302] sm:$0xff]
  %v840 = vld [vmem:[%s650 + $0x30a] sm:$0xff]
  %v841 = vld [vmem:[%s650 + $0x31a] sm:$0xff]
  %v842 = vld [vmem:[%s650 + $0x322] sm:$0xff]
  %907 = vrot.lane.b32.xlu0 %v330, 8
  %v908 = vpop.permute.xlu0 %907
  %909 = vrot.lane.b32.xlu0 %v331, 8
  %v910 = vpop.permute.xlu0 %909
  %911 = vrot.lane.b32.xlu0 %v332, 8
  %v912 = vpop.permute.xlu0 %911
  %913 = vrot.lane.b32.xlu0 %v333, 8
  %v914 = vpop.permute.xlu0 %913
  %915 = vrot.lane.b32.xlu0 %v334, 8
  %v916 = vpop.permute.xlu0 %915
  %917 = vrot.lane.b32.xlu0 %v335, 8
  %v918 = vpop.permute.xlu0 %917
  %919 = vrot.lane.b32.xlu0 %v336, 8
  %v920 = vpop.permute.xlu0 %919
  %921 = vrot.lane.b32.xlu0 %v337, 8
  %v922 = vpop.permute.xlu0 %921
  %923 = vrot.lane.b32.xlu0 %v338, 8
  %v924 = vpop.permute.xlu0 %923
  %925 = vrot.lane.b32.xlu0 %v339, 8
  %v926 = vpop.permute.xlu0 %925
  %927 = vrot.lane.b32.xlu0 %v340, 8
  %v928 = vpop.permute.xlu0 %927
  %929 = vrot.lane.b32.xlu0 %v341, 8
  %v930 = vpop.permute.xlu0 %929
  %931 = vrot.lane.b32.xlu0 %v342, 8
  %v932 = vpop.permute.xlu0 %931
  %933 = vrot.lane.b32.xlu0 %v343, 8
  %v934 = vpop.permute.xlu0 %933
  %935 = vrot.lane.b32.xlu0 %v344, 8
  %v936 = vpop.permute.xlu0 %935
  %937 = vrot.lane.b32.xlu0 %v345, 8
  %v938 = vpop.permute.xlu0 %937
  %939 = vrot.lane.b32.xlu0 %v346, 8
  %v940 = vpop.permute.xlu0 %939
  %941 = vrot.lane.b32.xlu0 %v347, 8
  %v942 = vpop.permute.xlu0 %941
  %943 = vrot.lane.b32.xlu0 %v348, 8
  %v944 = vpop.permute.xlu0 %943
  %945 = vrot.lane.b32.xlu0 %v349, 8
  %v946 = vpop.permute.xlu0 %945
  %947 = vrot.lane.b32.xlu0 %v350, 8
  %v948 = vpop.permute.xlu0 %947
  %949 = vrot.lane.b32.xlu0 %v351, 8
  %v950 = vpop.permute.xlu0 %949
  %951 = vrot.lane.b32.xlu0 %v352, 8
  %v952 = vpop.permute.xlu0 %951
  %953 = vrot.lane.b32.xlu0 %v353, 8
  %v954 = vpop.permute.xlu0 %953
  %955 = vrot.lane.b32.xlu0 %v354, 8
  %v956 = vpop.permute.xlu0 %955
  %957 = vrot.lane.b32.xlu0 %v355, 8
  %v958 = vpop.permute.xlu0 %957
  %959 = vrot.lane.b32.xlu0 %v356, 8
  %v960 = vpop.permute.xlu0 %959
  %961 = vrot.lane.b32.xlu0 %v357, 8
  %v962 = vpop.permute.xlu0 %961
  %963 = vrot.lane.b32.xlu0 %v358, 8
  %v964 = vpop.permute.xlu0 %963
  %965 = vrot.lane.b32.xlu0 %v359, 8
  %v966 = vpop.permute.xlu0 %965
  %967 = vrot.lane.b32.xlu0 %v360, 8
  %v968 = vpop.permute.xlu0 %967
  %969 = vrot.lane.b32.xlu0 %v361, 8
  %v970 = vpop.permute.xlu0 %969
  %971 = vrot.lane.b32.xlu0 %v362, 8
  %v972 = vpop.permute.xlu0 %971
  %973 = vrot.lane.b32.xlu0 %v363, 8
  %v974 = vpop.permute.xlu0 %973
  %975 = vrot.lane.b32.xlu0 %v364, 8
  %v976 = vpop.permute.xlu0 %975
  %977 = vrot.lane.b32.xlu0 %v365, 8
  %v978 = vpop.permute.xlu0 %977
  %979 = vrot.lane.b32.xlu0 %v366, 8
  %v980 = vpop.permute.xlu0 %979
  %981 = vrot.lane.b32.xlu0 %v367, 8
  %v982 = vpop.permute.xlu0 %981
  %983 = vrot.lane.b32.xlu0 %v368, 8
  %v984 = vpop.permute.xlu0 %983
  %985 = vrot.lane.b32.xlu0 %v369, 8
  %v986 = vpop.permute.xlu0 %985
  %987 = vrot.lane.b32.xlu0 %v370, 8
  %v988 = vpop.permute.xlu0 %987
  %989 = vrot.lane.b32.xlu0 %v371, 8
  %v990 = vpop.permute.xlu0 %989
  %991 = vrot.lane.b32.xlu0 %v372, 8
  %v992 = vpop.permute.xlu0 %991
  %993 = vrot.lane.b32.xlu0 %v373, 8
  %v994 = vpop.permute.xlu0 %993
  %995 = vrot.lane.b32.xlu0 %v374, 8
  %v996 = vpop.permute.xlu0 %995
  %997 = vrot.lane.b32.xlu0 %v375, 8
  %v998 = vpop.permute.xlu0 %997
  %999 = vrot.lane.b32.xlu0 %v376, 8
  %v1000 = vpop.permute.xlu0 %999
  %1001 = vrot.lane.b32.xlu0 %v377, 8
  %v1002 = vpop.permute.xlu0 %1001
  %1003 = vrot.lane.b32.xlu0 %v378, 8
  %v1004 = vpop.permute.xlu0 %1003
  %1005 = vrot.lane.b32.xlu0 %v379, 8
  %v1006 = vpop.permute.xlu0 %1005
  %1007 = vrot.lane.b32.xlu0 %v380, 8
  %v1008 = vpop.permute.xlu0 %1007
  %1009 = vrot.lane.b32.xlu0 %v381, 8
  %v1010 = vpop.permute.xlu0 %1009
  %1011 = vrot.lane.b32.xlu0 %v382, 8
  %v1012 = vpop.permute.xlu0 %1011
  %1013 = vrot.lane.b32.xlu0 %v383, 8
  %v1014 = vpop.permute.xlu0 %1013
  %1015 = vrot.lane.b32.xlu0 %v384, 8
  %v1016 = vpop.permute.xlu0 %1015
  %1017 = vrot.lane.b32.xlu0 %v385, 8
  %v1018 = vpop.permute.xlu0 %1017
  %1019 = vrot.lane.b32.xlu0 %v386, 8
  %v1020 = vpop.permute.xlu0 %1019
  %1021 = vrot.lane.b32.xlu0 %v387, 8
  %v1022 = vpop.permute.xlu0 %1021
  %1023 = vrot.lane.b32.xlu0 %v388, 8
  %v1024 = vpop.permute.xlu0 %1023
  %1025 = vrot.lane.b32.xlu0 %v389, 8
  %v1026 = vpop.permute.xlu0 %1025
  %1027 = vrot.lane.b32.xlu0 %v390, 8
  %v1028 = vpop.permute.xlu0 %1027
  %1029 = vrot.lane.b32.xlu0 %v391, 8
  %v1030 = vpop.permute.xlu0 %1029
  %1031 = vrot.lane.b32.xlu0 %v392, 8
  %v1032 = vpop.permute.xlu0 %1031
  %1033 = vrot.lane.b32.xlu0 %v393, 8
  %v1034 = vpop.permute.xlu0 %1033
  %1163 = vrot.lane.b32.xlu0 %v394, 16
  %v1164 = vpop.permute.xlu0 %1163
  %1165 = vrot.lane.b32.xlu0 %v395, 16
  %v1166 = vpop.permute.xlu0 %1165
  %1167 = vrot.lane.b32.xlu0 %v396, 16
  %v1168 = vpop.permute.xlu0 %1167
  %1169 = vrot.lane.b32.xlu0 %v397, 16
  %v1170 = vpop.permute.xlu0 %1169
  %1171 = vrot.lane.b32.xlu0 %v398, 16
  %v1172 = vpop.permute.xlu0 %1171
  %1173 = vrot.lane.b32.xlu0 %v399, 16
  %v1174 = vpop.permute.xlu0 %1173
  %1175 = vrot.lane.b32.xlu0 %v400, 16
  %v1176 = vpop.permute.xlu0 %1175
  %1177 = vrot.lane.b32.xlu0 %v401, 16
  %v1178 = vpop.permute.xlu0 %1177
  %1179 = vrot.lane.b32.xlu0 %v402, 16
  %v1180 = vpop.permute.xlu0 %1179
  %1181 = vrot.lane.b32.xlu0 %v403, 16
  %v1182 = vpop.permute.xlu0 %1181
  %1183 = vrot.lane.b32.xlu0 %v404, 16
  %v1184 = vpop.permute.xlu0 %1183
  %1185 = vrot.lane.b32.xlu0 %v405, 16
  %v1186 = vpop.permute.xlu0 %1185
  %1187 = vrot.lane.b32.xlu0 %v406, 16
  %v1188 = vpop.permute.xlu0 %1187
  %1189 = vrot.lane.b32.xlu0 %v407, 16
  %v1190 = vpop.permute.xlu0 %1189
  %1191 = vrot.lane.b32.xlu0 %v408, 16
  %v1192 = vpop.permute.xlu0 %1191
  %1193 = vrot.lane.b32.xlu0 %v409, 16
  %v1194 = vpop.permute.xlu0 %1193
  %1195 = vrot.lane.b32.xlu0 %v410, 16
  %v1196 = vpop.permute.xlu0 %1195
  %1197 = vrot.lane.b32.xlu0 %v411, 16
  %v1198 = vpop.permute.xlu0 %1197
  %1199 = vrot.lane.b32.xlu0 %v412, 16
  %v1200 = vpop.permute.xlu0 %1199
  %1201 = vrot.lane.b32.xlu0 %v413, 16
  %v1202 = vpop.permute.xlu0 %1201
  %1203 = vrot.lane.b32.xlu0 %v414, 16
  %v1204 = vpop.permute.xlu0 %1203
  %1205 = vrot.lane.b32.xlu0 %v415, 16
  %v1206 = vpop.permute.xlu0 %1205
  %1207 = vrot.lane.b32.xlu0 %v416, 16
  %v1208 = vpop.permute.xlu0 %1207
  %1209 = vrot.lane.b32.xlu0 %v417, 16
  %v1210 = vpop.permute.xlu0 %1209
  %1211 = vrot.lane.b32.xlu0 %v418, 16
  %v1212 = vpop.permute.xlu0 %1211
  %1213 = vrot.lane.b32.xlu0 %v419, 16
  %v1214 = vpop.permute.xlu0 %1213
  %1215 = vrot.lane.b32.xlu0 %v420, 16
  %v1216 = vpop.permute.xlu0 %1215
  %1217 = vrot.lane.b32.xlu0 %v421, 16
  %v1218 = vpop.permute.xlu0 %1217
  %1219 = vrot.lane.b32.xlu0 %v422, 16
  %v1220 = vpop.permute.xlu0 %1219
  %1221 = vrot.lane.b32.xlu0 %v423, 16
  %v1222 = vpop.permute.xlu0 %1221
  %1223 = vrot.lane.b32.xlu0 %v424, 16
  %v1224 = vpop.permute.xlu0 %1223
  %1225 = vrot.lane.b32.xlu0 %v425, 16
  %v1226 = vpop.permute.xlu0 %1225
  %1227 = vrot.lane.b32.xlu0 %v426, 16
  %v1228 = vpop.permute.xlu0 %1227
  %1229 = vrot.lane.b32.xlu0 %v427, 16
  %v1230 = vpop.permute.xlu0 %1229
  %1231 = vrot.lane.b32.xlu0 %v428, 16
  %v1232 = vpop.permute.xlu0 %1231
  %1233 = vrot.lane.b32.xlu0 %v429, 16
  %v1234 = vpop.permute.xlu0 %1233
  %1235 = vrot.lane.b32.xlu0 %v430, 16
  %v1236 = vpop.permute.xlu0 %1235
  %1237 = vrot.lane.b32.xlu0 %v431, 16
  %v1238 = vpop.permute.xlu0 %1237
  %1239 = vrot.lane.b32.xlu0 %v432, 16
  %v1240 = vpop.permute.xlu0 %1239
  %1241 = vrot.lane.b32.xlu0 %v433, 16
  %v1242 = vpop.permute.xlu0 %1241
  %1243 = vrot.lane.b32.xlu0 %v434, 16
  %v1244 = vpop.permute.xlu0 %1243
  %1245 = vrot.lane.b32.xlu0 %v435, 16
  %v1246 = vpop.permute.xlu0 %1245
  %1247 = vrot.lane.b32.xlu0 %v436, 16
  %v1248 = vpop.permute.xlu0 %1247
  %1249 = vrot.lane.b32.xlu0 %v437, 16
  %v1250 = vpop.permute.xlu0 %1249
  %1251 = vrot.lane.b32.xlu0 %v438, 16
  %v1252 = vpop.permute.xlu0 %1251
  %1253 = vrot.lane.b32.xlu0 %v439, 16
  %v1254 = vpop.permute.xlu0 %1253
  %1255 = vrot.lane.b32.xlu0 %v440, 16
  %v1256 = vpop.permute.xlu0 %1255
  %1257 = vrot.lane.b32.xlu0 %v441, 16
  %v1258 = vpop.permute.xlu0 %1257
  %1259 = vrot.lane.b32.xlu0 %v442, 16
  %v1260 = vpop.permute.xlu0 %1259
  %1261 = vrot.lane.b32.xlu0 %v443, 16
  %v1262 = vpop.permute.xlu0 %1261
  %1263 = vrot.lane.b32.xlu0 %v444, 16
  %v1264 = vpop.permute.xlu0 %1263
  %1265 = vrot.lane.b32.xlu0 %v445, 16
  %v1266 = vpop.permute.xlu0 %1265
  %1267 = vrot.lane.b32.xlu0 %v446, 16
  %v1268 = vpop.permute.xlu0 %1267
  %1269 = vrot.lane.b32.xlu0 %v447, 16
  %v1270 = vpop.permute.xlu0 %1269
  %1271 = vrot.lane.b32.xlu0 %v448, 16
  %v1272 = vpop.permute.xlu0 %1271
  %1273 = vrot.lane.b32.xlu0 %v449, 16
  %v1274 = vpop.permute.xlu0 %1273
  %1275 = vrot.lane.b32.xlu0 %v450, 16
  %v1276 = vpop.permute.xlu0 %1275
  %1277 = vrot.lane.b32.xlu0 %v451, 16
  %v1278 = vpop.permute.xlu0 %1277
  %1279 = vrot.lane.b32.xlu0 %v452, 16
  %v1280 = vpop.permute.xlu0 %1279
  %1281 = vrot.lane.b32.xlu0 %v453, 16
  %v1282 = vpop.permute.xlu0 %1281
  %1283 = vrot.lane.b32.xlu0 %v454, 16
  %v1284 = vpop.permute.xlu0 %1283
  %1285 = vrot.lane.b32.xlu0 %v455, 16
  %v1286 = vpop.permute.xlu0 %1285
  %1287 = vrot.lane.b32.xlu0 %v456, 16
  %v1288 = vpop.permute.xlu0 %1287
  %1289 = vrot.lane.b32.xlu0 %v457, 16
  %v1290 = vpop.permute.xlu0 %1289
  %1419 = vrot.lane.b32.xlu0 %v458, 24
  %v1420 = vpop.permute.xlu0 %1419
  %1421 = vrot.lane.b32.xlu0 %v459, 24
  %v1422 = vpop.permute.xlu0 %1421
  %1423 = vrot.lane.b32.xlu0 %v460, 24
  %v1424 = vpop.permute.xlu0 %1423
  %1425 = vrot.lane.b32.xlu0 %v461, 24
  %v1426 = vpop.permute.xlu0 %1425
  %1427 = vrot.lane.b32.xlu0 %v462, 24
  %v1428 = vpop.permute.xlu0 %1427
  %1429 = vrot.lane.b32.xlu0 %v463, 24
  %v1430 = vpop.permute.xlu0 %1429
  %1431 = vrot.lane.b32.xlu0 %v464, 24
  %v1432 = vpop.permute.xlu0 %1431
  %1433 = vrot.lane.b32.xlu0 %v465, 24
  %v1434 = vpop.permute.xlu0 %1433
  %1435 = vrot.lane.b32.xlu0 %v466, 24
  %v1436 = vpop.permute.xlu0 %1435
  %1437 = vrot.lane.b32.xlu0 %v467, 24
  %v1438 = vpop.permute.xlu0 %1437
  %1439 = vrot.lane.b32.xlu0 %v468, 24
  %v1440 = vpop.permute.xlu0 %1439
  %1441 = vrot.lane.b32.xlu0 %v469, 24
  %v1442 = vpop.permute.xlu0 %1441
  %1443 = vrot.lane.b32.xlu0 %v470, 24
  %v1444 = vpop.permute.xlu0 %1443
  %1445 = vrot.lane.b32.xlu0 %v471, 24
  %v1446 = vpop.permute.xlu0 %1445
  %1447 = vrot.lane.b32.xlu0 %v472, 24
  %v1448 = vpop.permute.xlu0 %1447
  %1449 = vrot.lane.b32.xlu0 %v473, 24
  %v1450 = vpop.permute.xlu0 %1449
  %1451 = vrot.lane.b32.xlu0 %v474, 24
  %v1452 = vpop.permute.xlu0 %1451
  %1453 = vrot.lane.b32.xlu0 %v475, 24
  %v1454 = vpop.permute.xlu0 %1453
  %1455 = vrot.lane.b32.xlu0 %v476, 24
  %v1456 = vpop.permute.xlu0 %1455
  %1457 = vrot.lane.b32.xlu0 %v477, 24
  %v1458 = vpop.permute.xlu0 %1457
  %1459 = vrot.lane.b32.xlu0 %v478, 24
  %v1460 = vpop.permute.xlu0 %1459
  %1461 = vrot.lane.b32.xlu0 %v479, 24
  %v1462 = vpop.permute.xlu0 %1461
  %1463 = vrot.lane.b32.xlu0 %v480, 24
  %v1464 = vpop.permute.xlu0 %1463
  %1465 = vrot.lane.b32.xlu0 %v481, 24
  %v1466 = vpop.permute.xlu0 %1465
  %1467 = vrot.lane.b32.xlu0 %v482, 24
  %v1468 = vpop.permute.xlu0 %1467
  %1469 = vrot.lane.b32.xlu0 %v483, 24
  %v1470 = vpop.permute.xlu0 %1469
  %1471 = vrot.lane.b32.xlu0 %v484, 24
  %v1472 = vpop.permute.xlu0 %1471
  %1473 = vrot.lane.b32.xlu0 %v485, 24
  %v1474 = vpop.permute.xlu0 %1473
  %1475 = vrot.lane.b32.xlu0 %v486, 24
  %v1476 = vpop.permute.xlu0 %1475
  %1477 = vrot.lane.b32.xlu0 %v487, 24
  %v1478 = vpop.permute.xlu0 %1477
  %1479 = vrot.lane.b32.xlu0 %v488, 24
  %v1480 = vpop.permute.xlu0 %1479
  %1481 = vrot.lane.b32.xlu0 %v489, 24
  %v1482 = vpop.permute.xlu0 %1481
  %1483 = vrot.lane.b32.xlu0 %v490, 24
  %v1484 = vpop.permute.xlu0 %1483
  %1485 = vrot.lane.b32.xlu0 %v491, 24
  %v1486 = vpop.permute.xlu0 %1485
  %1487 = vrot.lane.b32.xlu0 %v492, 24
  %v1488 = vpop.permute.xlu0 %1487
  %1489 = vrot.lane.b32.xlu0 %v493, 24
  %v1490 = vpop.permute.xlu0 %1489
  %1491 = vrot.lane.b32.xlu0 %v494, 24
  %v1492 = vpop.permute.xlu0 %1491
  %1493 = vrot.lane.b32.xlu0 %v495, 24
  %v1494 = vpop.permute.xlu0 %1493
  %1495 = vrot.lane.b32.xlu0 %v496, 24
  %v1496 = vpop.permute.xlu0 %1495
  %1497 = vrot.lane.b32.xlu0 %v497, 24
  %v1498 = vpop.permute.xlu0 %1497
  %1499 = vrot.lane.b32.xlu0 %v498, 24
  %v1500 = vpop.permute.xlu0 %1499
  %1501 = vrot.lane.b32.xlu0 %v499, 24
  %v1502 = vpop.permute.xlu0 %1501
  %1503 = vrot.lane.b32.xlu0 %v500, 24
  %v1504 = vpop.permute.xlu0 %1503
  %1505 = vrot.lane.b32.xlu0 %v501, 24
  %v1506 = vpop.permute.xlu0 %1505
  %1507 = vrot.lane.b32.xlu0 %v502, 24
  %v1508 = vpop.permute.xlu0 %1507
  %1509 = vrot.lane.b32.xlu0 %v503, 24
  %v1510 = vpop.permute.xlu0 %1509
  %1511 = vrot.lane.b32.xlu0 %v504, 24
  %v1512 = vpop.permute.xlu0 %1511
  %1513 = vrot.lane.b32.xlu0 %v505, 24
  %v1514 = vpop.permute.xlu0 %1513
  %1515 = vrot.lane.b32.xlu0 %v506, 24
  %v1516 = vpop.permute.xlu0 %1515
  %1517 = vrot.lane.b32.xlu0 %v507, 24
  %v1518 = vpop.permute.xlu0 %1517
  %1519 = vrot.lane.b32.xlu0 %v508, 24
  %v1520 = vpop.permute.xlu0 %1519
  %1521 = vrot.lane.b32.xlu0 %v509, 24
  %v1522 = vpop.permute.xlu0 %1521
  %1523 = vrot.lane.b32.xlu0 %v510, 24
  %v1524 = vpop.permute.xlu0 %1523
  %1525 = vrot.lane.b32.xlu0 %v511, 24
  %v1526 = vpop.permute.xlu0 %1525
  %1527 = vrot.lane.b32.xlu0 %v512, 24
  %v1528 = vpop.permute.xlu0 %1527
  %1529 = vrot.lane.b32.xlu0 %v513, 24
  %v1530 = vpop.permute.xlu0 %1529
  %1531 = vrot.lane.b32.xlu0 %v514, 24
  %v1532 = vpop.permute.xlu0 %1531
  %1533 = vrot.lane.b32.xlu0 %v515, 24
  %v1534 = vpop.permute.xlu0 %1533
  %1535 = vrot.lane.b32.xlu0 %v516, 24
  %v1536 = vpop.permute.xlu0 %1535
  %1537 = vrot.lane.b32.xlu0 %v517, 24
  %v1538 = vpop.permute.xlu0 %1537
  %1539 = vrot.lane.b32.xlu0 %v518, 24
  %v1540 = vpop.permute.xlu0 %1539
  %1541 = vrot.lane.b32.xlu0 %v519, 24
  %v1542 = vpop.permute.xlu0 %1541
  %1543 = vrot.lane.b32.xlu0 %v520, 24
  %v1544 = vpop.permute.xlu0 %1543
  %1545 = vrot.lane.b32.xlu0 %v521, 24
  %v1546 = vpop.permute.xlu0 %1545
  %1675 = vrot.lane.b32.xlu0 %v522, 32
  %v1676 = vpop.permute.xlu0 %1675
  %1677 = vrot.lane.b32.xlu0 %v523, 32
  %v1678 = vpop.permute.xlu0 %1677
  %1679 = vrot.lane.b32.xlu0 %v524, 32
  %v1680 = vpop.permute.xlu0 %1679
  %1681 = vrot.lane.b32.xlu0 %v525, 32
  %v1682 = vpop.permute.xlu0 %1681
  %1683 = vrot.lane.b32.xlu0 %v526, 32
  %v1684 = vpop.permute.xlu0 %1683
  %1685 = vrot.lane.b32.xlu0 %v527, 32
  %v1686 = vpop.permute.xlu0 %1685
  %1687 = vrot.lane.b32.xlu0 %v528, 32
  %v1688 = vpop.permute.xlu0 %1687
  %1689 = vrot.lane.b32.xlu0 %v529, 32
  %v1690 = vpop.permute.xlu0 %1689
  %1691 = vrot.lane.b32.xlu0 %v530, 32
  %v1692 = vpop.permute.xlu0 %1691
  %1693 = vrot.lane.b32.xlu0 %v531, 32
  %v1694 = vpop.permute.xlu0 %1693
  %1695 = vrot.lane.b32.xlu0 %v532, 32
  %v1696 = vpop.permute.xlu0 %1695
  %1697 = vrot.lane.b32.xlu0 %v533, 32
  %v1698 = vpop.permute.xlu0 %1697
  %1699 = vrot.lane.b32.xlu0 %v534, 32
  %v1700 = vpop.permute.xlu0 %1699
  %1701 = vrot.lane.b32.xlu0 %v535, 32
  %v1702 = vpop.permute.xlu0 %1701
  %1703 = vrot.lane.b32.xlu0 %v536, 32
  %v1704 = vpop.permute.xlu0 %1703
  %1705 = vrot.lane.b32.xlu0 %v537, 32
  %v1706 = vpop.permute.xlu0 %1705
  %1707 = vrot.lane.b32.xlu0 %v538, 32
  %v1708 = vpop.permute.xlu0 %1707
  %1709 = vrot.lane.b32.xlu0 %v539, 32
  %v1710 = vpop.permute.xlu0 %1709
  %1711 = vrot.lane.b32.xlu0 %v540, 32
  %v1712 = vpop.permute.xlu0 %1711
  %1713 = vrot.lane.b32.xlu0 %v541, 32
  %v1714 = vpop.permute.xlu0 %1713
  %1715 = vrot.lane.b32.xlu0 %v542, 32
  %v1716 = vpop.permute.xlu0 %1715
  %1717 = vrot.lane.b32.xlu0 %v543, 32
  %v1718 = vpop.permute.xlu0 %1717
  %1719 = vrot.lane.b32.xlu0 %v544, 32
  %v1720 = vpop.permute.xlu0 %1719
  %1721 = vrot.lane.b32.xlu0 %v545, 32
  %v1722 = vpop.permute.xlu0 %1721
  %1723 = vrot.lane.b32.xlu0 %v546, 32
  %v1724 = vpop.permute.xlu0 %1723
  %1725 = vrot.lane.b32.xlu0 %v547, 32
  %v1726 = vpop.permute.xlu0 %1725
  %1727 = vrot.lane.b32.xlu0 %v548, 32
  %v1728 = vpop.permute.xlu0 %1727
  %1729 = vrot.lane.b32.xlu0 %v549, 32
  %v1730 = vpop.permute.xlu0 %1729
  %1731 = vrot.lane.b32.xlu0 %v550, 32
  %v1732 = vpop.permute.xlu0 %1731
  %1733 = vrot.lane.b32.xlu0 %v551, 32
  %v1734 = vpop.permute.xlu0 %1733
  %1735 = vrot.lane.b32.xlu0 %v552, 32
  %v1736 = vpop.permute.xlu0 %1735
  %1737 = vrot.lane.b32.xlu0 %v553, 32
  %v1738 = vpop.permute.xlu0 %1737
  %1739 = vrot.lane.b32.xlu0 %v554, 32
  %v1740 = vpop.permute.xlu0 %1739
  %1741 = vrot.lane.b32.xlu0 %v555, 32
  %v1742 = vpop.permute.xlu0 %1741
  %1743 = vrot.lane.b32.xlu0 %v556, 32
  %v1744 = vpop.permute.xlu0 %1743
  %1745 = vrot.lane.b32.xlu0 %v557, 32
  %v1746 = vpop.permute.xlu0 %1745
  %1747 = vrot.lane.b32.xlu0 %v558, 32
  %v1748 = vpop.permute.xlu0 %1747
  %1749 = vrot.lane.b32.xlu0 %v559, 32
  %v1750 = vpop.permute.xlu0 %1749
  %1751 = vrot.lane.b32.xlu0 %v560, 32
  %v1752 = vpop.permute.xlu0 %1751
  %1753 = vrot.lane.b32.xlu0 %v561, 32
  %v1754 = vpop.permute.xlu0 %1753
  %1755 = vrot.lane.b32.xlu0 %v562, 32
  %v1756 = vpop.permute.xlu0 %1755
  %1757 = vrot.lane.b32.xlu0 %v563, 32
  %v1758 = vpop.permute.xlu0 %1757
  %1759 = vrot.lane.b32.xlu0 %v564, 32
  %v1760 = vpop.permute.xlu0 %1759
  %1761 = vrot.lane.b32.xlu0 %v565, 32
  %v1762 = vpop.permute.xlu0 %1761
  %1763 = vrot.lane.b32.xlu0 %v566, 32
  %v1764 = vpop.permute.xlu0 %1763
  %1765 = vrot.lane.b32.xlu0 %v567, 32
  %v1766 = vpop.permute.xlu0 %1765
  %1767 = vrot.lane.b32.xlu0 %v568, 32
  %v1768 = vpop.permute.xlu0 %1767
  %1769 = vrot.lane.b32.xlu0 %v569, 32
  %v1770 = vpop.permute.xlu0 %1769
  %1771 = vrot.lane.b32.xlu0 %v570, 32
  %v1772 = vpop.permute.xlu0 %1771
  %1773 = vrot.lane.b32.xlu0 %v571, 32
  %v1774 = vpop.permute.xlu0 %1773
  %1775 = vrot.lane.b32.xlu0 %v572, 32
  %v1776 = vpop.permute.xlu0 %1775
  %1777 = vrot.lane.b32.xlu0 %v573, 32
  %v1778 = vpop.permute.xlu0 %1777
  %1779 = vrot.lane.b32.xlu0 %v574, 32
  %v1780 = vpop.permute.xlu0 %1779
  %1781 = vrot.lane.b32.xlu0 %v575, 32
  %v1782 = vpop.permute.xlu0 %1781
  %1783 = vrot.lane.b32.xlu0 %v576, 32
  %v1784 = vpop.permute.xlu0 %1783
  %1785 = vrot.lane.b32.xlu0 %v577, 32
  %v1786 = vpop.permute.xlu0 %1785
  %1787 = vrot.lane.b32.xlu0 %v578, 32
  %v1788 = vpop.permute.xlu0 %1787
  %1789 = vrot.lane.b32.xlu0 %v579, 32
  %v1790 = vpop.permute.xlu0 %1789
  %1791 = vrot.lane.b32.xlu0 %v580, 32
  %v1792 = vpop.permute.xlu0 %1791
  %1793 = vrot.lane.b32.xlu0 %v581, 32
  %v1794 = vpop.permute.xlu0 %1793
  %1795 = vrot.lane.b32.xlu0 %v582, 32
  %v1796 = vpop.permute.xlu0 %1795
  %1797 = vrot.lane.b32.xlu0 %v583, 32
  %v1798 = vpop.permute.xlu0 %1797
  %1799 = vrot.lane.b32.xlu0 %v584, 32
  %v1800 = vpop.permute.xlu0 %1799
  %1801 = vrot.lane.b32.xlu0 %v585, 32
  %v1802 = vpop.permute.xlu0 %1801
  %1931 = vrot.lane.b32.xlu0 %v586, 40
  %v1932 = vpop.permute.xlu0 %1931
  %1933 = vrot.lane.b32.xlu0 %v587, 40
  %v1934 = vpop.permute.xlu0 %1933
  %1935 = vrot.lane.b32.xlu0 %v588, 40
  %v1936 = vpop.permute.xlu0 %1935
  %1937 = vrot.lane.b32.xlu0 %v589, 40
  %v1938 = vpop.permute.xlu0 %1937
  %1939 = vrot.lane.b32.xlu0 %v590, 40
  %v1940 = vpop.permute.xlu0 %1939
  %1941 = vrot.lane.b32.xlu0 %v591, 40
  %v1942 = vpop.permute.xlu0 %1941
  %1943 = vrot.lane.b32.xlu0 %v592, 40
  %v1944 = vpop.permute.xlu0 %1943
  %1945 = vrot.lane.b32.xlu0 %v593, 40
  %v1946 = vpop.permute.xlu0 %1945
  %1947 = vrot.lane.b32.xlu0 %v594, 40
  %v1948 = vpop.permute.xlu0 %1947
  %1949 = vrot.lane.b32.xlu0 %v595, 40
  %v1950 = vpop.permute.xlu0 %1949
  %1951 = vrot.lane.b32.xlu0 %v596, 40
  %v1952 = vpop.permute.xlu0 %1951
  %1953 = vrot.lane.b32.xlu0 %v597, 40
  %v1954 = vpop.permute.xlu0 %1953
  %1955 = vrot.lane.b32.xlu0 %v598, 40
  %v1956 = vpop.permute.xlu0 %1955
  %1957 = vrot.lane.b32.xlu0 %v599, 40
  %v1958 = vpop.permute.xlu0 %1957
  %1959 = vrot.lane.b32.xlu0 %v600, 40
  %v1960 = vpop.permute.xlu0 %1959
  %1961 = vrot.lane.b32.xlu0 %v601, 40
  %v1962 = vpop.permute.xlu0 %1961
  %1963 = vrot.lane.b32.xlu0 %v602, 40
  %v1964 = vpop.permute.xlu0 %1963
  %1965 = vrot.lane.b32.xlu0 %v603, 40
  %v1966 = vpop.permute.xlu0 %1965
  %1967 = vrot.lane.b32.xlu0 %v604, 40
  %v1968 = vpop.permute.xlu0 %1967
  %1969 = vrot.lane.b32.xlu0 %v605, 40
  %v1970 = vpop.permute.xlu0 %1969
  %1971 = vrot.lane.b32.xlu0 %v606, 40
  %v1972 = vpop.permute.xlu0 %1971
  %1973 = vrot.lane.b32.xlu0 %v607, 40
  %v1974 = vpop.permute.xlu0 %1973
  %1975 = vrot.lane.b32.xlu0 %v608, 40
  %v1976 = vpop.permute.xlu0 %1975
  %1977 = vrot.lane.b32.xlu0 %v609, 40
  %v1978 = vpop.permute.xlu0 %1977
  %1979 = vrot.lane.b32.xlu0 %v610, 40
  %v1980 = vpop.permute.xlu0 %1979
  %1981 = vrot.lane.b32.xlu0 %v611, 40
  %v1982 = vpop.permute.xlu0 %1981
  %1983 = vrot.lane.b32.xlu0 %v612, 40
  %v1984 = vpop.permute.xlu0 %1983
  %1985 = vrot.lane.b32.xlu0 %v613, 40
  %v1986 = vpop.permute.xlu0 %1985
  %1987 = vrot.lane.b32.xlu0 %v614, 40
  %v1988 = vpop.permute.xlu0 %1987
  %1989 = vrot.lane.b32.xlu0 %v615, 40
  %v1990 = vpop.permute.xlu0 %1989
  %1991 = vrot.lane.b32.xlu0 %v616, 40
  %v1992 = vpop.permute.xlu0 %1991
  %1993 = vrot.lane.b32.xlu0 %v617, 40
  %v1994 = vpop.permute.xlu0 %1993
  %1995 = vrot.lane.b32.xlu0 %v618, 40
  %v1996 = vpop.permute.xlu0 %1995
  %1997 = vrot.lane.b32.xlu0 %v619, 40
  %v1998 = vpop.permute.xlu0 %1997
  %1999 = vrot.lane.b32.xlu0 %v620, 40
  %v2000 = vpop.permute.xlu0 %1999
  %2001 = vrot.lane.b32.xlu0 %v621, 40
  %v2002 = vpop.permute.xlu0 %2001
  %2003 = vrot.lane.b32.xlu0 %v622, 40
  %v2004 = vpop.permute.xlu0 %2003
  %2005 = vrot.lane.b32.xlu0 %v623, 40
  %v2006 = vpop.permute.xlu0 %2005
  %2007 = vrot.lane.b32.xlu0 %v624, 40
  %v2008 = vpop.permute.xlu0 %2007
  %2009 = vrot.lane.b32.xlu0 %v625, 40
  %v2010 = vpop.permute.xlu0 %2009
  %2011 = vrot.lane.b32.xlu0 %v626, 40
  %v2012 = vpop.permute.xlu0 %2011
  %2013 = vrot.lane.b32.xlu0 %v627, 40
  %v2014 = vpop.permute.xlu0 %2013
  %2015 = vrot.lane.b32.xlu0 %v628, 40
  %v2016 = vpop.permute.xlu0 %2015
  %2017 = vrot.lane.b32.xlu0 %v629, 40
  %v2018 = vpop.permute.xlu0 %2017
  %2019 = vrot.lane.b32.xlu0 %v630, 40
  %v2020 = vpop.permute.xlu0 %2019
  %2021 = vrot.lane.b32.xlu0 %v631, 40
  %v2022 = vpop.permute.xlu0 %2021
  %2023 = vrot.lane.b32.xlu0 %v632, 40
  %v2024 = vpop.permute.xlu0 %2023
  %2025 = vrot.lane.b32.xlu0 %v633, 40
  %v2026 = vpop.permute.xlu0 %2025
  %2027 = vrot.lane.b32.xlu0 %v634, 40
  %v2028 = vpop.permute.xlu0 %2027
  %2029 = vrot.lane.b32.xlu0 %v635, 40
  %v2030 = vpop.permute.xlu0 %2029
  %2031 = vrot.lane.b32.xlu0 %v636, 40
  %v2032 = vpop.permute.xlu0 %2031
  %2033 = vrot.lane.b32.xlu0 %v637, 40
  %v2034 = vpop.permute.xlu0 %2033
  %2035 = vrot.lane.b32.xlu0 %v638, 40
  %v2036 = vpop.permute.xlu0 %2035
  %2037 = vrot.lane.b32.xlu0 %v639, 40
  %v2038 = vpop.permute.xlu0 %2037
  %2039 = vrot.lane.b32.xlu0 %v640, 40
  %v2040 = vpop.permute.xlu0 %2039
  %2041 = vrot.lane.b32.xlu0 %v641, 40
  %v2042 = vpop.permute.xlu0 %2041
  %2043 = vrot.lane.b32.xlu0 %v642, 40
  %v2044 = vpop.permute.xlu0 %2043
  %2045 = vrot.lane.b32.xlu0 %v643, 40
  %v2046 = vpop.permute.xlu0 %2045
  %2047 = vrot.lane.b32.xlu0 %v644, 40
  %v2048 = vpop.permute.xlu0 %2047
  %2049 = vrot.lane.b32.xlu0 %v645, 40
  %v2050 = vpop.permute.xlu0 %2049
  %2051 = vrot.lane.b32.xlu0 %v646, 40
  %v2052 = vpop.permute.xlu0 %2051
  %2053 = vrot.lane.b32.xlu0 %v647, 40
  %v2054 = vpop.permute.xlu0 %2053
  %2055 = vrot.lane.b32.xlu0 %v648, 40
  %v2056 = vpop.permute.xlu0 %2055
  %2057 = vrot.lane.b32.xlu0 %v649, 40
  %v2058 = vpop.permute.xlu0 %2057
  %2187 = vrot.lane.b32.xlu0 %v651, 48
  %v2188 = vpop.permute.xlu0 %2187
  %2189 = vrot.lane.b32.xlu0 %v652, 48
  %v2190 = vpop.permute.xlu0 %2189
  %2191 = vrot.lane.b32.xlu0 %v653, 48
  %v2192 = vpop.permute.xlu0 %2191
  %2193 = vrot.lane.b32.xlu0 %v654, 48
  %v2194 = vpop.permute.xlu0 %2193
  %2195 = vrot.lane.b32.xlu0 %v655, 48
  %v2196 = vpop.permute.xlu0 %2195
  %2197 = vrot.lane.b32.xlu0 %v656, 48
  %v2198 = vpop.permute.xlu0 %2197
  %2199 = vrot.lane.b32.xlu0 %v657, 48
  %v2200 = vpop.permute.xlu0 %2199
  %2201 = vrot.lane.b32.xlu0 %v658, 48
  %v2202 = vpop.permute.xlu0 %2201
  %2203 = vrot.lane.b32.xlu0 %v659, 48
  %v2204 = vpop.permute.xlu0 %2203
  %2205 = vrot.lane.b32.xlu0 %v660, 48
  %v2206 = vpop.permute.xlu0 %2205
  %2207 = vrot.lane.b32.xlu0 %v661, 48
  %v2208 = vpop.permute.xlu0 %2207
  %2209 = vrot.lane.b32.xlu0 %v662, 48
  %v2210 = vpop.permute.xlu0 %2209
  %2211 = vrot.lane.b32.xlu0 %v663, 48
  %v2212 = vpop.permute.xlu0 %2211
  %2213 = vrot.lane.b32.xlu0 %v664, 48
  %v2214 = vpop.permute.xlu0 %2213
  %2215 = vrot.lane.b32.xlu0 %v665, 48
  %v2216 = vpop.permute.xlu0 %2215
  %2217 = vrot.lane.b32.xlu0 %v666, 48
  %v2218 = vpop.permute.xlu0 %2217
  %2219 = vrot.lane.b32.xlu0 %v667, 48
  %v2220 = vpop.permute.xlu0 %2219
  %2221 = vrot.lane.b32.xlu0 %v668, 48
  %v2222 = vpop.permute.xlu0 %2221
  %2223 = vrot.lane.b32.xlu0 %v669, 48
  %v2224 = vpop.permute.xlu0 %2223
  %2225 = vrot.lane.b32.xlu0 %v670, 48
  %v2226 = vpop.permute.xlu0 %2225
  %2227 = vrot.lane.b32.xlu0 %v671, 48
  %v2228 = vpop.permute.xlu0 %2227
  %2229 = vrot.lane.b32.xlu0 %v672, 48
  %v2230 = vpop.permute.xlu0 %2229
  %2231 = vrot.lane.b32.xlu0 %v673, 48
  %v2232 = vpop.permute.xlu0 %2231
  %2233 = vrot.lane.b32.xlu0 %v674, 48
  %v2234 = vpop.permute.xlu0 %2233
  %2235 = vrot.lane.b32.xlu0 %v675, 48
  %v2236 = vpop.permute.xlu0 %2235
  %2237 = vrot.lane.b32.xlu0 %v676, 48
  %v2238 = vpop.permute.xlu0 %2237
  %2239 = vrot.lane.b32.xlu0 %v677, 48
  %v2240 = vpop.permute.xlu0 %2239
  %2241 = vrot.lane.b32.xlu0 %v678, 48
  %v2242 = vpop.permute.xlu0 %2241
  %2243 = vrot.lane.b32.xlu0 %v679, 48
  %v2244 = vpop.permute.xlu0 %2243
  %2245 = vrot.lane.b32.xlu0 %v680, 48
  %v2246 = vpop.permute.xlu0 %2245
  %2247 = vrot.lane.b32.xlu0 %v681, 48
  %v2248 = vpop.permute.xlu0 %2247
  %2249 = vrot.lane.b32.xlu0 %v682, 48
  %v2250 = vpop.permute.xlu0 %2249
  %2251 = vrot.lane.b32.xlu0 %v683, 48
  %v2252 = vpop.permute.xlu0 %2251
  %2253 = vrot.lane.b32.xlu0 %v684, 48
  %v2254 = vpop.permute.xlu0 %2253
  %2255 = vrot.lane.b32.xlu0 %v685, 48
  %v2256 = vpop.permute.xlu0 %2255
  %2257 = vrot.lane.b32.xlu0 %v686, 48
  %v2258 = vpop.permute.xlu0 %2257
  %2259 = vrot.lane.b32.xlu0 %v687, 48
  %v2260 = vpop.permute.xlu0 %2259
  %2261 = vrot.lane.b32.xlu0 %v688, 48
  %v2262 = vpop.permute.xlu0 %2261
  %2263 = vrot.lane.b32.xlu0 %v689, 48
  %v2264 = vpop.permute.xlu0 %2263
  %2265 = vrot.lane.b32.xlu0 %v690, 48
  %v2266 = vpop.permute.xlu0 %2265
  %2267 = vrot.lane.b32.xlu0 %v691, 48
  %v2268 = vpop.permute.xlu0 %2267
  %2269 = vrot.lane.b32.xlu0 %v692, 48
  %v2270 = vpop.permute.xlu0 %2269
  %2271 = vrot.lane.b32.xlu0 %v693, 48
  %v2272 = vpop.permute.xlu0 %2271
  %2273 = vrot.lane.b32.xlu0 %v694, 48
  %v2274 = vpop.permute.xlu0 %2273
  %2275 = vrot.lane.b32.xlu0 %v695, 48
  %v2276 = vpop.permute.xlu0 %2275
  %2277 = vrot.lane.b32.xlu0 %v696, 48
  %v2278 = vpop.permute.xlu0 %2277
  %2279 = vrot.lane.b32.xlu0 %v697, 48
  %v2280 = vpop.permute.xlu0 %2279
  %2281 = vrot.lane.b32.xlu0 %v698, 48
  %v2282 = vpop.permute.xlu0 %2281
  %2283 = vrot.lane.b32.xlu0 %v699, 48
  %v2284 = vpop.permute.xlu0 %2283
  %2285 = vrot.lane.b32.xlu0 %v700, 48
  %v2286 = vpop.permute.xlu0 %2285
  %2287 = vrot.lane.b32.xlu0 %v701, 48
  %v2288 = vpop.permute.xlu0 %2287
  %2289 = vrot.lane.b32.xlu0 %v702, 48
  %v2290 = vpop.permute.xlu0 %2289
  %2291 = vrot.lane.b32.xlu0 %v703, 48
  %v2292 = vpop.permute.xlu0 %2291
  %2293 = vrot.lane.b32.xlu0 %v704, 48
  %v2294 = vpop.permute.xlu0 %2293
  %2295 = vrot.lane.b32.xlu0 %v705, 48
  %v2296 = vpop.permute.xlu0 %2295
  %2297 = vrot.lane.b32.xlu0 %v706, 48
  %v2298 = vpop.permute.xlu0 %2297
  %2299 = vrot.lane.b32.xlu0 %v707, 48
  %v2300 = vpop.permute.xlu0 %2299
  %2301 = vrot.lane.b32.xlu0 %v708, 48
  %v2302 = vpop.permute.xlu0 %2301
  %2303 = vrot.lane.b32.xlu0 %v709, 48
  %v2304 = vpop.permute.xlu0 %2303
  %2305 = vrot.lane.b32.xlu0 %v710, 48
  %v2306 = vpop.permute.xlu0 %2305
  %2307 = vrot.lane.b32.xlu0 %v711, 48
  %v2308 = vpop.permute.xlu0 %2307
  %2309 = vrot.lane.b32.xlu0 %v712, 48
  %v2310 = vpop.permute.xlu0 %2309
  %2311 = vrot.lane.b32.xlu0 %v713, 48
  %v2312 = vpop.permute.xlu0 %2311
  %2313 = vrot.lane.b32.xlu0 %v714, 48
  %v2314 = vpop.permute.xlu0 %2313
  %2443 = vrot.lane.b32.xlu0 %v715, 56
  %v2444 = vpop.permute.xlu0 %2443
  %2445 = vrot.lane.b32.xlu0 %v716, 56
  %v2446 = vpop.permute.xlu0 %2445
  %2447 = vrot.lane.b32.xlu0 %v717, 56
  %v2448 = vpop.permute.xlu0 %2447
  %2449 = vrot.lane.b32.xlu0 %v718, 56
  %v2450 = vpop.permute.xlu0 %2449
  %2451 = vrot.lane.b32.xlu0 %v719, 56
  %v2452 = vpop.permute.xlu0 %2451
  %2453 = vrot.lane.b32.xlu0 %v720, 56
  %v2454 = vpop.permute.xlu0 %2453
  %2455 = vrot.lane.b32.xlu0 %v721, 56
  %v2456 = vpop.permute.xlu0 %2455
  %2457 = vrot.lane.b32.xlu0 %v722, 56
  %v2458 = vpop.permute.xlu0 %2457
  %2459 = vrot.lane.b32.xlu0 %v723, 56
  %v2460 = vpop.permute.xlu0 %2459
  %2461 = vrot.lane.b32.xlu0 %v724, 56
  %v2462 = vpop.permute.xlu0 %2461
  %2463 = vrot.lane.b32.xlu0 %v725, 56
  %v2464 = vpop.permute.xlu0 %2463
  %2465 = vrot.lane.b32.xlu0 %v726, 56
  %v2466 = vpop.permute.xlu0 %2465
  %2467 = vrot.lane.b32.xlu0 %v727, 56
  %v2468 = vpop.permute.xlu0 %2467
  %2469 = vrot.lane.b32.xlu0 %v728, 56
  %v2470 = vpop.permute.xlu0 %2469
  %2471 = vrot.lane.b32.xlu0 %v729, 56
  %v2472 = vpop.permute.xlu0 %2471
  %2473 = vrot.lane.b32.xlu0 %v730, 56
  %v2474 = vpop.permute.xlu0 %2473
  %2475 = vrot.lane.b32.xlu0 %v731, 56
  %v2476 = vpop.permute.xlu0 %2475
  %2477 = vrot.lane.b32.xlu0 %v732, 56
  %v2478 = vpop.permute.xlu0 %2477
  %2479 = vrot.lane.b32.xlu0 %v733, 56
  %v2480 = vpop.permute.xlu0 %2479
  %2481 = vrot.lane.b32.xlu0 %v734, 56
  %v2482 = vpop.permute.xlu0 %2481
  %2483 = vrot.lane.b32.xlu0 %v735, 56
  %v2484 = vpop.permute.xlu0 %2483
  %2485 = vrot.lane.b32.xlu0 %v736, 56
  %v2486 = vpop.permute.xlu0 %2485
  %2487 = vrot.lane.b32.xlu0 %v737, 56
  %v2488 = vpop.permute.xlu0 %2487
  %2489 = vrot.lane.b32.xlu0 %v738, 56
  %v2490 = vpop.permute.xlu0 %2489
  %2491 = vrot.lane.b32.xlu0 %v739, 56
  %v2492 = vpop.permute.xlu0 %2491
  %2493 = vrot.lane.b32.xlu0 %v740, 56
  %v2494 = vpop.permute.xlu0 %2493
  %2495 = vrot.lane.b32.xlu0 %v741, 56
  %v2496 = vpop.permute.xlu0 %2495
  %2497 = vrot.lane.b32.xlu0 %v742, 56
  %v2498 = vpop.permute.xlu0 %2497
  %2499 = vrot.lane.b32.xlu0 %v743, 56
  %v2500 = vpop.permute.xlu0 %2499
  %2501 = vrot.lane.b32.xlu0 %v744, 56
  %v2502 = vpop.permute.xlu0 %2501
  %2503 = vrot.lane.b32.xlu0 %v745, 56
  %v2504 = vpop.permute.xlu0 %2503
  %2505 = vrot.lane.b32.xlu0 %v746, 56
  %v2506 = vpop.permute.xlu0 %2505
  %2507 = vrot.lane.b32.xlu0 %v747, 56
  %v2508 = vpop.permute.xlu0 %2507
  %2509 = vrot.lane.b32.xlu0 %v748, 56
  %v2510 = vpop.permute.xlu0 %2509
  %2511 = vrot.lane.b32.xlu0 %v749, 56
  %v2512 = vpop.permute.xlu0 %2511
  %2513 = vrot.lane.b32.xlu0 %v750, 56
  %v2514 = vpop.permute.xlu0 %2513
  %2515 = vrot.lane.b32.xlu0 %v751, 56
  %v2516 = vpop.permute.xlu0 %2515
  %2517 = vrot.lane.b32.xlu0 %v752, 56
  %v2518 = vpop.permute.xlu0 %2517
  %2519 = vrot.lane.b32.xlu0 %v753, 56
  %v2520 = vpop.permute.xlu0 %2519
  %2521 = vrot.lane.b32.xlu0 %v754, 56
  %v2522 = vpop.permute.xlu0 %2521
  %2523 = vrot.lane.b32.xlu0 %v755, 56
  %v2524 = vpop.permute.xlu0 %2523
  %2525 = vrot.lane.b32.xlu0 %v756, 56
  %v2526 = vpop.permute.xlu0 %2525
  %2527 = vrot.lane.b32.xlu0 %v757, 56
  %v2528 = vpop.permute.xlu0 %2527
  %2529 = vrot.lane.b32.xlu0 %v758, 56
  %v2530 = vpop.permute.xlu0 %2529
  %2531 = vrot.lane.b32.xlu0 %v759, 56
  %v2532 = vpop.permute.xlu0 %2531
  %2533 = vrot.lane.b32.xlu0 %v760, 56
  %v2534 = vpop.permute.xlu0 %2533
  %2535 = vrot.lane.b32.xlu0 %v761, 56
  %v2536 = vpop.permute.xlu0 %2535
  %2537 = vrot.lane.b32.xlu0 %v762, 56
  %v2538 = vpop.permute.xlu0 %2537
  %2539 = vrot.lane.b32.xlu0 %v763, 56
  %v2540 = vpop.permute.xlu0 %2539
  %2541 = vrot.lane.b32.xlu0 %v764, 56
  %v2542 = vpop.permute.xlu0 %2541
  %2543 = vrot.lane.b32.xlu0 %v765, 56
  %v2544 = vpop.permute.xlu0 %2543
  %2545 = vrot.lane.b32.xlu0 %v766, 56
  %v2546 = vpop.permute.xlu0 %2545
  %2547 = vrot.lane.b32.xlu0 %v767, 56
  %v2548 = vpop.permute.xlu0 %2547
  %2549 = vrot.lane.b32.xlu0 %v768, 56
  %v2550 = vpop.permute.xlu0 %2549
  %2551 = vrot.lane.b32.xlu0 %v769, 56
  %v2552 = vpop.permute.xlu0 %2551
  %2553 = vrot.lane.b32.xlu0 %v770, 56
  %v2554 = vpop.permute.xlu0 %2553
  %2555 = vrot.lane.b32.xlu0 %v771, 56
  %v2556 = vpop.permute.xlu0 %2555
  %2557 = vrot.lane.b32.xlu0 %v772, 56
  %v2558 = vpop.permute.xlu0 %2557
  %2559 = vrot.lane.b32.xlu0 %v773, 56
  %v2560 = vpop.permute.xlu0 %2559
  %2561 = vrot.lane.b32.xlu0 %v774, 56
  %v2562 = vpop.permute.xlu0 %2561
  %2563 = vrot.lane.b32.xlu0 %v775, 56
  %v2564 = vpop.permute.xlu0 %2563
  %2565 = vrot.lane.b32.xlu0 %v776, 56
  %v2566 = vpop.permute.xlu0 %2565
  %2567 = vrot.lane.b32.xlu0 %v777, 56
  %v2568 = vpop.permute.xlu0 %2567
  %2569 = vrot.lane.b32.xlu0 %v778, 56
  %v2570 = vpop.permute.xlu0 %2569
  %2699 = vrot.lane.b32.xlu0 %v779, 64
  %v2700 = vpop.permute.xlu0 %2699
  %2701 = vrot.lane.b32.xlu0 %v780, 64
  %v2702 = vpop.permute.xlu0 %2701
  %2703 = vrot.lane.b32.xlu0 %v781, 64
  %v2704 = vpop.permute.xlu0 %2703
  %2705 = vrot.lane.b32.xlu0 %v782, 64
  %v2706 = vpop.permute.xlu0 %2705
  %2707 = vrot.lane.b32.xlu0 %v783, 64
  %v2708 = vpop.permute.xlu0 %2707
  %2709 = vrot.lane.b32.xlu0 %v784, 64
  %v2710 = vpop.permute.xlu0 %2709
  %2711 = vrot.lane.b32.xlu0 %v785, 64
  %v2712 = vpop.permute.xlu0 %2711
  %2713 = vrot.lane.b32.xlu0 %v786, 64
  %v2714 = vpop.permute.xlu0 %2713
  %2715 = vrot.lane.b32.xlu0 %v787, 64
  %v2716 = vpop.permute.xlu0 %2715
  %2717 = vrot.lane.b32.xlu0 %v788, 64
  %v2718 = vpop.permute.xlu0 %2717
  %2719 = vrot.lane.b32.xlu0 %v789, 64
  %v2720 = vpop.permute.xlu0 %2719
  %2721 = vrot.lane.b32.xlu0 %v790, 64
  %v2722 = vpop.permute.xlu0 %2721
  %2723 = vrot.lane.b32.xlu0 %v791, 64
  %v2724 = vpop.permute.xlu0 %2723
  %2725 = vrot.lane.b32.xlu0 %v792, 64
  %v2726 = vpop.permute.xlu0 %2725
  %2727 = vrot.lane.b32.xlu0 %v793, 64
  %v2728 = vpop.permute.xlu0 %2727
  %2729 = vrot.lane.b32.xlu0 %v794, 64
  %v2730 = vpop.permute.xlu0 %2729
  %2731 = vrot.lane.b32.xlu0 %v795, 64
  %v2732 = vpop.permute.xlu0 %2731
  %2733 = vrot.lane.b32.xlu0 %v796, 64
  %v2734 = vpop.permute.xlu0 %2733
  %2735 = vrot.lane.b32.xlu0 %v797, 64
  %v2736 = vpop.permute.xlu0 %2735
  %2737 = vrot.lane.b32.xlu0 %v798, 64
  %v2738 = vpop.permute.xlu0 %2737
  %2739 = vrot.lane.b32.xlu0 %v799, 64
  %v2740 = vpop.permute.xlu0 %2739
  %2741 = vrot.lane.b32.xlu0 %v800, 64
  %v2742 = vpop.permute.xlu0 %2741
  %2743 = vrot.lane.b32.xlu0 %v801, 64
  %v2744 = vpop.permute.xlu0 %2743
  %2745 = vrot.lane.b32.xlu0 %v802, 64
  %v2746 = vpop.permute.xlu0 %2745
  %2747 = vrot.lane.b32.xlu0 %v803, 64
  %v2748 = vpop.permute.xlu0 %2747
  %2749 = vrot.lane.b32.xlu0 %v804, 64
  %v2750 = vpop.permute.xlu0 %2749
  %2751 = vrot.lane.b32.xlu0 %v805, 64
  %v2752 = vpop.permute.xlu0 %2751
  %2753 = vrot.lane.b32.xlu0 %v806, 64
  %v2754 = vpop.permute.xlu0 %2753
  %2755 = vrot.lane.b32.xlu0 %v807, 64
  %v2756 = vpop.permute.xlu0 %2755
  %2757 = vrot.lane.b32.xlu0 %v808, 64
  %v2758 = vpop.permute.xlu0 %2757
  %2759 = vrot.lane.b32.xlu0 %v809, 64
  %v2760 = vpop.permute.xlu0 %2759
  %2761 = vrot.lane.b32.xlu0 %v810, 64
  %v2762 = vpop.permute.xlu0 %2761
  %2763 = vrot.lane.b32.xlu0 %v811, 64
  %v2764 = vpop.permute.xlu0 %2763
  %2765 = vrot.lane.b32.xlu0 %v812, 64
  %v2766 = vpop.permute.xlu0 %2765
  %2767 = vrot.lane.b32.xlu0 %v813, 64
  %v2768 = vpop.permute.xlu0 %2767
  %2769 = vrot.lane.b32.xlu0 %v814, 64
  %v2770 = vpop.permute.xlu0 %2769
  %2771 = vrot.lane.b32.xlu0 %v815, 64
  %v2772 = vpop.permute.xlu0 %2771
  %2773 = vrot.lane.b32.xlu0 %v816, 64
  %v2774 = vpop.permute.xlu0 %2773
  %2775 = vrot.lane.b32.xlu0 %v817, 64
  %v2776 = vpop.permute.xlu0 %2775
  %2777 = vrot.lane.b32.xlu0 %v818, 64
  %v2778 = vpop.permute.xlu0 %2777
  %2779 = vrot.lane.b32.xlu0 %v819, 64
  %v2780 = vpop.permute.xlu0 %2779
  %2781 = vrot.lane.b32.xlu0 %v820, 64
  %v2782 = vpop.permute.xlu0 %2781
  %2783 = vrot.lane.b32.xlu0 %v821, 64
  %v2784 = vpop.permute.xlu0 %2783
  %2785 = vrot.lane.b32.xlu0 %v822, 64
  %v2786 = vpop.permute.xlu0 %2785
  %2787 = vrot.lane.b32.xlu0 %v823, 64
  %v2788 = vpop.permute.xlu0 %2787
  %2789 = vrot.lane.b32.xlu0 %v824, 64
  %v2790 = vpop.permute.xlu0 %2789
  %2791 = vrot.lane.b32.xlu0 %v825, 64
  %v2792 = vpop.permute.xlu0 %2791
  %2793 = vrot.lane.b32.xlu0 %v826, 64
  %v2794 = vpop.permute.xlu0 %2793
  %2795 = vrot.lane.b32.xlu0 %v827, 64
  %v2796 = vpop.permute.xlu0 %2795
  %2797 = vrot.lane.b32.xlu0 %v828, 64
  %v2798 = vpop.permute.xlu0 %2797
  %2799 = vrot.lane.b32.xlu0 %v829, 64
  %v2800 = vpop.permute.xlu0 %2799
  %2801 = vrot.lane.b32.xlu0 %v830, 64
  %v2802 = vpop.permute.xlu0 %2801
  %2803 = vrot.lane.b32.xlu0 %v831, 64
  %v2804 = vpop.permute.xlu0 %2803
  %2805 = vrot.lane.b32.xlu0 %v832, 64
  %v2806 = vpop.permute.xlu0 %2805
  %2807 = vrot.lane.b32.xlu0 %v833, 64
  %v2808 = vpop.permute.xlu0 %2807
  %2809 = vrot.lane.b32.xlu0 %v834, 64
  %v2810 = vpop.permute.xlu0 %2809
  %2811 = vrot.lane.b32.xlu0 %v835, 64
  %v2812 = vpop.permute.xlu0 %2811
  %2813 = vrot.lane.b32.xlu0 %v836, 64
  %v2814 = vpop.permute.xlu0 %2813
  %2815 = vrot.lane.b32.xlu0 %v837, 64
  %v2816 = vpop.permute.xlu0 %2815
  %2817 = vrot.lane.b32.xlu0 %v838, 64
  %v2818 = vpop.permute.xlu0 %2817
  %2819 = vrot.lane.b32.xlu0 %v839, 64
  %v2820 = vpop.permute.xlu0 %2819
  %2821 = vrot.lane.b32.xlu0 %v840, 64
  %v2822 = vpop.permute.xlu0 %2821
  %2823 = vrot.lane.b32.xlu0 %v841, 64
  %v2824 = vpop.permute.xlu0 %2823
  %2825 = vrot.lane.b32.xlu0 %v842, 64
  %v2826 = vpop.permute.xlu0 %2825
  %v2891 = vsel %vm27, %v266, %v908
  %v2892 = vsel %vm27, %v267, %v910
  %v2893 = vsel %vm27, %v268, %v912
  %v2894 = vsel %vm27, %v269, %v914
  %v2895 = vsel %vm27, %v270, %v916
  %v2896 = vsel %vm27, %v271, %v918
  %v2897 = vsel %vm27, %v272, %v920
  %v2898 = vsel %vm27, %v273, %v922
  %v2899 = vsel %vm27, %v274, %v924
  %v2900 = vsel %vm27, %v275, %v926
  %v2901 = vsel %vm27, %v276, %v928
  %v2902 = vsel %vm27, %v277, %v930
  %v2903 = vsel %vm27, %v278, %v932
  %v2904 = vsel %vm27, %v279, %v934
  %v2905 = vsel %vm27, %v280, %v936
  %v2906 = vsel %vm27, %v281, %v938
  %v2907 = vsel %vm27, %v282, %v940
  %v2908 = vsel %vm27, %v283, %v942
  %v2909 = vsel %vm27, %v284, %v944
  %v2910 = vsel %vm27, %v285, %v946
  %v2911 = vsel %vm27, %v286, %v948
  %v2912 = vsel %vm27, %v287, %v950
  %v2913 = vsel %vm27, %v288, %v952
  %v2914 = vsel %vm27, %v289, %v954
  %v2915 = vsel %vm27, %v290, %v956
  %v2916 = vsel %vm27, %v291, %v958
  %v2917 = vsel %vm27, %v292, %v960
  %v2918 = vsel %vm27, %v293, %v962
  %v2919 = vsel %vm27, %v294, %v964
  %v2920 = vsel %vm27, %v295, %v966
  %v2921 = vsel %vm27, %v296, %v968
  %v2922 = vsel %vm27, %v297, %v970
  %v2923 = vsel %vm27, %v298, %v972
  %v2924 = vsel %vm27, %v299, %v974
  %v2925 = vsel %vm27, %v300, %v976
  %v2926 = vsel %vm27, %v301, %v978
  %v2927 = vsel %vm27, %v302, %v980
  %v2928 = vsel %vm27, %v303, %v982
  %v2929 = vsel %vm27, %v304, %v984
  %v2930 = vsel %vm27, %v305, %v986
  %v2931 = vsel %vm27, %v306, %v988
  %v2932 = vsel %vm27, %v307, %v990
  %v2933 = vsel %vm27, %v308, %v992
  %v2934 = vsel %vm27, %v309, %v994
  %v2935 = vsel %vm27, %v310, %v996
  %v2936 = vsel %vm27, %v311, %v998
  %v2937 = vsel %vm27, %v312, %v1000
  %v2938 = vsel %vm27, %v313, %v1002
  %v2939 = vsel %vm27, %v314, %v1004
  %v2940 = vsel %vm27, %v315, %v1006
  %v2941 = vsel %vm27, %v316, %v1008
  %v2942 = vsel %vm27, %v317, %v1010
  %v2943 = vsel %vm27, %v318, %v1012
  %v2944 = vsel %vm27, %v319, %v1014
  %v2945 = vsel %vm27, %v320, %v1016
  %v2946 = vsel %vm27, %v321, %v1018
  %v2947 = vsel %vm27, %v322, %v1020
  %v2948 = vsel %vm27, %v323, %v1022
  %v2949 = vsel %vm27, %v324, %v1024
  %v2950 = vsel %vm27, %v325, %v1026
  %v2951 = vsel %vm27, %v326, %v1028
  %v2952 = vsel %vm27, %v327, %v1030
  %v2953 = vsel %vm27, %v328, %v1032
  %v2954 = vsel %vm27, %v329, %v1034
  %vm2955 = vcmask 130048
  %v2956 = vsel %vm2955, %v2891, %v1164
  %v2957 = vsel %vm2955, %v2892, %v1166
  %v2958 = vsel %vm2955, %v2893, %v1168
  %v2959 = vsel %vm2955, %v2894, %v1170
  %v2960 = vsel %vm2955, %v2895, %v1172
  %v2961 = vsel %vm2955, %v2896, %v1174
  %v2962 = vsel %vm2955, %v2897, %v1176
  %v2963 = vsel %vm2955, %v2898, %v1178
  %v2964 = vsel %vm2955, %v2899, %v1180
  %v2965 = vsel %vm2955, %v2900, %v1182
  %v2966 = vsel %vm2955, %v2901, %v1184
  %v2967 = vsel %vm2955, %v2902, %v1186
  %v2968 = vsel %vm2955, %v2903, %v1188
  %v2969 = vsel %vm2955, %v2904, %v1190
  %v2970 = vsel %vm2955, %v2905, %v1192
  %v2971 = vsel %vm2955, %v2906, %v1194
  %v2972 = vsel %vm2955, %v2907, %v1196
  %v2973 = vsel %vm2955, %v2908, %v1198
  %v2974 = vsel %vm2955, %v2909, %v1200
  %v2975 = vsel %vm2955, %v2910, %v1202
  %v2976 = vsel %vm2955, %v2911, %v1204
  %v2977 = vsel %vm2955, %v2912, %v1206
  %v2978 = vsel %vm2955, %v2913, %v1208
  %v2979 = vsel %vm2955, %v2914, %v1210
  %v2980 = vsel %vm2955, %v2915, %v1212
  %v2981 = vsel %vm2955, %v2916, %v1214
  %v2982 = vsel %vm2955, %v2917, %v1216
  %v2983 = vsel %vm2955, %v2918, %v1218
  %v2984 = vsel %vm2955, %v2919, %v1220
  %v2985 = vsel %vm2955, %v2920, %v1222
  %v2986 = vsel %vm2955, %v2921, %v1224
  %v2987 = vsel %vm2955, %v2922, %v1226
  %v2988 = vsel %vm2955, %v2923, %v1228
  %v2989 = vsel %vm2955, %v2924, %v1230
  %v2990 = vsel %vm2955, %v2925, %v1232
  %v2991 = vsel %vm2955, %v2926, %v1234
  %v2992 = vsel %vm2955, %v2927, %v1236
  %v2993 = vsel %vm2955, %v2928, %v1238
  %v2994 = vsel %vm2955, %v2929, %v1240
  %v2995 = vsel %vm2955, %v2930, %v1242
  %v2996 = vsel %vm2955, %v2931, %v1244
  %v2997 = vsel %vm2955, %v2932, %v1246
  %v2998 = vsel %vm2955, %v2933, %v1248
  %v2999 = vsel %vm2955, %v2934, %v1250
  %v3000 = vsel %vm2955, %v2935, %v1252
  %v3001 = vsel %vm2955, %v2936, %v1254
  %v3002 = vsel %vm2955, %v2937, %v1256
  %v3003 = vsel %vm2955, %v2938, %v1258
  %v3004 = vsel %vm2955, %v2939, %v1260
  %v3005 = vsel %vm2955, %v2940, %v1262
  %v3006 = vsel %vm2955, %v2941, %v1264
  %v3007 = vsel %vm2955, %v2942, %v1266
  %v3008 = vsel %vm2955, %v2943, %v1268
  %v3009 = vsel %vm2955, %v2944, %v1270
  %v3010 = vsel %vm2955, %v2945, %v1272
  %v3011 = vsel %vm2955, %v2946, %v1274
  %v3012 = vsel %vm2955, %v2947, %v1276
  %v3013 = vsel %vm2955, %v2948, %v1278
  %v3014 = vsel %vm2955, %v2949, %v1280
  %v3015 = vsel %vm2955, %v2950, %v1282
  %v3016 = vsel %vm2955, %v2951, %v1284
  %v3017 = vsel %vm2955, %v2952, %v1286
  %v3018 = vsel %vm2955, %v2953, %v1288
  %v3019 = vsel %vm2955, %v2954, %v1290
  %vm3020 = vcmask 195584
  %v3021 = vsel %vm3020, %v2956, %v1420
  %v3022 = vsel %vm3020, %v2957, %v1422
  %v3023 = vsel %vm3020, %v2958, %v1424
  %v3024 = vsel %vm3020, %v2959, %v1426
  %v3025 = vsel %vm3020, %v2960, %v1428
  %v3026 = vsel %vm3020, %v2961, %v1430
  %v3027 = vsel %vm3020, %v2962, %v1432
  %v3028 = vsel %vm3020, %v2963, %v1434
  %v3029 = vsel %vm3020, %v2964, %v1436
  %v3030 = vsel %vm3020, %v2965, %v1438
  %v3031 = vsel %vm3020, %v2966, %v1440
  %v3032 = vsel %vm3020, %v2967, %v1442
  %v3033 = vsel %vm3020, %v2968, %v1444
  %v3034 = vsel %vm3020, %v2969, %v1446
  %v3035 = vsel %vm3020, %v2970, %v1448
  %v3036 = vsel %vm3020, %v2971, %v1450
  %v3037 = vsel %vm3020, %v2972, %v1452
  %v3038 = vsel %vm3020, %v2973, %v1454
  %v3039 = vsel %vm3020, %v2974, %v1456
  %v3040 = vsel %vm3020, %v2975, %v1458
  %v3041 = vsel %vm3020, %v2976, %v1460
  %v3042 = vsel %vm3020, %v2977, %v1462
  %v3043 = vsel %vm3020, %v2978, %v1464
  %v3044 = vsel %vm3020, %v2979, %v1466
  %v3045 = vsel %vm3020, %v2980, %v1468
  %v3046 = vsel %vm3020, %v2981, %v1470
  %v3047 = vsel %vm3020, %v2982, %v1472
  %v3048 = vsel %vm3020, %v2983, %v1474
  %v3049 = vsel %vm3020, %v2984, %v1476
  %v3050 = vsel %vm3020, %v2985, %v1478
  %v3051 = vsel %vm3020, %v2986, %v1480
  %v3052 = vsel %vm3020, %v2987, %v1482
  %v3053 = vsel %vm3020, %v2988, %v1484
  %v3054 = vsel %vm3020, %v2989, %v1486
  %v3055 = vsel %vm3020, %v2990, %v1488
  %v3056 = vsel %vm3020, %v2991, %v1490
  %v3057 = vsel %vm3020, %v2992, %v1492
  %v3058 = vsel %vm3020, %v2993, %v1494
  %v3059 = vsel %vm3020, %v2994, %v1496
  %v3060 = vsel %vm3020, %v2995, %v1498
  %v3061 = vsel %vm3020, %v2996, %v1500
  %v3062 = vsel %vm3020, %v2997, %v1502
  %v3063 = vsel %vm3020, %v2998, %v1504
  %v3064 = vsel %vm3020, %v2999, %v1506
  %v3065 = vsel %vm3020, %v3000, %v1508
  %v3066 = vsel %vm3020, %v3001, %v1510
  %v3067 = vsel %vm3020, %v3002, %v1512
  %v3068 = vsel %vm3020, %v3003, %v1514
  %v3069 = vsel %vm3020, %v3004, %v1516
  %v3070 = vsel %vm3020, %v3005, %v1518
  %v3071 = vsel %vm3020, %v3006, %v1520
  %v3072 = vsel %vm3020, %v3007, %v1522
  %v3073 = vsel %vm3020, %v3008, %v1524
  %v3074 = vsel %vm3020, %v3009, %v1526
  %v3075 = vsel %vm3020, %v3010, %v1528
  %v3076 = vsel %vm3020, %v3011, %v1530
  %v3077 = vsel %vm3020, %v3012, %v1532
  %v3078 = vsel %vm3020, %v3013, %v1534
  %v3079 = vsel %vm3020, %v3014, %v1536
  %v3080 = vsel %vm3020, %v3015, %v1538
  %v3081 = vsel %vm3020, %v3016, %v1540
  %v3082 = vsel %vm3020, %v3017, %v1542
  %v3083 = vsel %vm3020, %v3018, %v1544
  %v3084 = vsel %vm3020, %v3019, %v1546
  %vm3085 = vcmask 261120
  %v3086 = vsel %vm3085, %v3021, %v1676
  %v3087 = vsel %vm3085, %v3022, %v1678
  %v3088 = vsel %vm3085, %v3023, %v1680
  %v3089 = vsel %vm3085, %v3024, %v1682
  %v3090 = vsel %vm3085, %v3025, %v1684
  %v3091 = vsel %vm3085, %v3026, %v1686
  %v3092 = vsel %vm3085, %v3027, %v1688
  %v3093 = vsel %vm3085, %v3028, %v1690
  %v3094 = vsel %vm3085, %v3029, %v1692
  %v3095 = vsel %vm3085, %v3030, %v1694
  %v3096 = vsel %vm3085, %v3031, %v1696
  %v3097 = vsel %vm3085, %v3032, %v1698
  %v3098 = vsel %vm3085, %v3033, %v1700
  %v3099 = vsel %vm3085, %v3034, %v1702
  %v3100 = vsel %vm3085, %v3035, %v1704
  %v3101 = vsel %vm3085, %v3036, %v1706
  %v3102 = vsel %vm3085, %v3037, %v1708
  %v3103 = vsel %vm3085, %v3038, %v1710
  %v3104 = vsel %vm3085, %v3039, %v1712
  %v3105 = vsel %vm3085, %v3040, %v1714
  %v3106 = vsel %vm3085, %v3041, %v1716
  %v3107 = vsel %vm3085, %v3042, %v1718
  %v3108 = vsel %vm3085, %v3043, %v1720
  %v3109 = vsel %vm3085, %v3044, %v1722
  %v3110 = vsel %vm3085, %v3045, %v1724
  %v3111 = vsel %vm3085, %v3046, %v1726
  %v3112 = vsel %vm3085, %v3047, %v1728
  %v3113 = vsel %vm3085, %v3048, %v1730
  %v3114 = vsel %vm3085, %v3049, %v1732
  %v3115 = vsel %vm3085, %v3050, %v1734
  %v3116 = vsel %vm3085, %v3051, %v1736
  %v3117 = vsel %vm3085, %v3052, %v1738
  %v3118 = vsel %vm3085, %v3053, %v1740
  %v3119 = vsel %vm3085, %v3054, %v1742
  %v3120 = vsel %vm3085, %v3055, %v1744
  %v3121 = vsel %vm3085, %v3056, %v1746
  %v3122 = vsel %vm3085, %v3057, %v1748
  %v3123 = vsel %vm3085, %v3058, %v1750
  %v3124 = vsel %vm3085, %v3059, %v1752
  %v3125 = vsel %vm3085, %v3060, %v1754
  %v3126 = vsel %vm3085, %v3061, %v1756
  %v3127 = vsel %vm3085, %v3062, %v1758
  %v3128 = vsel %vm3085, %v3063, %v1760
  %v3129 = vsel %vm3085, %v3064, %v1762
  %v3130 = vsel %vm3085, %v3065, %v1764
  %v3131 = vsel %vm3085, %v3066, %v1766
  %v3132 = vsel %vm3085, %v3067, %v1768
  %v3133 = vsel %vm3085, %v3068, %v1770
  %v3134 = vsel %vm3085, %v3069, %v1772
  %v3135 = vsel %vm3085, %v3070, %v1774
  %v3136 = vsel %vm3085, %v3071, %v1776
  %v3137 = vsel %vm3085, %v3072, %v1778
  %v3138 = vsel %vm3085, %v3073, %v1780
  %v3139 = vsel %vm3085, %v3074, %v1782
  %v3140 = vsel %vm3085, %v3075, %v1784
  %v3141 = vsel %vm3085, %v3076, %v1786
  %v3142 = vsel %vm3085, %v3077, %v1788
  %v3143 = vsel %vm3085, %v3078, %v1790
  %v3144 = vsel %vm3085, %v3079, %v1792
  %v3145 = vsel %vm3085, %v3080, %v1794
  %v3146 = vsel %vm3085, %v3081, %v1796
  %v3147 = vsel %vm3085, %v3082, %v1798
  %v3148 = vsel %vm3085, %v3083, %v1800
  %v3149 = vsel %vm3085, %v3084, %v1802
  %vm3150 = vcmask 326656
  %v3151 = vsel %vm3150, %v3086, %v1932
  %v3152 = vsel %vm3150, %v3087, %v1934
  %v3153 = vsel %vm3150, %v3088, %v1936
  %v3154 = vsel %vm3150, %v3089, %v1938
  %v3155 = vsel %vm3150, %v3090, %v1940
  %v3156 = vsel %vm3150, %v3091, %v1942
  %v3157 = vsel %vm3150, %v3092, %v1944
  %v3158 = vsel %vm3150, %v3093, %v1946
  %v3159 = vsel %vm3150, %v3094, %v1948
  %v3160 = vsel %vm3150, %v3095, %v1950
  %v3161 = vsel %vm3150, %v3096, %v1952
  %v3162 = vsel %vm3150, %v3097, %v1954
  %v3163 = vsel %vm3150, %v3098, %v1956
  %v3164 = vsel %vm3150, %v3099, %v1958
  %v3165 = vsel %vm3150, %v3100, %v1960
  %v3166 = vsel %vm3150, %v3101, %v1962
  %v3167 = vsel %vm3150, %v3102, %v1964
  %v3168 = vsel %vm3150, %v3103, %v1966
  %v3169 = vsel %vm3150, %v3104, %v1968
  %v3170 = vsel %vm3150, %v3105, %v1970
  %v3171 = vsel %vm3150, %v3106, %v1972
  %v3172 = vsel %vm3150, %v3107, %v1974
  %v3173 = vsel %vm3150, %v3108, %v1976
  %v3174 = vsel %vm3150, %v3109, %v1978
  %v3175 = vsel %vm3150, %v3110, %v1980
  %v3176 = vsel %vm3150, %v3111, %v1982
  %v3177 = vsel %vm3150, %v3112, %v1984
  %v3178 = vsel %vm3150, %v3113, %v1986
  %v3179 = vsel %vm3150, %v3114, %v1988
  %v3180 = vsel %vm3150, %v3115, %v1990
  %v3181 = vsel %vm3150, %v3116, %v1992
  %v3182 = vsel %vm3150, %v3117, %v1994
  %v3183 = vsel %vm3150, %v3118, %v1996
  %v3184 = vsel %vm3150, %v3119, %v1998
  %v3185 = vsel %vm3150, %v3120, %v2000
  %v3186 = vsel %vm3150, %v3121, %v2002
  %v3187 = vsel %vm3150, %v3122, %v2004
  %v3188 = vsel %vm3150, %v3123, %v2006
  %v3189 = vsel %vm3150, %v3124, %v2008
  %v3190 = vsel %vm3150, %v3125, %v2010
  %v3191 = vsel %vm3150, %v3126, %v2012
  %v3192 = vsel %vm3150, %v3127, %v2014
  %v3193 = vsel %vm3150, %v3128, %v2016
  %v3194 = vsel %vm3150, %v3129, %v2018
  %v3195 = vsel %vm3150, %v3130, %v2020
  %v3196 = vsel %vm3150, %v3131, %v2022
  %v3197 = vsel %vm3150, %v3132, %v2024
  %v3198 = vsel %vm3150, %v3133, %v2026
  %v3199 = vsel %vm3150, %v3134, %v2028
  %v3200 = vsel %vm3150, %v3135, %v2030
  %v3201 = vsel %vm3150, %v3136, %v2032
  %v3202 = vsel %vm3150, %v3137, %v2034
  %v3203 = vsel %vm3150, %v3138, %v2036
  %v3204 = vsel %vm3150, %v3139, %v2038
  %v3205 = vsel %vm3150, %v3140, %v2040
  %v3206 = vsel %vm3150, %v3141, %v2042
  %v3207 = vsel %vm3150, %v3142, %v2044
  %v3208 = vsel %vm3150, %v3143, %v2046
  %v3209 = vsel %vm3150, %v3144, %v2048
  %v3210 = vsel %vm3150, %v3145, %v2050
  %v3211 = vsel %vm3150, %v3146, %v2052
  %v3212 = vsel %vm3150, %v3147, %v2054
  %v3213 = vsel %vm3150, %v3148, %v2056
  %v3214 = vsel %vm3150, %v3149, %v2058
  %vm3215 = vcmask 392192
  %v3216 = vsel %vm3215, %v3151, %v2188
  %v3217 = vsel %vm3215, %v3152, %v2190
  %v3218 = vsel %vm3215, %v3153, %v2192
  %v3219 = vsel %vm3215, %v3154, %v2194
  %v3220 = vsel %vm3215, %v3155, %v2196
  %v3221 = vsel %vm3215, %v3156, %v2198
  %v3222 = vsel %vm3215, %v3157, %v2200
  %v3223 = vsel %vm3215, %v3158, %v2202
  %v3224 = vsel %vm3215, %v3159, %v2204
  %v3225 = vsel %vm3215, %v3160, %v2206
  %v3226 = vsel %vm3215, %v3161, %v2208
  %v3227 = vsel %vm3215, %v3162, %v2210
  %v3228 = vsel %vm3215, %v3163, %v2212
  %v3229 = vsel %vm3215, %v3164, %v2214
  %v3230 = vsel %vm3215, %v3165, %v2216
  %v3231 = vsel %vm3215, %v3166, %v2218
  %v3232 = vsel %vm3215, %v3167, %v2220
  %v3233 = vsel %vm3215, %v3168, %v2222
  %v3234 = vsel %vm3215, %v3169, %v2224
  %v3235 = vsel %vm3215, %v3170, %v2226
  %v3236 = vsel %vm3215, %v3171, %v2228
  %v3237 = vsel %vm3215, %v3172, %v2230
  %v3238 = vsel %vm3215, %v3173, %v2232
  %v3239 = vsel %vm3215, %v3174, %v2234
  %v3240 = vsel %vm3215, %v3175, %v2236
  %v3241 = vsel %vm3215, %v3176, %v2238
  %v3242 = vsel %vm3215, %v3177, %v2240
  %v3243 = vsel %vm3215, %v3178, %v2242
  %v3244 = vsel %vm3215, %v3179, %v2244
  %v3245 = vsel %vm3215, %v3180, %v2246
  %v3246 = vsel %vm3215, %v3181, %v2248
  %v3247 = vsel %vm3215, %v3182, %v2250
  %v3248 = vsel %vm3215, %v3183, %v2252
  %v3249 = vsel %vm3215, %v3184, %v2254
  %v3250 = vsel %vm3215, %v3185, %v2256
  %v3251 = vsel %vm3215, %v3186, %v2258
  %v3252 = vsel %vm3215, %v3187, %v2260
  %v3253 = vsel %vm3215, %v3188, %v2262
  %v3254 = vsel %vm3215, %v3189, %v2264
  %v3255 = vsel %vm3215, %v3190, %v2266
  %v3256 = vsel %vm3215, %v3191, %v2268
  %v3257 = vsel %vm3215, %v3192, %v2270
  %v3258 = vsel %vm3215, %v3193, %v2272
  %v3259 = vsel %vm3215, %v3194, %v2274
  %v3260 = vsel %vm3215, %v3195, %v2276
  %v3261 = vsel %vm3215, %v3196, %v2278
  %v3262 = vsel %vm3215, %v3197, %v2280
  %v3263 = vsel %vm3215, %v3198, %v2282
  %v3264 = vsel %vm3215, %v3199, %v2284
  %v3265 = vsel %vm3215, %v3200, %v2286
  %v3266 = vsel %vm3215, %v3201, %v2288
  %v3267 = vsel %vm3215, %v3202, %v2290
  %v3268 = vsel %vm3215, %v3203, %v2292
  %v3269 = vsel %vm3215, %v3204, %v2294
  %v3270 = vsel %vm3215, %v3205, %v2296
  %v3271 = vsel %vm3215, %v3206, %v2298
  %v3272 = vsel %vm3215, %v3207, %v2300
  %v3273 = vsel %vm3215, %v3208, %v2302
  %v3274 = vsel %vm3215, %v3209, %v2304
  %v3275 = vsel %vm3215, %v3210, %v2306
  %v3276 = vsel %vm3215, %v3211, %v2308
  %v3277 = vsel %vm3215, %v3212, %v2310
  %v3278 = vsel %vm3215, %v3213, %v2312
  %v3279 = vsel %vm3215, %v3214, %v2314
  %vm3280 = vcmask 457728
  %v3281 = vsel %vm3280, %v3216, %v2444
  %v3282 = vsel %vm3280, %v3217, %v2446
  %v3283 = vsel %vm3280, %v3218, %v2448
  %v3284 = vsel %vm3280, %v3219, %v2450
  %v3285 = vsel %vm3280, %v3220, %v2452
  %v3286 = vsel %vm3280, %v3221, %v2454
  %v3287 = vsel %vm3280, %v3222, %v2456
  %v3288 = vsel %vm3280, %v3223, %v2458
  %v3289 = vsel %vm3280, %v3224, %v2460
  %v3290 = vsel %vm3280, %v3225, %v2462
  %v3291 = vsel %vm3280, %v3226, %v2464
  %v3292 = vsel %vm3280, %v3227, %v2466
  %v3293 = vsel %vm3280, %v3228, %v2468
  %v3294 = vsel %vm3280, %v3229, %v2470
  %v3295 = vsel %vm3280, %v3230, %v2472
  %v3296 = vsel %vm3280, %v3231, %v2474
  %v3297 = vsel %vm3280, %v3232, %v2476
  %v3298 = vsel %vm3280, %v3233, %v2478
  %v3299 = vsel %vm3280, %v3234, %v2480
  %v3300 = vsel %vm3280, %v3235, %v2482
  %v3301 = vsel %vm3280, %v3236, %v2484
  %v3302 = vsel %vm3280, %v3237, %v2486
  %v3303 = vsel %vm3280, %v3238, %v2488
  %v3304 = vsel %vm3280, %v3239, %v2490
  %v3305 = vsel %vm3280, %v3240, %v2492
  %v3306 = vsel %vm3280, %v3241, %v2494
  %v3307 = vsel %vm3280, %v3242, %v2496
  %v3308 = vsel %vm3280, %v3243, %v2498
  %v3309 = vsel %vm3280, %v3244, %v2500
  %v3310 = vsel %vm3280, %v3245, %v2502
  %v3311 = vsel %vm3280, %v3246, %v2504
  %v3312 = vsel %vm3280, %v3247, %v2506
  %v3313 = vsel %vm3280, %v3248, %v2508
  %v3314 = vsel %vm3280, %v3249, %v2510
  %v3315 = vsel %vm3280, %v3250, %v2512
  %v3316 = vsel %vm3280, %v3251, %v2514
  %v3317 = vsel %vm3280, %v3252, %v2516
  %v3318 = vsel %vm3280, %v3253, %v2518
  %v3319 = vsel %vm3280, %v3254, %v2520
  %v3320 = vsel %vm3280, %v3255, %v2522
  %v3321 = vsel %vm3280, %v3256, %v2524
  %v3322 = vsel %vm3280, %v3257, %v2526
  %v3323 = vsel %vm3280, %v3258, %v2528
  %v3324 = vsel %vm3280, %v3259, %v2530
  %v3325 = vsel %vm3280, %v3260, %v2532
  %v3326 = vsel %vm3280, %v3261, %v2534
  %v3327 = vsel %vm3280, %v3262, %v2536
  %v3328 = vsel %vm3280, %v3263, %v2538
  %v3329 = vsel %vm3280, %v3264, %v2540
  %v3330 = vsel %vm3280, %v3265, %v2542
  %v3331 = vsel %vm3280, %v3266, %v2544
  %v3332 = vsel %vm3280, %v3267, %v2546
  %v3333 = vsel %vm3280, %v3268, %v2548
  %v3334 = vsel %vm3280, %v3269, %v2550
  %v3335 = vsel %vm3280, %v3270, %v2552
  %v3336 = vsel %vm3280, %v3271, %v2554
  %v3337 = vsel %vm3280, %v3272, %v2556
  %v3338 = vsel %vm3280, %v3273, %v2558
  %v3339 = vsel %vm3280, %v3274, %v2560
  %v3340 = vsel %vm3280, %v3275, %v2562
  %v3341 = vsel %vm3280, %v3276, %v2564
  %v3342 = vsel %vm3280, %v3277, %v2566
  %v3343 = vsel %vm3280, %v3278, %v2568
  %v3344 = vsel %vm3280, %v3279, %v2570
  %vm3345 = vcmask 523264
  %v3346 = vsel %vm3345, %v3281, %v2700
  %v3347 = vsel %vm3345, %v3282, %v2702
  %v3348 = vsel %vm3345, %v3283, %v2704
  %v3349 = vsel %vm3345, %v3284, %v2706
  %v3350 = vsel %vm3345, %v3285, %v2708
  %v3351 = vsel %vm3345, %v3286, %v2710
  %v3352 = vsel %vm3345, %v3287, %v2712
  %v3353 = vsel %vm3345, %v3288, %v2714
  %v3354 = vsel %vm3345, %v3289, %v2716
  %v3355 = vsel %vm3345, %v3290, %v2718
  %v3356 = vsel %vm3345, %v3291, %v2720
  %v3357 = vsel %vm3345, %v3292, %v2722
  %v3358 = vsel %vm3345, %v3293, %v2724
  %v3359 = vsel %vm3345, %v3294, %v2726
  %v3360 = vsel %vm3345, %v3295, %v2728
  %v3361 = vsel %vm3345, %v3296, %v2730
  %v3362 = vsel %vm3345, %v3297, %v2732
  %v3363 = vsel %vm3345, %v3298, %v2734
  %v3364 = vsel %vm3345, %v3299, %v2736
  %v3365 = vsel %vm3345, %v3300, %v2738
  %v3366 = vsel %vm3345, %v3301, %v2740
  %v3367 = vsel %vm3345, %v3302, %v2742
  %v3368 = vsel %vm3345, %v3303, %v2744
  %v3369 = vsel %vm3345, %v3304, %v2746
  %v3370 = vsel %vm3345, %v3305, %v2748
  %v3371 = vsel %vm3345, %v3306, %v2750
  %v3372 = vsel %vm3345, %v3307, %v2752
  %v3373 = vsel %vm3345, %v3308, %v2754
  %v3374 = vsel %vm3345, %v3309, %v2756
  %v3375 = vsel %vm3345, %v3310, %v2758
  %v3376 = vsel %vm3345, %v3311, %v2760
  %v3377 = vsel %vm3345, %v3312, %v2762
  %v3378 = vsel %vm3345, %v3313, %v2764
  %v3379 = vsel %vm3345, %v3314, %v2766
  %v3380 = vsel %vm3345, %v3315, %v2768
  %v3381 = vsel %vm3345, %v3316, %v2770
  %v3382 = vsel %vm3345, %v3317, %v2772
  %v3383 = vsel %vm3345, %v3318, %v2774
  %v3384 = vsel %vm3345, %v3319, %v2776
  %v3385 = vsel %vm3345, %v3320, %v2778
  %v3386 = vsel %vm3345, %v3321, %v2780
  %v3387 = vsel %vm3345, %v3322, %v2782
  %v3388 = vsel %vm3345, %v3323, %v2784
  %v3389 = vsel %vm3345, %v3324, %v2786
  %v3390 = vsel %vm3345, %v3325, %v2788
  %v3391 = vsel %vm3345, %v3326, %v2790
  %v3392 = vsel %vm3345, %v3327, %v2792
  %v3393 = vsel %vm3345, %v3328, %v2794
  %v3394 = vsel %vm3345, %v3329, %v2796
  %v3395 = vsel %vm3345, %v3330, %v2798
  %v3396 = vsel %vm3345, %v3331, %v2800
  %v3397 = vsel %vm3345, %v3332, %v2802
  %v3398 = vsel %vm3345, %v3333, %v2804
  %v3399 = vsel %vm3345, %v3334, %v2806
  %v3400 = vsel %vm3345, %v3335, %v2808
  %v3401 = vsel %vm3345, %v3336, %v2810
  %v3402 = vsel %vm3345, %v3337, %v2812
  %v3403 = vsel %vm3345, %v3338, %v2814
  %v3404 = vsel %vm3345, %v3339, %v2816
  %v3405 = vsel %vm3345, %v3340, %v2818
  %v3406 = vsel %vm3345, %v3341, %v2820
  %v3407 = vsel %vm3345, %v3342, %v2822
  %v3408 = vsel %vm3345, %v3343, %v2824
  %v3409 = vsel %vm3345, %v3344, %v2826
  %v3410 = vpack.c.bf16 %v3347, %v3346
  %v3411 = vpack.c.bf16 %v3349, %v3348
  %v3412 = vpack.c.bf16 %v3351, %v3350
  %v3413 = vpack.c.bf16 %v3353, %v3352
  %v3414 = vpack.c.bf16 %v3355, %v3354
  %v3415 = vpack.c.bf16 %v3357, %v3356
  %v3416 = vpack.c.bf16 %v3359, %v3358
  %v3417 = vpack.c.bf16 %v3361, %v3360
  %v3418 = vpack.c.bf16 %v3363, %v3362
  %v3419 = vpack.c.bf16 %v3365, %v3364
  %v3420 = vpack.c.bf16 %v3367, %v3366
  %v3421 = vpack.c.bf16 %v3369, %v3368
  %v3422 = vpack.c.bf16 %v3371, %v3370
  %v3423 = vpack.c.bf16 %v3373, %v3372
  %v3424 = vpack.c.bf16 %v3375, %v3374
  %v3425 = vpack.c.bf16 %v3377, %v3376
  %v3426 = vpack.c.bf16 %v3379, %v3378
  %v3427 = vpack.c.bf16 %v3381, %v3380
  %v3428 = vpack.c.bf16 %v3383, %v3382
  %v3429 = vpack.c.bf16 %v3385, %v3384
  %v3430 = vpack.c.bf16 %v3387, %v3386
  %v3431 = vpack.c.bf16 %v3389, %v3388
  %v3432 = vpack.c.bf16 %v3391, %v3390
  %v3433 = vpack.c.bf16 %v3393, %v3392
  %v3434 = vpack.c.bf16 %v3395, %v3394
  %v3435 = vpack.c.bf16 %v3397, %v3396
  %v3436 = vpack.c.bf16 %v3399, %v3398
  %v3437 = vpack.c.bf16 %v3401, %v3400
  %v3438 = vpack.c.bf16 %v3403, %v3402
  %v3439 = vpack.c.bf16 %v3405, %v3404
  %v3440 = vpack.c.bf16 %v3407, %v3406
  %v3441 = vpack.c.bf16 %v3409, %v3408
  %v3442 = vld [vmem:[%s1] sm:$0xf]
  %v3443 = vld [vmem:[%s1 + $0x4] sm:$0xf]
  %v3444 = vld [vmem:[%s1 + $0x8] sm:$0xf]
  %v3445 = vld [vmem:[%s1 + $0xc] sm:$0xf]
  %v3446 = vld [vmem:[%s1 + $0x10] sm:$0xf]
  %v3447 = vld [vmem:[%s1 + $0x14] sm:$0xf]
  %v3448 = vld [vmem:[%s1 + $0x18] sm:$0xf]
  %v3449 = vld [vmem:[%s1 + $0x1c] sm:$0xf]
  %v3450 = vld [vmem:[%s1 + $0x20] sm:$0xf]
  %v3460 = vunpack.c.l.b16 %v3442
  %v3461 = vunpack.c.l.b16 %v3443
  %v3462 = vunpack.c.l.b16 %v3444
  %v3463 = vunpack.c.l.b16 %v3445
  %v3464 = vunpack.c.l.b16 %v3446
  %v3465 = vunpack.c.l.b16 %v3447
  %v3466 = vunpack.c.l.b16 %v3448
  %v3467 = vunpack.c.l.b16 %v3449
  %v3468 = vunpack.c.l.b16 %v3450
  %v3469 = vpack.c.b16 %v3461, %v3460
  %v3470 = vpack.c.b16 %v3463, %v3462
  %v3471 = vpack.c.b16 %v3465, %v3464
  %v3472 = vpack.c.b16 %v3467, %v3466
  %v3473 = vpack.c.b16 %v3468, %v3468
  %vm3478 = vcmask 588800
  %v3480 = vsel %vm3478, %v3410, 0
  %v3483 = vsel %vm3478, %v3411, 0
  %v3486 = vsel %vm3478, %v3412, 0
  %v3489 = vsel %vm3478, %v3413, 0
  %v3492 = vsel %vm3478, %v3414, 0
  %v3495 = vsel %vm3478, %v3415, 0
  %v3498 = vsel %vm3478, %v3416, 0
  %v3501 = vsel %vm3478, %v3417, 0
  %v3504 = vsel %vm3478, %v3418, 0
  %v3507 = vsel %vm3478, %v3419, 0
  %v3510 = vsel %vm3478, %v3420, 0
  %v3513 = vsel %vm3478, %v3421, 0
  %v3516 = vsel %vm3478, %v3422, 0
  %v3519 = vsel %vm3478, %v3423, 0
  %v3522 = vsel %vm3478, %v3424, 0
  %v3525 = vsel %vm3478, %v3425, 0
  %v3528 = vsel %vm3478, %v3426, 0
  %v3531 = vsel %vm3478, %v3427, 0
  %v3534 = vsel %vm3478, %v3428, 0
  %v3537 = vsel %vm3478, %v3429, 0
  %v3540 = vsel %vm3478, %v3430, 0
  %v3543 = vsel %vm3478, %v3431, 0
  %v3546 = vsel %vm3478, %v3432, 0
  %v3549 = vsel %vm3478, %v3433, 0
  %v3552 = vsel %vm3478, %v3434, 0
  %v3555 = vsel %vm3478, %v3435, 0
  %v3558 = vsel %vm3478, %v3436, 0
  %v3561 = vsel %vm3478, %v3437, 0
  %v3564 = vsel %vm3478, %v3438, 0
  %v3567 = vsel %vm3478, %v3439, 0
  %v3570 = vsel %vm3478, %v3440, 0
  %v3573 = vsel %vm3478, %v3441, 0
  %vm3575 = vcmask 1043456
  %v3577 = vsel %vm3575, %v3473, 0
  %3579 = vmatpush.bf16.msra.mxu0 0
  %3580 = vmatpush.bf16.msra.mxu0 0
  %3581 = vmatpush.bf16.msra.mxu0 0
  %3582 = vmatpush.bf16.msra.mxu0 %v3577
  %3583 = vmatpush.bf16.msra.mxu0 %v3472
  %3584 = vmatpush.bf16.msra.mxu0 %v3471
  %3585 = vmatpush.bf16.msra.mxu0 %v3470
  %3586 = vmatpush.bf16.msra.mxu0 %v3469
  %3587 = vmatmul.bf16.gmra.mxu0 %v3480
  %v3588 = vpop.f32.mrf.mxu0
  %v3589 = vadd.f32 0.0, %v3588
  %v3590 = vpop.f32.mrf.mxu0
  %v3591 = vadd.f32 0.0, %v3590
  %3592 = vmatmul.bf16.gmra.mxu0 %v3483
  %v3593 = vpop.f32.mrf.mxu0
  %v3594 = vadd.f32 0.0, %v3593
  %v3595 = vpop.f32.mrf.mxu0
  %v3596 = vadd.f32 0.0, %v3595
  %3597 = vmatmul.bf16.gmra.mxu0 %v3486
  %v3598 = vpop.f32.mrf.mxu0
  %v3599 = vadd.f32 0.0, %v3598
  %v3600 = vpop.f32.mrf.mxu0
  %v3601 = vadd.f32 0.0, %v3600
  %3602 = vmatmul.bf16.gmra.mxu0 %v3489
  %v3603 = vpop.f32.mrf.mxu0
  %v3604 = vadd.f32 0.0, %v3603
  %v3605 = vpop.f32.mrf.mxu0
  %v3606 = vadd.f32 0.0, %v3605
  %3607 = vmatmul.bf16.gmra.mxu0 %v3492
  %v3608 = vpop.f32.mrf.mxu0
  %v3609 = vadd.f32 0.0, %v3608
  %v3610 = vpop.f32.mrf.mxu0
  %v3611 = vadd.f32 0.0, %v3610
  %3612 = vmatmul.bf16.gmra.mxu0 %v3495
  %v3613 = vpop.f32.mrf.mxu0
  %v3614 = vadd.f32 0.0, %v3613
  %v3615 = vpop.f32.mrf.mxu0
  %v3616 = vadd.f32 0.0, %v3615
  %3617 = vmatmul.bf16.gmra.mxu0 %v3498
  %v3618 = vpop.f32.mrf.mxu0
  %v3619 = vadd.f32 0.0, %v3618
  %v3620 = vpop.f32.mrf.mxu0
  %v3621 = vadd.f32 0.0, %v3620
  %3622 = vmatmul.bf16.gmra.mxu0 %v3501
  %v3623 = vpop.f32.mrf.mxu0
  %v3624 = vadd.f32 0.0, %v3623
  %v3625 = vpop.f32.mrf.mxu0
  %v3626 = vadd.f32 0.0, %v3625
  %3627 = vmatmul.bf16.gmra.mxu0 %v3504
  %v3628 = vpop.f32.mrf.mxu0
  %v3629 = vadd.f32 0.0, %v3628
  %v3630 = vpop.f32.mrf.mxu0
  %v3631 = vadd.f32 0.0, %v3630
  %3632 = vmatmul.bf16.gmra.mxu0 %v3507
  %v3633 = vpop.f32.mrf.mxu0
  %v3634 = vadd.f32 0.0, %v3633
  %v3635 = vpop.f32.mrf.mxu0
  %v3636 = vadd.f32 0.0, %v3635
  %3637 = vmatmul.bf16.gmra.mxu0 %v3510
  %v3638 = vpop.f32.mrf.mxu0
  %v3639 = vadd.f32 0.0, %v3638
  %v3640 = vpop.f32.mrf.mxu0
  %v3641 = vadd.f32 0.0, %v3640
  %3642 = vmatmul.bf16.gmra.mxu0 %v3513
  %v3643 = vpop.f32.mrf.mxu0
  %v3644 = vadd.f32 0.0, %v3643
  %v3645 = vpop.f32.mrf.mxu0
  %v3646 = vadd.f32 0.0, %v3645
  %3647 = vmatmul.bf16.gmra.mxu0 %v3516
  %v3648 = vpop.f32.mrf.mxu0
  %v3649 = vadd.f32 0.0, %v3648
  %v3650 = vpop.f32.mrf.mxu0
  %v3651 = vadd.f32 0.0, %v3650
  %3652 = vmatmul.bf16.gmra.mxu0 %v3519
  %v3653 = vpop.f32.mrf.mxu0
  %v3654 = vadd.f32 0.0, %v3653
  %v3655 = vpop.f32.mrf.mxu0
  %v3656 = vadd.f32 0.0, %v3655
  %3657 = vmatmul.bf16.gmra.mxu0 %v3522
  %v3658 = vpop.f32.mrf.mxu0
  %v3659 = vadd.f32 0.0, %v3658
  %v3660 = vpop.f32.mrf.mxu0
  %v3661 = vadd.f32 0.0, %v3660
  %3662 = vmatmul.bf16.gmra.mxu0 %v3525
  %v3663 = vpop.f32.mrf.mxu0
  %v3664 = vadd.f32 0.0, %v3663
  %v3665 = vpop.f32.mrf.mxu0
  %v3666 = vadd.f32 0.0, %v3665
  %3667 = vmatmul.bf16.gmra.mxu0 %v3528
  %v3668 = vpop.f32.mrf.mxu0
  %v3669 = vadd.f32 0.0, %v3668
  %v3670 = vpop.f32.mrf.mxu0
  %v3671 = vadd.f32 0.0, %v3670
  %3672 = vmatmul.bf16.gmra.mxu0 %v3531
  %v3673 = vpop.f32.mrf.mxu0
  %v3674 = vadd.f32 0.0, %v3673
  %v3675 = vpop.f32.mrf.mxu0
  %v3676 = vadd.f32 0.0, %v3675
  %3677 = vmatmul.bf16.gmra.mxu0 %v3534
  %v3678 = vpop.f32.mrf.mxu0
  %v3679 = vadd.f32 0.0, %v3678
  %v3680 = vpop.f32.mrf.mxu0
  %v3681 = vadd.f32 0.0, %v3680
  %3682 = vmatmul.bf16.gmra.mxu0 %v3537
  %v3683 = vpop.f32.mrf.mxu0
  %v3684 = vadd.f32 0.0, %v3683
  %v3685 = vpop.f32.mrf.mxu0
  %v3686 = vadd.f32 0.0, %v3685
  %3687 = vmatmul.bf16.gmra.mxu0 %v3540
  %v3688 = vpop.f32.mrf.mxu0
  %v3689 = vadd.f32 0.0, %v3688
  %v3690 = vpop.f32.mrf.mxu0
  %v3691 = vadd.f32 0.0, %v3690
  %3692 = vmatmul.bf16.gmra.mxu0 %v3543
  %v3693 = vpop.f32.mrf.mxu0
  %v3694 = vadd.f32 0.0, %v3693
  %v3695 = vpop.f32.mrf.mxu0
  %v3696 = vadd.f32 0.0, %v3695
  %3697 = vmatmul.bf16.gmra.mxu0 %v3546
  %v3698 = vpop.f32.mrf.mxu0
  %v3699 = vadd.f32 0.0, %v3698
  %v3700 = vpop.f32.mrf.mxu0
  %v3701 = vadd.f32 0.0, %v3700
  %3702 = vmatmul.bf16.gmra.mxu0 %v3549
  %v3703 = vpop.f32.mrf.mxu0
  %v3704 = vadd.f32 0.0, %v3703
  %v3705 = vpop.f32.mrf.mxu0
  %v3706 = vadd.f32 0.0, %v3705
  %3707 = vmatmul.bf16.gmra.mxu0 %v3552
  %v3708 = vpop.f32.mrf.mxu0
  %v3709 = vadd.f32 0.0, %v3708
  %v3710 = vpop.f32.mrf.mxu0
  %v3711 = vadd.f32 0.0, %v3710
  %3712 = vmatmul.bf16.gmra.mxu0 %v3555
  %v3713 = vpop.f32.mrf.mxu0
  %v3714 = vadd.f32 0.0, %v3713
  %v3715 = vpop.f32.mrf.mxu0
  %v3716 = vadd.f32 0.0, %v3715
  %3717 = vmatmul.bf16.gmra.mxu0 %v3558
  %v3718 = vpop.f32.mrf.mxu0
  %v3719 = vadd.f32 0.0, %v3718
  %v3720 = vpop.f32.mrf.mxu0
  %v3721 = vadd.f32 0.0, %v3720
  %3722 = vmatmul.bf16.gmra.mxu0 %v3561
  %v3723 = vpop.f32.mrf.mxu0
  %v3724 = vadd.f32 0.0, %v3723
  %v3725 = vpop.f32.mrf.mxu0
  %v3726 = vadd.f32 0.0, %v3725
  %3727 = vmatmul.bf16.gmra.mxu0 %v3564
  %v3728 = vpop.f32.mrf.mxu0
  %v3729 = vadd.f32 0.0, %v3728
  %v3730 = vpop.f32.mrf.mxu0
  %v3731 = vadd.f32 0.0, %v3730
  %3732 = vmatmul.bf16.gmra.mxu0 %v3567
  %v3733 = vpop.f32.mrf.mxu0
  %v3734 = vadd.f32 0.0, %v3733
  %v3735 = vpop.f32.mrf.mxu0
  %v3736 = vadd.f32 0.0, %v3735
  %3737 = vmatmul.bf16.gmra.mxu0 %v3570
  %v3738 = vpop.f32.mrf.mxu0
  %v3739 = vadd.f32 0.0, %v3738
  %v3740 = vpop.f32.mrf.mxu0
  %v3741 = vadd.f32 0.0, %v3740
  %3742 = vmatmul.bf16.gmra.mxu0 %v3573
  %v3743 = vpop.f32.mrf.mxu0
  %v3744 = vadd.f32 0.0, %v3743
  %v3745 = vpop.f32.mrf.mxu0
  %v3746 = vadd.f32 0.0, %v3745
  %3747 = vdwg.mxu0
  %v3748 = vsel %vm27, %v3589, 0.0
  %v3749 = vsel %vm27, %v3591, 0.0
  %v3750 = vadd.f32 %v3748, %v3749
  %v3751 = vsel %vm27, %v3594, 0.0
  %v3752 = vadd.f32 %v3750, %v3751
  %v3753 = vsel %vm27, %v3596, 0.0
  %v3754 = vadd.f32 %v3752, %v3753
  %v3755 = vsel %vm27, %v3599, 0.0
  %v3756 = vadd.f32 %v3754, %v3755
  %v3757 = vsel %vm27, %v3601, 0.0
  %v3758 = vadd.f32 %v3756, %v3757
  %v3759 = vsel %vm27, %v3604, 0.0
  %v3760 = vadd.f32 %v3758, %v3759
  %v3761 = vsel %vm27, %v3606, 0.0
  %v3762 = vadd.f32 %v3760, %v3761
  %v3763 = vsel %vm27, %v3609, 0.0
  %v3764 = vadd.f32 %v3762, %v3763
  %v3765 = vsel %vm27, %v3611, 0.0
  %v3766 = vadd.f32 %v3764, %v3765
  %v3767 = vsel %vm27, %v3614, 0.0
  %v3768 = vadd.f32 %v3766, %v3767
  %v3769 = vsel %vm27, %v3616, 0.0
  %v3770 = vadd.f32 %v3768, %v3769
  %v3771 = vsel %vm27, %v3619, 0.0
  %v3772 = vadd.f32 %v3770, %v3771
  %v3773 = vsel %vm27, %v3621, 0.0
  %v3774 = vadd.f32 %v3772, %v3773
  %v3775 = vsel %vm27, %v3624, 0.0
  %v3776 = vadd.f32 %v3774, %v3775
  %v3777 = vsel %vm27, %v3626, 0.0
  %v3778 = vadd.f32 %v3776, %v3777
  %v3779 = vsel %vm27, %v3629, 0.0
  %v3780 = vadd.f32 %v3778, %v3779
  %v3781 = vsel %vm27, %v3631, 0.0
  %v3782 = vadd.f32 %v3780, %v3781
  %v3783 = vsel %vm27, %v3634, 0.0
  %v3784 = vadd.f32 %v3782, %v3783
  %v3785 = vsel %vm27, %v3636, 0.0
  %v3786 = vadd.f32 %v3784, %v3785
  %v3787 = vsel %vm27, %v3639, 0.0
  %v3788 = vadd.f32 %v3786, %v3787
  %v3789 = vsel %vm27, %v3641, 0.0
  %v3790 = vadd.f32 %v3788, %v3789
  %v3791 = vsel %vm27, %v3644, 0.0
  %v3792 = vadd.f32 %v3790, %v3791
  %v3793 = vsel %vm27, %v3646, 0.0
  %v3794 = vadd.f32 %v3792, %v3793
  %v3795 = vsel %vm27, %v3649, 0.0
  %v3796 = vadd.f32 %v3794, %v3795
  %v3797 = vsel %vm27, %v3651, 0.0
  %v3798 = vadd.f32 %v3796, %v3797
  %v3799 = vsel %vm27, %v3654, 0.0
  %v3800 = vadd.f32 %v3798, %v3799
  %v3801 = vsel %vm27, %v3656, 0.0
  %v3802 = vadd.f32 %v3800, %v3801
  %v3803 = vsel %vm27, %v3659, 0.0
  %v3804 = vadd.f32 %v3802, %v3803
  %v3805 = vsel %vm27, %v3661, 0.0
  %v3806 = vadd.f32 %v3804, %v3805
  %v3807 = vsel %vm27, %v3664, 0.0
  %v3808 = vadd.f32 %v3806, %v3807
  %v3809 = vsel %vm27, %v3666, 0.0
  %v3810 = vadd.f32 %v3808, %v3809
  %v3811 = vsel %vm27, %v3669, 0.0
  %v3812 = vadd.f32 %v3810, %v3811
  %v3813 = vsel %vm27, %v3671, 0.0
  %v3814 = vadd.f32 %v3812, %v3813
  %v3815 = vsel %vm27, %v3674, 0.0
  %v3816 = vadd.f32 %v3814, %v3815
  %v3817 = vsel %vm27, %v3676, 0.0
  %v3818 = vadd.f32 %v3816, %v3817
  %v3819 = vsel %vm27, %v3679, 0.0
  %v3820 = vadd.f32 %v3818, %v3819
  %v3821 = vsel %vm27, %v3681, 0.0
  %v3822 = vadd.f32 %v3820, %v3821
  %v3823 = vsel %vm27, %v3684, 0.0
  %v3824 = vadd.f32 %v3822, %v3823
  %v3825 = vsel %vm27, %v3686, 0.0
  %v3826 = vadd.f32 %v3824, %v3825
  %v3827 = vsel %vm27, %v3689, 0.0
  %v3828 = vadd.f32 %v3826, %v3827
  %v3829 = vsel %vm27, %v3691, 0.0
  %v3830 = vadd.f32 %v3828, %v3829
  %v3831 = vsel %vm27, %v3694, 0.0
  %v3832 = vadd.f32 %v3830, %v3831
  %v3833 = vsel %vm27, %v3696, 0.0
  %v3834 = vadd.f32 %v3832, %v3833
  %v3835 = vsel %vm27, %v3699, 0.0
  %v3836 = vadd.f32 %v3834, %v3835
  %v3837 = vsel %vm27, %v3701, 0.0
  %v3838 = vadd.f32 %v3836, %v3837
  %v3839 = vsel %vm27, %v3704, 0.0
  %v3840 = vadd.f32 %v3838, %v3839
  %v3841 = vsel %vm27, %v3706, 0.0
  %v3842 = vadd.f32 %v3840, %v3841
  %v3843 = vsel %vm27, %v3709, 0.0
  %v3844 = vadd.f32 %v3842, %v3843
  %v3845 = vsel %vm27, %v3711, 0.0
  %v3846 = vadd.f32 %v3844, %v3845
  %v3847 = vsel %vm27, %v3714, 0.0
  %v3848 = vadd.f32 %v3846, %v3847
  %v3849 = vsel %vm27, %v3716, 0.0
  %v3850 = vadd.f32 %v3848, %v3849
  %v3851 = vsel %vm27, %v3719, 0.0
  %v3852 = vadd.f32 %v3850, %v3851
  %v3853 = vsel %vm27, %v3721, 0.0
  %v3854 = vadd.f32 %v3852, %v3853
  %v3855 = vsel %vm27, %v3724, 0.0
  %v3856 = vadd.f32 %v3854, %v3855
  %v3857 = vsel %vm27, %v3726, 0.0
  %v3858 = vadd.f32 %v3856, %v3857
  %v3859 = vsel %vm27, %v3729, 0.0
  %v3860 = vadd.f32 %v3858, %v3859
  %v3861 = vsel %vm27, %v3731, 0.0
  %v3862 = vadd.f32 %v3860, %v3861
  %v3863 = vsel %vm27, %v3734, 0.0
  %v3864 = vadd.f32 %v3862, %v3863
  %v3865 = vsel %vm27, %v3736, 0.0
  %v3866 = vadd.f32 %v3864, %v3865
  %v3867 = vsel %vm27, %v3739, 0.0
  %v3868 = vadd.f32 %v3866, %v3867
  %v3869 = vsel %vm27, %v3741, 0.0
  %v3870 = vadd.f32 %v3868, %v3869
  %v3871 = vsel %vm27, %v3744, 0.0
  %v3872 = vadd.f32 %v3870, %v3871
  %v3873 = vsel %vm27, %v3746, 0.0
  %v3874 = vadd.f32 %v3872, %v3873
  %v3875 = vrot.slane %v3874, 4
  %v3876 = vadd.f32 %v3874, %v3875
  %v3877 = vrot.slane %v3876, 2
  %v3878 = vadd.f32 %v3876, %v3877
  %v3879 = vrot.slane %v3878, 1
  %v3880 = vadd.f32 %v3878, %v3879
  %v3881 = vrcp.pop 512.0
  %v3882 = vmul.f32 512.0, %v3881
  %v3883 = vsub.f32 1.0, %v3882
  %v3884 = vmul.f32 %v3881, %v3883
  %v3885 = vadd.f32 %v3881, %v3884
  %vm3886 = vweird.f32 %v3881
  %v3887 = vsel %vm3886, %v3881, %v3885
  %v3888 = vmul.f32 %v3880, %v3887
  %v3889 = vsub.f32 %v3589, %v3888
  %v3890 = vsub.f32 %v3591, %v3888
  %v3891 = vsub.f32 %v3594, %v3888
  %v3892 = vsub.f32 %v3596, %v3888
  %v3893 = vsub.f32 %v3599, %v3888
  %v3894 = vsub.f32 %v3601, %v3888
  %v3895 = vsub.f32 %v3604, %v3888
  %v3896 = vsub.f32 %v3606, %v3888
  %v3897 = vsub.f32 %v3609, %v3888
  %v3898 = vsub.f32 %v3611, %v3888
  %v3899 = vsub.f32 %v3614, %v3888
  %v3900 = vsub.f32 %v3616, %v3888
  %v3901 = vsub.f32 %v3619, %v3888
  %v3902 = vsub.f32 %v3621, %v3888
  %v3903 = vsub.f32 %v3624, %v3888
  %v3904 = vsub.f32 %v3626, %v3888
  %v3905 = vsub.f32 %v3629, %v3888
  %v3906 = vsub.f32 %v3631, %v3888
  %v3907 = vsub.f32 %v3634, %v3888
  %v3908 = vsub.f32 %v3636, %v3888
  %v3909 = vsub.f32 %v3639, %v3888
  %v3910 = vsub.f32 %v3641, %v3888
  %v3911 = vsub.f32 %v3644, %v3888
  %v3912 = vsub.f32 %v3646, %v3888
  %v3913 = vsub.f32 %v3649, %v3888
  %v3914 = vsub.f32 %v3651, %v3888
  %v3915 = vsub.f32 %v3654, %v3888
  %v3916 = vsub.f32 %v3656, %v3888
  %v3917 = vsub.f32 %v3659, %v3888
  %v3918 = vsub.f32 %v3661, %v3888
  %v3919 = vsub.f32 %v3664, %v3888
  %v3920 = vsub.f32 %v3666, %v3888
  %v3921 = vsub.f32 %v3669, %v3888
  %v3922 = vsub.f32 %v3671, %v3888
  %v3923 = vsub.f32 %v3674, %v3888
  %v3924 = vsub.f32 %v3676, %v3888
  %v3925 = vsub.f32 %v3679, %v3888
  %v3926 = vsub.f32 %v3681, %v3888
  %v3927 = vsub.f32 %v3684, %v3888
  %v3928 = vsub.f32 %v3686, %v3888
  %v3929 = vsub.f32 %v3689, %v3888
  %v3930 = vsub.f32 %v3691, %v3888
  %v3931 = vsub.f32 %v3694, %v3888
  %v3932 = vsub.f32 %v3696, %v3888
  %v3933 = vsub.f32 %v3699, %v3888
  %v3934 = vsub.f32 %v3701, %v3888
  %v3935 = vsub.f32 %v3704, %v3888
  %v3936 = vsub.f32 %v3706, %v3888
  %v3937 = vsub.f32 %v3709, %v3888
  %v3938 = vsub.f32 %v3711, %v3888
  %v3939 = vsub.f32 %v3714, %v3888
  %v3940 = vsub.f32 %v3716, %v3888
  %v3941 = vsub.f32 %v3719, %v3888
  %v3942 = vsub.f32 %v3721, %v3888
  %v3943 = vsub.f32 %v3724, %v3888
  %v3944 = vsub.f32 %v3726, %v3888
  %v3945 = vsub.f32 %v3729, %v3888
  %v3946 = vsub.f32 %v3731, %v3888
  %v3947 = vsub.f32 %v3734, %v3888
  %v3948 = vsub.f32 %v3736, %v3888
  %v3949 = vsub.f32 %v3739, %v3888
  %v3950 = vsub.f32 %v3741, %v3888
  %v3951 = vsub.f32 %v3744, %v3888
  %v3952 = vsub.f32 %v3746, %v3888
  %v3953 = vmul.f32 %v3889, %v3889
  %v3954 = vmul.f32 %v3890, %v3890
  %v3955 = vmul.f32 %v3891, %v3891
  %v3956 = vmul.f32 %v3892, %v3892
  %v3957 = vmul.f32 %v3893, %v3893
  %v3958 = vmul.f32 %v3894, %v3894
  %v3959 = vmul.f32 %v3895, %v3895
  %v3960 = vmul.f32 %v3896, %v3896
  %v3961 = vmul.f32 %v3897, %v3897
  %v3962 = vmul.f32 %v3898, %v3898
  %v3963 = vmul.f32 %v3899, %v3899
  %v3964 = vmul.f32 %v3900, %v3900
  %v3965 = vmul.f32 %v3901, %v3901
  %v3966 = vmul.f32 %v3902, %v3902
  %v3967 = vmul.f32 %v3903, %v3903
  %v3968 = vmul.f32 %v3904, %v3904
  %v3969 = vmul.f32 %v3905, %v3905
  %v3970 = vmul.f32 %v3906, %v3906
  %v3971 = vmul.f32 %v3907, %v3907
  %v3972 = vmul.f32 %v3908, %v3908
  %v3973 = vmul.f32 %v3909, %v3909
  %v3974 = vmul.f32 %v3910, %v3910
  %v3975 = vmul.f32 %v3911, %v3911
  %v3976 = vmul.f32 %v3912, %v3912
  %v3977 = vmul.f32 %v3913, %v3913
  %v3978 = vmul.f32 %v3914, %v3914
  %v3979 = vmul.f32 %v3915, %v3915
  %v3980 = vmul.f32 %v3916, %v3916
  %v3981 = vmul.f32 %v3917, %v3917
  %v3982 = vmul.f32 %v3918, %v3918
  %v3983 = vmul.f32 %v3919, %v3919
  %v3984 = vmul.f32 %v3920, %v3920
  %v3985 = vmul.f32 %v3921, %v3921
  %v3986 = vmul.f32 %v3922, %v3922
  %v3987 = vmul.f32 %v3923, %v3923
  %v3988 = vmul.f32 %v3924, %v3924
  %v3989 = vmul.f32 %v3925, %v3925
  %v3990 = vmul.f32 %v3926, %v3926
  %v3991 = vmul.f32 %v3927, %v3927
  %v3992 = vmul.f32 %v3928, %v3928
  %v3993 = vmul.f32 %v3929, %v3929
  %v3994 = vmul.f32 %v3930, %v3930
  %v3995 = vmul.f32 %v3931, %v3931
  %v3996 = vmul.f32 %v3932, %v3932
  %v3997 = vmul.f32 %v3933, %v3933
  %v3998 = vmul.f32 %v3934, %v3934
  %v3999 = vmul.f32 %v3935, %v3935
  %v4000 = vmul.f32 %v3936, %v3936
  %v4001 = vmul.f32 %v3937, %v3937
  %v4002 = vmul.f32 %v3938, %v3938
  %v4003 = vmul.f32 %v3939, %v3939
  %v4004 = vmul.f32 %v3940, %v3940
  %v4005 = vmul.f32 %v3941, %v3941
  %v4006 = vmul.f32 %v3942, %v3942
  %v4007 = vmul.f32 %v3943, %v3943
  %v4008 = vmul.f32 %v3944, %v3944
  %v4009 = vmul.f32 %v3945, %v3945
  %v4010 = vmul.f32 %v3946, %v3946
  %v4011 = vmul.f32 %v3947, %v3947
  %v4012 = vmul.f32 %v3948, %v3948
  %v4013 = vmul.f32 %v3949, %v3949
  %v4014 = vmul.f32 %v3950, %v3950
  %v4015 = vmul.f32 %v3951, %v3951
  %v4016 = vmul.f32 %v3952, %v3952
  %v4017 = vsel %vm27, %v3953, 0.0
  %v4018 = vsel %vm27, %v3954, 0.0
  %v4019 = vadd.f32 %v4017, %v4018
  %v4020 = vsel %vm27, %v3955, 0.0
  %v4021 = vadd.f32 %v4019, %v4020
  %v4022 = vsel %vm27, %v3956, 0.0
  %v4023 = vadd.f32 %v4021, %v4022
  %v4024 = vsel %vm27, %v3957, 0.0
  %v4025 = vadd.f32 %v4023, %v4024
  %v4026 = vsel %vm27, %v3958, 0.0
  %v4027 = vadd.f32 %v4025, %v4026
  %v4028 = vsel %vm27, %v3959, 0.0
  %v4029 = vadd.f32 %v4027, %v4028
  %v4030 = vsel %vm27, %v3960, 0.0
  %v4031 = vadd.f32 %v4029, %v4030
  %v4032 = vsel %vm27, %v3961, 0.0
  %v4033 = vadd.f32 %v4031, %v4032
  %v4034 = vsel %vm27, %v3962, 0.0
  %v4035 = vadd.f32 %v4033, %v4034
  %v4036 = vsel %vm27, %v3963, 0.0
  %v4037 = vadd.f32 %v4035, %v4036
  %v4038 = vsel %vm27, %v3964, 0.0
  %v4039 = vadd.f32 %v4037, %v4038
  %v4040 = vsel %vm27, %v3965, 0.0
  %v4041 = vadd.f32 %v4039, %v4040
  %v4042 = vsel %vm27, %v3966, 0.0
  %v4043 = vadd.f32 %v4041, %v4042
  %v4044 = vsel %vm27, %v3967, 0.0
  %v4045 = vadd.f32 %v4043, %v4044
  %v4046 = vsel %vm27, %v3968, 0.0
  %v4047 = vadd.f32 %v4045, %v4046
  %v4048 = vsel %vm27, %v3969, 0.0
  %v4049 = vadd.f32 %v4047, %v4048
  %v4050 = vsel %vm27, %v3970, 0.0
  %v4051 = vadd.f32 %v4049, %v4050
  %v4052 = vsel %vm27, %v3971, 0.0
  %v4053 = vadd.f32 %v4051, %v4052
  %v4054 = vsel %vm27, %v3972, 0.0
  %v4055 = vadd.f32 %v4053, %v4054
  %v4056 = vsel %vm27, %v3973, 0.0
  %v4057 = vadd.f32 %v4055, %v4056
  %v4058 = vsel %vm27, %v3974, 0.0
  %v4059 = vadd.f32 %v4057, %v4058
  %v4060 = vsel %vm27, %v3975, 0.0
  %v4061 = vadd.f32 %v4059, %v4060
  %v4062 = vsel %vm27, %v3976, 0.0
  %v4063 = vadd.f32 %v4061, %v4062
  %v4064 = vsel %vm27, %v3977, 0.0
  %v4065 = vadd.f32 %v4063, %v4064
  %v4066 = vsel %vm27, %v3978, 0.0
  %v4067 = vadd.f32 %v4065, %v4066
  %v4068 = vsel %vm27, %v3979, 0.0
  %v4069 = vadd.f32 %v4067, %v4068
  %v4070 = vsel %vm27, %v3980, 0.0
  %v4071 = vadd.f32 %v4069, %v4070
  %v4072 = vsel %vm27, %v3981, 0.0
  %v4073 = vadd.f32 %v4071, %v4072
  %v4074 = vsel %vm27, %v3982, 0.0
  %v4075 = vadd.f32 %v4073, %v4074
  %v4076 = vsel %vm27, %v3983, 0.0
  %v4077 = vadd.f32 %v4075, %v4076
  %v4078 = vsel %vm27, %v3984, 0.0
  %v4079 = vadd.f32 %v4077, %v4078
  %v4080 = vsel %vm27, %v3985, 0.0
  %v4081 = vadd.f32 %v4079, %v4080
  %v4082 = vsel %vm27, %v3986, 0.0
  %v4083 = vadd.f32 %v4081, %v4082
  %v4084 = vsel %vm27, %v3987, 0.0
  %v4085 = vadd.f32 %v4083, %v4084
  %v4086 = vsel %vm27, %v3988, 0.0
  %v4087 = vadd.f32 %v4085, %v4086
  %v4088 = vsel %vm27, %v3989, 0.0
  %v4089 = vadd.f32 %v4087, %v4088
  %v4090 = vsel %vm27, %v3990, 0.0
  %v4091 = vadd.f32 %v4089, %v4090
  %v4092 = vsel %vm27, %v3991, 0.0
  %v4093 = vadd.f32 %v4091, %v4092
  %v4094 = vsel %vm27, %v3992, 0.0
  %v4095 = vadd.f32 %v4093, %v4094
  %v4096 = vsel %vm27, %v3993, 0.0
  %v4097 = vadd.f32 %v4095, %v4096
  %v4098 = vsel %vm27, %v3994, 0.0
  %v4099 = vadd.f32 %v4097, %v4098
  %v4100 = vsel %vm27, %v3995, 0.0
  %v4101 = vadd.f32 %v4099, %v4100
  %v4102 = vsel %vm27, %v3996, 0.0
  %v4103 = vadd.f32 %v4101, %v4102
  %v4104 = vsel %vm27, %v3997, 0.0
  %v4105 = vadd.f32 %v4103, %v4104
  %v4106 = vsel %vm27, %v3998, 0.0
  %v4107 = vadd.f32 %v4105, %v4106
  %v4108 = vsel %vm27, %v3999, 0.0
  %v4109 = vadd.f32 %v4107, %v4108
  %v4110 = vsel %vm27, %v4000, 0.0
  %v4111 = vadd.f32 %v4109, %v4110
  %v4112 = vsel %vm27, %v4001, 0.0
  %v4113 = vadd.f32 %v4111, %v4112
  %v4114 = vsel %vm27, %v4002, 0.0
  %v4115 = vadd.f32 %v4113, %v4114
  %v4116 = vsel %vm27, %v4003, 0.0
  %v4117 = vadd.f32 %v4115, %v4116
  %v4118 = vsel %vm27, %v4004, 0.0
  %v4119 = vadd.f32 %v4117, %v4118
  %v4120 = vsel %vm27, %v4005, 0.0
  %v4121 = vadd.f32 %v4119, %v4120
  %v4122 = vsel %vm27, %v4006, 0.0
  %v4123 = vadd.f32 %v4121, %v4122
  %v4124 = vsel %vm27, %v4007, 0.0
  %v4125 = vadd.f32 %v4123, %v4124
  %v4126 = vsel %vm27, %v4008, 0.0
  %v4127 = vadd.f32 %v4125, %v4126
  %v4128 = vsel %vm27, %v4009, 0.0
  %v4129 = vadd.f32 %v4127, %v4128
  %v4130 = vsel %vm27, %v4010, 0.0
  %v4131 = vadd.f32 %v4129, %v4130
  %v4132 = vsel %vm27, %v4011, 0.0
  %v4133 = vadd.f32 %v4131, %v4132
  %v4134 = vsel %vm27, %v4012, 0.0
  %v4135 = vadd.f32 %v4133, %v4134
  %v4136 = vsel %vm27, %v4013, 0.0
  %v4137 = vadd.f32 %v4135, %v4136
  %v4138 = vsel %vm27, %v4014, 0.0
  %v4139 = vadd.f32 %v4137, %v4138
  %v4140 = vsel %vm27, %v4015, 0.0
  %v4141 = vadd.f32 %v4139, %v4140
  %v4142 = vsel %vm27, %v4016, 0.0
  %v4143 = vadd.f32 %v4141, %v4142
  %v4144 = vrot.slane %v4143, 4
  %v4145 = vadd.f32 %v4143, %v4144
  %v4146 = vrot.slane %v4145, 2
  %v4147 = vadd.f32 %v4145, %v4146
  %v4148 = vrot.slane %v4147, 1
  %v4149 = vadd.f32 %v4147, %v4148
  %v4150 = vmul.f32 %v4149, %v3887
  %v4151 = vld [vmem:[%s3] sm:$0x1]
  %v4152 = vadd.f32 %v4150, 1e-05
  %v4153 = vrsqrt.pop %v4152
  %v4154 = vmul.f32 %v4153, %v4152
  %v4155 = vmul.f32 %v4154, %v4153
  %v4156 = vmul.f32 0.5, %v4155
  %v4157 = vsub.f32 1.5, %v4156
  %v4158 = vmul.f32 %v4153, %v4157
  %vm4159 = vweird.f32 %v4152
  %vm4160 = vweird.f32 %v4153
  %vm4161 = vmor %vm4159, %vm4160
  %v4162 = vsel %vm4161, %v4153, %v4158
  %v4163 = vmul.f32 %v4151, %v4162
  %v4164 = vld [vmem:[%s4] sm:$0x1]
  %v4165 = vmul.f32 %v3888, %v4163
  %v4166 = vsub.f32 %v4164, %v4165
  %v4168 = vperm.slane %v4163, 0
  %v4170 = vmul.f32 %v3589, %v4168
  %v4171 = vmul.f32 %v3591, %v4168
  %v4172 = vmul.f32 %v3594, %v4168
  %v4173 = vmul.f32 %v3596, %v4168
  %v4174 = vmul.f32 %v3599, %v4168
  %v4175 = vmul.f32 %v3601, %v4168
  %v4176 = vmul.f32 %v3604, %v4168
  %v4177 = vmul.f32 %v3606, %v4168
  %v4178 = vmul.f32 %v3609, %v4168
  %v4179 = vmul.f32 %v3611, %v4168
  %v4180 = vmul.f32 %v3614, %v4168
  %v4181 = vmul.f32 %v3616, %v4168
  %v4182 = vmul.f32 %v3619, %v4168
  %v4183 = vmul.f32 %v3621, %v4168
  %v4184 = vmul.f32 %v3624, %v4168
  %v4185 = vmul.f32 %v3626, %v4168
  %v4186 = vmul.f32 %v3629, %v4168
  %v4187 = vmul.f32 %v3631, %v4168
  %v4188 = vmul.f32 %v3634, %v4168
  %v4189 = vmul.f32 %v3636, %v4168
  %v4190 = vmul.f32 %v3639, %v4168
  %v4191 = vmul.f32 %v3641, %v4168
  %v4192 = vmul.f32 %v3644, %v4168
  %v4193 = vmul.f32 %v3646, %v4168
  %v4194 = vmul.f32 %v3649, %v4168
  %v4195 = vmul.f32 %v3651, %v4168
  %v4196 = vmul.f32 %v3654, %v4168
  %v4197 = vmul.f32 %v3656, %v4168
  %v4198 = vmul.f32 %v3659, %v4168
  %v4199 = vmul.f32 %v3661, %v4168
  %v4200 = vmul.f32 %v3664, %v4168
  %v4201 = vmul.f32 %v3666, %v4168
  %v4202 = vmul.f32 %v3669, %v4168
  %v4203 = vmul.f32 %v3671, %v4168
  %v4204 = vmul.f32 %v3674, %v4168
  %v4205 = vmul.f32 %v3676, %v4168
  %v4206 = vmul.f32 %v3679, %v4168
  %v4207 = vmul.f32 %v3681, %v4168
  %v4208 = vmul.f32 %v3684, %v4168
  %v4209 = vmul.f32 %v3686, %v4168
  %v4210 = vmul.f32 %v3689, %v4168
  %v4211 = vmul.f32 %v3691, %v4168
  %v4212 = vmul.f32 %v3694, %v4168
  %v4213 = vmul.f32 %v3696, %v4168
  %v4214 = vmul.f32 %v3699, %v4168
  %v4215 = vmul.f32 %v3701, %v4168
  %v4216 = vmul.f32 %v3704, %v4168
  %v4217 = vmul.f32 %v3706, %v4168
  %v4218 = vmul.f32 %v3709, %v4168
  %v4219 = vmul.f32 %v3711, %v4168
  %v4220 = vmul.f32 %v3714, %v4168
  %v4221 = vmul.f32 %v3716, %v4168
  %v4222 = vmul.f32 %v3719, %v4168
  %v4223 = vmul.f32 %v3721, %v4168
  %v4224 = vmul.f32 %v3724, %v4168
  %v4225 = vmul.f32 %v3726, %v4168
  %v4226 = vmul.f32 %v3729, %v4168
  %v4227 = vmul.f32 %v3731, %v4168
  %v4228 = vmul.f32 %v3734, %v4168
  %v4229 = vmul.f32 %v3736, %v4168
  %v4230 = vmul.f32 %v3739, %v4168
  %v4231 = vmul.f32 %v3741, %v4168
  %v4232 = vmul.f32 %v3744, %v4168
  %v4233 = vmul.f32 %v3746, %v4168
  %v4235 = vperm.slane %v4166, 0
  %v4237 = vadd.f32 %v4170, %v4235
  %v4238 = vadd.f32 %v4171, %v4235
  %v4239 = vadd.f32 %v4172, %v4235
  %v4240 = vadd.f32 %v4173, %v4235
  %v4241 = vadd.f32 %v4174, %v4235
  %v4242 = vadd.f32 %v4175, %v4235
  %v4243 = vadd.f32 %v4176, %v4235
  %v4244 = vadd.f32 %v4177, %v4235
  %v4245 = vadd.f32 %v4178, %v4235
  %v4246 = vadd.f32 %v4179, %v4235
  %v4247 = vadd.f32 %v4180, %v4235
  %v4248 = vadd.f32 %v4181, %v4235
  %v4249 = vadd.f32 %v4182, %v4235
  %v4250 = vadd.f32 %v4183, %v4235
  %v4251 = vadd.f32 %v4184, %v4235
  %v4252 = vadd.f32 %v4185, %v4235
  %v4253 = vadd.f32 %v4186, %v4235
  %v4254 = vadd.f32 %v4187, %v4235
  %v4255 = vadd.f32 %v4188, %v4235
  %v4256 = vadd.f32 %v4189, %v4235
  %v4257 = vadd.f32 %v4190, %v4235
  %v4258 = vadd.f32 %v4191, %v4235
  %v4259 = vadd.f32 %v4192, %v4235
  %v4260 = vadd.f32 %v4193, %v4235
  %v4261 = vadd.f32 %v4194, %v4235
  %v4262 = vadd.f32 %v4195, %v4235
  %v4263 = vadd.f32 %v4196, %v4235
  %v4264 = vadd.f32 %v4197, %v4235
  %v4265 = vadd.f32 %v4198, %v4235
  %v4266 = vadd.f32 %v4199, %v4235
  %v4267 = vadd.f32 %v4200, %v4235
  %v4268 = vadd.f32 %v4201, %v4235
  %v4269 = vadd.f32 %v4202, %v4235
  %v4270 = vadd.f32 %v4203, %v4235
  %v4271 = vadd.f32 %v4204, %v4235
  %v4272 = vadd.f32 %v4205, %v4235
  %v4273 = vadd.f32 %v4206, %v4235
  %v4274 = vadd.f32 %v4207, %v4235
  %v4275 = vadd.f32 %v4208, %v4235
  %v4276 = vadd.f32 %v4209, %v4235
  %v4277 = vadd.f32 %v4210, %v4235
  %v4278 = vadd.f32 %v4211, %v4235
  %v4279 = vadd.f32 %v4212, %v4235
  %v4280 = vadd.f32 %v4213, %v4235
  %v4281 = vadd.f32 %v4214, %v4235
  %v4282 = vadd.f32 %v4215, %v4235
  %v4283 = vadd.f32 %v4216, %v4235
  %v4284 = vadd.f32 %v4217, %v4235
  %v4285 = vadd.f32 %v4218, %v4235
  %v4286 = vadd.f32 %v4219, %v4235
  %v4287 = vadd.f32 %v4220, %v4235
  %v4288 = vadd.f32 %v4221, %v4235
  %v4289 = vadd.f32 %v4222, %v4235
  %v4290 = vadd.f32 %v4223, %v4235
  %v4291 = vadd.f32 %v4224, %v4235
  %v4292 = vadd.f32 %v4225, %v4235
  %v4293 = vadd.f32 %v4226, %v4235
  %v4294 = vadd.f32 %v4227, %v4235
  %v4295 = vadd.f32 %v4228, %v4235
  %v4296 = vadd.f32 %v4229, %v4235
  %v4297 = vadd.f32 %v4230, %v4235
  %v4298 = vadd.f32 %v4231, %v4235
  %v4299 = vadd.f32 %v4232, %v4235
  %v4300 = vadd.f32 %v4233, %v4235
  %v4301 = vmax.f32 %v4237, 0.0
  %v4302 = vmax.f32 %v4238, 0.0
  %v4303 = vmax.f32 %v4239, 0.0
  %v4304 = vmax.f32 %v4240, 0.0
  %v4305 = vmax.f32 %v4241, 0.0
  %v4306 = vmax.f32 %v4242, 0.0
  %v4307 = vmax.f32 %v4243, 0.0
  %v4308 = vmax.f32 %v4244, 0.0
  %v4309 = vmax.f32 %v4245, 0.0
  %v4310 = vmax.f32 %v4246, 0.0
  %v4311 = vmax.f32 %v4247, 0.0
  %v4312 = vmax.f32 %v4248, 0.0
  %v4313 = vmax.f32 %v4249, 0.0
  %v4314 = vmax.f32 %v4250, 0.0
  %v4315 = vmax.f32 %v4251, 0.0
  %v4316 = vmax.f32 %v4252, 0.0
  %v4317 = vmax.f32 %v4253, 0.0
  %v4318 = vmax.f32 %v4254, 0.0
  %v4319 = vmax.f32 %v4255, 0.0
  %v4320 = vmax.f32 %v4256, 0.0
  %v4321 = vmax.f32 %v4257, 0.0
  %v4322 = vmax.f32 %v4258, 0.0
  %v4323 = vmax.f32 %v4259, 0.0
  %v4324 = vmax.f32 %v4260, 0.0
  %v4325 = vmax.f32 %v4261, 0.0
  %v4326 = vmax.f32 %v4262, 0.0
  %v4327 = vmax.f32 %v4263, 0.0
  %v4328 = vmax.f32 %v4264, 0.0
  %v4329 = vmax.f32 %v4265, 0.0
  %v4330 = vmax.f32 %v4266, 0.0
  %v4331 = vmax.f32 %v4267, 0.0
  %v4332 = vmax.f32 %v4268, 0.0
  %v4333 = vmax.f32 %v4269, 0.0
  %v4334 = vmax.f32 %v4270, 0.0
  %v4335 = vmax.f32 %v4271, 0.0
  %v4336 = vmax.f32 %v4272, 0.0
  %v4337 = vmax.f32 %v4273, 0.0
  %v4338 = vmax.f32 %v4274, 0.0
  %v4339 = vmax.f32 %v4275, 0.0
  %v4340 = vmax.f32 %v4276, 0.0
  %v4341 = vmax.f32 %v4277, 0.0
  %v4342 = vmax.f32 %v4278, 0.0
  %v4343 = vmax.f32 %v4279, 0.0
  %v4344 = vmax.f32 %v4280, 0.0
  %v4345 = vmax.f32 %v4281, 0.0
  %v4346 = vmax.f32 %v4282, 0.0
  %v4347 = vmax.f32 %v4283, 0.0
  %v4348 = vmax.f32 %v4284, 0.0
  %v4349 = vmax.f32 %v4285, 0.0
  %v4350 = vmax.f32 %v4286, 0.0
  %v4351 = vmax.f32 %v4287, 0.0
  %v4352 = vmax.f32 %v4288, 0.0
  %v4353 = vmax.f32 %v4289, 0.0
  %v4354 = vmax.f32 %v4290, 0.0
  %v4355 = vmax.f32 %v4291, 0.0
  %v4356 = vmax.f32 %v4292, 0.0
  %v4357 = vmax.f32 %v4293, 0.0
  %v4358 = vmax.f32 %v4294, 0.0
  %v4359 = vmax.f32 %v4295, 0.0
  %v4360 = vmax.f32 %v4296, 0.0
  %v4361 = vmax.f32 %v4297, 0.0
  %v4362 = vmax.f32 %v4298, 0.0
  %v4363 = vmax.f32 %v4299, 0.0
  %v4364 = vmax.f32 %v4300, 0.0
  %4365 = vst.msk [vmem:[%s201 + $0x1] sm:$0xff] %vm27, %v4301
  %4366 = vst.msk [vmem:[%s201 + $0x9] sm:$0xff] %vm27, %v4302
  %4367 = vst.msk [vmem:[%s201 + $0x19] sm:$0xff] %vm27, %v4303
  %4368 = vst.msk [vmem:[%s201 + $0x21] sm:$0xff] %vm27, %v4304
  %4369 = vst.msk [vmem:[%s201 + $0x31] sm:$0xff] %vm27, %v4305
  %4370 = vst.msk [vmem:[%s201 + $0x39] sm:$0xff] %vm27, %v4306
  %4371 = vst.msk [vmem:[%s201 + $0x49] sm:$0xff] %vm27, %v4307
  %4372 = vst.msk [vmem:[%s201 + $0x51] sm:$0xff] %vm27, %v4308
  %4373 = vst.msk [vmem:[%s201 + $0x61] sm:$0xff] %vm27, %v4309
  %4374 = vst.msk [vmem:[%s201 + $0x69] sm:$0xff] %vm27, %v4310
  %4375 = vst.msk [vmem:[%s201 + $0x79] sm:$0xff] %vm27, %v4311
  %4376 = vst.msk [vmem:[%s201 + $0x81] sm:$0xff] %vm27, %v4312
  %4377 = vst.msk [vmem:[%s201 + $0x91] sm:$0xff] %vm27, %v4313
  %4378 = vst.msk [vmem:[%s201 + $0x99] sm:$0xff] %vm27, %v4314
  %4379 = vst.msk [vmem:[%s201 + $0xa9] sm:$0xff] %vm27, %v4315
  %4380 = vst.msk [vmem:[%s201 + $0xb1] sm:$0xff] %vm27, %v4316
  %4381 = vst.msk [vmem:[%s201 + $0xc1] sm:$0xff] %vm27, %v4317
  %4382 = vst.msk [vmem:[%s201 + $0xc9] sm:$0xff] %vm27, %v4318
  %4383 = vst.msk [vmem:[%s201 + $0xd9] sm:$0xff] %vm27, %v4319
  %4384 = vst.msk [vmem:[%s201 + $0xe1] sm:$0xff] %vm27, %v4320
  %4385 = vst.msk [vmem:[%s201 + $0xf1] sm:$0xff] %vm27, %v4321
  %4386 = vst.msk [vmem:[%s201 + $0xf9] sm:$0xff] %vm27, %v4322
  %4387 = vst.msk [vmem:[%s201 + $0x109] sm:$0xff] %vm27, %v4323
  %4388 = vst.msk [vmem:[%s201 + $0x111] sm:$0xff] %vm27, %v4324
  %4389 = vst.msk [vmem:[%s201 + $0x121] sm:$0xff] %vm27, %v4325
  %4390 = vst.msk [vmem:[%s201 + $0x129] sm:$0xff] %vm27, %v4326
  %4391 = vst.msk [vmem:[%s201 + $0x139] sm:$0xff] %vm27, %v4327
  %4392 = vst.msk [vmem:[%s201 + $0x141] sm:$0xff] %vm27, %v4328
  %4393 = vst.msk [vmem:[%s201 + $0x151] sm:$0xff] %vm27, %v4329
  %4394 = vst.msk [vmem:[%s201 + $0x159] sm:$0xff] %vm27, %v4330
  %4395 = vst.msk [vmem:[%s201 + $0x169] sm:$0xff] %vm27, %v4331
  %4396 = vst.msk [vmem:[%s201 + $0x171] sm:$0xff] %vm27, %v4332
  %4397 = vst.msk [vmem:[%s201 + $0x1b1] sm:$0xff] %vm27, %v4333
  %4398 = vst.msk [vmem:[%s201 + $0x1b9] sm:$0xff] %vm27, %v4334
  %4399 = vst.msk [vmem:[%s201 + $0x1c9] sm:$0xff] %vm27, %v4335
  %4400 = vst.msk [vmem:[%s201 + $0x1d1] sm:$0xff] %vm27, %v4336
  %4401 = vst.msk [vmem:[%s201 + $0x1e1] sm:$0xff] %vm27, %v4337
  %4402 = vst.msk [vmem:[%s201 + $0x1e9] sm:$0xff] %vm27, %v4338
  %4403 = vst.msk [vmem:[%s201 + $0x1f9] sm:$0xff] %vm27, %v4339
  %4404 = vst.msk [vmem:[%s201 + $0x201] sm:$0xff] %vm27, %v4340
  %4405 = vst.msk [vmem:[%s201 + $0x211] sm:$0xff] %vm27, %v4341
  %4406 = vst.msk [vmem:[%s201 + $0x219] sm:$0xff] %vm27, %v4342
  %4407 = vst.msk [vmem:[%s201 + $0x229] sm:$0xff] %vm27, %v4343
  %4408 = vst.msk [vmem:[%s201 + $0x231] sm:$0xff] %vm27, %v4344
  %4409 = vst.msk [vmem:[%s201 + $0x241] sm:$0xff] %vm27, %v4345
  %4410 = vst.msk [vmem:[%s201 + $0x249] sm:$0xff] %vm27, %v4346
  %4411 = vst.msk [vmem:[%s201 + $0x259] sm:$0xff] %vm27, %v4347
  %4412 = vst.msk [vmem:[%s201 + $0x261] sm:$0xff] %vm27, %v4348
  %4413 = vst.msk [vmem:[%s201 + $0x271] sm:$0xff] %vm27, %v4349
  %4414 = vst.msk [vmem:[%s201 + $0x279] sm:$0xff] %vm27, %v4350
  %4415 = vst.msk [vmem:[%s201 + $0x289] sm:$0xff] %vm27, %v4351
  %4416 = vst.msk [vmem:[%s201 + $0x291] sm:$0xff] %vm27, %v4352
  %4417 = vst.msk [vmem:[%s201 + $0x2a1] sm:$0xff] %vm27, %v4353
  %4418 = vst.msk [vmem:[%s201 + $0x2a9] sm:$0xff] %vm27, %v4354
  %4419 = vst.msk [vmem:[%s201 + $0x2b9] sm:$0xff] %vm27, %v4355
  %4420 = vst.msk [vmem:[%s201 + $0x2c1] sm:$0xff] %vm27, %v4356
  %4421 = vst.msk [vmem:[%s201 + $0x2d1] sm:$0xff] %vm27, %v4357
  %4422 = vst.msk [vmem:[%s201 + $0x2d9] sm:$0xff] %vm27, %v4358
  %4423 = vst.msk [vmem:[%s201 + $0x2e9] sm:$0xff] %vm27, %v4359
  %4424 = vst.msk [vmem:[%s201 + $0x2f1] sm:$0xff] %vm27, %v4360
  %4425 = vst.msk [vmem:[%s201 + $0x301] sm:$0xff] %vm27, %v4361
  %4426 = vst.msk [vmem:[%s201 + $0x309] sm:$0xff] %vm27, %v4362
  %4427 = vst.msk [vmem:[%s201 + $0x319] sm:$0xff] %vm27, %v4363
  %4428 = vst.msk [vmem:[%s201 + $0x321] sm:$0xff] %vm27, %v4364
  %v4429 = vld [vmem:[#allocation2] sm:$0xff]
  %v4430 = vld [vmem:[#allocation2 + $0x8] sm:$0xff]
  %v4431 = vld [vmem:[#allocation2 + $0x18] sm:$0xff]
  %v4432 = vld [vmem:[#allocation2 + $0x20] sm:$0xff]
  %v4433 = vld [vmem:[#allocation2 + $0x30] sm:$0xff]
  %v4434 = vld [vmem:[#allocation2 + $0x38] sm:$0xff]
  %v4435 = vld [vmem:[#allocation2 + $0x48] sm:$0xff]
  %v4436 = vld [vmem:[#allocation2 + $0x50] sm:$0xff]
  %v4437 = vld [vmem:[#allocation2 + $0x60] sm:$0xff]
  %v4438 = vld [vmem:[#allocation2 + $0x68] sm:$0xff]
  %v4439 = vld [vmem:[#allocation2 + $0x78] sm:$0xff]
  %v4440 = vld [vmem:[#allocation2 + $0x80] sm:$0xff]
  %v4441 = vld [vmem:[#allocation2 + $0x90] sm:$0xff]
  %v4442 = vld [vmem:[#allocation2 + $0x98] sm:$0xff]
  %v4443 = vld [vmem:[#allocation2 + $0xa8] sm:$0xff]
  %v4444 = vld [vmem:[#allocation2 + $0xb0] sm:$0xff]
  %v4445 = vld [vmem:[#allocation2 + $0xc0] sm:$0xff]
  %v4446 = vld [vmem:[#allocation2 + $0xc8] sm:$0xff]
  %v4447 = vld [vmem:[#allocation2 + $0xd8] sm:$0xff]
  %v4448 = vld [vmem:[#allocation2 + $0xe0] sm:$0xff]
  %v4449 = vld [vmem:[#allocation2 + $0xf0] sm:$0xff]
  %v4450 = vld [vmem:[#allocation2 + $0xf8] sm:$0xff]
  %v4451 = vld [vmem:[#allocation2 + $0x108] sm:$0xff]
  %v4452 = vld [vmem:[#allocation2 + $0x110] sm:$0xff]
  %v4453 = vld [vmem:[#allocation2 + $0x120] sm:$0xff]
  %v4454 = vld [vmem:[#allocation2 + $0x128] sm:$0xff]
  %v4455 = vld [vmem:[#allocation2 + $0x138] sm:$0xff]
  %v4456 = vld [vmem:[#allocation2 + $0x140] sm:$0xff]
  %v4457 = vld [vmem:[#allocation2 + $0x150] sm:$0xff]
  %v4458 = vld [vmem:[#allocation2 + $0x158] sm:$0xff]
  %v4459 = vld [vmem:[#allocation2 + $0x168] sm:$0xff]
  %v4460 = vld [vmem:[#allocation2 + $0x170] sm:$0xff]
  %v4461 = vld [vmem:[#allocation2 + $0x1b0] sm:$0xff]
  %v4462 = vld [vmem:[#allocation2 + $0x1b8] sm:$0xff]
  %v4463 = vld [vmem:[#allocation2 + $0x1c8] sm:$0xff]
  %v4464 = vld [vmem:[#allocation2 + $0x1d0] sm:$0xff]
  %v4465 = vld [vmem:[#allocation2 + $0x1e0] sm:$0xff]
  %v4466 = vld [vmem:[#allocation2 + $0x1e8] sm:$0xff]
  %v4467 = vld [vmem:[#allocation2 + $0x1f8] sm:$0xff]
  %v4468 = vld [vmem:[#allocation2 + $0x200] sm:$0xff]
  %v4469 = vld [vmem:[#allocation2 + $0x210] sm:$0xff]
  %v4470 = vld [vmem:[#allocation2 + $0x218] sm:$0xff]
  %v4471 = vld [vmem:[#allocation2 + $0x228] sm:$0xff]
  %v4472 = vld [vmem:[#allocation2 + $0x230] sm:$0xff]
  %v4473 = vld [vmem:[#allocation2 + $0x240] sm:$0xff]
  %v4474 = vld [vmem:[#allocation2 + $0x248] sm:$0xff]
  %v4475 = vld [vmem:[#allocation2 + $0x258] sm:$0xff]
  %v4476 = vld [vmem:[#allocation2 + $0x260] sm:$0xff]
  %v4477 = vld [vmem:[#allocation2 + $0x270] sm:$0xff]
  %v4478 = vld [vmem:[#allocation2 + $0x278] sm:$0xff]
  %v4479 = vld [vmem:[#allocation2 + $0x288] sm:$0xff]
  %v4480 = vld [vmem:[#allocation2 + $0x290] sm:$0xff]
  %v4481 = vld [vmem:[#allocation2 + $0x2a0] sm:$0xff]
  %v4482 = vld [vmem:[#allocation2 + $0x2a8] sm:$0xff]
  %v4483 = vld [vmem:[#allocation2 + $0x2b8] sm:$0xff]
  %v4484 = vld [vmem:[#allocation2 + $0x2c0] sm:$0xff]
  %v4485 = vld [vmem:[#allocation2 + $0x2d0] sm:$0xff]
  %v4486 = vld [vmem:[#allocation2 + $0x2d8] sm:$0xff]
  %v4487 = vld [vmem:[#allocation2 + $0x2e8] sm:$0xff]
  %v4488 = vld [vmem:[#allocation2 + $0x2f0] sm:$0xff]
  %v4489 = vld [vmem:[#allocation2 + $0x300] sm:$0xff]
  %v4490 = vld [vmem:[#allocation2 + $0x308] sm:$0xff]
  %v4491 = vld [vmem:[#allocation2 + $0x318] sm:$0xff]
  %v4492 = vld [vmem:[#allocation2 + $0x320] sm:$0xff]
  %v4493 = vld [vmem:[#allocation2 + $0x1] sm:$0xff]
  %v4494 = vld [vmem:[#allocation2 + $0x9] sm:$0xff]
  %v4495 = vld [vmem:[#allocation2 + $0x19] sm:$0xff]
  %v4496 = vld [vmem:[#allocation2 + $0x21] sm:$0xff]
  %v4497 = vld [vmem:[#allocation2 + $0x31] sm:$0xff]
  %v4498 = vld [vmem:[#allocation2 + $0x39] sm:$0xff]
  %v4499 = vld [vmem:[#allocation2 + $0x49] sm:$0xff]
  %v4500 = vld [vmem:[#allocation2 + $0x51] sm:$0xff]
  %v4501 = vld [vmem:[#allocation2 + $0x61] sm:$0xff]
  %v4502 = vld [vmem:[#allocation2 + $0x69] sm:$0xff]
  %v4503 = vld [vmem:[#allocation2 + $0x79] sm:$0xff]
  %v4504 = vld [vmem:[#allocation2 + $0x81] sm:$0xff]
  %v4505 = vld [vmem:[#allocation2 + $0x91] sm:$0xff]
  %v4506 = vld [vmem:[#allocation2 + $0x99] sm:$0xff]
  %v4507 = vld [vmem:[#allocation2 + $0xa9] sm:$0xff]
  %v4508 = vld [vmem:[#allocation2 + $0xb1] sm:$0xff]
  %v4509 = vld [vmem:[#allocation2 + $0xc1] sm:$0xff]
  %v4510 = vld [vmem:[#allocation2 + $0xc9] sm:$0xff]
  %v4511 = vld [vmem:[#allocation2 + $0xd9] sm:$0xff]
  %v4512 = vld [vmem:[#allocation2 + $0xe1] sm:$0xff]
  %v4513 = vld [vmem:[#allocation2 + $0xf1] sm:$0xff]
  %v4514 = vld [vmem:[#allocation2 + $0xf9] sm:$0xff]
  %v4515 = vld [vmem:[#allocation2 + $0x109] sm:$0xff]
  %v4516 = vld [vmem:[#allocation2 + $0x111] sm:$0xff]
  %v4517 = vld [vmem:[#allocation2 + $0x121] sm:$0xff]
  %v4518 = vld [vmem:[#allocation2 + $0x129] sm:$0xff]
  %v4519 = vld [vmem:[#allocation2 + $0x139] sm:$0xff]
  %v4520 = vld [vmem:[#allocation2 + $0x141] sm:$0xff]
  %v4521 = vld [vmem:[#allocation2 + $0x151] sm:$0xff]
  %v4522 = vld [vmem:[#allocation2 + $0x159] sm:$0xff]
  %v4523 = vld [vmem:[#allocation2 + $0x169] sm:$0xff]
  %v4524 = vld [vmem:[#allocation2 + $0x171] sm:$0xff]
  %v4525 = vld [vmem:[#allocation2 + $0x1b1] sm:$0xff]
  %v4526 = vld [vmem:[#allocation2 + $0x1b9] sm:$0xff]
  %v4527 = vld [vmem:[#allocation2 + $0x1c9] sm:$0xff]
  %v4528 = vld [vmem:[#allocation2 + $0x1d1] sm:$0xff]
  %v4529 = vld [vmem:[#allocation2 + $0x1e1] sm:$0xff]
  %v4530 = vld [vmem:[#allocation2 + $0x1e9] sm:$0xff]
  %v4531 = vld [vmem:[#allocation2 + $0x1f9] sm:$0xff]
  %v4532 = vld [vmem:[#allocation2 + $0x201] sm:$0xff]
  %v4533 = vld [vmem:[#allocation2 + $0x211] sm:$0xff]
  %v4534 = vld [vmem:[#allocation2 + $0x219] sm:$0xff]
  %v4535 = vld [vmem:[#allocation2 + $0x229] sm:$0xff]
  %v4536 = vld [vmem:[#allocation2 + $0x231] sm:$0xff]
  %v4537 = vld [vmem:[#allocation2 + $0x241] sm:$0xff]
  %v4538 = vld [vmem:[#allocation2 + $0x249] sm:$0xff]
  %v4539 = vld [vmem:[#allocation2 + $0x259] sm:$0xff]
  %v4540 = vld [vmem:[#allocation2 + $0x261] sm:$0xff]
  %v4541 = vld [vmem:[#allocation2 + $0x271] sm:$0xff]
  %v4542 = vld [vmem:[#allocation2 + $0x279] sm:$0xff]
  %v4543 = vld [vmem:[#allocation2 + $0x289] sm:$0xff]
  %v4544 = vld [vmem:[#allocation2 + $0x291] sm:$0xff]
  %v4545 = vld [vmem:[#allocation2 + $0x2a1] sm:$0xff]
  %v4546 = vld [vmem:[#allocation2 + $0x2a9] sm:$0xff]
  %v4547 = vld [vmem:[#allocation2 + $0x2b9] sm:$0xff]
  %v4548 = vld [vmem:[#allocation2 + $0x2c1] sm:$0xff]
  %v4549 = vld [vmem:[#allocation2 + $0x2d1] sm:$0xff]
  %v4550 = vld [vmem:[#allocation2 + $0x2d9] sm:$0xff]
  %v4551 = vld [vmem:[#allocation2 + $0x2e9] sm:$0xff]
  %v4552 = vld [vmem:[#allocation2 + $0x2f1] sm:$0xff]
  %v4553 = vld [vmem:[#allocation2 + $0x301] sm:$0xff]
  %v4554 = vld [vmem:[#allocation2 + $0x309] sm:$0xff]
  %v4555 = vld [vmem:[#allocation2 + $0x319] sm:$0xff]
  %v4556 = vld [vmem:[#allocation2 + $0x321] sm:$0xff]
  %v4557 = vld [vmem:[#allocation2 + $0x2] sm:$0xff]
  %v4558 = vld [vmem:[#allocation2 + $0xa] sm:$0xff]
  %v4559 = vld [vmem:[#allocation2 + $0x1a] sm:$0xff]
  %v4560 = vld [vmem:[#allocation2 + $0x22] sm:$0xff]
  %v4561 = vld [vmem:[#allocation2 + $0x32] sm:$0xff]
  %v4562 = vld [vmem:[#allocation2 + $0x3a] sm:$0xff]
  %v4563 = vld [vmem:[#allocation2 + $0x4a] sm:$0xff]
  %v4564 = vld [vmem:[#allocation2 + $0x52] sm:$0xff]
  %v4565 = vld [vmem:[#allocation2 + $0x62] sm:$0xff]
  %v4566 = vld [vmem:[#allocation2 + $0x6a] sm:$0xff]
  %v4567 = vld [vmem:[#allocation2 + $0x7a] sm:$0xff]
  %v4568 = vld [vmem:[#allocation2 + $0x82] sm:$0xff]
  %v4569 = vld [vmem:[#allocation2 + $0x92] sm:$0xff]
  %v4570 = vld [vmem:[#allocation2 + $0x9a] sm:$0xff]
  %v4571 = vld [vmem:[#allocation2 + $0xaa] sm:$0xff]
  %v4572 = vld [vmem:[#allocation2 + $0xb2] sm:$0xff]
  %v4573 = vld [vmem:[#allocation2 + $0xc2] sm:$0xff]
  %v4574 = vld [vmem:[#allocation2 + $0xca] sm:$0xff]
  %v4575 = vld [vmem:[#allocation2 + $0xda] sm:$0xff]
  %v4576 = vld [vmem:[#allocation2 + $0xe2] sm:$0xff]
  %v4577 = vld [vmem:[#allocation2 + $0xf2] sm:$0xff]
  %v4578 = vld [vmem:[#allocation2 + $0xfa] sm:$0xff]
  %v4579 = vld [vmem:[#allocation2 + $0x10a] sm:$0xff]
  %v4580 = vld [vmem:[#allocation2 + $0x112] sm:$0xff]
  %v4581 = vld [vmem:[#allocation2 + $0x122] sm:$0xff]
  %v4582 = vld [vmem:[#allocation2 + $0x12a] sm:$0xff]
  %v4583 = vld [vmem:[#allocation2 + $0x13a] sm:$0xff]
  %v4584 = vld [vmem:[#allocation2 + $0x142] sm:$0xff]
  %v4585 = vld [vmem:[#allocation2 + $0x152] sm:$0xff]
  %v4586 = vld [vmem:[#allocation2 + $0x15a] sm:$0xff]
  %v4587 = vld [vmem:[#allocation2 + $0x16a] sm:$0xff]
  %v4588 = vld [vmem:[#allocation2 + $0x172] sm:$0xff]
  %v4589 = vld [vmem:[#allocation2 + $0x1b2] sm:$0xff]
  %v4590 = vld [vmem:[#allocation2 + $0x1ba] sm:$0xff]
  %v4591 = vld [vmem:[#allocation2 + $0x1ca] sm:$0xff]
  %v4592 = vld [vmem:[#allocation2 + $0x1d2] sm:$0xff]
  %v4593 = vld [vmem:[#allocation2 + $0x1e2] sm:$0xff]
  %v4594 = vld [vmem:[#allocation2 + $0x1ea] sm:$0xff]
  %v4595 = vld [vmem:[#allocation2 + $0x1fa] sm:$0xff]
  %v4596 = vld [vmem:[#allocation2 + $0x202] sm:$0xff]
  %v4597 = vld [vmem:[#allocation2 + $0x212] sm:$0xff]
  %v4598 = vld [vmem:[#allocation2 + $0x21a] sm:$0xff]
  %v4599 = vld [vmem:[#allocation2 + $0x22a] sm:$0xff]
  %v4600 = vld [vmem:[#allocation2 + $0x232] sm:$0xff]
  %v4601 = vld [vmem:[#allocation2 + $0x242] sm:$0xff]
  %v4602 = vld [vmem:[#allocation2 + $0x24a] sm:$0xff]
  %v4603 = vld [vmem:[#allocation2 + $0x25a] sm:$0xff]
  %v4604 = vld [vmem:[#allocation2 + $0x262] sm:$0xff]
  %v4605 = vld [vmem:[#allocation2 + $0x272] sm:$0xff]
  %v4606 = vld [vmem:[#allocation2 + $0x27a] sm:$0xff]
  %v4607 = vld [vmem:[#allocation2 + $0x28a] sm:$0xff]
  %v4608 = vld [vmem:[#allocation2 + $0x292] sm:$0xff]
  %v4609 = vld [vmem:[#allocation2 + $0x2a2] sm:$0xff]
  %v4610 = vld [vmem:[#allocation2 + $0x2aa] sm:$0xff]
  %v4611 = vld [vmem:[#allocation2 + $0x2ba] sm:$0xff]
  %v4612 = vld [vmem:[#allocation2 + $0x2c2] sm:$0xff]
  %v4613 = vld [vmem:[#allocation2 + $0x2d2] sm:$0xff]
  %v4614 = vld [vmem:[#allocation2 + $0x2da] sm:$0xff]
  %v4615 = vld [vmem:[#allocation2 + $0x2ea] sm:$0xff]
  %v4616 = vld [vmem:[#allocation2 + $0x2f2] sm:$0xff]
  %v4617 = vld [vmem:[#allocation2 + $0x302] sm:$0xff]
  %v4618 = vld [vmem:[#allocation2 + $0x30a] sm:$0xff]
  %v4619 = vld [vmem:[#allocation2 + $0x31a] sm:$0xff]
  %v4620 = vld [vmem:[#allocation2 + $0x322] sm:$0xff]
  %v4621 = vld [vmem:[%s201] sm:$0xff]
  %v4622 = vld [vmem:[%s201 + $0x8] sm:$0xff]
  %v4623 = vld [vmem:[%s201 + $0x18] sm:$0xff]
  %v4624 = vld [vmem:[%s201 + $0x20] sm:$0xff]
  %v4625 = vld [vmem:[%s201 + $0x30] sm:$0xff]
  %v4626 = vld [vmem:[%s201 + $0x38] sm:$0xff]
  %v4627 = vld [vmem:[%s201 + $0x48] sm:$0xff]
  %v4628 = vld [vmem:[%s201 + $0x50] sm:$0xff]
  %v4629 = vld [vmem:[%s201 + $0x60] sm:$0xff]
  %v4630 = vld [vmem:[%s201 + $0x68] sm:$0xff]
  %v4631 = vld [vmem:[%s201 + $0x78] sm:$0xff]
  %v4632 = vld [vmem:[%s201 + $0x80] sm:$0xff]
  %v4633 = vld [vmem:[%s201 + $0x90] sm:$0xff]
  %v4634 = vld [vmem:[%s201 + $0x98] sm:$0xff]
  %v4635 = vld [vmem:[%s201 + $0xa8] sm:$0xff]
  %v4636 = vld [vmem:[%s201 + $0xb0] sm:$0xff]
  %v4637 = vld [vmem:[%s201 + $0xc0] sm:$0xff]
  %v4638 = vld [vmem:[%s201 + $0xc8] sm:$0xff]
  %v4639 = vld [vmem:[%s201 + $0xd8] sm:$0xff]
  %v4640 = vld [vmem:[%s201 + $0xe0] sm:$0xff]
  %v4641 = vld [vmem:[%s201 + $0xf0] sm:$0xff]
  %v4642 = vld [vmem:[%s201 + $0xf8] sm:$0xff]
  %v4643 = vld [vmem:[%s201 + $0x108] sm:$0xff]
  %v4644 = vld [vmem:[%s201 + $0x110] sm:$0xff]
  %v4645 = vld [vmem:[%s201 + $0x120] sm:$0xff]
  %v4646 = vld [vmem:[%s201 + $0x128] sm:$0xff]
  %v4647 = vld [vmem:[%s201 + $0x138] sm:$0xff]
  %v4648 = vld [vmem:[%s201 + $0x140] sm:$0xff]
  %v4649 = vld [vmem:[%s201 + $0x150] sm:$0xff]
  %v4650 = vld [vmem:[%s201 + $0x158] sm:$0xff]
  %v4651 = vld [vmem:[%s201 + $0x168] sm:$0xff]
  %v4652 = vld [vmem:[%s201 + $0x170] sm:$0xff]
  %v4653 = vld [vmem:[%s201 + $0x1b0] sm:$0xff]
  %v4654 = vld [vmem:[%s201 + $0x1b8] sm:$0xff]
  %v4655 = vld [vmem:[%s201 + $0x1c8] sm:$0xff]
  %v4656 = vld [vmem:[%s201 + $0x1d0] sm:$0xff]
  %v4657 = vld [vmem:[%s201 + $0x1e0] sm:$0xff]
  %v4658 = vld [vmem:[%s201 + $0x1e8] sm:$0xff]
  %v4659 = vld [vmem:[%s201 + $0x1f8] sm:$0xff]
  %v4660 = vld [vmem:[%s201 + $0x200] sm:$0xff]
  %v4661 = vld [vmem:[%s201 + $0x210] sm:$0xff]
  %v4662 = vld [vmem:[%s201 + $0x218] sm:$0xff]
  %v4663 = vld [vmem:[%s201 + $0x228] sm:$0xff]
  %v4664 = vld [vmem:[%s201 + $0x230] sm:$0xff]
  %v4665 = vld [vmem:[%s201 + $0x240] sm:$0xff]
  %v4666 = vld [vmem:[%s201 + $0x248] sm:$0xff]
  %v4667 = vld [vmem:[%s201 + $0x258] sm:$0xff]
  %v4668 = vld [vmem:[%s201 + $0x260] sm:$0xff]
  %v4669 = vld [vmem:[%s201 + $0x270] sm:$0xff]
  %v4670 = vld [vmem:[%s201 + $0x278] sm:$0xff]
  %v4671 = vld [vmem:[%s201 + $0x288] sm:$0xff]
  %v4672 = vld [vmem:[%s201 + $0x290] sm:$0xff]
  %v4673 = vld [vmem:[%s201 + $0x2a0] sm:$0xff]
  %v4674 = vld [vmem:[%s201 + $0x2a8] sm:$0xff]
  %v4675 = vld [vmem:[%s201 + $0x2b8] sm:$0xff]
  %v4676 = vld [vmem:[%s201 + $0x2c0] sm:$0xff]
  %v4677 = vld [vmem:[%s201 + $0x2d0] sm:$0xff]
  %v4678 = vld [vmem:[%s201 + $0x2d8] sm:$0xff]
  %v4679 = vld [vmem:[%s201 + $0x2e8] sm:$0xff]
  %v4680 = vld [vmem:[%s201 + $0x2f0] sm:$0xff]
  %v4681 = vld [vmem:[%s201 + $0x300] sm:$0xff]
  %v4682 = vld [vmem:[%s201 + $0x308] sm:$0xff]
  %v4683 = vld [vmem:[%s201 + $0x318] sm:$0xff]
  %v4684 = vld [vmem:[%s201 + $0x320] sm:$0xff]
  %v4685 = vld [vmem:[%s201 + $0x1] sm:$0xff]
  %v4686 = vld [vmem:[%s201 + $0x9] sm:$0xff]
  %v4687 = vld [vmem:[%s201 + $0x19] sm:$0xff]
  %v4688 = vld [vmem:[%s201 + $0x21] sm:$0xff]
  %v4689 = vld [vmem:[%s201 + $0x31] sm:$0xff]
  %v4690 = vld [vmem:[%s201 + $0x39] sm:$0xff]
  %v4691 = vld [vmem:[%s201 + $0x49] sm:$0xff]
  %v4692 = vld [vmem:[%s201 + $0x51] sm:$0xff]
  %v4693 = vld [vmem:[%s201 + $0x61] sm:$0xff]
  %v4694 = vld [vmem:[%s201 + $0x69] sm:$0xff]
  %v4695 = vld [vmem:[%s201 + $0x79] sm:$0xff]
  %v4696 = vld [vmem:[%s201 + $0x81] sm:$0xff]
  %v4697 = vld [vmem:[%s201 + $0x91] sm:$0xff]
  %v4698 = vld [vmem:[%s201 + $0x99] sm:$0xff]
  %v4699 = vld [vmem:[%s201 + $0xa9] sm:$0xff]
  %v4700 = vld [vmem:[%s201 + $0xb1] sm:$0xff]
  %v4701 = vld [vmem:[%s201 + $0xc1] sm:$0xff]
  %v4702 = vld [vmem:[%s201 + $0xc9] sm:$0xff]
  %v4703 = vld [vmem:[%s201 + $0xd9] sm:$0xff]
  %v4704 = vld [vmem:[%s201 + $0xe1] sm:$0xff]
  %v4705 = vld [vmem:[%s201 + $0xf1] sm:$0xff]
  %v4706 = vld [vmem:[%s201 + $0xf9] sm:$0xff]
  %v4707 = vld [vmem:[%s201 + $0x109] sm:$0xff]
  %v4708 = vld [vmem:[%s201 + $0x111] sm:$0xff]
  %v4709 = vld [vmem:[%s201 + $0x121] sm:$0xff]
  %v4710 = vld [vmem:[%s201 + $0x129] sm:$0xff]
  %v4711 = vld [vmem:[%s201 + $0x139] sm:$0xff]
  %v4712 = vld [vmem:[%s201 + $0x141] sm:$0xff]
  %v4713 = vld [vmem:[%s201 + $0x151] sm:$0xff]
  %v4714 = vld [vmem:[%s201 + $0x159] sm:$0xff]
  %v4715 = vld [vmem:[%s201 + $0x169] sm:$0xff]
  %v4716 = vld [vmem:[%s201 + $0x171] sm:$0xff]
  %v4717 = vld [vmem:[%s201 + $0x1b1] sm:$0xff]
  %v4718 = vld [vmem:[%s201 + $0x1b9] sm:$0xff]
  %v4719 = vld [vmem:[%s201 + $0x1c9] sm:$0xff]
  %v4720 = vld [vmem:[%s201 + $0x1d1] sm:$0xff]
  %v4721 = vld [vmem:[%s201 + $0x1e1] sm:$0xff]
  %v4722 = vld [vmem:[%s201 + $0x1e9] sm:$0xff]
  %v4723 = vld [vmem:[%s201 + $0x1f9] sm:$0xff]
  %v4724 = vld [vmem:[%s201 + $0x201] sm:$0xff]
  %v4725 = vld [vmem:[%s201 + $0x211] sm:$0xff]
  %v4726 = vld [vmem:[%s201 + $0x219] sm:$0xff]
  %v4727 = vld [vmem:[%s201 + $0x229] sm:$0xff]
  %v4728 = vld [vmem:[%s201 + $0x231] sm:$0xff]
  %v4729 = vld [vmem:[%s201 + $0x241] sm:$0xff]
  %v4730 = vld [vmem:[%s201 + $0x249] sm:$0xff]
  %v4731 = vld [vmem:[%s201 + $0x259] sm:$0xff]
  %v4732 = vld [vmem:[%s201 + $0x261] sm:$0xff]
  %v4733 = vld [vmem:[%s201 + $0x271] sm:$0xff]
  %v4734 = vld [vmem:[%s201 + $0x279] sm:$0xff]
  %v4735 = vld [vmem:[%s201 + $0x289] sm:$0xff]
  %v4736 = vld [vmem:[%s201 + $0x291] sm:$0xff]
  %v4737 = vld [vmem:[%s201 + $0x2a1] sm:$0xff]
  %v4738 = vld [vmem:[%s201 + $0x2a9] sm:$0xff]
  %v4739 = vld [vmem:[%s201 + $0x2b9] sm:$0xff]
  %v4740 = vld [vmem:[%s201 + $0x2c1] sm:$0xff]
  %v4741 = vld [vmem:[%s201 + $0x2d1] sm:$0xff]
  %v4742 = vld [vmem:[%s201 + $0x2d9] sm:$0xff]
  %v4743 = vld [vmem:[%s201 + $0x2e9] sm:$0xff]
  %v4744 = vld [vmem:[%s201 + $0x2f1] sm:$0xff]
  %v4745 = vld [vmem:[%s201 + $0x301] sm:$0xff]
  %v4746 = vld [vmem:[%s201 + $0x309] sm:$0xff]
  %v4747 = vld [vmem:[%s201 + $0x319] sm:$0xff]
  %v4748 = vld [vmem:[%s201 + $0x321] sm:$0xff]
  %v4749 = vld [vmem:[%s201 + $0x2] sm:$0xff]
  %v4750 = vld [vmem:[%s201 + $0xa] sm:$0xff]
  %v4751 = vld [vmem:[%s201 + $0x1a] sm:$0xff]
  %v4752 = vld [vmem:[%s201 + $0x22] sm:$0xff]
  %v4753 = vld [vmem:[%s201 + $0x32] sm:$0xff]
  %v4754 = vld [vmem:[%s201 + $0x3a] sm:$0xff]
  %v4755 = vld [vmem:[%s201 + $0x4a] sm:$0xff]
  %v4756 = vld [vmem:[%s201 + $0x52] sm:$0xff]
  %v4757 = vld [vmem:[%s201 + $0x62] sm:$0xff]
  %v4758 = vld [vmem:[%s201 + $0x6a] sm:$0xff]
  %v4759 = vld [vmem:[%s201 + $0x7a] sm:$0xff]
  %v4760 = vld [vmem:[%s201 + $0x82] sm:$0xff]
  %v4761 = vld [vmem:[%s201 + $0x92] sm:$0xff]
  %v4762 = vld [vmem:[%s201 + $0x9a] sm:$0xff]
  %v4763 = vld [vmem:[%s201 + $0xaa] sm:$0xff]
  %v4764 = vld [vmem:[%s201 + $0xb2] sm:$0xff]
  %v4765 = vld [vmem:[%s201 + $0xc2] sm:$0xff]
  %v4766 = vld [vmem:[%s201 + $0xca] sm:$0xff]
  %v4767 = vld [vmem:[%s201 + $0xda] sm:$0xff]
  %v4768 = vld [vmem:[%s201 + $0xe2] sm:$0xff]
  %v4769 = vld [vmem:[%s201 + $0xf2] sm:$0xff]
  %v4770 = vld [vmem:[%s201 + $0xfa] sm:$0xff]
  %v4771 = vld [vmem:[%s201 + $0x10a] sm:$0xff]
  %v4772 = vld [vmem:[%s201 + $0x112] sm:$0xff]
  %v4773 = vld [vmem:[%s201 + $0x122] sm:$0xff]
  %v4774 = vld [vmem:[%s201 + $0x12a] sm:$0xff]
  %v4775 = vld [vmem:[%s201 + $0x13a] sm:$0xff]
  %v4776 = vld [vmem:[%s201 + $0x142] sm:$0xff]
  %v4777 = vld [vmem:[%s201 + $0x152] sm:$0xff]
  %v4778 = vld [vmem:[%s201 + $0x15a] sm:$0xff]
  %v4779 = vld [vmem:[%s201 + $0x16a] sm:$0xff]
  %v4780 = vld [vmem:[%s201 + $0x172] sm:$0xff]
  %v4781 = vld [vmem:[%s201 + $0x1b2] sm:$0xff]
  %v4782 = vld [vmem:[%s201 + $0x1ba] sm:$0xff]
  %v4783 = vld [vmem:[%s201 + $0x1ca] sm:$0xff]
  %v4784 = vld [vmem:[%s201 + $0x1d2] sm:$0xff]
  %v4785 = vld [vmem:[%s201 + $0x1e2] sm:$0xff]
  %v4786 = vld [vmem:[%s201 + $0x1ea] sm:$0xff]
  %v4787 = vld [vmem:[%s201 + $0x1fa] sm:$0xff]
  %v4788 = vld [vmem:[%s201 + $0x202] sm:$0xff]
  %v4789 = vld [vmem:[%s201 + $0x212] sm:$0xff]
  %v4790 = vld [vmem:[%s201 + $0x21a] sm:$0xff]
  %v4791 = vld [vmem:[%s201 + $0x22a] sm:$0xff]
  %v4792 = vld [vmem:[%s201 + $0x232] sm:$0xff]
  %v4793 = vld [vmem:[%s201 + $0x242] sm:$0xff]
  %v4794 = vld [vmem:[%s201 + $0x24a] sm:$0xff]
  %v4795 = vld [vmem:[%s201 + $0x25a] sm:$0xff]
  %v4796 = vld [vmem:[%s201 + $0x262] sm:$0xff]
  %v4797 = vld [vmem:[%s201 + $0x272] sm:$0xff]
  %v4798 = vld [vmem:[%s201 + $0x27a] sm:$0xff]
  %v4799 = vld [vmem:[%s201 + $0x28a] sm:$0xff]
  %v4800 = vld [vmem:[%s201 + $0x292] sm:$0xff]
  %v4801 = vld [vmem:[%s201 + $0x2a2] sm:$0xff]
  %v4802 = vld [vmem:[%s201 + $0x2aa] sm:$0xff]
  %v4803 = vld [vmem:[%s201 + $0x2ba] sm:$0xff]
  %v4804 = vld [vmem:[%s201 + $0x2c2] sm:$0xff]
  %v4805 = vld [vmem:[%s201 + $0x2d2] sm:$0xff]
  %v4806 = vld [vmem:[%s201 + $0x2da] sm:$0xff]
  %v4807 = vld [vmem:[%s201 + $0x2ea] sm:$0xff]
  %v4808 = vld [vmem:[%s201 + $0x2f2] sm:$0xff]
  %v4809 = vld [vmem:[%s201 + $0x302] sm:$0xff]
  %v4810 = vld [vmem:[%s201 + $0x30a] sm:$0xff]
  %v4811 = vld [vmem:[%s201 + $0x31a] sm:$0xff]
  %v4812 = vld [vmem:[%s201 + $0x322] sm:$0xff]
  %v4813 = vld [vmem:[%s650] sm:$0xff]
  %v4814 = vld [vmem:[%s650 + $0x8] sm:$0xff]
  %v4815 = vld [vmem:[%s650 + $0x18] sm:$0xff]
  %v4816 = vld [vmem:[%s650 + $0x20] sm:$0xff]
  %v4817 = vld [vmem:[%s650 + $0x30] sm:$0xff]
  %v4818 = vld [vmem:[%s650 + $0x38] sm:$0xff]
  %v4819 = vld [vmem:[%s650 + $0x48] sm:$0xff]
  %v4820 = vld [vmem:[%s650 + $0x50] sm:$0xff]
  %v4821 = vld [vmem:[%s650 + $0x60] sm:$0xff]
  %v4822 = vld [vmem:[%s650 + $0x68] sm:$0xff]
  %v4823 = vld [vmem:[%s650 + $0x78] sm:$0xff]
  %v4824 = vld [vmem:[%s650 + $0x80] sm:$0xff]
  %v4825 = vld [vmem:[%s650 + $0x90] sm:$0xff]
  %v4826 = vld [vmem:[%s650 + $0x98] sm:$0xff]
  %v4827 = vld [vmem:[%s650 + $0xa8] sm:$0xff]
  %v4828 = vld [vmem:[%s650 + $0xb0] sm:$0xff]
  %v4829 = vld [vmem:[%s650 + $0xc0] sm:$0xff]
  %v4830 = vld [vmem:[%s650 + $0xc8] sm:$0xff]
  %v4831 = vld [vmem:[%s650 + $0xd8] sm:$0xff]
  %v4832 = vld [vmem:[%s650 + $0xe0] sm:$0xff]
  %v4833 = vld [vmem:[%s650 + $0xf0] sm:$0xff]
  %v4834 = vld [vmem:[%s650 + $0xf8] sm:$0xff]
  %v4835 = vld [vmem:[%s650 + $0x108] sm:$0xff]
  %v4836 = vld [vmem:[%s650 + $0x110] sm:$0xff]
  %v4837 = vld [vmem:[%s650 + $0x120] sm:$0xff]
  %v4838 = vld [vmem:[%s650 + $0x128] sm:$0xff]
  %v4839 = vld [vmem:[%s650 + $0x138] sm:$0xff]
  %v4840 = vld [vmem:[%s650 + $0x140] sm:$0xff]
  %v4841 = vld [vmem:[%s650 + $0x150] sm:$0xff]
  %v4842 = vld [vmem:[%s650 + $0x158] sm:$0xff]
  %v4843 = vld [vmem:[%s650 + $0x168] sm:$0xff]
  %v4844 = vld [vmem:[%s650 + $0x170] sm:$0xff]
  %v4845 = vld [vmem:[%s650 + $0x1b0] sm:$0xff]
  %v4846 = vld [vmem:[%s650 + $0x1b8] sm:$0xff]
  %v4847 = vld [vmem:[%s650 + $0x1c8] sm:$0xff]
  %v4848 = vld [vmem:[%s650 + $0x1d0] sm:$0xff]
  %v4849 = vld [vmem:[%s650 + $0x1e0] sm:$0xff]
  %v4850 = vld [vmem:[%s650 + $0x1e8] sm:$0xff]
  %v4851 = vld [vmem:[%s650 + $0x1f8] sm:$0xff]
  %v4852 = vld [vmem:[%s650 + $0x200] sm:$0xff]
  %v4853 = vld [vmem:[%s650 + $0x210] sm:$0xff]
  %v4854 = vld [vmem:[%s650 + $0x218] sm:$0xff]
  %v4855 = vld [vmem:[%s650 + $0x228] sm:$0xff]
  %v4856 = vld [vmem:[%s650 + $0x230] sm:$0xff]
  %v4857 = vld [vmem:[%s650 + $0x240] sm:$0xff]
  %v4858 = vld [vmem:[%s650 + $0x248] sm:$0xff]
  %v4859 = vld [vmem:[%s650 + $0x258] sm:$0xff]
  %v4860 = vld [vmem:[%s650 + $0x260] sm:$0xff]
  %v4861 = vld [vmem:[%s650 + $0x270] sm:$0xff]
  %v4862 = vld [vmem:[%s650 + $0x278] sm:$0xff]
  %v4863 = vld [vmem:[%s650 + $0x288] sm:$0xff]
  %v4864 = vld [vmem:[%s650 + $0x290] sm:$0xff]
  %v4865 = vld [vmem:[%s650 + $0x2a0] sm:$0xff]
  %v4866 = vld [vmem:[%s650 + $0x2a8] sm:$0xff]
  %v4867 = vld [vmem:[%s650 + $0x2b8] sm:$0xff]
  %v4868 = vld [vmem:[%s650 + $0x2c0] sm:$0xff]
  %v4869 = vld [vmem:[%s650 + $0x2d0] sm:$0xff]
  %v4870 = vld [vmem:[%s650 + $0x2d8] sm:$0xff]
  %v4871 = vld [vmem:[%s650 + $0x2e8] sm:$0xff]
  %v4872 = vld [vmem:[%s650 + $0x2f0] sm:$0xff]
  %v4873 = vld [vmem:[%s650 + $0x300] sm:$0xff]
  %v4874 = vld [vmem:[%s650 + $0x308] sm:$0xff]
  %v4875 = vld [vmem:[%s650 + $0x318] sm:$0xff]
  %v4876 = vld [vmem:[%s650 + $0x320] sm:$0xff]
  %v4877 = vld [vmem:[%s650 + $0x1] sm:$0xff]
  %v4878 = vld [vmem:[%s650 + $0x9] sm:$0xff]
  %v4879 = vld [vmem:[%s650 + $0x19] sm:$0xff]
  %v4880 = vld [vmem:[%s650 + $0x21] sm:$0xff]
  %v4881 = vld [vmem:[%s650 + $0x31] sm:$0xff]
  %v4882 = vld [vmem:[%s650 + $0x39] sm:$0xff]
  %v4883 = vld [vmem:[%s650 + $0x49] sm:$0xff]
  %v4884 = vld [vmem:[%s650 + $0x51] sm:$0xff]
  %v4885 = vld [vmem:[%s650 + $0x61] sm:$0xff]
  %v4886 = vld [vmem:[%s650 + $0x69] sm:$0xff]
  %v4887 = vld [vmem:[%s650 + $0x79] sm:$0xff]
  %v4888 = vld [vmem:[%s650 + $0x81] sm:$0xff]
  %v4889 = vld [vmem:[%s650 + $0x91] sm:$0xff]
  %v4890 = vld [vmem:[%s650 + $0x99] sm:$0xff]
  %v4891 = vld [vmem:[%s650 + $0xa9] sm:$0xff]
  %v4892 = vld [vmem:[%s650 + $0xb1] sm:$0xff]
  %v4893 = vld [vmem:[%s650 + $0xc1] sm:$0xff]
  %v4894 = vld [vmem:[%s650 + $0xc9] sm:$0xff]
  %v4895 = vld [vmem:[%s650 + $0xd9] sm:$0xff]
  %v4896 = vld [vmem:[%s650 + $0xe1] sm:$0xff]
  %v4897 = vld [vmem:[%s650 + $0xf1] sm:$0xff]
  %v4898 = vld [vmem:[%s650 + $0xf9] sm:$0xff]
  %v4899 = vld [vmem:[%s650 + $0x109] sm:$0xff]
  %v4900 = vld [vmem:[%s650 + $0x111] sm:$0xff]
  %v4901 = vld [vmem:[%s650 + $0x121] sm:$0xff]
  %v4902 = vld [vmem:[%s650 + $0x129] sm:$0xff]
  %v4903 = vld [vmem:[%s650 + $0x139] sm:$0xff]
  %v4904 = vld [vmem:[%s650 + $0x141] sm:$0xff]
  %v4905 = vld [vmem:[%s650 + $0x151] sm:$0xff]
  %v4906 = vld [vmem:[%s650 + $0x159] sm:$0xff]
  %v4907 = vld [vmem:[%s650 + $0x169] sm:$0xff]
  %v4908 = vld [vmem:[%s650 + $0x171] sm:$0xff]
  %v4909 = vld [vmem:[%s650 + $0x1b1] sm:$0xff]
  %v4910 = vld [vmem:[%s650 + $0x1b9] sm:$0xff]
  %v4911 = vld [vmem:[%s650 + $0x1c9] sm:$0xff]
  %v4912 = vld [vmem:[%s650 + $0x1d1] sm:$0xff]
  %v4913 = vld [vmem:[%s650 + $0x1e1] sm:$0xff]
  %v4914 = vld [vmem:[%s650 + $0x1e9] sm:$0xff]
  %v4915 = vld [vmem:[%s650 + $0x1f9] sm:$0xff]
  %v4916 = vld [vmem:[%s650 + $0x201] sm:$0xff]
  %v4917 = vld [vmem:[%s650 + $0x211] sm:$0xff]
  %v4918 = vld [vmem:[%s650 + $0x219] sm:$0xff]
  %v4919 = vld [vmem:[%s650 + $0x229] sm:$0xff]
  %v4920 = vld [vmem:[%s650 + $0x231] sm:$0xff]
  %v4921 = vld [vmem:[%s650 + $0x241] sm:$0xff]
  %v4922 = vld [vmem:[%s650 + $0x249] sm:$0xff]
  %v4923 = vld [vmem:[%s650 + $0x259] sm:$0xff]
  %v4924 = vld [vmem:[%s650 + $0x261] sm:$0xff]
  %v4925 = vld [vmem:[%s650 + $0x271] sm:$0xff]
  %v4926 = vld [vmem:[%s650 + $0x279] sm:$0xff]
  %v4927 = vld [vmem:[%s650 + $0x289] sm:$0xff]
  %v4928 = vld [vmem:[%s650 + $0x291] sm:$0xff]
  %v4929 = vld [vmem:[%s650 + $0x2a1] sm:$0xff]
  %v4930 = vld [vmem:[%s650 + $0x2a9] sm:$0xff]
  %v4931 = vld [vmem:[%s650 + $0x2b9] sm:$0xff]
  %v4932 = vld [vmem:[%s650 + $0x2c1] sm:$0xff]
  %v4933 = vld [vmem:[%s650 + $0x2d1] sm:$0xff]
  %v4934 = vld [vmem:[%s650 + $0x2d9] sm:$0xff]
  %v4935 = vld [vmem:[%s650 + $0x2e9] sm:$0xff]
  %v4936 = vld [vmem:[%s650 + $0x2f1] sm:$0xff]
  %v4937 = vld [vmem:[%s650 + $0x301] sm:$0xff]
  %v4938 = vld [vmem:[%s650 + $0x309] sm:$0xff]
  %v4939 = vld [vmem:[%s650 + $0x319] sm:$0xff]
  %v4940 = vld [vmem:[%s650 + $0x321] sm:$0xff]
  %v4941 = vld [vmem:[%s650 + $0x2] sm:$0xff]
  %v4942 = vld [vmem:[%s650 + $0xa] sm:$0xff]
  %v4943 = vld [vmem:[%s650 + $0x1a] sm:$0xff]
  %v4944 = vld [vmem:[%s650 + $0x22] sm:$0xff]
  %v4945 = vld [vmem:[%s650 + $0x32] sm:$0xff]
  %v4946 = vld [vmem:[%s650 + $0x3a] sm:$0xff]
  %v4947 = vld [vmem:[%s650 + $0x4a] sm:$0xff]
  %v4948 = vld [vmem:[%s650 + $0x52] sm:$0xff]
  %v4949 = vld [vmem:[%s650 + $0x62] sm:$0xff]
  %v4950 = vld [vmem:[%s650 + $0x6a] sm:$0xff]
  %v4951 = vld [vmem:[%s650 + $0x7a] sm:$0xff]
  %v4952 = vld [vmem:[%s650 + $0x82] sm:$0xff]
  %v4953 = vld [vmem:[%s650 + $0x92] sm:$0xff]
  %v4954 = vld [vmem:[%s650 + $0x9a] sm:$0xff]
  %v4955 = vld [vmem:[%s650 + $0xaa] sm:$0xff]
  %v4956 = vld [vmem:[%s650 + $0xb2] sm:$0xff]
  %v4957 = vld [vmem:[%s650 + $0xc2] sm:$0xff]
  %v4958 = vld [vmem:[%s650 + $0xca] sm:$0xff]
  %v4959 = vld [vmem:[%s650 + $0xda] sm:$0xff]
  %v4960 = vld [vmem:[%s650 + $0xe2] sm:$0xff]
  %v4961 = vld [vmem:[%s650 + $0xf2] sm:$0xff]
  %v4962 = vld [vmem:[%s650 + $0xfa] sm:$0xff]
  %v4963 = vld [vmem:[%s650 + $0x10a] sm:$0xff]
  %v4964 = vld [vmem:[%s650 + $0x112] sm:$0xff]
  %v4965 = vld [vmem:[%s650 + $0x122] sm:$0xff]
  %v4966 = vld [vmem:[%s650 + $0x12a] sm:$0xff]
  %v4967 = vld [vmem:[%s650 + $0x13a] sm:$0xff]
  %v4968 = vld [vmem:[%s650 + $0x142] sm:$0xff]
  %v4969 = vld [vmem:[%s650 + $0x152] sm:$0xff]
  %v4970 = vld [vmem:[%s650 + $0x15a] sm:$0xff]
  %v4971 = vld [vmem:[%s650 + $0x16a] sm:$0xff]
  %v4972 = vld [vmem:[%s650 + $0x172] sm:$0xff]
  %v4973 = vld [vmem:[%s650 + $0x1b2] sm:$0xff]
  %v4974 = vld [vmem:[%s650 + $0x1ba] sm:$0xff]
  %v4975 = vld [vmem:[%s650 + $0x1ca] sm:$0xff]
  %v4976 = vld [vmem:[%s650 + $0x1d2] sm:$0xff]
  %v4977 = vld [vmem:[%s650 + $0x1e2] sm:$0xff]
  %v4978 = vld [vmem:[%s650 + $0x1ea] sm:$0xff]
  %v4979 = vld [vmem:[%s650 + $0x1fa] sm:$0xff]
  %v4980 = vld [vmem:[%s650 + $0x202] sm:$0xff]
  %v4981 = vld [vmem:[%s650 + $0x212] sm:$0xff]
  %v4982 = vld [vmem:[%s650 + $0x21a] sm:$0xff]
  %v4983 = vld [vmem:[%s650 + $0x22a] sm:$0xff]
  %v4984 = vld [vmem:[%s650 + $0x232] sm:$0xff]
  %v4985 = vld [vmem:[%s650 + $0x242] sm:$0xff]
  %v4986 = vld [vmem:[%s650 + $0x24a] sm:$0xff]
  %v4987 = vld [vmem:[%s650 + $0x25a] sm:$0xff]
  %v4988 = vld [vmem:[%s650 + $0x262] sm:$0xff]
  %v4989 = vld [vmem:[%s650 + $0x272] sm:$0xff]
  %v4990 = vld [vmem:[%s650 + $0x27a] sm:$0xff]
  %v4991 = vld [vmem:[%s650 + $0x28a] sm:$0xff]
  %v4992 = vld [vmem:[%s650 + $0x292] sm:$0xff]
  %v4993 = vld [vmem:[%s650 + $0x2a2] sm:$0xff]
  %v4994 = vld [vmem:[%s650 + $0x2aa] sm:$0xff]
  %v4995 = vld [vmem:[%s650 + $0x2ba] sm:$0xff]
  %v4996 = vld [vmem:[%s650 + $0x2c2] sm:$0xff]
  %v4997 = vld [vmem:[%s650 + $0x2d2] sm:$0xff]
  %v4998 = vld [vmem:[%s650 + $0x2da] sm:$0xff]
  %v4999 = vld [vmem:[%s650 + $0x2ea] sm:$0xff]
  %v5000 = vld [vmem:[%s650 + $0x2f2] sm:$0xff]
  %v5001 = vld [vmem:[%s650 + $0x302] sm:$0xff]
  %v5002 = vld [vmem:[%s650 + $0x30a] sm:$0xff]
  %v5003 = vld [vmem:[%s650 + $0x31a] sm:$0xff]
  %v5004 = vld [vmem:[%s650 + $0x322] sm:$0xff]
  %5069 = vrot.lane.b32.xlu0 %v4493, 8
  %v5070 = vpop.permute.xlu0 %5069
  %5071 = vrot.lane.b32.xlu0 %v4494, 8
  %v5072 = vpop.permute.xlu0 %5071
  %5073 = vrot.lane.b32.xlu0 %v4495, 8
  %v5074 = vpop.permute.xlu0 %5073
  %5075 = vrot.lane.b32.xlu0 %v4496, 8
  %v5076 = vpop.permute.xlu0 %5075
  %5077 = vrot.lane.b32.xlu0 %v4497, 8
  %v5078 = vpop.permute.xlu0 %5077
  %5079 = vrot.lane.b32.xlu0 %v4498, 8
  %v5080 = vpop.permute.xlu0 %5079
  %5081 = vrot.lane.b32.xlu0 %v4499, 8
  %v5082 = vpop.permute.xlu0 %5081
  %5083 = vrot.lane.b32.xlu0 %v4500, 8
  %v5084 = vpop.permute.xlu0 %5083
  %5085 = vrot.lane.b32.xlu0 %v4501, 8
  %v5086 = vpop.permute.xlu0 %5085
  %5087 = vrot.lane.b32.xlu0 %v4502, 8
  %v5088 = vpop.permute.xlu0 %5087
  %5089 = vrot.lane.b32.xlu0 %v4503, 8
  %v5090 = vpop.permute.xlu0 %5089
  %5091 = vrot.lane.b32.xlu0 %v4504, 8
  %v5092 = vpop.permute.xlu0 %5091
  %5093 = vrot.lane.b32.xlu0 %v4505, 8
  %v5094 = vpop.permute.xlu0 %5093
  %5095 = vrot.lane.b32.xlu0 %v4506, 8
  %v5096 = vpop.permute.xlu0 %5095
  %5097 = vrot.lane.b32.xlu0 %v4507, 8
  %v5098 = vpop.permute.xlu0 %5097
  %5099 = vrot.lane.b32.xlu0 %v4508, 8
  %v5100 = vpop.permute.xlu0 %5099
  %5101 = vrot.lane.b32.xlu0 %v4509, 8
  %v5102 = vpop.permute.xlu0 %5101
  %5103 = vrot.lane.b32.xlu0 %v4510, 8
  %v5104 = vpop.permute.xlu0 %5103
  %5105 = vrot.lane.b32.xlu0 %v4511, 8
  %v5106 = vpop.permute.xlu0 %5105
  %5107 = vrot.lane.b32.xlu0 %v4512, 8
  %v5108 = vpop.permute.xlu0 %5107
  %5109 = vrot.lane.b32.xlu0 %v4513, 8
  %v5110 = vpop.permute.xlu0 %5109
  %5111 = vrot.lane.b32.xlu0 %v4514, 8
  %v5112 = vpop.permute.xlu0 %5111
  %5113 = vrot.lane.b32.xlu0 %v4515, 8
  %v5114 = vpop.permute.xlu0 %5113
  %5115 = vrot.lane.b32.xlu0 %v4516, 8
  %v5116 = vpop.permute.xlu0 %5115
  %5117 = vrot.lane.b32.xlu0 %v4517, 8
  %v5118 = vpop.permute.xlu0 %5117
  %5119 = vrot.lane.b32.xlu0 %v4518, 8
  %v5120 = vpop.permute.xlu0 %5119
  %5121 = vrot.lane.b32.xlu0 %v4519, 8
  %v5122 = vpop.permute.xlu0 %5121
  %5123 = vrot.lane.b32.xlu0 %v4520, 8
  %v5124 = vpop.permute.xlu0 %5123
  %5125 = vrot.lane.b32.xlu0 %v4521, 8
  %v5126 = vpop.permute.xlu0 %5125
  %5127 = vrot.lane.b32.xlu0 %v4522, 8
  %v5128 = vpop.permute.xlu0 %5127
  %5129 = vrot.lane.b32.xlu0 %v4523, 8
  %v5130 = vpop.permute.xlu0 %5129
  %5131 = vrot.lane.b32.xlu0 %v4524, 8
  %v5132 = vpop.permute.xlu0 %5131
  %5133 = vrot.lane.b32.xlu0 %v4525, 8
  %v5134 = vpop.permute.xlu0 %5133
  %5135 = vrot.lane.b32.xlu0 %v4526, 8
  %v5136 = vpop.permute.xlu0 %5135
  %5137 = vrot.lane.b32.xlu0 %v4527, 8
  %v5138 = vpop.permute.xlu0 %5137
  %5139 = vrot.lane.b32.xlu0 %v4528, 8
  %v5140 = vpop.permute.xlu0 %5139
  %5141 = vrot.lane.b32.xlu0 %v4529, 8
  %v5142 = vpop.permute.xlu0 %5141
  %5143 = vrot.lane.b32.xlu0 %v4530, 8
  %v5144 = vpop.permute.xlu0 %5143
  %5145 = vrot.lane.b32.xlu0 %v4531, 8
  %v5146 = vpop.permute.xlu0 %5145
  %5147 = vrot.lane.b32.xlu0 %v4532, 8
  %v5148 = vpop.permute.xlu0 %5147
  %5149 = vrot.lane.b32.xlu0 %v4533, 8
  %v5150 = vpop.permute.xlu0 %5149
  %5151 = vrot.lane.b32.xlu0 %v4534, 8
  %v5152 = vpop.permute.xlu0 %5151
  %5153 = vrot.lane.b32.xlu0 %v4535, 8
  %v5154 = vpop.permute.xlu0 %5153
  %5155 = vrot.lane.b32.xlu0 %v4536, 8
  %v5156 = vpop.permute.xlu0 %5155
  %5157 = vrot.lane.b32.xlu0 %v4537, 8
  %v5158 = vpop.permute.xlu0 %5157
  %5159 = vrot.lane.b32.xlu0 %v4538, 8
  %v5160 = vpop.permute.xlu0 %5159
  %5161 = vrot.lane.b32.xlu0 %v4539, 8
  %v5162 = vpop.permute.xlu0 %5161
  %5163 = vrot.lane.b32.xlu0 %v4540, 8
  %v5164 = vpop.permute.xlu0 %5163
  %5165 = vrot.lane.b32.xlu0 %v4541, 8
  %v5166 = vpop.permute.xlu0 %5165
  %5167 = vrot.lane.b32.xlu0 %v4542, 8
  %v5168 = vpop.permute.xlu0 %5167
  %5169 = vrot.lane.b32.xlu0 %v4543, 8
  %v5170 = vpop.permute.xlu0 %5169
  %5171 = vrot.lane.b32.xlu0 %v4544, 8
  %v5172 = vpop.permute.xlu0 %5171
  %5173 = vrot.lane.b32.xlu0 %v4545, 8
  %v5174 = vpop.permute.xlu0 %5173
  %5175 = vrot.lane.b32.xlu0 %v4546, 8
  %v5176 = vpop.permute.xlu0 %5175
  %5177 = vrot.lane.b32.xlu0 %v4547, 8
  %v5178 = vpop.permute.xlu0 %5177
  %5179 = vrot.lane.b32.xlu0 %v4548, 8
  %v5180 = vpop.permute.xlu0 %5179
  %5181 = vrot.lane.b32.xlu0 %v4549, 8
  %v5182 = vpop.permute.xlu0 %5181
  %5183 = vrot.lane.b32.xlu0 %v4550, 8
  %v5184 = vpop.permute.xlu0 %5183
  %5185 = vrot.lane.b32.xlu0 %v4551, 8
  %v5186 = vpop.permute.xlu0 %5185
  %5187 = vrot.lane.b32.xlu0 %v4552, 8
  %v5188 = vpop.permute.xlu0 %5187
  %5189 = vrot.lane.b32.xlu0 %v4553, 8
  %v5190 = vpop.permute.xlu0 %5189
  %5191 = vrot.lane.b32.xlu0 %v4554, 8
  %v5192 = vpop.permute.xlu0 %5191
  %5193 = vrot.lane.b32.xlu0 %v4555, 8
  %v5194 = vpop.permute.xlu0 %5193
  %5195 = vrot.lane.b32.xlu0 %v4556, 8
  %v5196 = vpop.permute.xlu0 %5195
  %5325 = vrot.lane.b32.xlu0 %v4557, 16
  %v5326 = vpop.permute.xlu0 %5325
  %5327 = vrot.lane.b32.xlu0 %v4558, 16
  %v5328 = vpop.permute.xlu0 %5327
  %5329 = vrot.lane.b32.xlu0 %v4559, 16
  %v5330 = vpop.permute.xlu0 %5329
  %5331 = vrot.lane.b32.xlu0 %v4560, 16
  %v5332 = vpop.permute.xlu0 %5331
  %5333 = vrot.lane.b32.xlu0 %v4561, 16
  %v5334 = vpop.permute.xlu0 %5333
  %5335 = vrot.lane.b32.xlu0 %v4562, 16
  %v5336 = vpop.permute.xlu0 %5335
  %5337 = vrot.lane.b32.xlu0 %v4563, 16
  %v5338 = vpop.permute.xlu0 %5337
  %5339 = vrot.lane.b32.xlu0 %v4564, 16
  %v5340 = vpop.permute.xlu0 %5339
  %5341 = vrot.lane.b32.xlu0 %v4565, 16
  %v5342 = vpop.permute.xlu0 %5341
  %5343 = vrot.lane.b32.xlu0 %v4566, 16
  %v5344 = vpop.permute.xlu0 %5343
  %5345 = vrot.lane.b32.xlu0 %v4567, 16
  %v5346 = vpop.permute.xlu0 %5345
  %5347 = vrot.lane.b32.xlu0 %v4568, 16
  %v5348 = vpop.permute.xlu0 %5347
  %5349 = vrot.lane.b32.xlu0 %v4569, 16
  %v5350 = vpop.permute.xlu0 %5349
  %5351 = vrot.lane.b32.xlu0 %v4570, 16
  %v5352 = vpop.permute.xlu0 %5351
  %5353 = vrot.lane.b32.xlu0 %v4571, 16
  %v5354 = vpop.permute.xlu0 %5353
  %5355 = vrot.lane.b32.xlu0 %v4572, 16
  %v5356 = vpop.permute.xlu0 %5355
  %5357 = vrot.lane.b32.xlu0 %v4573, 16
  %v5358 = vpop.permute.xlu0 %5357
  %5359 = vrot.lane.b32.xlu0 %v4574, 16
  %v5360 = vpop.permute.xlu0 %5359
  %5361 = vrot.lane.b32.xlu0 %v4575, 16
  %v5362 = vpop.permute.xlu0 %5361
  %5363 = vrot.lane.b32.xlu0 %v4576, 16
  %v5364 = vpop.permute.xlu0 %5363
  %5365 = vrot.lane.b32.xlu0 %v4577, 16
  %v5366 = vpop.permute.xlu0 %5365
  %5367 = vrot.lane.b32.xlu0 %v4578, 16
  %v5368 = vpop.permute.xlu0 %5367
  %5369 = vrot.lane.b32.xlu0 %v4579, 16
  %v5370 = vpop.permute.xlu0 %5369
  %5371 = vrot.lane.b32.xlu0 %v4580, 16
  %v5372 = vpop.permute.xlu0 %5371
  %5373 = vrot.lane.b32.xlu0 %v4581, 16
  %v5374 = vpop.permute.xlu0 %5373
  %5375 = vrot.lane.b32.xlu0 %v4582, 16
  %v5376 = vpop.permute.xlu0 %5375
  %5377 = vrot.lane.b32.xlu0 %v4583, 16
  %v5378 = vpop.permute.xlu0 %5377
  %5379 = vrot.lane.b32.xlu0 %v4584, 16
  %v5380 = vpop.permute.xlu0 %5379
  %5381 = vrot.lane.b32.xlu0 %v4585, 16
  %v5382 = vpop.permute.xlu0 %5381
  %5383 = vrot.lane.b32.xlu0 %v4586, 16
  %v5384 = vpop.permute.xlu0 %5383
  %5385 = vrot.lane.b32.xlu0 %v4587, 16
  %v5386 = vpop.permute.xlu0 %5385
  %5387 = vrot.lane.b32.xlu0 %v4588, 16
  %v5388 = vpop.permute.xlu0 %5387
  %5389 = vrot.lane.b32.xlu0 %v4589, 16
  %v5390 = vpop.permute.xlu0 %5389
  %5391 = vrot.lane.b32.xlu0 %v4590, 16
  %v5392 = vpop.permute.xlu0 %5391
  %5393 = vrot.lane.b32.xlu0 %v4591, 16
  %v5394 = vpop.permute.xlu0 %5393
  %5395 = vrot.lane.b32.xlu0 %v4592, 16
  %v5396 = vpop.permute.xlu0 %5395
  %5397 = vrot.lane.b32.xlu0 %v4593, 16
  %v5398 = vpop.permute.xlu0 %5397
  %5399 = vrot.lane.b32.xlu0 %v4594, 16
  %v5400 = vpop.permute.xlu0 %5399
  %5401 = vrot.lane.b32.xlu0 %v4595, 16
  %v5402 = vpop.permute.xlu0 %5401
  %5403 = vrot.lane.b32.xlu0 %v4596, 16
  %v5404 = vpop.permute.xlu0 %5403
  %5405 = vrot.lane.b32.xlu0 %v4597, 16
  %v5406 = vpop.permute.xlu0 %5405
  %5407 = vrot.lane.b32.xlu0 %v4598, 16
  %v5408 = vpop.permute.xlu0 %5407
  %5409 = vrot.lane.b32.xlu0 %v4599, 16
  %v5410 = vpop.permute.xlu0 %5409
  %5411 = vrot.lane.b32.xlu0 %v4600, 16
  %v5412 = vpop.permute.xlu0 %5411
  %5413 = vrot.lane.b32.xlu0 %v4601, 16
  %v5414 = vpop.permute.xlu0 %5413
  %5415 = vrot.lane.b32.xlu0 %v4602, 16
  %v5416 = vpop.permute.xlu0 %5415
  %5417 = vrot.lane.b32.xlu0 %v4603, 16
  %v5418 = vpop.permute.xlu0 %5417
  %5419 = vrot.lane.b32.xlu0 %v4604, 16
  %v5420 = vpop.permute.xlu0 %5419
  %5421 = vrot.lane.b32.xlu0 %v4605, 16
  %v5422 = vpop.permute.xlu0 %5421
  %5423 = vrot.lane.b32.xlu0 %v4606, 16
  %v5424 = vpop.permute.xlu0 %5423
  %5425 = vrot.lane.b32.xlu0 %v4607, 16
  %v5426 = vpop.permute.xlu0 %5425
  %5427 = vrot.lane.b32.xlu0 %v4608, 16
  %v5428 = vpop.permute.xlu0 %5427
  %5429 = vrot.lane.b32.xlu0 %v4609, 16
  %v5430 = vpop.permute.xlu0 %5429
  %5431 = vrot.lane.b32.xlu0 %v4610, 16
  %v5432 = vpop.permute.xlu0 %5431
  %5433 = vrot.lane.b32.xlu0 %v4611, 16
  %v5434 = vpop.permute.xlu0 %5433
  %5435 = vrot.lane.b32.xlu0 %v4612, 16
  %v5436 = vpop.permute.xlu0 %5435
  %5437 = vrot.lane.b32.xlu0 %v4613, 16
  %v5438 = vpop.permute.xlu0 %5437
  %5439 = vrot.lane.b32.xlu0 %v4614, 16
  %v5440 = vpop.permute.xlu0 %5439
  %5441 = vrot.lane.b32.xlu0 %v4615, 16
  %v5442 = vpop.permute.xlu0 %5441
  %5443 = vrot.lane.b32.xlu0 %v4616, 16
  %v5444 = vpop.permute.xlu0 %5443
  %5445 = vrot.lane.b32.xlu0 %v4617, 16
  %v5446 = vpop.permute.xlu0 %5445
  %5447 = vrot.lane.b32.xlu0 %v4618, 16
  %v5448 = vpop.permute.xlu0 %5447
  %5449 = vrot.lane.b32.xlu0 %v4619, 16
  %v5450 = vpop.permute.xlu0 %5449
  %5451 = vrot.lane.b32.xlu0 %v4620, 16
  %v5452 = vpop.permute.xlu0 %5451
  %5581 = vrot.lane.b32.xlu0 %v4621, 24
  %v5582 = vpop.permute.xlu0 %5581
  %5583 = vrot.lane.b32.xlu0 %v4622, 24
  %v5584 = vpop.permute.xlu0 %5583
  %5585 = vrot.lane.b32.xlu0 %v4623, 24
  %v5586 = vpop.permute.xlu0 %5585
  %5587 = vrot.lane.b32.xlu0 %v4624, 24
  %v5588 = vpop.permute.xlu0 %5587
  %5589 = vrot.lane.b32.xlu0 %v4625, 24
  %v5590 = vpop.permute.xlu0 %5589
  %5591 = vrot.lane.b32.xlu0 %v4626, 24
  %v5592 = vpop.permute.xlu0 %5591
  %5593 = vrot.lane.b32.xlu0 %v4627, 24
  %v5594 = vpop.permute.xlu0 %5593
  %5595 = vrot.lane.b32.xlu0 %v4628, 24
  %v5596 = vpop.permute.xlu0 %5595
  %5597 = vrot.lane.b32.xlu0 %v4629, 24
  %v5598 = vpop.permute.xlu0 %5597
  %5599 = vrot.lane.b32.xlu0 %v4630, 24
  %v5600 = vpop.permute.xlu0 %5599
  %5601 = vrot.lane.b32.xlu0 %v4631, 24
  %v5602 = vpop.permute.xlu0 %5601
  %5603 = vrot.lane.b32.xlu0 %v4632, 24
  %v5604 = vpop.permute.xlu0 %5603
  %5605 = vrot.lane.b32.xlu0 %v4633, 24
  %v5606 = vpop.permute.xlu0 %5605
  %5607 = vrot.lane.b32.xlu0 %v4634, 24
  %v5608 = vpop.permute.xlu0 %5607
  %5609 = vrot.lane.b32.xlu0 %v4635, 24
  %v5610 = vpop.permute.xlu0 %5609
  %5611 = vrot.lane.b32.xlu0 %v4636, 24
  %v5612 = vpop.permute.xlu0 %5611
  %5613 = vrot.lane.b32.xlu0 %v4637, 24
  %v5614 = vpop.permute.xlu0 %5613
  %5615 = vrot.lane.b32.xlu0 %v4638, 24
  %v5616 = vpop.permute.xlu0 %5615
  %5617 = vrot.lane.b32.xlu0 %v4639, 24
  %v5618 = vpop.permute.xlu0 %5617
  %5619 = vrot.lane.b32.xlu0 %v4640, 24
  %v5620 = vpop.permute.xlu0 %5619
  %5621 = vrot.lane.b32.xlu0 %v4641, 24
  %v5622 = vpop.permute.xlu0 %5621
  %5623 = vrot.lane.b32.xlu0 %v4642, 24
  %v5624 = vpop.permute.xlu0 %5623
  %5625 = vrot.lane.b32.xlu0 %v4643, 24
  %v5626 = vpop.permute.xlu0 %5625
  %5627 = vrot.lane.b32.xlu0 %v4644, 24
  %v5628 = vpop.permute.xlu0 %5627
  %5629 = vrot.lane.b32.xlu0 %v4645, 24
  %v5630 = vpop.permute.xlu0 %5629
  %5631 = vrot.lane.b32.xlu0 %v4646, 24
  %v5632 = vpop.permute.xlu0 %5631
  %5633 = vrot.lane.b32.xlu0 %v4647, 24
  %v5634 = vpop.permute.xlu0 %5633
  %5635 = vrot.lane.b32.xlu0 %v4648, 24
  %v5636 = vpop.permute.xlu0 %5635
  %5637 = vrot.lane.b32.xlu0 %v4649, 24
  %v5638 = vpop.permute.xlu0 %5637
  %5639 = vrot.lane.b32.xlu0 %v4650, 24
  %v5640 = vpop.permute.xlu0 %5639
  %5641 = vrot.lane.b32.xlu0 %v4651, 24
  %v5642 = vpop.permute.xlu0 %5641
  %5643 = vrot.lane.b32.xlu0 %v4652, 24
  %v5644 = vpop.permute.xlu0 %5643
  %5645 = vrot.lane.b32.xlu0 %v4653, 24
  %v5646 = vpop.permute.xlu0 %5645
  %5647 = vrot.lane.b32.xlu0 %v4654, 24
  %v5648 = vpop.permute.xlu0 %5647
  %5649 = vrot.lane.b32.xlu0 %v4655, 24
  %v5650 = vpop.permute.xlu0 %5649
  %5651 = vrot.lane.b32.xlu0 %v4656, 24
  %v5652 = vpop.permute.xlu0 %5651
  %5653 = vrot.lane.b32.xlu0 %v4657, 24
  %v5654 = vpop.permute.xlu0 %5653
  %5655 = vrot.lane.b32.xlu0 %v4658, 24
  %v5656 = vpop.permute.xlu0 %5655
  %5657 = vrot.lane.b32.xlu0 %v4659, 24
  %v5658 = vpop.permute.xlu0 %5657
  %5659 = vrot.lane.b32.xlu0 %v4660, 24
  %v5660 = vpop.permute.xlu0 %5659
  %5661 = vrot.lane.b32.xlu0 %v4661, 24
  %v5662 = vpop.permute.xlu0 %5661
  %5663 = vrot.lane.b32.xlu0 %v4662, 24
  %v5664 = vpop.permute.xlu0 %5663
  %5665 = vrot.lane.b32.xlu0 %v4663, 24
  %v5666 = vpop.permute.xlu0 %5665
  %5667 = vrot.lane.b32.xlu0 %v4664, 24
  %v5668 = vpop.permute.xlu0 %5667
  %5669 = vrot.lane.b32.xlu0 %v4665, 24
  %v5670 = vpop.permute.xlu0 %5669
  %5671 = vrot.lane.b32.xlu0 %v4666, 24
  %v5672 = vpop.permute.xlu0 %5671
  %5673 = vrot.lane.b32.xlu0 %v4667, 24
  %v5674 = vpop.permute.xlu0 %5673
  %5675 = vrot.lane.b32.xlu0 %v4668, 24
  %v5676 = vpop.permute.xlu0 %5675
  %5677 = vrot.lane.b32.xlu0 %v4669, 24
  %v5678 = vpop.permute.xlu0 %5677
  %5679 = vrot.lane.b32.xlu0 %v4670, 24
  %v5680 = vpop.permute.xlu0 %5679
  %5681 = vrot.lane.b32.xlu0 %v4671, 24
  %v5682 = vpop.permute.xlu0 %5681
  %5683 = vrot.lane.b32.xlu0 %v4672, 24
  %v5684 = vpop.permute.xlu0 %5683
  %5685 = vrot.lane.b32.xlu0 %v4673, 24
  %v5686 = vpop.permute.xlu0 %5685
  %5687 = vrot.lane.b32.xlu0 %v4674, 24
  %v5688 = vpop.permute.xlu0 %5687
  %5689 = vrot.lane.b32.xlu0 %v4675, 24
  %v5690 = vpop.permute.xlu0 %5689
  %5691 = vrot.lane.b32.xlu0 %v4676, 24
  %v5692 = vpop.permute.xlu0 %5691
  %5693 = vrot.lane.b32.xlu0 %v4677, 24
  %v5694 = vpop.permute.xlu0 %5693
  %5695 = vrot.lane.b32.xlu0 %v4678, 24
  %v5696 = vpop.permute.xlu0 %5695
  %5697 = vrot.lane.b32.xlu0 %v4679, 24
  %v5698 = vpop.permute.xlu0 %5697
  %5699 = vrot.lane.b32.xlu0 %v4680, 24
  %v5700 = vpop.permute.xlu0 %5699
  %5701 = vrot.lane.b32.xlu0 %v4681, 24
  %v5702 = vpop.permute.xlu0 %5701
  %5703 = vrot.lane.b32.xlu0 %v4682, 24
  %v5704 = vpop.permute.xlu0 %5703
  %5705 = vrot.lane.b32.xlu0 %v4683, 24
  %v5706 = vpop.permute.xlu0 %5705
  %5707 = vrot.lane.b32.xlu0 %v4684, 24
  %v5708 = vpop.permute.xlu0 %5707
  %5837 = vrot.lane.b32.xlu0 %v4685, 32
  %v5838 = vpop.permute.xlu0 %5837
  %5839 = vrot.lane.b32.xlu0 %v4686, 32
  %v5840 = vpop.permute.xlu0 %5839
  %5841 = vrot.lane.b32.xlu0 %v4687, 32
  %v5842 = vpop.permute.xlu0 %5841
  %5843 = vrot.lane.b32.xlu0 %v4688, 32
  %v5844 = vpop.permute.xlu0 %5843
  %5845 = vrot.lane.b32.xlu0 %v4689, 32
  %v5846 = vpop.permute.xlu0 %5845
  %5847 = vrot.lane.b32.xlu0 %v4690, 32
  %v5848 = vpop.permute.xlu0 %5847
  %5849 = vrot.lane.b32.xlu0 %v4691, 32
  %v5850 = vpop.permute.xlu0 %5849
  %5851 = vrot.lane.b32.xlu0 %v4692, 32
  %v5852 = vpop.permute.xlu0 %5851
  %5853 = vrot.lane.b32.xlu0 %v4693, 32
  %v5854 = vpop.permute.xlu0 %5853
  %5855 = vrot.lane.b32.xlu0 %v4694, 32
  %v5856 = vpop.permute.xlu0 %5855
  %5857 = vrot.lane.b32.xlu0 %v4695, 32
  %v5858 = vpop.permute.xlu0 %5857
  %5859 = vrot.lane.b32.xlu0 %v4696, 32
  %v5860 = vpop.permute.xlu0 %5859
  %5861 = vrot.lane.b32.xlu0 %v4697, 32
  %v5862 = vpop.permute.xlu0 %5861
  %5863 = vrot.lane.b32.xlu0 %v4698, 32
  %v5864 = vpop.permute.xlu0 %5863
  %5865 = vrot.lane.b32.xlu0 %v4699, 32
  %v5866 = vpop.permute.xlu0 %5865
  %5867 = vrot.lane.b32.xlu0 %v4700, 32
  %v5868 = vpop.permute.xlu0 %5867
  %5869 = vrot.lane.b32.xlu0 %v4701, 32
  %v5870 = vpop.permute.xlu0 %5869
  %5871 = vrot.lane.b32.xlu0 %v4702, 32
  %v5872 = vpop.permute.xlu0 %5871
  %5873 = vrot.lane.b32.xlu0 %v4703, 32
  %v5874 = vpop.permute.xlu0 %5873
  %5875 = vrot.lane.b32.xlu0 %v4704, 32
  %v5876 = vpop.permute.xlu0 %5875
  %5877 = vrot.lane.b32.xlu0 %v4705, 32
  %v5878 = vpop.permute.xlu0 %5877
  %5879 = vrot.lane.b32.xlu0 %v4706, 32
  %v5880 = vpop.permute.xlu0 %5879
  %5881 = vrot.lane.b32.xlu0 %v4707, 32
  %v5882 = vpop.permute.xlu0 %5881
  %5883 = vrot.lane.b32.xlu0 %v4708, 32
  %v5884 = vpop.permute.xlu0 %5883
  %5885 = vrot.lane.b32.xlu0 %v4709, 32
  %v5886 = vpop.permute.xlu0 %5885
  %5887 = vrot.lane.b32.xlu0 %v4710, 32
  %v5888 = vpop.permute.xlu0 %5887
  %5889 = vrot.lane.b32.xlu0 %v4711, 32
  %v5890 = vpop.permute.xlu0 %5889
  %5891 = vrot.lane.b32.xlu0 %v4712, 32
  %v5892 = vpop.permute.xlu0 %5891
  %5893 = vrot.lane.b32.xlu0 %v4713, 32
  %v5894 = vpop.permute.xlu0 %5893
  %5895 = vrot.lane.b32.xlu0 %v4714, 32
  %v5896 = vpop.permute.xlu0 %5895
  %5897 = vrot.lane.b32.xlu0 %v4715, 32
  %v5898 = vpop.permute.xlu0 %5897
  %5899 = vrot.lane.b32.xlu0 %v4716, 32
  %v5900 = vpop.permute.xlu0 %5899
  %5901 = vrot.lane.b32.xlu0 %v4717, 32
  %v5902 = vpop.permute.xlu0 %5901
  %5903 = vrot.lane.b32.xlu0 %v4718, 32
  %v5904 = vpop.permute.xlu0 %5903
  %5905 = vrot.lane.b32.xlu0 %v4719, 32
  %v5906 = vpop.permute.xlu0 %5905
  %5907 = vrot.lane.b32.xlu0 %v4720, 32
  %v5908 = vpop.permute.xlu0 %5907
  %5909 = vrot.lane.b32.xlu0 %v4721, 32
  %v5910 = vpop.permute.xlu0 %5909
  %5911 = vrot.lane.b32.xlu0 %v4722, 32
  %v5912 = vpop.permute.xlu0 %5911
  %5913 = vrot.lane.b32.xlu0 %v4723, 32
  %v5914 = vpop.permute.xlu0 %5913
  %5915 = vrot.lane.b32.xlu0 %v4724, 32
  %v5916 = vpop.permute.xlu0 %5915
  %5917 = vrot.lane.b32.xlu0 %v4725, 32
  %v5918 = vpop.permute.xlu0 %5917
  %5919 = vrot.lane.b32.xlu0 %v4726, 32
  %v5920 = vpop.permute.xlu0 %5919
  %5921 = vrot.lane.b32.xlu0 %v4727, 32
  %v5922 = vpop.permute.xlu0 %5921
  %5923 = vrot.lane.b32.xlu0 %v4728, 32
  %v5924 = vpop.permute.xlu0 %5923
  %5925 = vrot.lane.b32.xlu0 %v4729, 32
  %v5926 = vpop.permute.xlu0 %5925
  %5927 = vrot.lane.b32.xlu0 %v4730, 32
  %v5928 = vpop.permute.xlu0 %5927
  %5929 = vrot.lane.b32.xlu0 %v4731, 32
  %v5930 = vpop.permute.xlu0 %5929
  %5931 = vrot.lane.b32.xlu0 %v4732, 32
  %v5932 = vpop.permute.xlu0 %5931
  %5933 = vrot.lane.b32.xlu0 %v4733, 32
  %v5934 = vpop.permute.xlu0 %5933
  %5935 = vrot.lane.b32.xlu0 %v4734, 32
  %v5936 = vpop.permute.xlu0 %5935
  %5937 = vrot.lane.b32.xlu0 %v4735, 32
  %v5938 = vpop.permute.xlu0 %5937
  %5939 = vrot.lane.b32.xlu0 %v4736, 32
  %v5940 = vpop.permute.xlu0 %5939
  %5941 = vrot.lane.b32.xlu0 %v4737, 32
  %v5942 = vpop.permute.xlu0 %5941
  %5943 = vrot.lane.b32.xlu0 %v4738, 32
  %v5944 = vpop.permute.xlu0 %5943
  %5945 = vrot.lane.b32.xlu0 %v4739, 32
  %v5946 = vpop.permute.xlu0 %5945
  %5947 = vrot.lane.b32.xlu0 %v4740, 32
  %v5948 = vpop.permute.xlu0 %5947
  %5949 = vrot.lane.b32.xlu0 %v4741, 32
  %v5950 = vpop.permute.xlu0 %5949
  %5951 = vrot.lane.b32.xlu0 %v4742, 32
  %v5952 = vpop.permute.xlu0 %5951
  %5953 = vrot.lane.b32.xlu0 %v4743, 32
  %v5954 = vpop.permute.xlu0 %5953
  %5955 = vrot.lane.b32.xlu0 %v4744, 32
  %v5956 = vpop.permute.xlu0 %5955
  %5957 = vrot.lane.b32.xlu0 %v4745, 32
  %v5958 = vpop.permute.xlu0 %5957
  %5959 = vrot.lane.b32.xlu0 %v4746, 32
  %v5960 = vpop.permute.xlu0 %5959
  %5961 = vrot.lane.b32.xlu0 %v4747, 32
  %v5962 = vpop.permute.xlu0 %5961
  %5963 = vrot.lane.b32.xlu0 %v4748, 32
  %v5964 = vpop.permute.xlu0 %5963
  %6093 = vrot.lane.b32.xlu0 %v4749, 40
  %v6094 = vpop.permute.xlu0 %6093
  %6095 = vrot.lane.b32.xlu0 %v4750, 40
  %v6096 = vpop.permute.xlu0 %6095
  %6097 = vrot.lane.b32.xlu0 %v4751, 40
  %v6098 = vpop.permute.xlu0 %6097
  %6099 = vrot.lane.b32.xlu0 %v4752, 40
  %v6100 = vpop.permute.xlu0 %6099
  %6101 = vrot.lane.b32.xlu0 %v4753, 40
  %v6102 = vpop.permute.xlu0 %6101
  %6103 = vrot.lane.b32.xlu0 %v4754, 40
  %v6104 = vpop.permute.xlu0 %6103
  %6105 = vrot.lane.b32.xlu0 %v4755, 40
  %v6106 = vpop.permute.xlu0 %6105
  %6107 = vrot.lane.b32.xlu0 %v4756, 40
  %v6108 = vpop.permute.xlu0 %6107
  %6109 = vrot.lane.b32.xlu0 %v4757, 40
  %v6110 = vpop.permute.xlu0 %6109
  %6111 = vrot.lane.b32.xlu0 %v4758, 40
  %v6112 = vpop.permute.xlu0 %6111
  %6113 = vrot.lane.b32.xlu0 %v4759, 40
  %v6114 = vpop.permute.xlu0 %6113
  %6115 = vrot.lane.b32.xlu0 %v4760, 40
  %v6116 = vpop.permute.xlu0 %6115
  %6117 = vrot.lane.b32.xlu0 %v4761, 40
  %v6118 = vpop.permute.xlu0 %6117
  %6119 = vrot.lane.b32.xlu0 %v4762, 40
  %v6120 = vpop.permute.xlu0 %6119
  %6121 = vrot.lane.b32.xlu0 %v4763, 40
  %v6122 = vpop.permute.xlu0 %6121
  %6123 = vrot.lane.b32.xlu0 %v4764, 40
  %v6124 = vpop.permute.xlu0 %6123
  %6125 = vrot.lane.b32.xlu0 %v4765, 40
  %v6126 = vpop.permute.xlu0 %6125
  %6127 = vrot.lane.b32.xlu0 %v4766, 40
  %v6128 = vpop.permute.xlu0 %6127
  %6129 = vrot.lane.b32.xlu0 %v4767, 40
  %v6130 = vpop.permute.xlu0 %6129
  %6131 = vrot.lane.b32.xlu0 %v4768, 40
  %v6132 = vpop.permute.xlu0 %6131
  %6133 = vrot.lane.b32.xlu0 %v4769, 40
  %v6134 = vpop.permute.xlu0 %6133
  %6135 = vrot.lane.b32.xlu0 %v4770, 40
  %v6136 = vpop.permute.xlu0 %6135
  %6137 = vrot.lane.b32.xlu0 %v4771, 40
  %v6138 = vpop.permute.xlu0 %6137
  %6139 = vrot.lane.b32.xlu0 %v4772, 40
  %v6140 = vpop.permute.xlu0 %6139
  %6141 = vrot.lane.b32.xlu0 %v4773, 40
  %v6142 = vpop.permute.xlu0 %6141
  %6143 = vrot.lane.b32.xlu0 %v4774, 40
  %v6144 = vpop.permute.xlu0 %6143
  %6145 = vrot.lane.b32.xlu0 %v4775, 40
  %v6146 = vpop.permute.xlu0 %6145
  %6147 = vrot.lane.b32.xlu0 %v4776, 40
  %v6148 = vpop.permute.xlu0 %6147
  %6149 = vrot.lane.b32.xlu0 %v4777, 40
  %v6150 = vpop.permute.xlu0 %6149
  %6151 = vrot.lane.b32.xlu0 %v4778, 40
  %v6152 = vpop.permute.xlu0 %6151
  %6153 = vrot.lane.b32.xlu0 %v4779, 40
  %v6154 = vpop.permute.xlu0 %6153
  %6155 = vrot.lane.b32.xlu0 %v4780, 40
  %v6156 = vpop.permute.xlu0 %6155
  %6157 = vrot.lane.b32.xlu0 %v4781, 40
  %v6158 = vpop.permute.xlu0 %6157
  %6159 = vrot.lane.b32.xlu0 %v4782, 40
  %v6160 = vpop.permute.xlu0 %6159
  %6161 = vrot.lane.b32.xlu0 %v4783, 40
  %v6162 = vpop.permute.xlu0 %6161
  %6163 = vrot.lane.b32.xlu0 %v4784, 40
  %v6164 = vpop.permute.xlu0 %6163
  %6165 = vrot.lane.b32.xlu0 %v4785, 40
  %v6166 = vpop.permute.xlu0 %6165
  %6167 = vrot.lane.b32.xlu0 %v4786, 40
  %v6168 = vpop.permute.xlu0 %6167
  %6169 = vrot.lane.b32.xlu0 %v4787, 40
  %v6170 = vpop.permute.xlu0 %6169
  %6171 = vrot.lane.b32.xlu0 %v4788, 40
  %v6172 = vpop.permute.xlu0 %6171
  %6173 = vrot.lane.b32.xlu0 %v4789, 40
  %v6174 = vpop.permute.xlu0 %6173
  %6175 = vrot.lane.b32.xlu0 %v4790, 40
  %v6176 = vpop.permute.xlu0 %6175
  %6177 = vrot.lane.b32.xlu0 %v4791, 40
  %v6178 = vpop.permute.xlu0 %6177
  %6179 = vrot.lane.b32.xlu0 %v4792, 40
  %v6180 = vpop.permute.xlu0 %6179
  %6181 = vrot.lane.b32.xlu0 %v4793, 40
  %v6182 = vpop.permute.xlu0 %6181
  %6183 = vrot.lane.b32.xlu0 %v4794, 40
  %v6184 = vpop.permute.xlu0 %6183
  %6185 = vrot.lane.b32.xlu0 %v4795, 40
  %v6186 = vpop.permute.xlu0 %6185
  %6187 = vrot.lane.b32.xlu0 %v4796, 40
  %v6188 = vpop.permute.xlu0 %6187
  %6189 = vrot.lane.b32.xlu0 %v4797, 40
  %v6190 = vpop.permute.xlu0 %6189
  %6191 = vrot.lane.b32.xlu0 %v4798, 40
  %v6192 = vpop.permute.xlu0 %6191
  %6193 = vrot.lane.b32.xlu0 %v4799, 40
  %v6194 = vpop.permute.xlu0 %6193
  %6195 = vrot.lane.b32.xlu0 %v4800, 40
  %v6196 = vpop.permute.xlu0 %6195
  %6197 = vrot.lane.b32.xlu0 %v4801, 40
  %v6198 = vpop.permute.xlu0 %6197
  %6199 = vrot.lane.b32.xlu0 %v4802, 40
  %v6200 = vpop.permute.xlu0 %6199
  %6201 = vrot.lane.b32.xlu0 %v4803, 40
  %v6202 = vpop.permute.xlu0 %6201
  %6203 = vrot.lane.b32.xlu0 %v4804, 40
  %v6204 = vpop.permute.xlu0 %6203
  %6205 = vrot.lane.b32.xlu0 %v4805, 40
  %v6206 = vpop.permute.xlu0 %6205
  %6207 = vrot.lane.b32.xlu0 %v4806, 40
  %v6208 = vpop.permute.xlu0 %6207
  %6209 = vrot.lane.b32.xlu0 %v4807, 40
  %v6210 = vpop.permute.xlu0 %6209
  %6211 = vrot.lane.b32.xlu0 %v4808, 40
  %v6212 = vpop.permute.xlu0 %6211
  %6213 = vrot.lane.b32.xlu0 %v4809, 40
  %v6214 = vpop.permute.xlu0 %6213
  %6215 = vrot.lane.b32.xlu0 %v4810, 40
  %v6216 = vpop.permute.xlu0 %6215
  %6217 = vrot.lane.b32.xlu0 %v4811, 40
  %v6218 = vpop.permute.xlu0 %6217
  %6219 = vrot.lane.b32.xlu0 %v4812, 40
  %v6220 = vpop.permute.xlu0 %6219
  %6349 = vrot.lane.b32.xlu0 %v4813, 48
  %v6350 = vpop.permute.xlu0 %6349
  %6351 = vrot.lane.b32.xlu0 %v4814, 48
  %v6352 = vpop.permute.xlu0 %6351
  %6353 = vrot.lane.b32.xlu0 %v4815, 48
  %v6354 = vpop.permute.xlu0 %6353
  %6355 = vrot.lane.b32.xlu0 %v4816, 48
  %v6356 = vpop.permute.xlu0 %6355
  %6357 = vrot.lane.b32.xlu0 %v4817, 48
  %v6358 = vpop.permute.xlu0 %6357
  %6359 = vrot.lane.b32.xlu0 %v4818, 48
  %v6360 = vpop.permute.xlu0 %6359
  %6361 = vrot.lane.b32.xlu0 %v4819, 48
  %v6362 = vpop.permute.xlu0 %6361
  %6363 = vrot.lane.b32.xlu0 %v4820, 48
  %v6364 = vpop.permute.xlu0 %6363
  %6365 = vrot.lane.b32.xlu0 %v4821, 48
  %v6366 = vpop.permute.xlu0 %6365
  %6367 = vrot.lane.b32.xlu0 %v4822, 48
  %v6368 = vpop.permute.xlu0 %6367
  %6369 = vrot.lane.b32.xlu0 %v4823, 48
  %v6370 = vpop.permute.xlu0 %6369
  %6371 = vrot.lane.b32.xlu0 %v4824, 48
  %v6372 = vpop.permute.xlu0 %6371
  %6373 = vrot.lane.b32.xlu0 %v4825, 48
  %v6374 = vpop.permute.xlu0 %6373
  %6375 = vrot.lane.b32.xlu0 %v4826, 48
  %v6376 = vpop.permute.xlu0 %6375
  %6377 = vrot.lane.b32.xlu0 %v4827, 48
  %v6378 = vpop.permute.xlu0 %6377
  %6379 = vrot.lane.b32.xlu0 %v4828, 48
  %v6380 = vpop.permute.xlu0 %6379
  %6381 = vrot.lane.b32.xlu0 %v4829, 48
  %v6382 = vpop.permute.xlu0 %6381
  %6383 = vrot.lane.b32.xlu0 %v4830, 48
  %v6384 = vpop.permute.xlu0 %6383
  %6385 = vrot.lane.b32.xlu0 %v4831, 48
  %v6386 = vpop.permute.xlu0 %6385
  %6387 = vrot.lane.b32.xlu0 %v4832, 48
  %v6388 = vpop.permute.xlu0 %6387
  %6389 = vrot.lane.b32.xlu0 %v4833, 48
  %v6390 = vpop.permute.xlu0 %6389
  %6391 = vrot.lane.b32.xlu0 %v4834, 48
  %v6392 = vpop.permute.xlu0 %6391
  %6393 = vrot.lane.b32.xlu0 %v4835, 48
  %v6394 = vpop.permute.xlu0 %6393
  %6395 = vrot.lane.b32.xlu0 %v4836, 48
  %v6396 = vpop.permute.xlu0 %6395
  %6397 = vrot.lane.b32.xlu0 %v4837, 48
  %v6398 = vpop.permute.xlu0 %6397
  %6399 = vrot.lane.b32.xlu0 %v4838, 48
  %v6400 = vpop.permute.xlu0 %6399
  %6401 = vrot.lane.b32.xlu0 %v4839, 48
  %v6402 = vpop.permute.xlu0 %6401
  %6403 = vrot.lane.b32.xlu0 %v4840, 48
  %v6404 = vpop.permute.xlu0 %6403
  %6405 = vrot.lane.b32.xlu0 %v4841, 48
  %v6406 = vpop.permute.xlu0 %6405
  %6407 = vrot.lane.b32.xlu0 %v4842, 48
  %v6408 = vpop.permute.xlu0 %6407
  %6409 = vrot.lane.b32.xlu0 %v4843, 48
  %v6410 = vpop.permute.xlu0 %6409
  %6411 = vrot.lane.b32.xlu0 %v4844, 48
  %v6412 = vpop.permute.xlu0 %6411
  %6413 = vrot.lane.b32.xlu0 %v4845, 48
  %v6414 = vpop.permute.xlu0 %6413
  %6415 = vrot.lane.b32.xlu0 %v4846, 48
  %v6416 = vpop.permute.xlu0 %6415
  %6417 = vrot.lane.b32.xlu0 %v4847, 48
  %v6418 = vpop.permute.xlu0 %6417
  %6419 = vrot.lane.b32.xlu0 %v4848, 48
  %v6420 = vpop.permute.xlu0 %6419
  %6421 = vrot.lane.b32.xlu0 %v4849, 48
  %v6422 = vpop.permute.xlu0 %6421
  %6423 = vrot.lane.b32.xlu0 %v4850, 48
  %v6424 = vpop.permute.xlu0 %6423
  %6425 = vrot.lane.b32.xlu0 %v4851, 48
  %v6426 = vpop.permute.xlu0 %6425
  %6427 = vrot.lane.b32.xlu0 %v4852, 48
  %v6428 = vpop.permute.xlu0 %6427
  %6429 = vrot.lane.b32.xlu0 %v4853, 48
  %v6430 = vpop.permute.xlu0 %6429
  %6431 = vrot.lane.b32.xlu0 %v4854, 48
  %v6432 = vpop.permute.xlu0 %6431
  %6433 = vrot.lane.b32.xlu0 %v4855, 48
  %v6434 = vpop.permute.xlu0 %6433
  %6435 = vrot.lane.b32.xlu0 %v4856, 48
  %v6436 = vpop.permute.xlu0 %6435
  %6437 = vrot.lane.b32.xlu0 %v4857, 48
  %v6438 = vpop.permute.xlu0 %6437
  %6439 = vrot.lane.b32.xlu0 %v4858, 48
  %v6440 = vpop.permute.xlu0 %6439
  %6441 = vrot.lane.b32.xlu0 %v4859, 48
  %v6442 = vpop.permute.xlu0 %6441
  %6443 = vrot.lane.b32.xlu0 %v4860, 48
  %v6444 = vpop.permute.xlu0 %6443
  %6445 = vrot.lane.b32.xlu0 %v4861, 48
  %v6446 = vpop.permute.xlu0 %6445
  %6447 = vrot.lane.b32.xlu0 %v4862, 48
  %v6448 = vpop.permute.xlu0 %6447
  %6449 = vrot.lane.b32.xlu0 %v4863, 48
  %v6450 = vpop.permute.xlu0 %6449
  %6451 = vrot.lane.b32.xlu0 %v4864, 48
  %v6452 = vpop.permute.xlu0 %6451
  %6453 = vrot.lane.b32.xlu0 %v4865, 48
  %v6454 = vpop.permute.xlu0 %6453
  %6455 = vrot.lane.b32.xlu0 %v4866, 48
  %v6456 = vpop.permute.xlu0 %6455
  %6457 = vrot.lane.b32.xlu0 %v4867, 48
  %v6458 = vpop.permute.xlu0 %6457
  %6459 = vrot.lane.b32.xlu0 %v4868, 48
  %v6460 = vpop.permute.xlu0 %6459
  %6461 = vrot.lane.b32.xlu0 %v4869, 48
  %v6462 = vpop.permute.xlu0 %6461
  %6463 = vrot.lane.b32.xlu0 %v4870, 48
  %v6464 = vpop.permute.xlu0 %6463
  %6465 = vrot.lane.b32.xlu0 %v4871, 48
  %v6466 = vpop.permute.xlu0 %6465
  %6467 = vrot.lane.b32.xlu0 %v4872, 48
  %v6468 = vpop.permute.xlu0 %6467
  %6469 = vrot.lane.b32.xlu0 %v4873, 48
  %v6470 = vpop.permute.xlu0 %6469
  %6471 = vrot.lane.b32.xlu0 %v4874, 48
  %v6472 = vpop.permute.xlu0 %6471
  %6473 = vrot.lane.b32.xlu0 %v4875, 48
  %v6474 = vpop.permute.xlu0 %6473
  %6475 = vrot.lane.b32.xlu0 %v4876, 48
  %v6476 = vpop.permute.xlu0 %6475
  %6605 = vrot.lane.b32.xlu0 %v4877, 56
  %v6606 = vpop.permute.xlu0 %6605
  %6607 = vrot.lane.b32.xlu0 %v4878, 56
  %v6608 = vpop.permute.xlu0 %6607
  %6609 = vrot.lane.b32.xlu0 %v4879, 56
  %v6610 = vpop.permute.xlu0 %6609
  %6611 = vrot.lane.b32.xlu0 %v4880, 56
  %v6612 = vpop.permute.xlu0 %6611
  %6613 = vrot.lane.b32.xlu0 %v4881, 56
  %v6614 = vpop.permute.xlu0 %6613
  %6615 = vrot.lane.b32.xlu0 %v4882, 56
  %v6616 = vpop.permute.xlu0 %6615
  %6617 = vrot.lane.b32.xlu0 %v4883, 56
  %v6618 = vpop.permute.xlu0 %6617
  %6619 = vrot.lane.b32.xlu0 %v4884, 56
  %v6620 = vpop.permute.xlu0 %6619
  %6621 = vrot.lane.b32.xlu0 %v4885, 56
  %v6622 = vpop.permute.xlu0 %6621
  %6623 = vrot.lane.b32.xlu0 %v4886, 56
  %v6624 = vpop.permute.xlu0 %6623
  %6625 = vrot.lane.b32.xlu0 %v4887, 56
  %v6626 = vpop.permute.xlu0 %6625
  %6627 = vrot.lane.b32.xlu0 %v4888, 56
  %v6628 = vpop.permute.xlu0 %6627
  %6629 = vrot.lane.b32.xlu0 %v4889, 56
  %v6630 = vpop.permute.xlu0 %6629
  %6631 = vrot.lane.b32.xlu0 %v4890, 56
  %v6632 = vpop.permute.xlu0 %6631
  %6633 = vrot.lane.b32.xlu0 %v4891, 56
  %v6634 = vpop.permute.xlu0 %6633
  %6635 = vrot.lane.b32.xlu0 %v4892, 56
  %v6636 = vpop.permute.xlu0 %6635
  %6637 = vrot.lane.b32.xlu0 %v4893, 56
  %v6638 = vpop.permute.xlu0 %6637
  %6639 = vrot.lane.b32.xlu0 %v4894, 56
  %v6640 = vpop.permute.xlu0 %6639
  %6641 = vrot.lane.b32.xlu0 %v4895, 56
  %v6642 = vpop.permute.xlu0 %6641
  %6643 = vrot.lane.b32.xlu0 %v4896, 56
  %v6644 = vpop.permute.xlu0 %6643
  %6645 = vrot.lane.b32.xlu0 %v4897, 56
  %v6646 = vpop.permute.xlu0 %6645
  %6647 = vrot.lane.b32.xlu0 %v4898, 56
  %v6648 = vpop.permute.xlu0 %6647
  %6649 = vrot.lane.b32.xlu0 %v4899, 56
  %v6650 = vpop.permute.xlu0 %6649
  %6651 = vrot.lane.b32.xlu0 %v4900, 56
  %v6652 = vpop.permute.xlu0 %6651
  %6653 = vrot.lane.b32.xlu0 %v4901, 56
  %v6654 = vpop.permute.xlu0 %6653
  %6655 = vrot.lane.b32.xlu0 %v4902, 56
  %v6656 = vpop.permute.xlu0 %6655
  %6657 = vrot.lane.b32.xlu0 %v4903, 56
  %v6658 = vpop.permute.xlu0 %6657
  %6659 = vrot.lane.b32.xlu0 %v4904, 56
  %v6660 = vpop.permute.xlu0 %6659
  %6661 = vrot.lane.b32.xlu0 %v4905, 56
  %v6662 = vpop.permute.xlu0 %6661
  %6663 = vrot.lane.b32.xlu0 %v4906, 56
  %v6664 = vpop.permute.xlu0 %6663
  %6665 = vrot.lane.b32.xlu0 %v4907, 56
  %v6666 = vpop.permute.xlu0 %6665
  %6667 = vrot.lane.b32.xlu0 %v4908, 56
  %v6668 = vpop.permute.xlu0 %6667
  %6669 = vrot.lane.b32.xlu0 %v4909, 56
  %v6670 = vpop.permute.xlu0 %6669
  %6671 = vrot.lane.b32.xlu0 %v4910, 56
  %v6672 = vpop.permute.xlu0 %6671
  %6673 = vrot.lane.b32.xlu0 %v4911, 56
  %v6674 = vpop.permute.xlu0 %6673
  %6675 = vrot.lane.b32.xlu0 %v4912, 56
  %v6676 = vpop.permute.xlu0 %6675
  %6677 = vrot.lane.b32.xlu0 %v4913, 56
  %v6678 = vpop.permute.xlu0 %6677
  %6679 = vrot.lane.b32.xlu0 %v4914, 56
  %v6680 = vpop.permute.xlu0 %6679
  %6681 = vrot.lane.b32.xlu0 %v4915, 56
  %v6682 = vpop.permute.xlu0 %6681
  %6683 = vrot.lane.b32.xlu0 %v4916, 56
  %v6684 = vpop.permute.xlu0 %6683
  %6685 = vrot.lane.b32.xlu0 %v4917, 56
  %v6686 = vpop.permute.xlu0 %6685
  %6687 = vrot.lane.b32.xlu0 %v4918, 56
  %v6688 = vpop.permute.xlu0 %6687
  %6689 = vrot.lane.b32.xlu0 %v4919, 56
  %v6690 = vpop.permute.xlu0 %6689
  %6691 = vrot.lane.b32.xlu0 %v4920, 56
  %v6692 = vpop.permute.xlu0 %6691
  %6693 = vrot.lane.b32.xlu0 %v4921, 56
  %v6694 = vpop.permute.xlu0 %6693
  %6695 = vrot.lane.b32.xlu0 %v4922, 56
  %v6696 = vpop.permute.xlu0 %6695
  %6697 = vrot.lane.b32.xlu0 %v4923, 56
  %v6698 = vpop.permute.xlu0 %6697
  %6699 = vrot.lane.b32.xlu0 %v4924, 56
  %v6700 = vpop.permute.xlu0 %6699
  %6701 = vrot.lane.b32.xlu0 %v4925, 56
  %v6702 = vpop.permute.xlu0 %6701
  %6703 = vrot.lane.b32.xlu0 %v4926, 56
  %v6704 = vpop.permute.xlu0 %6703
  %6705 = vrot.lane.b32.xlu0 %v4927, 56
  %v6706 = vpop.permute.xlu0 %6705
  %6707 = vrot.lane.b32.xlu0 %v4928, 56
  %v6708 = vpop.permute.xlu0 %6707
  %6709 = vrot.lane.b32.xlu0 %v4929, 56
  %v6710 = vpop.permute.xlu0 %6709
  %6711 = vrot.lane.b32.xlu0 %v4930, 56
  %v6712 = vpop.permute.xlu0 %6711
  %6713 = vrot.lane.b32.xlu0 %v4931, 56
  %v6714 = vpop.permute.xlu0 %6713
  %6715 = vrot.lane.b32.xlu0 %v4932, 56
  %v6716 = vpop.permute.xlu0 %6715
  %6717 = vrot.lane.b32.xlu0 %v4933, 56
  %v6718 = vpop.permute.xlu0 %6717
  %6719 = vrot.lane.b32.xlu0 %v4934, 56
  %v6720 = vpop.permute.xlu0 %6719
  %6721 = vrot.lane.b32.xlu0 %v4935, 56
  %v6722 = vpop.permute.xlu0 %6721
  %6723 = vrot.lane.b32.xlu0 %v4936, 56
  %v6724 = vpop.permute.xlu0 %6723
  %6725 = vrot.lane.b32.xlu0 %v4937, 56
  %v6726 = vpop.permute.xlu0 %6725
  %6727 = vrot.lane.b32.xlu0 %v4938, 56
  %v6728 = vpop.permute.xlu0 %6727
  %6729 = vrot.lane.b32.xlu0 %v4939, 56
  %v6730 = vpop.permute.xlu0 %6729
  %6731 = vrot.lane.b32.xlu0 %v4940, 56
  %v6732 = vpop.permute.xlu0 %6731
  %6861 = vrot.lane.b32.xlu0 %v4941, 64
  %v6862 = vpop.permute.xlu0 %6861
  %6863 = vrot.lane.b32.xlu0 %v4942, 64
  %v6864 = vpop.permute.xlu0 %6863
  %6865 = vrot.lane.b32.xlu0 %v4943, 64
  %v6866 = vpop.permute.xlu0 %6865
  %6867 = vrot.lane.b32.xlu0 %v4944, 64
  %v6868 = vpop.permute.xlu0 %6867
  %6869 = vrot.lane.b32.xlu0 %v4945, 64
  %v6870 = vpop.permute.xlu0 %6869
  %6871 = vrot.lane.b32.xlu0 %v4946, 64
  %v6872 = vpop.permute.xlu0 %6871
  %6873 = vrot.lane.b32.xlu0 %v4947, 64
  %v6874 = vpop.permute.xlu0 %6873
  %6875 = vrot.lane.b32.xlu0 %v4948, 64
  %v6876 = vpop.permute.xlu0 %6875
  %6877 = vrot.lane.b32.xlu0 %v4949, 64
  %v6878 = vpop.permute.xlu0 %6877
  %6879 = vrot.lane.b32.xlu0 %v4950, 64
  %v6880 = vpop.permute.xlu0 %6879
  %6881 = vrot.lane.b32.xlu0 %v4951, 64
  %v6882 = vpop.permute.xlu0 %6881
  %6883 = vrot.lane.b32.xlu0 %v4952, 64
  %v6884 = vpop.permute.xlu0 %6883
  %6885 = vrot.lane.b32.xlu0 %v4953, 64
  %v6886 = vpop.permute.xlu0 %6885
  %6887 = vrot.lane.b32.xlu0 %v4954, 64
  %v6888 = vpop.permute.xlu0 %6887
  %6889 = vrot.lane.b32.xlu0 %v4955, 64
  %v6890 = vpop.permute.xlu0 %6889
  %6891 = vrot.lane.b32.xlu0 %v4956, 64
  %v6892 = vpop.permute.xlu0 %6891
  %6893 = vrot.lane.b32.xlu0 %v4957, 64
  %v6894 = vpop.permute.xlu0 %6893
  %6895 = vrot.lane.b32.xlu0 %v4958, 64
  %v6896 = vpop.permute.xlu0 %6895
  %6897 = vrot.lane.b32.xlu0 %v4959, 64
  %v6898 = vpop.permute.xlu0 %6897
  %6899 = vrot.lane.b32.xlu0 %v4960, 64
  %v6900 = vpop.permute.xlu0 %6899
  %6901 = vrot.lane.b32.xlu0 %v4961, 64
  %v6902 = vpop.permute.xlu0 %6901
  %6903 = vrot.lane.b32.xlu0 %v4962, 64
  %v6904 = vpop.permute.xlu0 %6903
  %6905 = vrot.lane.b32.xlu0 %v4963, 64
  %v6906 = vpop.permute.xlu0 %6905
  %6907 = vrot.lane.b32.xlu0 %v4964, 64
  %v6908 = vpop.permute.xlu0 %6907
  %6909 = vrot.lane.b32.xlu0 %v4965, 64
  %v6910 = vpop.permute.xlu0 %6909
  %6911 = vrot.lane.b32.xlu0 %v4966, 64
  %v6912 = vpop.permute.xlu0 %6911
  %6913 = vrot.lane.b32.xlu0 %v4967, 64
  %v6914 = vpop.permute.xlu0 %6913
  %6915 = vrot.lane.b32.xlu0 %v4968, 64
  %v6916 = vpop.permute.xlu0 %6915
  %6917 = vrot.lane.b32.xlu0 %v4969, 64
  %v6918 = vpop.permute.xlu0 %6917
  %6919 = vrot.lane.b32.xlu0 %v4970, 64
  %v6920 = vpop.permute.xlu0 %6919
  %6921 = vrot.lane.b32.xlu0 %v4971, 64
  %v6922 = vpop.permute.xlu0 %6921
  %6923 = vrot.lane.b32.xlu0 %v4972, 64
  %v6924 = vpop.permute.xlu0 %6923
  %6925 = vrot.lane.b32.xlu0 %v4973, 64
  %v6926 = vpop.permute.xlu0 %6925
  %6927 = vrot.lane.b32.xlu0 %v4974, 64
  %v6928 = vpop.permute.xlu0 %6927
  %6929 = vrot.lane.b32.xlu0 %v4975, 64
  %v6930 = vpop.permute.xlu0 %6929
  %6931 = vrot.lane.b32.xlu0 %v4976, 64
  %v6932 = vpop.permute.xlu0 %6931
  %6933 = vrot.lane.b32.xlu0 %v4977, 64
  %v6934 = vpop.permute.xlu0 %6933
  %6935 = vrot.lane.b32.xlu0 %v4978, 64
  %v6936 = vpop.permute.xlu0 %6935
  %6937 = vrot.lane.b32.xlu0 %v4979, 64
  %v6938 = vpop.permute.xlu0 %6937
  %6939 = vrot.lane.b32.xlu0 %v4980, 64
  %v6940 = vpop.permute.xlu0 %6939
  %6941 = vrot.lane.b32.xlu0 %v4981, 64
  %v6942 = vpop.permute.xlu0 %6941
  %6943 = vrot.lane.b32.xlu0 %v4982, 64
  %v6944 = vpop.permute.xlu0 %6943
  %6945 = vrot.lane.b32.xlu0 %v4983, 64
  %v6946 = vpop.permute.xlu0 %6945
  %6947 = vrot.lane.b32.xlu0 %v4984, 64
  %v6948 = vpop.permute.xlu0 %6947
  %6949 = vrot.lane.b32.xlu0 %v4985, 64
  %v6950 = vpop.permute.xlu0 %6949
  %6951 = vrot.lane.b32.xlu0 %v4986, 64
  %v6952 = vpop.permute.xlu0 %6951
  %6953 = vrot.lane.b32.xlu0 %v4987, 64
  %v6954 = vpop.permute.xlu0 %6953
  %6955 = vrot.lane.b32.xlu0 %v4988, 64
  %v6956 = vpop.permute.xlu0 %6955
  %6957 = vrot.lane.b32.xlu0 %v4989, 64
  %v6958 = vpop.permute.xlu0 %6957
  %6959 = vrot.lane.b32.xlu0 %v4990, 64
  %v6960 = vpop.permute.xlu0 %6959
  %6961 = vrot.lane.b32.xlu0 %v4991, 64
  %v6962 = vpop.permute.xlu0 %6961
  %6963 = vrot.lane.b32.xlu0 %v4992, 64
  %v6964 = vpop.permute.xlu0 %6963
  %6965 = vrot.lane.b32.xlu0 %v4993, 64
  %v6966 = vpop.permute.xlu0 %6965
  %6967 = vrot.lane.b32.xlu0 %v4994, 64
  %v6968 = vpop.permute.xlu0 %6967
  %6969 = vrot.lane.b32.xlu0 %v4995, 64
  %v6970 = vpop.permute.xlu0 %6969
  %6971 = vrot.lane.b32.xlu0 %v4996, 64
  %v6972 = vpop.permute.xlu0 %6971
  %6973 = vrot.lane.b32.xlu0 %v4997, 64
  %v6974 = vpop.permute.xlu0 %6973
  %6975 = vrot.lane.b32.xlu0 %v4998, 64
  %v6976 = vpop.permute.xlu0 %6975
  %6977 = vrot.lane.b32.xlu0 %v4999, 64
  %v6978 = vpop.permute.xlu0 %6977
  %6979 = vrot.lane.b32.xlu0 %v5000, 64
  %v6980 = vpop.permute.xlu0 %6979
  %6981 = vrot.lane.b32.xlu0 %v5001, 64
  %v6982 = vpop.permute.xlu0 %6981
  %6983 = vrot.lane.b32.xlu0 %v5002, 64
  %v6984 = vpop.permute.xlu0 %6983
  %6985 = vrot.lane.b32.xlu0 %v5003, 64
  %v6986 = vpop.permute.xlu0 %6985
  %6987 = vrot.lane.b32.xlu0 %v5004, 64
  %v6988 = vpop.permute.xlu0 %6987
  %v7053 = vsel %vm27, %v4429, %v5070
  %v7054 = vsel %vm27, %v4430, %v5072
  %v7055 = vsel %vm27, %v4431, %v5074
  %v7056 = vsel %vm27, %v4432, %v5076
  %v7057 = vsel %vm27, %v4433, %v5078
  %v7058 = vsel %vm27, %v4434, %v5080
  %v7059 = vsel %vm27, %v4435, %v5082
  %v7060 = vsel %vm27, %v4436, %v5084
  %v7061 = vsel %vm27, %v4437, %v5086
  %v7062 = vsel %vm27, %v4438, %v5088
  %v7063 = vsel %vm27, %v4439, %v5090
  %v7064 = vsel %vm27, %v4440, %v5092
  %v7065 = vsel %vm27, %v4441, %v5094
  %v7066 = vsel %vm27, %v4442, %v5096
  %v7067 = vsel %vm27, %v4443, %v5098
  %v7068 = vsel %vm27, %v4444, %v5100
  %v7069 = vsel %vm27, %v4445, %v5102
  %v7070 = vsel %vm27, %v4446, %v5104
  %v7071 = vsel %vm27, %v4447, %v5106
  %v7072 = vsel %vm27, %v4448, %v5108
  %v7073 = vsel %vm27, %v4449, %v5110
  %v7074 = vsel %vm27, %v4450, %v5112
  %v7075 = vsel %vm27, %v4451, %v5114
  %v7076 = vsel %vm27, %v4452, %v5116
  %v7077 = vsel %vm27, %v4453, %v5118
  %v7078 = vsel %vm27, %v4454, %v5120
  %v7079 = vsel %vm27, %v4455, %v5122
  %v7080 = vsel %vm27, %v4456, %v5124
  %v7081 = vsel %vm27, %v4457, %v5126
  %v7082 = vsel %vm27, %v4458, %v5128
  %v7083 = vsel %vm27, %v4459, %v5130
  %v7084 = vsel %vm27, %v4460, %v5132
  %v7085 = vsel %vm27, %v4461, %v5134
  %v7086 = vsel %vm27, %v4462, %v5136
  %v7087 = vsel %vm27, %v4463, %v5138
  %v7088 = vsel %vm27, %v4464, %v5140
  %v7089 = vsel %vm27, %v4465, %v5142
  %v7090 = vsel %vm27, %v4466, %v5144
  %v7091 = vsel %vm27, %v4467, %v5146
  %v7092 = vsel %vm27, %v4468, %v5148
  %v7093 = vsel %vm27, %v4469, %v5150
  %v7094 = vsel %vm27, %v4470, %v5152
  %v7095 = vsel %vm27, %v4471, %v5154
  %v7096 = vsel %vm27, %v4472, %v5156
  %v7097 = vsel %vm27, %v4473, %v5158
  %v7098 = vsel %vm27, %v4474, %v5160
  %v7099 = vsel %vm27, %v4475, %v5162
  %v7100 = vsel %vm27, %v4476, %v5164
  %v7101 = vsel %vm27, %v4477, %v5166
  %v7102 = vsel %vm27, %v4478, %v5168
  %v7103 = vsel %vm27, %v4479, %v5170
  %v7104 = vsel %vm27, %v4480, %v5172
  %v7105 = vsel %vm27, %v4481, %v5174
  %v7106 = vsel %vm27, %v4482, %v5176
  %v7107 = vsel %vm27, %v4483, %v5178
  %v7108 = vsel %vm27, %v4484, %v5180
  %v7109 = vsel %vm27, %v4485, %v5182
  %v7110 = vsel %vm27, %v4486, %v5184
  %v7111 = vsel %vm27, %v4487, %v5186
  %v7112 = vsel %vm27, %v4488, %v5188
  %v7113 = vsel %vm27, %v4489, %v5190
  %v7114 = vsel %vm27, %v4490, %v5192
  %v7115 = vsel %vm27, %v4491, %v5194
  %v7116 = vsel %vm27, %v4492, %v5196
  %v7117 = vsel %vm2955, %v7053, %v5326
  %v7118 = vsel %vm2955, %v7054, %v5328
  %v7119 = vsel %vm2955, %v7055, %v5330
  %v7120 = vsel %vm2955, %v7056, %v5332
  %v7121 = vsel %vm2955, %v7057, %v5334
  %v7122 = vsel %vm2955, %v7058, %v5336
  %v7123 = vsel %vm2955, %v7059, %v5338
  %v7124 = vsel %vm2955, %v7060, %v5340
  %v7125 = vsel %vm2955, %v7061, %v5342
  %v7126 = vsel %vm2955, %v7062, %v5344
  %v7127 = vsel %vm2955, %v7063, %v5346
  %v7128 = vsel %vm2955, %v7064, %v5348
  %v7129 = vsel %vm2955, %v7065, %v5350
  %v7130 = vsel %vm2955, %v7066, %v5352
  %v7131 = vsel %vm2955, %v7067, %v5354
  %v7132 = vsel %vm2955, %v7068, %v5356
  %v7133 = vsel %vm2955, %v7069, %v5358
  %v7134 = vsel %vm2955, %v7070, %v5360
  %v7135 = vsel %vm2955, %v7071, %v5362
  %v7136 = vsel %vm2955, %v7072, %v5364
  %v7137 = vsel %vm2955, %v7073, %v5366
  %v7138 = vsel %vm2955, %v7074, %v5368
  %v7139 = vsel %vm2955, %v7075, %v5370
  %v7140 = vsel %vm2955, %v7076, %v5372
  %v7141 = vsel %vm2955, %v7077, %v5374
  %v7142 = vsel %vm2955, %v7078, %v5376
  %v7143 = vsel %vm2955, %v7079, %v5378
  %v7144 = vsel %vm2955, %v7080, %v5380
  %v7145 = vsel %vm2955, %v7081, %v5382
  %v7146 = vsel %vm2955, %v7082, %v5384
  %v7147 = vsel %vm2955, %v7083, %v5386
  %v7148 = vsel %vm2955, %v7084, %v5388
  %v7149 = vsel %vm2955, %v7085, %v5390
  %v7150 = vsel %vm2955, %v7086, %v5392
  %v7151 = vsel %vm2955, %v7087, %v5394
  %v7152 = vsel %vm2955, %v7088, %v5396
  %v7153 = vsel %vm2955, %v7089, %v5398
  %v7154 = vsel %vm2955, %v7090, %v5400
  %v7155 = vsel %vm2955, %v7091, %v5402
  %v7156 = vsel %vm2955, %v7092, %v5404
  %v7157 = vsel %vm2955, %v7093, %v5406
  %v7158 = vsel %vm2955, %v7094, %v5408
  %v7159 = vsel %vm2955, %v7095, %v5410
  %v7160 = vsel %vm2955, %v7096, %v5412
  %v7161 = vsel %vm2955, %v7097, %v5414
  %v7162 = vsel %vm2955, %v7098, %v5416
  %v7163 = vsel %vm2955, %v7099, %v5418
  %v7164 = vsel %vm2955, %v7100, %v5420
  %v7165 = vsel %vm2955, %v7101, %v5422
  %v7166 = vsel %vm2955, %v7102, %v5424
  %v7167 = vsel %vm2955, %v7103, %v5426
  %v7168 = vsel %vm2955, %v7104, %v5428
  %v7169 = vsel %vm2955, %v7105, %v5430
  %v7170 = vsel %vm2955, %v7106, %v5432
  %v7171 = vsel %vm2955, %v7107, %v5434
  %v7172 = vsel %vm2955, %v7108, %v5436
  %v7173 = vsel %vm2955, %v7109, %v5438
  %v7174 = vsel %vm2955, %v7110, %v5440
  %v7175 = vsel %vm2955, %v7111, %v5442
  %v7176 = vsel %vm2955, %v7112, %v5444
  %v7177 = vsel %vm2955, %v7113, %v5446
  %v7178 = vsel %vm2955, %v7114, %v5448
  %v7179 = vsel %vm2955, %v7115, %v5450
  %v7180 = vsel %vm2955, %v7116, %v5452
  %v7181 = vsel %vm3020, %v7117, %v5582
  %v7182 = vsel %vm3020, %v7118, %v5584
  %v7183 = vsel %vm3020, %v7119, %v5586
  %v7184 = vsel %vm3020, %v7120, %v5588
  %v7185 = vsel %vm3020, %v7121, %v5590
  %v7186 = vsel %vm3020, %v7122, %v5592
  %v7187 = vsel %vm3020, %v7123, %v5594
  %v7188 = vsel %vm3020, %v7124, %v5596
  %v7189 = vsel %vm3020, %v7125, %v5598
  %v7190 = vsel %vm3020, %v7126, %v5600
  %v7191 = vsel %vm3020, %v7127, %v5602
  %v7192 = vsel %vm3020, %v7128, %v5604
  %v7193 = vsel %vm3020, %v7129, %v5606
  %v7194 = vsel %vm3020, %v7130, %v5608
  %v7195 = vsel %vm3020, %v7131, %v5610
  %v7196 = vsel %vm3020, %v7132, %v5612
  %v7197 = vsel %vm3020, %v7133, %v5614
  %v7198 = vsel %vm3020, %v7134, %v5616
  %v7199 = vsel %vm3020, %v7135, %v5618
  %v7200 = vsel %vm3020, %v7136, %v5620
  %v7201 = vsel %vm3020, %v7137, %v5622
  %v7202 = vsel %vm3020, %v7138, %v5624
  %v7203 = vsel %vm3020, %v7139, %v5626
  %v7204 = vsel %vm3020, %v7140, %v5628
  %v7205 = vsel %vm3020, %v7141, %v5630
  %v7206 = vsel %vm3020, %v7142, %v5632
  %v7207 = vsel %vm3020, %v7143, %v5634
  %v7208 = vsel %vm3020, %v7144, %v5636
  %v7209 = vsel %vm3020, %v7145, %v5638
  %v7210 = vsel %vm3020, %v7146, %v5640
  %v7211 = vsel %vm3020, %v7147, %v5642
  %v7212 = vsel %vm3020, %v7148, %v5644
  %v7213 = vsel %vm3020, %v7149, %v5646
  %v7214 = vsel %vm3020, %v7150, %v5648
  %v7215 = vsel %vm3020, %v7151, %v5650
  %v7216 = vsel %vm3020, %v7152, %v5652
  %v7217 = vsel %vm3020, %v7153, %v5654
  %v7218 = vsel %vm3020, %v7154, %v5656
  %v7219 = vsel %vm3020, %v7155, %v5658
  %v7220 = vsel %vm3020, %v7156, %v5660
  %v7221 = vsel %vm3020, %v7157, %v5662
  %v7222 = vsel %vm3020, %v7158, %v5664
  %v7223 = vsel %vm3020, %v7159, %v5666
  %v7224 = vsel %vm3020, %v7160, %v5668
  %v7225 = vsel %vm3020, %v7161, %v5670
  %v7226 = vsel %vm3020, %v7162, %v5672
  %v7227 = vsel %vm3020, %v7163, %v5674
  %v7228 = vsel %vm3020, %v7164, %v5676
  %v7229 = vsel %vm3020, %v7165, %v5678
  %v7230 = vsel %vm3020, %v7166, %v5680
  %v7231 = vsel %vm3020, %v7167, %v5682
  %v7232 = vsel %vm3020, %v7168, %v5684
  %v7233 = vsel %vm3020, %v7169, %v5686
  %v7234 = vsel %vm3020, %v7170, %v5688
  %v7235 = vsel %vm3020, %v7171, %v5690
  %v7236 = vsel %vm3020, %v7172, %v5692
  %v7237 = vsel %vm3020, %v7173, %v5694
  %v7238 = vsel %vm3020, %v7174, %v5696
  %v7239 = vsel %vm3020, %v7175, %v5698
  %v7240 = vsel %vm3020, %v7176, %v5700
  %v7241 = vsel %vm3020, %v7177, %v5702
  %v7242 = vsel %vm3020, %v7178, %v5704
  %v7243 = vsel %vm3020, %v7179, %v5706
  %v7244 = vsel %vm3020, %v7180, %v5708
  %v7245 = vsel %vm3085, %v7181, %v5838
  %v7246 = vsel %vm3085, %v7182, %v5840
  %v7247 = vsel %vm3085, %v7183, %v5842
  %v7248 = vsel %vm3085, %v7184, %v5844
  %v7249 = vsel %vm3085, %v7185, %v5846
  %v7250 = vsel %vm3085, %v7186, %v5848
  %v7251 = vsel %vm3085, %v7187, %v5850
  %v7252 = vsel %vm3085, %v7188, %v5852
  %v7253 = vsel %vm3085, %v7189, %v5854
  %v7254 = vsel %vm3085, %v7190, %v5856
  %v7255 = vsel %vm3085, %v7191, %v5858
  %v7256 = vsel %vm3085, %v7192, %v5860
  %v7257 = vsel %vm3085, %v7193, %v5862
  %v7258 = vsel %vm3085, %v7194, %v5864
  %v7259 = vsel %vm3085, %v7195, %v5866
  %v7260 = vsel %vm3085, %v7196, %v5868
  %v7261 = vsel %vm3085, %v7197, %v5870
  %v7262 = vsel %vm3085, %v7198, %v5872
  %v7263 = vsel %vm3085, %v7199, %v5874
  %v7264 = vsel %vm3085, %v7200, %v5876
  %v7265 = vsel %vm3085, %v7201, %v5878
  %v7266 = vsel %vm3085, %v7202, %v5880
  %v7267 = vsel %vm3085, %v7203, %v5882
  %v7268 = vsel %vm3085, %v7204, %v5884
  %v7269 = vsel %vm3085, %v7205, %v5886
  %v7270 = vsel %vm3085, %v7206, %v5888
  %v7271 = vsel %vm3085, %v7207, %v5890
  %v7272 = vsel %vm3085, %v7208, %v5892
  %v7273 = vsel %vm3085, %v7209, %v5894
  %v7274 = vsel %vm3085, %v7210, %v5896
  %v7275 = vsel %vm3085, %v7211, %v5898
  %v7276 = vsel %vm3085, %v7212, %v5900
  %v7277 = vsel %vm3085, %v7213, %v5902
  %v7278 = vsel %vm3085, %v7214, %v5904
  %v7279 = vsel %vm3085, %v7215, %v5906
  %v7280 = vsel %vm3085, %v7216, %v5908
  %v7281 = vsel %vm3085, %v7217, %v5910
  %v7282 = vsel %vm3085, %v7218, %v5912
  %v7283 = vsel %vm3085, %v7219, %v5914
  %v7284 = vsel %vm3085, %v7220, %v5916
  %v7285 = vsel %vm3085, %v7221, %v5918
  %v7286 = vsel %vm3085, %v7222, %v5920
  %v7287 = vsel %vm3085, %v7223, %v5922
  %v7288 = vsel %vm3085, %v7224, %v5924
  %v7289 = vsel %vm3085, %v7225, %v5926
  %v7290 = vsel %vm3085, %v7226, %v5928
  %v7291 = vsel %vm3085, %v7227, %v5930
  %v7292 = vsel %vm3085, %v7228, %v5932
  %v7293 = vsel %vm3085, %v7229, %v5934
  %v7294 = vsel %vm3085, %v7230, %v5936
  %v7295 = vsel %vm3085, %v7231, %v5938
  %v7296 = vsel %vm3085, %v7232, %v5940
  %v7297 = vsel %vm3085, %v7233, %v5942
  %v7298 = vsel %vm3085, %v7234, %v5944
  %v7299 = vsel %vm3085, %v7235, %v5946
  %v7300 = vsel %vm3085, %v7236, %v5948
  %v7301 = vsel %vm3085, %v7237, %v5950
  %v7302 = vsel %vm3085, %v7238, %v5952
  %v7303 = vsel %vm3085, %v7239, %v5954
  %v7304 = vsel %vm3085, %v7240, %v5956
  %v7305 = vsel %vm3085, %v7241, %v5958
  %v7306 = vsel %vm3085, %v7242, %v5960
  %v7307 = vsel %vm3085, %v7243, %v5962
  %v7308 = vsel %vm3085, %v7244, %v5964
  %v7309 = vsel %vm3150, %v7245, %v6094
  %v7310 = vsel %vm3150, %v7246, %v6096
  %v7311 = vsel %vm3150, %v7247, %v6098
  %v7312 = vsel %vm3150, %v7248, %v6100
  %v7313 = vsel %vm3150, %v7249, %v6102
  %v7314 = vsel %vm3150, %v7250, %v6104
  %v7315 = vsel %vm3150, %v7251, %v6106
  %v7316 = vsel %vm3150, %v7252, %v6108
  %v7317 = vsel %vm3150, %v7253, %v6110
  %v7318 = vsel %vm3150, %v7254, %v6112
  %v7319 = vsel %vm3150, %v7255, %v6114
  %v7320 = vsel %vm3150, %v7256, %v6116
  %v7321 = vsel %vm3150, %v7257, %v6118
  %v7322 = vsel %vm3150, %v7258, %v6120
  %v7323 = vsel %vm3150, %v7259, %v6122
  %v7324 = vsel %vm3150, %v7260, %v6124
  %v7325 = vsel %vm3150, %v7261, %v6126
  %v7326 = vsel %vm3150, %v7262, %v6128
  %v7327 = vsel %vm3150, %v7263, %v6130
  %v7328 = vsel %vm3150, %v7264, %v6132
  %v7329 = vsel %vm3150, %v7265, %v6134
  %v7330 = vsel %vm3150, %v7266, %v6136
  %v7331 = vsel %vm3150, %v7267, %v6138
  %v7332 = vsel %vm3150, %v7268, %v6140
  %v7333 = vsel %vm3150, %v7269, %v6142
  %v7334 = vsel %vm3150, %v7270, %v6144
  %v7335 = vsel %vm3150, %v7271, %v6146
  %v7336 = vsel %vm3150, %v7272, %v6148
  %v7337 = vsel %vm3150, %v7273, %v6150
  %v7338 = vsel %vm3150, %v7274, %v6152
  %v7339 = vsel %vm3150, %v7275, %v6154
  %v7340 = vsel %vm3150, %v7276, %v6156
  %v7341 = vsel %vm3150, %v7277, %v6158
  %v7342 = vsel %vm3150, %v7278, %v6160
  %v7343 = vsel %vm3150, %v7279, %v6162
  %v7344 = vsel %vm3150, %v7280, %v6164
  %v7345 = vsel %vm3150, %v7281, %v6166
  %v7346 = vsel %vm3150, %v7282, %v6168
  %v7347 = vsel %vm3150, %v7283, %v6170
  %v7348 = vsel %vm3150, %v7284, %v6172
  %v7349 = vsel %vm3150, %v7285, %v6174
  %v7350 = vsel %vm3150, %v7286, %v6176
  %v7351 = vsel %vm3150, %v7287, %v6178
  %v7352 = vsel %vm3150, %v7288, %v6180
  %v7353 = vsel %vm3150, %v7289, %v6182
  %v7354 = vsel %vm3150, %v7290, %v6184
  %v7355 = vsel %vm3150, %v7291, %v6186
  %v7356 = vsel %vm3150, %v7292, %v6188
  %v7357 = vsel %vm3150, %v7293, %v6190
  %v7358 = vsel %vm3150, %v7294, %v6192
  %v7359 = vsel %vm3150, %v7295, %v6194
  %v7360 = vsel %vm3150, %v7296, %v6196
  %v7361 = vsel %vm3150, %v7297, %v6198
  %v7362 = vsel %vm3150, %v7298, %v6200
  %v7363 = vsel %vm3150, %v7299, %v6202
  %v7364 = vsel %vm3150, %v7300, %v6204
  %v7365 = vsel %vm3150, %v7301, %v6206
  %v7366 = vsel %vm3150, %v7302, %v6208
  %v7367 = vsel %vm3150, %v7303, %v6210
  %v7368 = vsel %vm3150, %v7304, %v6212
  %v7369 = vsel %vm3150, %v7305, %v6214
  %v7370 = vsel %vm3150, %v7306, %v6216
  %v7371 = vsel %vm3150, %v7307, %v6218
  %v7372 = vsel %vm3150, %v7308, %v6220
  %v7373 = vsel %vm3215, %v7309, %v6350
  %v7374 = vsel %vm3215, %v7310, %v6352
  %v7375 = vsel %vm3215, %v7311, %v6354
  %v7376 = vsel %vm3215, %v7312, %v6356
  %v7377 = vsel %vm3215, %v7313, %v6358
  %v7378 = vsel %vm3215, %v7314, %v6360
  %v7379 = vsel %vm3215, %v7315, %v6362
  %v7380 = vsel %vm3215, %v7316, %v6364
  %v7381 = vsel %vm3215, %v7317, %v6366
  %v7382 = vsel %vm3215, %v7318, %v6368
  %v7383 = vsel %vm3215, %v7319, %v6370
  %v7384 = vsel %vm3215, %v7320, %v6372
  %v7385 = vsel %vm3215, %v7321, %v6374
  %v7386 = vsel %vm3215, %v7322, %v6376
  %v7387 = vsel %vm3215, %v7323, %v6378
  %v7388 = vsel %vm3215, %v7324, %v6380
  %v7389 = vsel %vm3215, %v7325, %v6382
  %v7390 = vsel %vm3215, %v7326, %v6384
  %v7391 = vsel %vm3215, %v7327, %v6386
  %v7392 = vsel %vm3215, %v7328, %v6388
  %v7393 = vsel %vm3215, %v7329, %v6390
  %v7394 = vsel %vm3215, %v7330, %v6392
  %v7395 = vsel %vm3215, %v7331, %v6394
  %v7396 = vsel %vm3215, %v7332, %v6396
  %v7397 = vsel %vm3215, %v7333, %v6398
  %v7398 = vsel %vm3215, %v7334, %v6400
  %v7399 = vsel %vm3215, %v7335, %v6402
  %v7400 = vsel %vm3215, %v7336, %v6404
  %v7401 = vsel %vm3215, %v7337, %v6406
  %v7402 = vsel %vm3215, %v7338, %v6408
  %v7403 = vsel %vm3215, %v7339, %v6410
  %v7404 = vsel %vm3215, %v7340, %v6412
  %v7405 = vsel %vm3215, %v7341, %v6414
  %v7406 = vsel %vm3215, %v7342, %v6416
  %v7407 = vsel %vm3215, %v7343, %v6418
  %v7408 = vsel %vm3215, %v7344, %v6420
  %v7409 = vsel %vm3215, %v7345, %v6422
  %v7410 = vsel %vm3215, %v7346, %v6424
  %v7411 = vsel %vm3215, %v7347, %v6426
  %v7412 = vsel %vm3215, %v7348, %v6428
  %v7413 = vsel %vm3215, %v7349, %v6430
  %v7414 = vsel %vm3215, %v7350, %v6432
  %v7415 = vsel %vm3215, %v7351, %v6434
  %v7416 = vsel %vm3215, %v7352, %v6436
  %v7417 = vsel %vm3215, %v7353, %v6438
  %v7418 = vsel %vm3215, %v7354, %v6440
  %v7419 = vsel %vm3215, %v7355, %v6442
  %v7420 = vsel %vm3215, %v7356, %v6444
  %v7421 = vsel %vm3215, %v7357, %v6446
  %v7422 = vsel %vm3215, %v7358, %v6448
  %v7423 = vsel %vm3215, %v7359, %v6450
  %v7424 = vsel %vm3215, %v7360, %v6452
  %v7425 = vsel %vm3215, %v7361, %v6454
  %v7426 = vsel %vm3215, %v7362, %v6456
  %v7427 = vsel %vm3215, %v7363, %v6458
  %v7428 = vsel %vm3215, %v7364, %v6460
  %v7429 = vsel %vm3215, %v7365, %v6462
  %v7430 = vsel %vm3215, %v7366, %v6464
  %v7431 = vsel %vm3215, %v7367, %v6466
  %v7432 = vsel %vm3215, %v7368, %v6468
  %v7433 = vsel %vm3215, %v7369, %v6470
  %v7434 = vsel %vm3215, %v7370, %v6472
  %v7435 = vsel %vm3215, %v7371, %v6474
  %v7436 = vsel %vm3215, %v7372, %v6476
  %v7437 = vsel %vm3280, %v7373, %v6606
  %v7438 = vsel %vm3280, %v7374, %v6608
  %v7439 = vsel %vm3280, %v7375, %v6610
  %v7440 = vsel %vm3280, %v7376, %v6612
  %v7441 = vsel %vm3280, %v7377, %v6614
  %v7442 = vsel %vm3280, %v7378, %v6616
  %v7443 = vsel %vm3280, %v7379, %v6618
  %v7444 = vsel %vm3280, %v7380, %v6620
  %v7445 = vsel %vm3280, %v7381, %v6622
  %v7446 = vsel %vm3280, %v7382, %v6624
  %v7447 = vsel %vm3280, %v7383, %v6626
  %v7448 = vsel %vm3280, %v7384, %v6628
  %v7449 = vsel %vm3280, %v7385, %v6630
  %v7450 = vsel %vm3280, %v7386, %v6632
  %v7451 = vsel %vm3280, %v7387, %v6634
  %v7452 = vsel %vm3280, %v7388, %v6636
  %v7453 = vsel %vm3280, %v7389, %v6638
  %v7454 = vsel %vm3280, %v7390, %v6640
  %v7455 = vsel %vm3280, %v7391, %v6642
  %v7456 = vsel %vm3280, %v7392, %v6644
  %v7457 = vsel %vm3280, %v7393, %v6646
  %v7458 = vsel %vm3280, %v7394, %v6648
  %v7459 = vsel %vm3280, %v7395, %v6650
  %v7460 = vsel %vm3280, %v7396, %v6652
  %v7461 = vsel %vm3280, %v7397, %v6654
  %v7462 = vsel %vm3280, %v7398, %v6656
  %v7463 = vsel %vm3280, %v7399, %v6658
  %v7464 = vsel %vm3280, %v7400, %v6660
  %v7465 = vsel %vm3280, %v7401, %v6662
  %v7466 = vsel %vm3280, %v7402, %v6664
  %v7467 = vsel %vm3280, %v7403, %v6666
  %v7468 = vsel %vm3280, %v7404, %v6668
  %v7469 = vsel %vm3280, %v7405, %v6670
  %v7470 = vsel %vm3280, %v7406, %v6672
  %v7471 = vsel %vm3280, %v7407, %v6674
  %v7472 = vsel %vm3280, %v7408, %v6676
  %v7473 = vsel %vm3280, %v7409, %v6678
  %v7474 = vsel %vm3280, %v7410, %v6680
  %v7475 = vsel %vm3280, %v7411, %v6682
  %v7476 = vsel %vm3280, %v7412, %v6684
  %v7477 = vsel %vm3280, %v7413, %v6686
  %v7478 = vsel %vm3280, %v7414, %v6688
  %v7479 = vsel %vm3280, %v7415, %v6690
  %v7480 = vsel %vm3280, %v7416, %v6692
  %v7481 = vsel %vm3280, %v7417, %v6694
  %v7482 = vsel %vm3280, %v7418, %v6696
  %v7483 = vsel %vm3280, %v7419, %v6698
  %v7484 = vsel %vm3280, %v7420, %v6700
  %v7485 = vsel %vm3280, %v7421, %v6702
  %v7486 = vsel %vm3280, %v7422, %v6704
  %v7487 = vsel %vm3280, %v7423, %v6706
  %v7488 = vsel %vm3280, %v7424, %v6708
  %v7489 = vsel %vm3280, %v7425, %v6710
  %v7490 = vsel %vm3280, %v7426, %v6712
  %v7491 = vsel %vm3280, %v7427, %v6714
  %v7492 = vsel %vm3280, %v7428, %v6716
  %v7493 = vsel %vm3280, %v7429, %v6718
  %v7494 = vsel %vm3280, %v7430, %v6720
  %v7495 = vsel %vm3280, %v7431, %v6722
  %v7496 = vsel %vm3280, %v7432, %v6724
  %v7497 = vsel %vm3280, %v7433, %v6726
  %v7498 = vsel %vm3280, %v7434, %v6728
  %v7499 = vsel %vm3280, %v7435, %v6730
  %v7500 = vsel %vm3280, %v7436, %v6732
  %v7501 = vsel %vm3345, %v7437, %v6862
  %v7502 = vsel %vm3345, %v7438, %v6864
  %v7503 = vsel %vm3345, %v7439, %v6866
  %v7504 = vsel %vm3345, %v7440, %v6868
  %v7505 = vsel %vm3345, %v7441, %v6870
  %v7506 = vsel %vm3345, %v7442, %v6872
  %v7507 = vsel %vm3345, %v7443, %v6874
  %v7508 = vsel %vm3345, %v7444, %v6876
  %v7509 = vsel %vm3345, %v7445, %v6878
  %v7510 = vsel %vm3345, %v7446, %v6880
  %v7511 = vsel %vm3345, %v7447, %v6882
  %v7512 = vsel %vm3345, %v7448, %v6884
  %v7513 = vsel %vm3345, %v7449, %v6886
  %v7514 = vsel %vm3345, %v7450, %v6888
  %v7515 = vsel %vm3345, %v7451, %v6890
  %v7516 = vsel %vm3345, %v7452, %v6892
  %v7517 = vsel %vm3345, %v7453, %v6894
  %v7518 = vsel %vm3345, %v7454, %v6896
  %v7519 = vsel %vm3345, %v7455, %v6898
  %v7520 = vsel %vm3345, %v7456, %v6900
  %v7521 = vsel %vm3345, %v7457, %v6902
  %v7522 = vsel %vm3345, %v7458, %v6904
  %v7523 = vsel %vm3345, %v7459, %v6906
  %v7524 = vsel %vm3345, %v7460, %v6908
  %v7525 = vsel %vm3345, %v7461, %v6910
  %v7526 = vsel %vm3345, %v7462, %v6912
  %v7527 = vsel %vm3345, %v7463, %v6914
  %v7528 = vsel %vm3345, %v7464, %v6916
  %v7529 = vsel %vm3345, %v7465, %v6918
  %v7530 = vsel %vm3345, %v7466, %v6920
  %v7531 = vsel %vm3345, %v7467, %v6922
  %v7532 = vsel %vm3345, %v7468, %v6924
  %v7533 = vsel %vm3345, %v7469, %v6926
  %v7534 = vsel %vm3345, %v7470, %v6928
  %v7535 = vsel %vm3345, %v7471, %v6930
  %v7536 = vsel %vm3345, %v7472, %v6932
  %v7537 = vsel %vm3345, %v7473, %v6934
  %v7538 = vsel %vm3345, %v7474, %v6936
  %v7539 = vsel %vm3345, %v7475, %v6938
  %v7540 = vsel %vm3345, %v7476, %v6940
  %v7541 = vsel %vm3345, %v7477, %v6942
  %v7542 = vsel %vm3345, %v7478, %v6944
  %v7543 = vsel %vm3345, %v7479, %v6946
  %v7544 = vsel %vm3345, %v7480, %v6948
  %v7545 = vsel %vm3345, %v7481, %v6950
  %v7546 = vsel %vm3345, %v7482, %v6952
  %v7547 = vsel %vm3345, %v7483, %v6954
  %v7548 = vsel %vm3345, %v7484, %v6956
  %v7549 = vsel %vm3345, %v7485, %v6958
  %v7550 = vsel %vm3345, %v7486, %v6960
  %v7551 = vsel %vm3345, %v7487, %v6962
  %v7552 = vsel %vm3345, %v7488, %v6964
  %v7553 = vsel %vm3345, %v7489, %v6966
  %v7554 = vsel %vm3345, %v7490, %v6968
  %v7555 = vsel %vm3345, %v7491, %v6970
  %v7556 = vsel %vm3345, %v7492, %v6972
  %v7557 = vsel %vm3345, %v7493, %v6974
  %v7558 = vsel %vm3345, %v7494, %v6976
  %v7559 = vsel %vm3345, %v7495, %v6978
  %v7560 = vsel %vm3345, %v7496, %v6980
  %v7561 = vsel %vm3345, %v7497, %v6982
  %v7562 = vsel %vm3345, %v7498, %v6984
  %v7563 = vsel %vm3345, %v7499, %v6986
  %v7564 = vsel %vm3345, %v7500, %v6988
  %v7565 = vpack.c.bf16 %v7502, %v7501
  %v7566 = vpack.c.bf16 %v7504, %v7503
  %v7567 = vpack.c.bf16 %v7506, %v7505
  %v7568 = vpack.c.bf16 %v7508, %v7507
  %v7569 = vpack.c.bf16 %v7510, %v7509
  %v7570 = vpack.c.bf16 %v7512, %v7511
  %v7571 = vpack.c.bf16 %v7514, %v7513
  %v7572 = vpack.c.bf16 %v7516, %v7515
  %v7573 = vpack.c.bf16 %v7518, %v7517
  %v7574 = vpack.c.bf16 %v7520, %v7519
  %v7575 = vpack.c.bf16 %v7522, %v7521
  %v7576 = vpack.c.bf16 %v7524, %v7523
  %v7577 = vpack.c.bf16 %v7526, %v7525
  %v7578 = vpack.c.bf16 %v7528, %v7527
  %v7579 = vpack.c.bf16 %v7530, %v7529
  %v7580 = vpack.c.bf16 %v7532, %v7531
  %v7581 = vpack.c.bf16 %v7534, %v7533
  %v7582 = vpack.c.bf16 %v7536, %v7535
  %v7583 = vpack.c.bf16 %v7538, %v7537
  %v7584 = vpack.c.bf16 %v7540, %v7539
  %v7585 = vpack.c.bf16 %v7542, %v7541
  %v7586 = vpack.c.bf16 %v7544, %v7543
  %v7587 = vpack.c.bf16 %v7546, %v7545
  %v7588 = vpack.c.bf16 %v7548, %v7547
  %v7589 = vpack.c.bf16 %v7550, %v7549
  %v7590 = vpack.c.bf16 %v7552, %v7551
  %v7591 = vpack.c.bf16 %v7554, %v7553
  %v7592 = vpack.c.bf16 %v7556, %v7555
  %v7593 = vpack.c.bf16 %v7558, %v7557
  %v7594 = vpack.c.bf16 %v7560, %v7559
  %v7595 = vpack.c.bf16 %v7562, %v7561
  %v7596 = vpack.c.bf16 %v7564, %v7563
  %v7597 = vld [vmem:[%s2] sm:$0xf]
  %v7598 = vld [vmem:[%s2 + $0x4] sm:$0xf]
  %v7599 = vld [vmem:[%s2 + $0x8] sm:$0xf]
  %v7600 = vld [vmem:[%s2 + $0xc] sm:$0xf]
  %v7601 = vld [vmem:[%s2 + $0x10] sm:$0xf]
  %v7602 = vld [vmem:[%s2 + $0x14] sm:$0xf]
  %v7603 = vld [vmem:[%s2 + $0x18] sm:$0xf]
  %v7604 = vld [vmem:[%s2 + $0x1c] sm:$0xf]
  %v7605 = vld [vmem:[%s2 + $0x20] sm:$0xf]
  %v7615 = vunpack.c.l.b16 %v7597
  %v7616 = vunpack.c.l.b16 %v7598
  %v7617 = vunpack.c.l.b16 %v7599
  %v7618 = vunpack.c.l.b16 %v7600
  %v7619 = vunpack.c.l.b16 %v7601
  %v7620 = vunpack.c.l.b16 %v7602
  %v7621 = vunpack.c.l.b16 %v7603
  %v7622 = vunpack.c.l.b16 %v7604
  %v7623 = vunpack.c.l.b16 %v7605
  %v7624 = vpack.c.b16 %v7616, %v7615
  %v7625 = vpack.c.b16 %v7618, %v7617
  %v7626 = vpack.c.b16 %v7620, %v7619
  %v7627 = vpack.c.b16 %v7622, %v7621
  %v7628 = vpack.c.b16 %v7623, %v7623
  %v7634 = vsel %vm3478, %v7565, 0
  %v7637 = vsel %vm3478, %v7566, 0
  %v7640 = vsel %vm3478, %v7567, 0
  %v7643 = vsel %vm3478, %v7568, 0
  %v7646 = vsel %vm3478, %v7569, 0
  %v7649 = vsel %vm3478, %v7570, 0
  %v7652 = vsel %vm3478, %v7571, 0
  %v7655 = vsel %vm3478, %v7572, 0
  %v7658 = vsel %vm3478, %v7573, 0
  %v7661 = vsel %vm3478, %v7574, 0
  %v7664 = vsel %vm3478, %v7575, 0
  %v7667 = vsel %vm3478, %v7576, 0
  %v7670 = vsel %vm3478, %v7577, 0
  %v7673 = vsel %vm3478, %v7578, 0
  %v7676 = vsel %vm3478, %v7579, 0
  %v7679 = vsel %vm3478, %v7580, 0
  %v7682 = vsel %vm3478, %v7581, 0
  %v7685 = vsel %vm3478, %v7582, 0
  %v7688 = vsel %vm3478, %v7583, 0
  %v7691 = vsel %vm3478, %v7584, 0
  %v7694 = vsel %vm3478, %v7585, 0
  %v7697 = vsel %vm3478, %v7586, 0
  %v7700 = vsel %vm3478, %v7587, 0
  %v7703 = vsel %vm3478, %v7588, 0
  %v7706 = vsel %vm3478, %v7589, 0
  %v7709 = vsel %vm3478, %v7590, 0
  %v7712 = vsel %vm3478, %v7591, 0
  %v7715 = vsel %vm3478, %v7592, 0
  %v7718 = vsel %vm3478, %v7593, 0
  %v7721 = vsel %vm3478, %v7594, 0
  %v7724 = vsel %vm3478, %v7595, 0
  %v7727 = vsel %vm3478, %v7596, 0
  %v7730 = vsel %vm3575, %v7628, 0
  %7732 = vmatpush.bf16.msra.mxu0 0
  %7733 = vmatpush.bf16.msra.mxu0 0
  %7734 = vmatpush.bf16.msra.mxu0 0
  %7735 = vmatpush.bf16.msra.mxu0 %v7730
  %7736 = vmatpush.bf16.msra.mxu0 %v7627
  %7737 = vmatpush.bf16.msra.mxu0 %v7626
  %7738 = vmatpush.bf16.msra.mxu0 %v7625
  %7739 = vmatpush.bf16.msra.mxu0 %v7624
  %7740 = vmatmul.bf16.gmra.mxu0 %v7634
  %v7741 = vpop.f32.mrf.mxu0
  %v7742 = vadd.f32 0.0, %v7741
  %v7743 = vpop.f32.mrf.mxu0
  %v7744 = vadd.f32 0.0, %v7743
  %7745 = vmatmul.bf16.gmra.mxu0 %v7637
  %v7746 = vpop.f32.mrf.mxu0
  %v7747 = vadd.f32 0.0, %v7746
  %v7748 = vpop.f32.mrf.mxu0
  %v7749 = vadd.f32 0.0, %v7748
  %7750 = vmatmul.bf16.gmra.mxu0 %v7640
  %v7751 = vpop.f32.mrf.mxu0
  %v7752 = vadd.f32 0.0, %v7751
  %v7753 = vpop.f32.mrf.mxu0
  %v7754 = vadd.f32 0.0, %v7753
  %7755 = vmatmul.bf16.gmra.mxu0 %v7643
  %v7756 = vpop.f32.mrf.mxu0
  %v7757 = vadd.f32 0.0, %v7756
  %v7758 = vpop.f32.mrf.mxu0
  %v7759 = vadd.f32 0.0, %v7758
  %7760 = vmatmul.bf16.gmra.mxu0 %v7646
  %v7761 = vpop.f32.mrf.mxu0
  %v7762 = vadd.f32 0.0, %v7761
  %v7763 = vpop.f32.mrf.mxu0
  %v7764 = vadd.f32 0.0, %v7763
  %7765 = vmatmul.bf16.gmra.mxu0 %v7649
  %v7766 = vpop.f32.mrf.mxu0
  %v7767 = vadd.f32 0.0, %v7766
  %v7768 = vpop.f32.mrf.mxu0
  %v7769 = vadd.f32 0.0, %v7768
  %7770 = vmatmul.bf16.gmra.mxu0 %v7652
  %v7771 = vpop.f32.mrf.mxu0
  %v7772 = vadd.f32 0.0, %v7771
  %v7773 = vpop.f32.mrf.mxu0
  %v7774 = vadd.f32 0.0, %v7773
  %7775 = vmatmul.bf16.gmra.mxu0 %v7655
  %v7776 = vpop.f32.mrf.mxu0
  %v7777 = vadd.f32 0.0, %v7776
  %v7778 = vpop.f32.mrf.mxu0
  %v7779 = vadd.f32 0.0, %v7778
  %7780 = vmatmul.bf16.gmra.mxu0 %v7658
  %v7781 = vpop.f32.mrf.mxu0
  %v7782 = vadd.f32 0.0, %v7781
  %v7783 = vpop.f32.mrf.mxu0
  %v7784 = vadd.f32 0.0, %v7783
  %7785 = vmatmul.bf16.gmra.mxu0 %v7661
  %v7786 = vpop.f32.mrf.mxu0
  %v7787 = vadd.f32 0.0, %v7786
  %v7788 = vpop.f32.mrf.mxu0
  %v7789 = vadd.f32 0.0, %v7788
  %7790 = vmatmul.bf16.gmra.mxu0 %v7664
  %v7791 = vpop.f32.mrf.mxu0
  %v7792 = vadd.f32 0.0, %v7791
  %v7793 = vpop.f32.mrf.mxu0
  %v7794 = vadd.f32 0.0, %v7793
  %7795 = vmatmul.bf16.gmra.mxu0 %v7667
  %v7796 = vpop.f32.mrf.mxu0
  %v7797 = vadd.f32 0.0, %v7796
  %v7798 = vpop.f32.mrf.mxu0
  %v7799 = vadd.f32 0.0, %v7798
  %7800 = vmatmul.bf16.gmra.mxu0 %v7670
  %v7801 = vpop.f32.mrf.mxu0
  %v7802 = vadd.f32 0.0, %v7801
  %v7803 = vpop.f32.mrf.mxu0
  %v7804 = vadd.f32 0.0, %v7803
  %7805 = vmatmul.bf16.gmra.mxu0 %v7673
  %v7806 = vpop.f32.mrf.mxu0
  %v7807 = vadd.f32 0.0, %v7806
  %v7808 = vpop.f32.mrf.mxu0
  %v7809 = vadd.f32 0.0, %v7808
  %7810 = vmatmul.bf16.gmra.mxu0 %v7676
  %v7811 = vpop.f32.mrf.mxu0
  %v7812 = vadd.f32 0.0, %v7811
  %v7813 = vpop.f32.mrf.mxu0
  %v7814 = vadd.f32 0.0, %v7813
  %7815 = vmatmul.bf16.gmra.mxu0 %v7679
  %v7816 = vpop.f32.mrf.mxu0
  %v7817 = vadd.f32 0.0, %v7816
  %v7818 = vpop.f32.mrf.mxu0
  %v7819 = vadd.f32 0.0, %v7818
  %7820 = vmatmul.bf16.gmra.mxu0 %v7682
  %v7821 = vpop.f32.mrf.mxu0
  %v7822 = vadd.f32 0.0, %v7821
  %v7823 = vpop.f32.mrf.mxu0
  %v7824 = vadd.f32 0.0, %v7823
  %7825 = vmatmul.bf16.gmra.mxu0 %v7685
  %v7826 = vpop.f32.mrf.mxu0
  %v7827 = vadd.f32 0.0, %v7826
  %v7828 = vpop.f32.mrf.mxu0
  %v7829 = vadd.f32 0.0, %v7828
  %7830 = vmatmul.bf16.gmra.mxu0 %v7688
  %v7831 = vpop.f32.mrf.mxu0
  %v7832 = vadd.f32 0.0, %v7831
  %v7833 = vpop.f32.mrf.mxu0
  %v7834 = vadd.f32 0.0, %v7833
  %7835 = vmatmul.bf16.gmra.mxu0 %v7691
  %v7836 = vpop.f32.mrf.mxu0
  %v7837 = vadd.f32 0.0, %v7836
  %v7838 = vpop.f32.mrf.mxu0
  %v7839 = vadd.f32 0.0, %v7838
  %7840 = vmatmul.bf16.gmra.mxu0 %v7694
  %v7841 = vpop.f32.mrf.mxu0
  %v7842 = vadd.f32 0.0, %v7841
  %v7843 = vpop.f32.mrf.mxu0
  %v7844 = vadd.f32 0.0, %v7843
  %7845 = vmatmul.bf16.gmra.mxu0 %v7697
  %v7846 = vpop.f32.mrf.mxu0
  %v7847 = vadd.f32 0.0, %v7846
  %v7848 = vpop.f32.mrf.mxu0
  %v7849 = vadd.f32 0.0, %v7848
  %7850 = vmatmul.bf16.gmra.mxu0 %v7700
  %v7851 = vpop.f32.mrf.mxu0
  %v7852 = vadd.f32 0.0, %v7851
  %v7853 = vpop.f32.mrf.mxu0
  %v7854 = vadd.f32 0.0, %v7853
  %7855 = vmatmul.bf16.gmra.mxu0 %v7703
  %v7856 = vpop.f32.mrf.mxu0
  %v7857 = vadd.f32 0.0, %v7856
  %v7858 = vpop.f32.mrf.mxu0
  %v7859 = vadd.f32 0.0, %v7858
  %7860 = vmatmul.bf16.gmra.mxu0 %v7706
  %v7861 = vpop.f32.mrf.mxu0
  %v7862 = vadd.f32 0.0, %v7861
  %v7863 = vpop.f32.mrf.mxu0
  %v7864 = vadd.f32 0.0, %v7863
  %7865 = vmatmul.bf16.gmra.mxu0 %v7709
  %v7866 = vpop.f32.mrf.mxu0
  %v7867 = vadd.f32 0.0, %v7866
  %v7868 = vpop.f32.mrf.mxu0
  %v7869 = vadd.f32 0.0, %v7868
  %7870 = vmatmul.bf16.gmra.mxu0 %v7712
  %v7871 = vpop.f32.mrf.mxu0
  %v7872 = vadd.f32 0.0, %v7871
  %v7873 = vpop.f32.mrf.mxu0
  %v7874 = vadd.f32 0.0, %v7873
  %7875 = vmatmul.bf16.gmra.mxu0 %v7715
  %v7876 = vpop.f32.mrf.mxu0
  %v7877 = vadd.f32 0.0, %v7876
  %v7878 = vpop.f32.mrf.mxu0
  %v7879 = vadd.f32 0.0, %v7878
  %7880 = vmatmul.bf16.gmra.mxu0 %v7718
  %v7881 = vpop.f32.mrf.mxu0
  %v7882 = vadd.f32 0.0, %v7881
  %v7883 = vpop.f32.mrf.mxu0
  %v7884 = vadd.f32 0.0, %v7883
  %7885 = vmatmul.bf16.gmra.mxu0 %v7721
  %v7886 = vpop.f32.mrf.mxu0
  %v7887 = vadd.f32 0.0, %v7886
  %v7888 = vpop.f32.mrf.mxu0
  %v7889 = vadd.f32 0.0, %v7888
  %7890 = vmatmul.bf16.gmra.mxu0 %v7724
  %v7891 = vpop.f32.mrf.mxu0
  %v7892 = vadd.f32 0.0, %v7891
  %v7893 = vpop.f32.mrf.mxu0
  %v7894 = vadd.f32 0.0, %v7893
  %7895 = vmatmul.bf16.gmra.mxu0 %v7727
  %v7896 = vpop.f32.mrf.mxu0
  %v7897 = vadd.f32 0.0, %v7896
  %v7898 = vpop.f32.mrf.mxu0
  %v7899 = vadd.f32 0.0, %v7898
  %7900 = vdwg.mxu0
  %v7901 = vsel %vm27, %v7742, 0.0
  %v7902 = vsel %vm27, %v7744, 0.0
  %v7903 = vadd.f32 %v7901, %v7902
  %v7904 = vsel %vm27, %v7747, 0.0
  %v7905 = vadd.f32 %v7903, %v7904
  %v7906 = vsel %vm27, %v7749, 0.0
  %v7907 = vadd.f32 %v7905, %v7906
  %v7908 = vsel %vm27, %v7752, 0.0
  %v7909 = vadd.f32 %v7907, %v7908
  %v7910 = vsel %vm27, %v7754, 0.0
  %v7911 = vadd.f32 %v7909, %v7910
  %v7912 = vsel %vm27, %v7757, 0.0
  %v7913 = vadd.f32 %v7911, %v7912
  %v7914 = vsel %vm27, %v7759, 0.0
  %v7915 = vadd.f32 %v7913, %v7914
  %v7916 = vsel %vm27, %v7762, 0.0
  %v7917 = vadd.f32 %v7915, %v7916
  %v7918 = vsel %vm27, %v7764, 0.0
  %v7919 = vadd.f32 %v7917, %v7918
  %v7920 = vsel %vm27, %v7767, 0.0
  %v7921 = vadd.f32 %v7919, %v7920
  %v7922 = vsel %vm27, %v7769, 0.0
  %v7923 = vadd.f32 %v7921, %v7922
  %v7924 = vsel %vm27, %v7772, 0.0
  %v7925 = vadd.f32 %v7923, %v7924
  %v7926 = vsel %vm27, %v7774, 0.0
  %v7927 = vadd.f32 %v7925, %v7926
  %v7928 = vsel %vm27, %v7777, 0.0
  %v7929 = vadd.f32 %v7927, %v7928
  %v7930 = vsel %vm27, %v7779, 0.0
  %v7931 = vadd.f32 %v7929, %v7930
  %v7932 = vsel %vm27, %v7782, 0.0
  %v7933 = vadd.f32 %v7931, %v7932
  %v7934 = vsel %vm27, %v7784, 0.0
  %v7935 = vadd.f32 %v7933, %v7934
  %v7936 = vsel %vm27, %v7787, 0.0
  %v7937 = vadd.f32 %v7935, %v7936
  %v7938 = vsel %vm27, %v7789, 0.0
  %v7939 = vadd.f32 %v7937, %v7938
  %v7940 = vsel %vm27, %v7792, 0.0
  %v7941 = vadd.f32 %v7939, %v7940
  %v7942 = vsel %vm27, %v7794, 0.0
  %v7943 = vadd.f32 %v7941, %v7942
  %v7944 = vsel %vm27, %v7797, 0.0
  %v7945 = vadd.f32 %v7943, %v7944
  %v7946 = vsel %vm27, %v7799, 0.0
  %v7947 = vadd.f32 %v7945, %v7946
  %v7948 = vsel %vm27, %v7802, 0.0
  %v7949 = vadd.f32 %v7947, %v7948
  %v7950 = vsel %vm27, %v7804, 0.0
  %v7951 = vadd.f32 %v7949, %v7950
  %v7952 = vsel %vm27, %v7807, 0.0
  %v7953 = vadd.f32 %v7951, %v7952
  %v7954 = vsel %vm27, %v7809, 0.0
  %v7955 = vadd.f32 %v7953, %v7954
  %v7956 = vsel %vm27, %v7812, 0.0
  %v7957 = vadd.f32 %v7955, %v7956
  %v7958 = vsel %vm27, %v7814, 0.0
  %v7959 = vadd.f32 %v7957, %v7958
  %v7960 = vsel %vm27, %v7817, 0.0
  %v7961 = vadd.f32 %v7959, %v7960
  %v7962 = vsel %vm27, %v7819, 0.0
  %v7963 = vadd.f32 %v7961, %v7962
  %v7964 = vsel %vm27, %v7822, 0.0
  %v7965 = vadd.f32 %v7963, %v7964
  %v7966 = vsel %vm27, %v7824, 0.0
  %v7967 = vadd.f32 %v7965, %v7966
  %v7968 = vsel %vm27, %v7827, 0.0
  %v7969 = vadd.f32 %v7967, %v7968
  %v7970 = vsel %vm27, %v7829, 0.0
  %v7971 = vadd.f32 %v7969, %v7970
  %v7972 = vsel %vm27, %v7832, 0.0
  %v7973 = vadd.f32 %v7971, %v7972
  %v7974 = vsel %vm27, %v7834, 0.0
  %v7975 = vadd.f32 %v7973, %v7974
  %v7976 = vsel %vm27, %v7837, 0.0
  %v7977 = vadd.f32 %v7975, %v7976
  %v7978 = vsel %vm27, %v7839, 0.0
  %v7979 = vadd.f32 %v7977, %v7978
  %v7980 = vsel %vm27, %v7842, 0.0
  %v7981 = vadd.f32 %v7979, %v7980
  %v7982 = vsel %vm27, %v7844, 0.0
  %v7983 = vadd.f32 %v7981, %v7982
  %v7984 = vsel %vm27, %v7847, 0.0
  %v7985 = vadd.f32 %v7983, %v7984
  %v7986 = vsel %vm27, %v7849, 0.0
  %v7987 = vadd.f32 %v7985, %v7986
  %v7988 = vsel %vm27, %v7852, 0.0
  %v7989 = vadd.f32 %v7987, %v7988
  %v7990 = vsel %vm27, %v7854, 0.0
  %v7991 = vadd.f32 %v7989, %v7990
  %v7992 = vsel %vm27, %v7857, 0.0
  %v7993 = vadd.f32 %v7991, %v7992
  %v7994 = vsel %vm27, %v7859, 0.0
  %v7995 = vadd.f32 %v7993, %v7994
  %v7996 = vsel %vm27, %v7862, 0.0
  %v7997 = vadd.f32 %v7995, %v7996
  %v7998 = vsel %vm27, %v7864, 0.0
  %v7999 = vadd.f32 %v7997, %v7998
  %v8000 = vsel %vm27, %v7867, 0.0
  %v8001 = vadd.f32 %v7999, %v8000
  %v8002 = vsel %vm27, %v7869, 0.0
  %v8003 = vadd.f32 %v8001, %v8002
  %v8004 = vsel %vm27, %v7872, 0.0
  %v8005 = vadd.f32 %v8003, %v8004
  %v8006 = vsel %vm27, %v7874, 0.0
  %v8007 = vadd.f32 %v8005, %v8006
  %v8008 = vsel %vm27, %v7877, 0.0
  %v8009 = vadd.f32 %v8007, %v8008
  %v8010 = vsel %vm27, %v7879, 0.0
  %v8011 = vadd.f32 %v8009, %v8010
  %v8012 = vsel %vm27, %v7882, 0.0
  %v8013 = vadd.f32 %v8011, %v8012
  %v8014 = vsel %vm27, %v7884, 0.0
  %v8015 = vadd.f32 %v8013, %v8014
  %v8016 = vsel %vm27, %v7887, 0.0
  %v8017 = vadd.f32 %v8015, %v8016
  %v8018 = vsel %vm27, %v7889, 0.0
  %v8019 = vadd.f32 %v8017, %v8018
  %v8020 = vsel %vm27, %v7892, 0.0
  %v8021 = vadd.f32 %v8019, %v8020
  %v8022 = vsel %vm27, %v7894, 0.0
  %v8023 = vadd.f32 %v8021, %v8022
  %v8024 = vsel %vm27, %v7897, 0.0
  %v8025 = vadd.f32 %v8023, %v8024
  %v8026 = vsel %vm27, %v7899, 0.0
  %v8027 = vadd.f32 %v8025, %v8026
  %v8028 = vrot.slane %v8027, 4
  %v8029 = vadd.f32 %v8027, %v8028
  %v8030 = vrot.slane %v8029, 2
  %v8031 = vadd.f32 %v8029, %v8030
  %v8032 = vrot.slane %v8031, 1
  %v8033 = vadd.f32 %v8031, %v8032
  %v8034 = vmul.f32 %v8033, %v3887
  %v8035 = vsub.f32 %v7742, %v8034
  %v8036 = vsub.f32 %v7744, %v8034
  %v8037 = vsub.f32 %v7747, %v8034
  %v8038 = vsub.f32 %v7749, %v8034
  %v8039 = vsub.f32 %v7752, %v8034
  %v8040 = vsub.f32 %v7754, %v8034
  %v8041 = vsub.f32 %v7757, %v8034
  %v8042 = vsub.f32 %v7759, %v8034
  %v8043 = vsub.f32 %v7762, %v8034
  %v8044 = vsub.f32 %v7764, %v8034
  %v8045 = vsub.f32 %v7767, %v8034
  %v8046 = vsub.f32 %v7769, %v8034
  %v8047 = vsub.f32 %v7772, %v8034
  %v8048 = vsub.f32 %v7774, %v8034
  %v8049 = vsub.f32 %v7777, %v8034
  %v8050 = vsub.f32 %v7779, %v8034
  %v8051 = vsub.f32 %v7782, %v8034
  %v8052 = vsub.f32 %v7784, %v8034
  %v8053 = vsub.f32 %v7787, %v8034
  %v8054 = vsub.f32 %v7789, %v8034
  %v8055 = vsub.f32 %v7792, %v8034
  %v8056 = vsub.f32 %v7794, %v8034
  %v8057 = vsub.f32 %v7797, %v8034
  %v8058 = vsub.f32 %v7799, %v8034
  %v8059 = vsub.f32 %v7802, %v8034
  %v8060 = vsub.f32 %v7804, %v8034
  %v8061 = vsub.f32 %v7807, %v8034
  %v8062 = vsub.f32 %v7809, %v8034
  %v8063 = vsub.f32 %v7812, %v8034
  %v8064 = vsub.f32 %v7814, %v8034
  %v8065 = vsub.f32 %v7817, %v8034
  %v8066 = vsub.f32 %v7819, %v8034
  %v8067 = vsub.f32 %v7822, %v8034
  %v8068 = vsub.f32 %v7824, %v8034
  %v8069 = vsub.f32 %v7827, %v8034
  %v8070 = vsub.f32 %v7829, %v8034
  %v8071 = vsub.f32 %v7832, %v8034
  %v8072 = vsub.f32 %v7834, %v8034
  %v8073 = vsub.f32 %v7837, %v8034
  %v8074 = vsub.f32 %v7839, %v8034
  %v8075 = vsub.f32 %v7842, %v8034
  %v8076 = vsub.f32 %v7844, %v8034
  %v8077 = vsub.f32 %v7847, %v8034
  %v8078 = vsub.f32 %v7849, %v8034
  %v8079 = vsub.f32 %v7852, %v8034
  %v8080 = vsub.f32 %v7854, %v8034
  %v8081 = vsub.f32 %v7857, %v8034
  %v8082 = vsub.f32 %v7859, %v8034
  %v8083 = vsub.f32 %v7862, %v8034
  %v8084 = vsub.f32 %v7864, %v8034
  %v8085 = vsub.f32 %v7867, %v8034
  %v8086 = vsub.f32 %v7869, %v8034
  %v8087 = vsub.f32 %v7872, %v8034
  %v8088 = vsub.f32 %v7874, %v8034
  %v8089 = vsub.f32 %v7877, %v8034
  %v8090 = vsub.f32 %v7879, %v8034
  %v8091 = vsub.f32 %v7882, %v8034
  %v8092 = vsub.f32 %v7884, %v8034
  %v8093 = vsub.f32 %v7887, %v8034
  %v8094 = vsub.f32 %v7889, %v8034
  %v8095 = vsub.f32 %v7892, %v8034
  %v8096 = vsub.f32 %v7894, %v8034
  %v8097 = vsub.f32 %v7897, %v8034
  %v8098 = vsub.f32 %v7899, %v8034
  %v8099 = vmul.f32 %v8035, %v8035
  %v8100 = vmul.f32 %v8036, %v8036
  %v8101 = vmul.f32 %v8037, %v8037
  %v8102 = vmul.f32 %v8038, %v8038
  %v8103 = vmul.f32 %v8039, %v8039
  %v8104 = vmul.f32 %v8040, %v8040
  %v8105 = vmul.f32 %v8041, %v8041
  %v8106 = vmul.f32 %v8042, %v8042
  %v8107 = vmul.f32 %v8043, %v8043
  %v8108 = vmul.f32 %v8044, %v8044
  %v8109 = vmul.f32 %v8045, %v8045
  %v8110 = vmul.f32 %v8046, %v8046
  %v8111 = vmul.f32 %v8047, %v8047
  %v8112 = vmul.f32 %v8048, %v8048
  %v8113 = vmul.f32 %v8049, %v8049
  %v8114 = vmul.f32 %v8050, %v8050
  %v8115 = vmul.f32 %v8051, %v8051
  %v8116 = vmul.f32 %v8052, %v8052
  %v8117 = vmul.f32 %v8053, %v8053
  %v8118 = vmul.f32 %v8054, %v8054
  %v8119 = vmul.f32 %v8055, %v8055
  %v8120 = vmul.f32 %v8056, %v8056
  %v8121 = vmul.f32 %v8057, %v8057
  %v8122 = vmul.f32 %v8058, %v8058
  %v8123 = vmul.f32 %v8059, %v8059
  %v8124 = vmul.f32 %v8060, %v8060
  %v8125 = vmul.f32 %v8061, %v8061
  %v8126 = vmul.f32 %v8062, %v8062
  %v8127 = vmul.f32 %v8063, %v8063
  %v8128 = vmul.f32 %v8064, %v8064
  %v8129 = vmul.f32 %v8065, %v8065
  %v8130 = vmul.f32 %v8066, %v8066
  %v8131 = vmul.f32 %v8067, %v8067
  %v8132 = vmul.f32 %v8068, %v8068
  %v8133 = vmul.f32 %v8069, %v8069
  %v8134 = vmul.f32 %v8070, %v8070
  %v8135 = vmul.f32 %v8071, %v8071
  %v8136 = vmul.f32 %v8072, %v8072
  %v8137 = vmul.f32 %v8073, %v8073
  %v8138 = vmul.f32 %v8074, %v8074
  %v8139 = vmul.f32 %v8075, %v8075
  %v8140 = vmul.f32 %v8076, %v8076
  %v8141 = vmul.f32 %v8077, %v8077
  %v8142 = vmul.f32 %v8078, %v8078
  %v8143 = vmul.f32 %v8079, %v8079
  %v8144 = vmul.f32 %v8080, %v8080
  %v8145 = vmul.f32 %v8081, %v8081
  %v8146 = vmul.f32 %v8082, %v8082
  %v8147 = vmul.f32 %v8083, %v8083
  %v8148 = vmul.f32 %v8084, %v8084
  %v8149 = vmul.f32 %v8085, %v8085
  %v8150 = vmul.f32 %v8086, %v8086
  %v8151 = vmul.f32 %v8087, %v8087
  %v8152 = vmul.f32 %v8088, %v8088
  %v8153 = vmul.f32 %v8089, %v8089
  %v8154 = vmul.f32 %v8090, %v8090
  %v8155 = vmul.f32 %v8091, %v8091
  %v8156 = vmul.f32 %v8092, %v8092
  %v8157 = vmul.f32 %v8093, %v8093
  %v8158 = vmul.f32 %v8094, %v8094
  %v8159 = vmul.f32 %v8095, %v8095
  %v8160 = vmul.f32 %v8096, %v8096
  %v8161 = vmul.f32 %v8097, %v8097
  %v8162 = vmul.f32 %v8098, %v8098
  %v8163 = vsel %vm27, %v8099, 0.0
  %v8164 = vsel %vm27, %v8100, 0.0
  %v8165 = vadd.f32 %v8163, %v8164
  %v8166 = vsel %vm27, %v8101, 0.0
  %v8167 = vadd.f32 %v8165, %v8166
  %v8168 = vsel %vm27, %v8102, 0.0
  %v8169 = vadd.f32 %v8167, %v8168
  %v8170 = vsel %vm27, %v8103, 0.0
  %v8171 = vadd.f32 %v8169, %v8170
  %v8172 = vsel %vm27, %v8104, 0.0
  %v8173 = vadd.f32 %v8171, %v8172
  %v8174 = vsel %vm27, %v8105, 0.0
  %v8175 = vadd.f32 %v8173, %v8174
  %v8176 = vsel %vm27, %v8106, 0.0
  %v8177 = vadd.f32 %v8175, %v8176
  %v8178 = vsel %vm27, %v8107, 0.0
  %v8179 = vadd.f32 %v8177, %v8178
  %v8180 = vsel %vm27, %v8108, 0.0
  %v8181 = vadd.f32 %v8179, %v8180
  %v8182 = vsel %vm27, %v8109, 0.0
  %v8183 = vadd.f32 %v8181, %v8182
  %v8184 = vsel %vm27, %v8110, 0.0
  %v8185 = vadd.f32 %v8183, %v8184
  %v8186 = vsel %vm27, %v8111, 0.0
  %v8187 = vadd.f32 %v8185, %v8186
  %v8188 = vsel %vm27, %v8112, 0.0
  %v8189 = vadd.f32 %v8187, %v8188
  %v8190 = vsel %vm27, %v8113, 0.0
  %v8191 = vadd.f32 %v8189, %v8190
  %v8192 = vsel %vm27, %v8114, 0.0
  %v8193 = vadd.f32 %v8191, %v8192
  %v8194 = vsel %vm27, %v8115, 0.0
  %v8195 = vadd.f32 %v8193, %v8194
  %v8196 = vsel %vm27, %v8116, 0.0
  %v8197 = vadd.f32 %v8195, %v8196
  %v8198 = vsel %vm27, %v8117, 0.0
  %v8199 = vadd.f32 %v8197, %v8198
  %v8200 = vsel %vm27, %v8118, 0.0
  %v8201 = vadd.f32 %v8199, %v8200
  %v8202 = vsel %vm27, %v8119, 0.0
  %v8203 = vadd.f32 %v8201, %v8202
  %v8204 = vsel %vm27, %v8120, 0.0
  %v8205 = vadd.f32 %v8203, %v8204
  %v8206 = vsel %vm27, %v8121, 0.0
  %v8207 = vadd.f32 %v8205, %v8206
  %v8208 = vsel %vm27, %v8122, 0.0
  %v8209 = vadd.f32 %v8207, %v8208
  %v8210 = vsel %vm27, %v8123, 0.0
  %v8211 = vadd.f32 %v8209, %v8210
  %v8212 = vsel %vm27, %v8124, 0.0
  %v8213 = vadd.f32 %v8211, %v8212
  %v8214 = vsel %vm27, %v8125, 0.0
  %v8215 = vadd.f32 %v8213, %v8214
  %v8216 = vsel %vm27, %v8126, 0.0
  %v8217 = vadd.f32 %v8215, %v8216
  %v8218 = vsel %vm27, %v8127, 0.0
  %v8219 = vadd.f32 %v8217, %v8218
  %v8220 = vsel %vm27, %v8128, 0.0
  %v8221 = vadd.f32 %v8219, %v8220
  %v8222 = vsel %vm27, %v8129, 0.0
  %v8223 = vadd.f32 %v8221, %v8222
  %v8224 = vsel %vm27, %v8130, 0.0
  %v8225 = vadd.f32 %v8223, %v8224
  %v8226 = vsel %vm27, %v8131, 0.0
  %v8227 = vadd.f32 %v8225, %v8226
  %v8228 = vsel %vm27, %v8132, 0.0
  %v8229 = vadd.f32 %v8227, %v8228
  %v8230 = vsel %vm27, %v8133, 0.0
  %v8231 = vadd.f32 %v8229, %v8230
  %v8232 = vsel %vm27, %v8134, 0.0
  %v8233 = vadd.f32 %v8231, %v8232
  %v8234 = vsel %vm27, %v8135, 0.0
  %v8235 = vadd.f32 %v8233, %v8234
  %v8236 = vsel %vm27, %v8136, 0.0
  %v8237 = vadd.f32 %v8235, %v8236
  %v8238 = vsel %vm27, %v8137, 0.0
  %v8239 = vadd.f32 %v8237, %v8238
  %v8240 = vsel %vm27, %v8138, 0.0
  %v8241 = vadd.f32 %v8239, %v8240
  %v8242 = vsel %vm27, %v8139, 0.0
  %v8243 = vadd.f32 %v8241, %v8242
  %v8244 = vsel %vm27, %v8140, 0.0
  %v8245 = vadd.f32 %v8243, %v8244
  %v8246 = vsel %vm27, %v8141, 0.0
  %v8247 = vadd.f32 %v8245, %v8246
  %v8248 = vsel %vm27, %v8142, 0.0
  %v8249 = vadd.f32 %v8247, %v8248
  %v8250 = vsel %vm27, %v8143, 0.0
  %v8251 = vadd.f32 %v8249, %v8250
  %v8252 = vsel %vm27, %v8144, 0.0
  %v8253 = vadd.f32 %v8251, %v8252
  %v8254 = vsel %vm27, %v8145, 0.0
  %v8255 = vadd.f32 %v8253, %v8254
  %v8256 = vsel %vm27, %v8146, 0.0
  %v8257 = vadd.f32 %v8255, %v8256
  %v8258 = vsel %vm27, %v8147, 0.0
  %v8259 = vadd.f32 %v8257, %v8258
  %v8260 = vsel %vm27, %v8148, 0.0
  %v8261 = vadd.f32 %v8259, %v8260
  %v8262 = vsel %vm27, %v8149, 0.0
  %v8263 = vadd.f32 %v8261, %v8262
  %v8264 = vsel %vm27, %v8150, 0.0
  %v8265 = vadd.f32 %v8263, %v8264
  %v8266 = vsel %vm27, %v8151, 0.0
  %v8267 = vadd.f32 %v8265, %v8266
  %v8268 = vsel %vm27, %v8152, 0.0
  %v8269 = vadd.f32 %v8267, %v8268
  %v8270 = vsel %vm27, %v8153, 0.0
  %v8271 = vadd.f32 %v8269, %v8270
  %v8272 = vsel %vm27, %v8154, 0.0
  %v8273 = vadd.f32 %v8271, %v8272
  %v8274 = vsel %vm27, %v8155, 0.0
  %v8275 = vadd.f32 %v8273, %v8274
  %v8276 = vsel %vm27, %v8156, 0.0
  %v8277 = vadd.f32 %v8275, %v8276
  %v8278 = vsel %vm27, %v8157, 0.0
  %v8279 = vadd.f32 %v8277, %v8278
  %v8280 = vsel %vm27, %v8158, 0.0
  %v8281 = vadd.f32 %v8279, %v8280
  %v8282 = vsel %vm27, %v8159, 0.0
  %v8283 = vadd.f32 %v8281, %v8282
  %v8284 = vsel %vm27, %v8160, 0.0
  %v8285 = vadd.f32 %v8283, %v8284
  %v8286 = vsel %vm27, %v8161, 0.0
  %v8287 = vadd.f32 %v8285, %v8286
  %v8288 = vsel %vm27, %v8162, 0.0
  %v8289 = vadd.f32 %v8287, %v8288
  %v8290 = vrot.slane %v8289, 4
  %v8291 = vadd.f32 %v8289, %v8290
  %v8292 = vrot.slane %v8291, 2
  %v8293 = vadd.f32 %v8291, %v8292
  %v8294 = vrot.slane %v8293, 1
  %v8295 = vadd.f32 %v8293, %v8294
  %v8296 = vmul.f32 %v8295, %v3887
  %v8297 = vld [vmem:[%s5] sm:$0x1]
  %v8298 = vadd.f32 %v8296, 1e-05
  %v8299 = vrsqrt.pop %v8298
  %v8300 = vmul.f32 %v8299, %v8298
  %v8301 = vmul.f32 %v8300, %v8299
  %v8302 = vmul.f32 0.5, %v8301
  %v8303 = vsub.f32 1.5, %v8302
  %v8304 = vmul.f32 %v8299, %v8303
  %vm8305 = vweird.f32 %v8298
  %vm8306 = vweird.f32 %v8299
  %vm8307 = vmor %vm8305, %vm8306
  %v8308 = vsel %vm8307, %v8299, %v8304
  %v8309 = vmul.f32 %v8297, %v8308
  %v8310 = vld [vmem:[%s6] sm:$0x1]
  %v8311 = vmul.f32 %v8034, %v8309
  %v8312 = vsub.f32 %v8310, %v8311
  %v8314 = vperm.slane %v8309, 0
  %v8316 = vmul.f32 %v7742, %v8314
  %v8317 = vmul.f32 %v7744, %v8314
  %v8318 = vmul.f32 %v7747, %v8314
  %v8319 = vmul.f32 %v7749, %v8314
  %v8320 = vmul.f32 %v7752, %v8314
  %v8321 = vmul.f32 %v7754, %v8314
  %v8322 = vmul.f32 %v7757, %v8314
  %v8323 = vmul.f32 %v7759, %v8314
  %v8324 = vmul.f32 %v7762, %v8314
  %v8325 = vmul.f32 %v7764, %v8314
  %v8326 = vmul.f32 %v7767, %v8314
  %v8327 = vmul.f32 %v7769, %v8314
  %v8328 = vmul.f32 %v7772, %v8314
  %v8329 = vmul.f32 %v7774, %v8314
  %v8330 = vmul.f32 %v7777, %v8314
  %v8331 = vmul.f32 %v7779, %v8314
  %v8332 = vmul.f32 %v7782, %v8314
  %v8333 = vmul.f32 %v7784, %v8314
  %v8334 = vmul.f32 %v7787, %v8314
  %v8335 = vmul.f32 %v7789, %v8314
  %v8336 = vmul.f32 %v7792, %v8314
  %v8337 = vmul.f32 %v7794, %v8314
  %v8338 = vmul.f32 %v7797, %v8314
  %v8339 = vmul.f32 %v7799, %v8314
  %v8340 = vmul.f32 %v7802, %v8314
  %v8341 = vmul.f32 %v7804, %v8314
  %v8342 = vmul.f32 %v7807, %v8314
  %v8343 = vmul.f32 %v7809, %v8314
  %v8344 = vmul.f32 %v7812, %v8314
  %v8345 = vmul.f32 %v7814, %v8314
  %v8346 = vmul.f32 %v7817, %v8314
  %v8347 = vmul.f32 %v7819, %v8314
  %v8348 = vmul.f32 %v7822, %v8314
  %v8349 = vmul.f32 %v7824, %v8314
  %v8350 = vmul.f32 %v7827, %v8314
  %v8351 = vmul.f32 %v7829, %v8314
  %v8352 = vmul.f32 %v7832, %v8314
  %v8353 = vmul.f32 %v7834, %v8314
  %v8354 = vmul.f32 %v7837, %v8314
  %v8355 = vmul.f32 %v7839, %v8314
  %v8356 = vmul.f32 %v7842, %v8314
  %v8357 = vmul.f32 %v7844, %v8314
  %v8358 = vmul.f32 %v7847, %v8314
  %v8359 = vmul.f32 %v7849, %v8314
  %v8360 = vmul.f32 %v7852, %v8314
  %v8361 = vmul.f32 %v7854, %v8314
  %v8362 = vmul.f32 %v7857, %v8314
  %v8363 = vmul.f32 %v7859, %v8314
  %v8364 = vmul.f32 %v7862, %v8314
  %v8365 = vmul.f32 %v7864, %v8314
  %v8366 = vmul.f32 %v7867, %v8314
  %v8367 = vmul.f32 %v7869, %v8314
  %v8368 = vmul.f32 %v7872, %v8314
  %v8369 = vmul.f32 %v7874, %v8314
  %v8370 = vmul.f32 %v7877, %v8314
  %v8371 = vmul.f32 %v7879, %v8314
  %v8372 = vmul.f32 %v7882, %v8314
  %v8373 = vmul.f32 %v7884, %v8314
  %v8374 = vmul.f32 %v7887, %v8314
  %v8375 = vmul.f32 %v7889, %v8314
  %v8376 = vmul.f32 %v7892, %v8314
  %v8377 = vmul.f32 %v7894, %v8314
  %v8378 = vmul.f32 %v7897, %v8314
  %v8379 = vmul.f32 %v7899, %v8314
  %v8381 = vperm.slane %v8312, 0
  %v8383 = vadd.f32 %v8316, %v8381
  %v8384 = vadd.f32 %v8317, %v8381
  %v8385 = vadd.f32 %v8318, %v8381
  %v8386 = vadd.f32 %v8319, %v8381
  %v8387 = vadd.f32 %v8320, %v8381
  %v8388 = vadd.f32 %v8321, %v8381
  %v8389 = vadd.f32 %v8322, %v8381
  %v8390 = vadd.f32 %v8323, %v8381
  %v8391 = vadd.f32 %v8324, %v8381
  %v8392 = vadd.f32 %v8325, %v8381
  %v8393 = vadd.f32 %v8326, %v8381
  %v8394 = vadd.f32 %v8327, %v8381
  %v8395 = vadd.f32 %v8328, %v8381
  %v8396 = vadd.f32 %v8329, %v8381
  %v8397 = vadd.f32 %v8330, %v8381
  %v8398 = vadd.f32 %v8331, %v8381
  %v8399 = vadd.f32 %v8332, %v8381
  %v8400 = vadd.f32 %v8333, %v8381
  %v8401 = vadd.f32 %v8334, %v8381
  %v8402 = vadd.f32 %v8335, %v8381
  %v8403 = vadd.f32 %v8336, %v8381
  %v8404 = vadd.f32 %v8337, %v8381
  %v8405 = vadd.f32 %v8338, %v8381
  %v8406 = vadd.f32 %v8339, %v8381
  %v8407 = vadd.f32 %v8340, %v8381
  %v8408 = vadd.f32 %v8341, %v8381
  %v8409 = vadd.f32 %v8342, %v8381
  %v8410 = vadd.f32 %v8343, %v8381
  %v8411 = vadd.f32 %v8344, %v8381
  %v8412 = vadd.f32 %v8345, %v8381
  %v8413 = vadd.f32 %v8346, %v8381
  %v8414 = vadd.f32 %v8347, %v8381
  %v8415 = vadd.f32 %v8348, %v8381
  %v8416 = vadd.f32 %v8349, %v8381
  %v8417 = vadd.f32 %v8350, %v8381
  %v8418 = vadd.f32 %v8351, %v8381
  %v8419 = vadd.f32 %v8352, %v8381
  %v8420 = vadd.f32 %v8353, %v8381
  %v8421 = vadd.f32 %v8354, %v8381
  %v8422 = vadd.f32 %v8355, %v8381
  %v8423 = vadd.f32 %v8356, %v8381
  %v8424 = vadd.f32 %v8357, %v8381
  %v8425 = vadd.f32 %v8358, %v8381
  %v8426 = vadd.f32 %v8359, %v8381
  %v8427 = vadd.f32 %v8360, %v8381
  %v8428 = vadd.f32 %v8361, %v8381
  %v8429 = vadd.f32 %v8362, %v8381
  %v8430 = vadd.f32 %v8363, %v8381
  %v8431 = vadd.f32 %v8364, %v8381
  %v8432 = vadd.f32 %v8365, %v8381
  %v8433 = vadd.f32 %v8366, %v8381
  %v8434 = vadd.f32 %v8367, %v8381
  %v8435 = vadd.f32 %v8368, %v8381
  %v8436 = vadd.f32 %v8369, %v8381
  %v8437 = vadd.f32 %v8370, %v8381
  %v8438 = vadd.f32 %v8371, %v8381
  %v8439 = vadd.f32 %v8372, %v8381
  %v8440 = vadd.f32 %v8373, %v8381
  %v8441 = vadd.f32 %v8374, %v8381
  %v8442 = vadd.f32 %v8375, %v8381
  %v8443 = vadd.f32 %v8376, %v8381
  %v8444 = vadd.f32 %v8377, %v8381
  %v8445 = vadd.f32 %v8378, %v8381
  %v8446 = vadd.f32 %v8379, %v8381
  %v8447 = vadd.f32 %v8383, %v137
  %v8448 = vadd.f32 %v8384, %v138
  %v8449 = vadd.f32 %v8385, %v139
  %v8450 = vadd.f32 %v8386, %v140
  %v8451 = vadd.f32 %v8387, %v141
  %v8452 = vadd.f32 %v8388, %v142
  %v8453 = vadd.f32 %v8389, %v143
  %v8454 = vadd.f32 %v8390, %v144
  %v8455 = vadd.f32 %v8391, %v145
  %v8456 = vadd.f32 %v8392, %v146
  %v8457 = vadd.f32 %v8393, %v147
  %v8458 = vadd.f32 %v8394, %v148
  %v8459 = vadd.f32 %v8395, %v149
  %v8460 = vadd.f32 %v8396, %v150
  %v8461 = vadd.f32 %v8397, %v151
  %v8462 = vadd.f32 %v8398, %v152
  %v8463 = vadd.f32 %v8399, %v153
  %v8464 = vadd.f32 %v8400, %v154
  %v8465 = vadd.f32 %v8401, %v155
  %v8466 = vadd.f32 %v8402, %v156
  %v8467 = vadd.f32 %v8403, %v157
  %v8468 = vadd.f32 %v8404, %v158
  %v8469 = vadd.f32 %v8405, %v159
  %v8470 = vadd.f32 %v8406, %v160
  %v8471 = vadd.f32 %v8407, %v161
  %v8472 = vadd.f32 %v8408, %v162
  %v8473 = vadd.f32 %v8409, %v163
  %v8474 = vadd.f32 %v8410, %v164
  %v8475 = vadd.f32 %v8411, %v165
  %v8476 = vadd.f32 %v8412, %v166
  %v8477 = vadd.f32 %v8413, %v167
  %v8478 = vadd.f32 %v8414, %v168
  %v8479 = vadd.f32 %v8415, %v169
  %v8480 = vadd.f32 %v8416, %v170
  %v8481 = vadd.f32 %v8417, %v171
  %v8482 = vadd.f32 %v8418, %v172
  %v8483 = vadd.f32 %v8419, %v173
  %v8484 = vadd.f32 %v8420, %v174
  %v8485 = vadd.f32 %v8421, %v175
  %v8486 = vadd.f32 %v8422, %v176
  %v8487 = vadd.f32 %v8423, %v177
  %v8488 = vadd.f32 %v8424, %v178
  %v8489 = vadd.f32 %v8425, %v179
  %v8490 = vadd.f32 %v8426, %v180
  %v8491 = vadd.f32 %v8427, %v181
  %v8492 = vadd.f32 %v8428, %v182
  %v8493 = vadd.f32 %v8429, %v183
  %v8494 = vadd.f32 %v8430, %v184
  %v8495 = vadd.f32 %v8431, %v185
  %v8496 = vadd.f32 %v8432, %v186
  %v8497 = vadd.f32 %v8433, %v187
  %v8498 = vadd.f32 %v8434, %v188
  %v8499 = vadd.f32 %v8435, %v189
  %v8500 = vadd.f32 %v8436, %v190
  %v8501 = vadd.f32 %v8437, %v191
  %v8502 = vadd.f32 %v8438, %v192
  %v8503 = vadd.f32 %v8439, %v193
  %v8504 = vadd.f32 %v8440, %v194
  %v8505 = vadd.f32 %v8441, %v195
  %v8506 = vadd.f32 %v8442, %v196
  %v8507 = vadd.f32 %v8443, %v197
  %v8508 = vadd.f32 %v8444, %v198
  %v8509 = vadd.f32 %v8445, %v199
  %v8510 = vadd.f32 %v8446, %v200
  %v8511 = vmax.f32 %v8447, 0.0
  %v8512 = vmax.f32 %v8448, 0.0
  %v8513 = vmax.f32 %v8449, 0.0
  %v8514 = vmax.f32 %v8450, 0.0
  %v8515 = vmax.f32 %v8451, 0.0
  %v8516 = vmax.f32 %v8452, 0.0
  %v8517 = vmax.f32 %v8453, 0.0
  %v8518 = vmax.f32 %v8454, 0.0
  %v8519 = vmax.f32 %v8455, 0.0
  %v8520 = vmax.f32 %v8456, 0.0
  %v8521 = vmax.f32 %v8457, 0.0
  %v8522 = vmax.f32 %v8458, 0.0
  %v8523 = vmax.f32 %v8459, 0.0
  %v8524 = vmax.f32 %v8460, 0.0
  %v8525 = vmax.f32 %v8461, 0.0
  %v8526 = vmax.f32 %v8462, 0.0
  %v8527 = vmax.f32 %v8463, 0.0
  %v8528 = vmax.f32 %v8464, 0.0
  %v8529 = vmax.f32 %v8465, 0.0
  %v8530 = vmax.f32 %v8466, 0.0
  %v8531 = vmax.f32 %v8467, 0.0
  %v8532 = vmax.f32 %v8468, 0.0
  %v8533 = vmax.f32 %v8469, 0.0
  %v8534 = vmax.f32 %v8470, 0.0
  %v8535 = vmax.f32 %v8471, 0.0
  %v8536 = vmax.f32 %v8472, 0.0
  %v8537 = vmax.f32 %v8473, 0.0
  %v8538 = vmax.f32 %v8474, 0.0
  %v8539 = vmax.f32 %v8475, 0.0
  %v8540 = vmax.f32 %v8476, 0.0
  %v8541 = vmax.f32 %v8477, 0.0
  %v8542 = vmax.f32 %v8478, 0.0
  %v8543 = vmax.f32 %v8479, 0.0
  %v8544 = vmax.f32 %v8480, 0.0
  %v8545 = vmax.f32 %v8481, 0.0
  %v8546 = vmax.f32 %v8482, 0.0
  %v8547 = vmax.f32 %v8483, 0.0
  %v8548 = vmax.f32 %v8484, 0.0
  %v8549 = vmax.f32 %v8485, 0.0
  %v8550 = vmax.f32 %v8486, 0.0
  %v8551 = vmax.f32 %v8487, 0.0
  %v8552 = vmax.f32 %v8488, 0.0
  %v8553 = vmax.f32 %v8489, 0.0
  %v8554 = vmax.f32 %v8490, 0.0
  %v8555 = vmax.f32 %v8491, 0.0
  %v8556 = vmax.f32 %v8492, 0.0
  %v8557 = vmax.f32 %v8493, 0.0
  %v8558 = vmax.f32 %v8494, 0.0
  %v8559 = vmax.f32 %v8495, 0.0
  %v8560 = vmax.f32 %v8496, 0.0
  %v8561 = vmax.f32 %v8497, 0.0
  %v8562 = vmax.f32 %v8498, 0.0
  %v8563 = vmax.f32 %v8499, 0.0
  %v8564 = vmax.f32 %v8500, 0.0
  %v8565 = vmax.f32 %v8501, 0.0
  %v8566 = vmax.f32 %v8502, 0.0
  %v8567 = vmax.f32 %v8503, 0.0
  %v8568 = vmax.f32 %v8504, 0.0
  %v8569 = vmax.f32 %v8505, 0.0
  %v8570 = vmax.f32 %v8506, 0.0
  %v8571 = vmax.f32 %v8507, 0.0
  %v8572 = vmax.f32 %v8508, 0.0
  %v8573 = vmax.f32 %v8509, 0.0
  %v8574 = vmax.f32 %v8510, 0.0
  %8575 = vst.msk [vmem:[%s7] sm:$0xff] %vm27, %v8511
  %8576 = vst.msk [vmem:[%s7 + $0x8] sm:$0xff] %vm27, %v8512
  %8577 = vst.msk [vmem:[%s7 + $0x10] sm:$0xff] %vm27, %v8513
  %8578 = vst.msk [vmem:[%s7 + $0x18] sm:$0xff] %vm27, %v8514
  %8579 = vst.msk [vmem:[%s7 + $0x20] sm:$0xff] %vm27, %v8515
  %8580 = vst.msk [vmem:[%s7 + $0x28] sm:$0xff] %vm27, %v8516
  %8581 = vst.msk [vmem:[%s7 + $0x30] sm:$0xff] %vm27, %v8517
  %8582 = vst.msk [vmem:[%s7 + $0x38] sm:$0xff] %vm27, %v8518
  %8583 = vst.msk [vmem:[%s7 + $0x40] sm:$0xff] %vm27, %v8519
  %8584 = vst.msk [vmem:[%s7 + $0x48] sm:$0xff] %vm27, %v8520
  %8585 = vst.msk [vmem:[%s7 + $0x50] sm:$0xff] %vm27, %v8521
  %8586 = vst.msk [vmem:[%s7 + $0x58] sm:$0xff] %vm27, %v8522
  %8587 = vst.msk [vmem:[%s7 + $0x60] sm:$0xff] %vm27, %v8523
  %8588 = vst.msk [vmem:[%s7 + $0x68] sm:$0xff] %vm27, %v8524
  %8589 = vst.msk [vmem:[%s7 + $0x70] sm:$0xff] %vm27, %v8525
  %8590 = vst.msk [vmem:[%s7 + $0x78] sm:$0xff] %vm27, %v8526
  %8591 = vst.msk [vmem:[%s7 + $0x80] sm:$0xff] %vm27, %v8527
  %8592 = vst.msk [vmem:[%s7 + $0x88] sm:$0xff] %vm27, %v8528
  %8593 = vst.msk [vmem:[%s7 + $0x90] sm:$0xff] %vm27, %v8529
  %8594 = vst.msk [vmem:[%s7 + $0x98] sm:$0xff] %vm27, %v8530
  %8595 = vst.msk [vmem:[%s7 + $0xa0] sm:$0xff] %vm27, %v8531
  %8596 = vst.msk [vmem:[%s7 + $0xa8] sm:$0xff] %vm27, %v8532
  %8597 = vst.msk [vmem:[%s7 + $0xb0] sm:$0xff] %vm27, %v8533
  %8598 = vst.msk [vmem:[%s7 + $0xb8] sm:$0xff] %vm27, %v8534
  %8599 = vst.msk [vmem:[%s7 + $0xc0] sm:$0xff] %vm27, %v8535
  %8600 = vst.msk [vmem:[%s7 + $0xc8] sm:$0xff] %vm27, %v8536
  %8601 = vst.msk [vmem:[%s7 + $0xd0] sm:$0xff] %vm27, %v8537
  %8602 = vst.msk [vmem:[%s7 + $0xd8] sm:$0xff] %vm27, %v8538
  %8603 = vst.msk [vmem:[%s7 + $0xe0] sm:$0xff] %vm27, %v8539
  %8604 = vst.msk [vmem:[%s7 + $0xe8] sm:$0xff] %vm27, %v8540
  %8605 = vst.msk [vmem:[%s7 + $0xf0] sm:$0xff] %vm27, %v8541
  %8606 = vst.msk [vmem:[%s7 + $0xf8] sm:$0xff] %vm27, %v8542
  %8607 = vst.msk [vmem:[%s7 + $0x100] sm:$0xff] %vm27, %v8543
  %8608 = vst.msk [vmem:[%s7 + $0x108] sm:$0xff] %vm27, %v8544
  %8609 = vst.msk [vmem:[%s7 + $0x110] sm:$0xff] %vm27, %v8545
  %8610 = vst.msk [vmem:[%s7 + $0x118] sm:$0xff] %vm27, %v8546
  %8611 = vst.msk [vmem:[%s7 + $0x120] sm:$0xff] %vm27, %v8547
  %8612 = vst.msk [vmem:[%s7 + $0x128] sm:$0xff] %vm27, %v8548
  %8613 = vst.msk [vmem:[%s7 + $0x130] sm:$0xff] %vm27, %v8549
  %8614 = vst.msk [vmem:[%s7 + $0x138] sm:$0xff] %vm27, %v8550
  %8615 = vst.msk [vmem:[%s7 + $0x140] sm:$0xff] %vm27, %v8551
  %8616 = vst.msk [vmem:[%s7 + $0x148] sm:$0xff] %vm27, %v8552
  %8617 = vst.msk [vmem:[%s7 + $0x150] sm:$0xff] %vm27, %v8553
  %8618 = vst.msk [vmem:[%s7 + $0x158] sm:$0xff] %vm27, %v8554
  %8619 = vst.msk [vmem:[%s7 + $0x160] sm:$0xff] %vm27, %v8555
  %8620 = vst.msk [vmem:[%s7 + $0x168] sm:$0xff] %vm27, %v8556
  %8621 = vst.msk [vmem:[%s7 + $0x170] sm:$0xff] %vm27, %v8557
  %8622 = vst.msk [vmem:[%s7 + $0x178] sm:$0xff] %vm27, %v8558
  %8623 = vst.msk [vmem:[%s7 + $0x180] sm:$0xff] %vm27, %v8559
  %8624 = vst.msk [vmem:[%s7 + $0x188] sm:$0xff] %vm27, %v8560
  %8625 = vst.msk [vmem:[%s7 + $0x190] sm:$0xff] %vm27, %v8561
  %8626 = vst.msk [vmem:[%s7 + $0x198] sm:$0xff] %vm27, %v8562
  %8627 = vst.msk [vmem:[%s7 + $0x1a0] sm:$0xff] %vm27, %v8563
  %8628 = vst.msk [vmem:[%s7 + $0x1a8] sm:$0xff] %vm27, %v8564
  %8629 = vst.msk [vmem:[%s7 + $0x1b0] sm:$0xff] %vm27, %v8565
  %8630 = vst.msk [vmem:[%s7 + $0x1b8] sm:$0xff] %vm27, %v8566
  %8631 = vst.msk [vmem:[%s7 + $0x1c0] sm:$0xff] %vm27, %v8567
  %8632 = vst.msk [vmem:[%s7 + $0x1c8] sm:$0xff] %vm27, %v8568
  %8633 = vst.msk [vmem:[%s7 + $0x1d0] sm:$0xff] %vm27, %v8569
  %8634 = vst.msk [vmem:[%s7 + $0x1d8] sm:$0xff] %vm27, %v8570
  %8635 = vst.msk [vmem:[%s7 + $0x1e0] sm:$0xff] %vm27, %v8571
  %8636 = vst.msk [vmem:[%s7 + $0x1e8] sm:$0xff] %vm27, %v8572
  %8637 = vst.msk [vmem:[%s7 + $0x1f0] sm:$0xff] %vm27, %v8573
  %8638 = vst.msk [vmem:[%s7 + $0x1f8] sm:$0xff] %vm27, %v8574
  // Predicated region
  $region30: #{_lambda_.1} parent=0 // pred_check
    _
  $region31: #{_lambda_.1} parent=0 // pred_check_branch
    %8640 = sbr.rel (0) target = $region33
  $region32: #{_lambda_.1} parent=0 // pred_region
    _
  $region33: #{_lambda_.1} parent=0 // pred_fallthru
    _
  // Predicated region
  $region34: #{_lambda_.1} parent=0 // pred_check
    _
  $region35: #{_lambda_.1} parent=0 // pred_check_branch
    %8642 = sbr.rel (0) target = $region37
  $region36: #{_lambda_.1} parent=0 // pred_region
    _
  $region37: #{_lambda_.1} parent=0 // pred_fallthru
    _

</llo_original>
